<compile_context>
chip_gen: v6e
topology: v6e:2x2x1
jax: 0.10.0
libtpu: 0.0.40
codegen_flags: <defaults>
</compile_context>

<pallas_src>
import jax
import jax.numpy as jnp
from jax import lax
from jax.experimental import pallas as pl
from jax.experimental.pallas import tpu as pltpu


# -----------------------------------------------------------------------------
# Fused Conv1x3x1 kernel: (1x1 + ReLU) -> (3x3 "same" + ReLU) -> (1x1 + ReLU)
# -----------------------------------------------------------------------------
def _conv1x3x1_kernel(xm_ref, xt_ref, xb_ref,
                      w1_ref, b1_ref, w2c_ref, b2_ref, w3_ref, b3_ref,
                      o_ref, y1_ref):
    # xm_ref : (TH, W, Cin) bf16 -- this row-tile's input rows
    # xt_ref : (1,  W, Cin) bf16 -- row above the tile (don't-care at t == 0)
    # xb_ref : (1,  W, Cin) bf16 -- row below the tile (don't-care at t == last)
    # w1_ref : (Cin, Cm) bf16,       b1_ref: (1, Cm)   f32
    # w2c_ref: (3, 3*Cm, Cm) bf16,   b2_ref: (1, Cm)   f32   (dx-concatenated per dy)
    # w3_ref : (Cm, Cout) bf16,      b3_ref: (1, Cout) f32
    # o_ref  : (TH, W, Cout) bf16
    # y1_ref : VMEM scratch (TH+2, W, Cm) bf16 -- post-ReLU output of the first
    #          1x1 conv for the tile rows + 1-row halos (no W padding columns).
    th, w, cout = o_ref.shape
    cin = xm_ref.shape[-1]
    cm = w1_ref.shape[-1]
    r = th + 2
    t = pl.program_id(1)

    # ---- stage 1: pointwise 1x1 conv + ReLU over tile + halo rows (one matmul) --
    # TODO(synk): for the l1 block (Cin=4) a K=4 MXU matmul wastes the systolic
    #             array; a VPU broadcast-FMA path would be marginally cheaper.
    x_all = jnp.concatenate([xt_ref[...], xm_ref[...], xb_ref[...]], axis=0)
    z = jnp.dot(x_all.reshape(r * w, cin), w1_ref[...],
                preferred_element_type=jnp.float32)
    y1 = jnp.maximum(z + b1_ref[...], 0.0)
    y1_ref[...] = y1.reshape(r, w, cm).astype(y1_ref.dtype)

    # SAME padding zero-pads the (post-ReLU) input of the 3x3 conv, so halo rows
    # that fall outside the image must be zero y1.  The clamped halo fetch
    # delivered an in-image row there -- overwrite it with zeros.
    zrow = jnp.zeros((1, w, cm), y1_ref.dtype)

    @pl.when(t == 0)
    def _():
        y1_ref[0:1, :, :] = zrow

    @pl.when(t == pl.num_programs(1) - 1)
    def _():
        y1_ref[r - 1:r, :, :] = zrow

    # ---- stage 2: 3x3 "same" conv as 3 MXU matmuls with K = 3*Cm ----------------
    # Build the three dx-shifted planes once and reuse them for every dy (dy
    # slicing is a leading-dim address offset, i.e. free).
    c = y1_ref[...]                                              # dx = 1 (center)
    zcol = jnp.zeros((r, 1, cm), c.dtype)
    left = jnp.concatenate([zcol, c[:, :w - 1, :]], axis=1)      # dx = 0
    right = jnp.concatenate([c[:, 1:, :], zcol], axis=1)         # dx = 2
    planes = jnp.concatenate([left, c, right], axis=-1)          # (r, w, 3*Cm)

    acc = None
    for dy in range(3):
        lhs = planes[dy:dy + th].reshape(th * w, 3 * cm)
        part = jnp.dot(lhs, w2c_ref[dy], preferred_element_type=jnp.float32)
        acc = part if acc is None else acc + part                # value chain (MRB on v7x)
    y2 = jnp.maximum(acc + b2_ref[...], 0.0).astype(jnp.bfloat16)

    # ---- stage 3: pointwise 1x1 conv + ReLU -> output tile ----------------------
    # TODO(synk): for Cout=32/64 the store is lane-sparse (masked vst); a
    #             lane-dense (TH, W*Cout) output layout would need a
    #             sublane->lane relayout in-kernel, so it is left as-is.
    y3 = jnp.dot(y2, w3_ref[...], preferred_element_type=jnp.float32)
    y3 = jnp.maximum(y3 + b3_ref[...], 0.0)
    o_ref[...] = y3.reshape(th, w, cout).astype(o_ref.dtype)


# -----------------------------------------------------------------------------
# Tile sizing: VMEM-budget driven, generation-aware
# -----------------------------------------------------------------------------
def _vmem_caps():
    try:
        cap = int(pltpu.get_tpu_info().vmem_capacity_bytes)
    except Exception:
        cap = 64 * 1024 * 1024            # conservative (v7x-sized) fallback
    limit = int(cap * 0.9)                # scoped limit: leave runtime headroom
    budget = int(limit * 0.6)             # tiling target: stay well under limit
    return limit, budget


def _pick_row_tile(h, w, cin, cm, cout, budget_bytes):
    """Largest divisor of H whose per-step VMEM footprint fits the budget,
    capped at ~8K output pixels per step (amortizes per-grid-step overhead)."""
    def step_bytes(th):
        bf, f4 = 2, 4
        r = th + 2
        io = 2 * (th * w * cin + 2 * w * cin + th * w * cout) * bf  # dbl-buffered
        wts = 2 * ((cin * cm + 9 * cm * cm + cm * cout) * bf
                   + (3 * cm + cout) * f4)
        scr = r * w * cm * bf                                        # y1 scratch
        live = r * w * 3 * cm * bf + th * w * cm * f4 + th * w * cout * f4
        return io + wts + scr + live

    divs = sorted({d for d in range(1, h + 1) if h % d == 0}, reverse=True)
    for th in divs:
        if th * w <= 8192 and step_bytes(th) <= budget_bytes:
            return th
    return divs[-1]


# -----------------------------------------------------------------------------
# Wrapper: one pallas_call per Conv1x3x1 block (NHWC, bf16 activations)
# -----------------------------------------------------------------------------
def conv1x3x1(x_nhwc, p):
    """Fused Conv1x3x1 block. x: (N,H,W,Cin) -> (N,H,W,Cout), bf16."""
    n, h, w, cin = x_nhwc.shape
    cm = p["w1"].shape[1]
    cout = p["w3"].shape[1]
    vmem_limit, budget = _vmem_caps()
    th = _pick_row_tile(h, w, cin, cm, cout, budget)
    n_t = h // th

    x = x_nhwc.astype(jnp.bfloat16)
    w1 = p["w1"].astype(jnp.bfloat16)
    # (3,3,Cm,Cm) -> (3, 3*Cm, Cm): w2c[dy] = [W2[dy,0]; W2[dy,1]; W2[dy,2]] along K
    w2c = p["w2"].astype(jnp.bfloat16).reshape(3, 3 * cm, cm)
    w3 = p["w3"].astype(jnp.bfloat16)
    b1 = p["b1"].astype(jnp.float32).reshape(1, cm)
    b2 = p["b2"].astype(jnp.float32).reshape(1, cm)
    b3 = p["b3"].astype(jnp.float32).reshape(1, cout)

    # TODO(synk): very wide images also want a W tile (with 1-column halos);
    #             only H is tiled here.
    return pl.pallas_call(
        _conv1x3x1_kernel,
        out_shape=jax.ShapeDtypeStruct((n, h, w, cout), jnp.bfloat16),
        grid=(n, n_t),
        in_specs=[
            # this tile's rows
            pl.BlockSpec((None, th, w, cin), lambda b, t: (b, t, 0, 0)),
            # 1-row halo above / below (index clamped at the image border; the
            # kernel zeroes the corresponding y1 row there instead)
            pl.BlockSpec((None, 1, w, cin),
                         lambda b, t: (b, jnp.maximum(t * th - 1, 0), 0, 0)),
            pl.BlockSpec((None, 1, w, cin),
                         lambda b, t: (b, jnp.minimum(t * th + th, h - 1), 0, 0)),
            # weights / biases: same (resident) block every grid step
            pl.BlockSpec((cin, cm), lambda b, t: (0, 0)),
            pl.BlockSpec((1, cm), lambda b, t: (0, 0)),
            pl.BlockSpec((3, 3 * cm, cm), lambda b, t: (0, 0, 0)),
            pl.BlockSpec((1, cm), lambda b, t: (0, 0)),
            pl.BlockSpec((cm, cout), lambda b, t: (0, 0)),
            pl.BlockSpec((1, cout), lambda b, t: (0, 0)),
        ],
        out_specs=pl.BlockSpec((None, th, w, cout), lambda b, t: (b, t, 0, 0)),
        scratch_shapes=[pltpu.VMEM((th + 2, w, cm), jnp.bfloat16)],
        compiler_params=pltpu.CompilerParams(
            dimension_semantics=("parallel", "parallel"),
            vmem_limit_bytes=vmem_limit),
    )(x, x, x, w1, b1, w2c, b2, w3, b3)


def down1x3x1_nhwc(x_nhwc, params):
    """NHWC/bf16 fast path: returns (x3, [x1, x2]) in NHWC (no layout transposes)."""
    x = x_nhwc.astype(jnp.bfloat16)
    x1 = conv1x3x1(x, params["l1"])
    x2 = conv1x3x1(x1, params["l2"])
    x3 = conv1x3x1(x2, params["l3"])
    return x3, [x1, x2]


def down1x3x1(x_nchw, params):
    """Matches Down1x3x1.forward (NCHW API): returns (x3, [x1, x2]) in NCHW (bf16)."""
    # TODO(synk): the NCHW<->NHWC transposes are extra HBM passes; keep the whole
    #             UNet in NHWC/bf16 (use down1x3x1_nhwc) if the surrounding model
    #             permits.
    x = jnp.transpose(x_nchw, (0, 2, 3, 1))
    x3, (x1, x2) = down1x3x1_nhwc(x, params)
    to_nchw = lambda t: jnp.transpose(t, (0, 3, 1, 2))
    return to_nchw(x3), [to_nchw(x1), to_nchw(x2)]


# -----------------------------------------------------------------------------
# Deterministic parameter construction (weights bf16, biases f32)
# -----------------------------------------------------------------------------
def init_conv1x3x1_params(key, cin, cout):
    k1, k2, k3, kb1, kb2, kb3 = jax.random.split(key, 6)
    f32 = jnp.float32
    return {
        "w1": (jax.random.normal(k1, (cin, cout), f32) * (2.0 / cin) ** 0.5
               ).astype(jnp.bfloat16),
        "b1": 0.1 * jax.random.normal(kb1, (cout,), f32),
        "w2": (jax.random.normal(k2, (3, 3, cout, cout), f32)
               * (2.0 / (9 * cout)) ** 0.5).astype(jnp.bfloat16),
        "b2": 0.1 * jax.random.normal(kb2, (cout,), f32),
        "w3": (jax.random.normal(k3, (cout, cout), f32) * (2.0 / cout) ** 0.5
               ).astype(jnp.bfloat16),
        "b3": 0.1 * jax.random.normal(kb3, (cout,), f32),
    }


def init_down1x3x1_params(key, in_channels, out_channels):
    k1, k2, k3 = jax.random.split(key, 3)
    return {
        "l1": init_conv1x3x1_params(k1, in_channels, 64),
        "l2": init_conv1x3x1_params(k2, 64, 128),
        "l3": init_conv1x3x1_params(k3, 128, out_channels),
    }


# -----------------------------------------------------------------------------
# Pure-JAX reference (same bf16 quantization points as the kernels)
# -----------------------------------------------------------------------------
def _ref_conv1x3x1(x_nhwc, p):
    dn = ("NHWC", "HWIO", "NHWC")
    f32 = jnp.float32
    y = x_nhwc.astype(f32)
    y = lax.conv_general_dilated(y, p["w1"].astype(f32)[None, None], (1, 1),
                                 "SAME", dimension_numbers=dn) + p["b1"]
    y = jax.nn.relu(y).astype(jnp.bfloat16).astype(f32)
    y = lax.conv_general_dilated(y, p["w2"].astype(f32), (1, 1), "SAME",
                                 dimension_numbers=dn) + p["b2"]
    y = jax.nn.relu(y).astype(jnp.bfloat16).astype(f32)
    y = lax.conv_general_dilated(y, p["w3"].astype(f32)[None, None], (1, 1),
                                 "SAME", dimension_numbers=dn) + p["b3"]
    return jax.nn.relu(y).astype(jnp.bfloat16)


def _ref_down1x3x1(x_nchw, params):
    x = jnp.transpose(x_nchw, (0, 2, 3, 1)).astype(jnp.bfloat16)
    x1 = _ref_conv1x3x1(x, params["l1"])
    x2 = _ref_conv1x3x1(x1, params["l2"])
    x3 = _ref_conv1x3x1(x2, params["l3"])
    to_nchw = lambda t: jnp.transpose(t, (0, 3, 1, 2))
    return to_nchw(x3), [to_nchw(x1), to_nchw(x2)]


# -----------------------------------------------------------------------------
if __name__ == "__main__":
    key = jax.random.PRNGKey(0)
    kx, kp = jax.random.split(key)

    N, IN_CH, H, W = 2, 4, 16, 16
    OUT_CH = 32

    x = jax.random.normal(kx, (N, IN_CH, H, W), jnp.float32)
    params = init_down1x3x1_params(kp, IN_CH, OUT_CH)

    fwd = jax.jit(lambda xx: down1x3x1(xx, params))
    x3, skips = fwd(x)
    x1, x2 = skips
    jax.block_until_ready((x3, x1, x2))

    assert x1.shape == (N, 64, H, W)
    assert x2.shape == (N, 128, H, W)
    assert x3.shape == (N, OUT_CH, H, W)

    # correctness check against plain-JAX convs with matching bf16 quantization
    r3, (r1, r2) = _ref_down1x3x1(x, params)
    for got, ref in ((x1, r1), (x2, r2), (x3, r3)):
        err = float(jnp.max(jnp.abs(got.astype(jnp.float32)
                                    - ref.astype(jnp.float32))))
        assert err < 5e-2, f"max abs error too large: {err}"

    print("KERNEL_OK")
</pallas_src>

<mosaic_0001>
module attributes {stable_mosaic.version = 11 : i64} {
  func.func @_conv1x3x1_kernel(%arg0: i32, %arg1: i32, %arg2: memref<1x16x16x64xbf16, #tpu.memory_space<vmem>>, %arg3: memref<1x1x16x64xbf16, #tpu.memory_space<vmem>>, %arg4: memref<1x1x16x64xbf16, #tpu.memory_space<vmem>>, %arg5: memref<64x128xbf16, #tpu.memory_space<vmem>>, %arg6: memref<1x128xf32, #tpu.memory_space<vmem>>, %arg7: memref<3x384x128xbf16, #tpu.memory_space<vmem>>, %arg8: memref<1x128xf32, #tpu.memory_space<vmem>>, %arg9: memref<128x128xbf16, #tpu.memory_space<vmem>>, %arg10: memref<1x128xf32, #tpu.memory_space<vmem>>, %arg11: memref<1x16x16x128xbf16, #tpu.memory_space<vmem>>, %arg12: memref<18x16x128xbf16, #tpu.memory_space<vmem>>) attributes {dimension_semantics = [#tpu.dimension_semantics<parallel>, #tpu.dimension_semantics<parallel>], iteration_bounds = array<i64: 2, 1>, scalar_prefetch = 0 : i64, scratch_operands = 1 : i64, tpu.core_type = #tpu.core_type<tc>, window_params = [{transform_indices = @transform_0, window_bounds = array<i64: 1, 16, 16, 64>}, {transform_indices = @transform_1, window_bounds = array<i64: 1, 1, 16, 64>}, {transform_indices = @transform_2, window_bounds = array<i64: 1, 1, 16, 64>}, {pipeline_mode = #tpu.pipeline_mode<synchronous>, transform_indices = @transform_3, window_bounds = array<i64: 64, 128>}, {pipeline_mode = #tpu.pipeline_mode<synchronous>, transform_indices = @transform_4, window_bounds = array<i64: 1, 128>}, {pipeline_mode = #tpu.pipeline_mode<synchronous>, transform_indices = @transform_5, window_bounds = array<i64: 3, 384, 128>}, {pipeline_mode = #tpu.pipeline_mode<synchronous>, transform_indices = @transform_6, window_bounds = array<i64: 1, 128>}, {pipeline_mode = #tpu.pipeline_mode<synchronous>, transform_indices = @transform_7, window_bounds = array<i64: 128, 128>}, {pipeline_mode = #tpu.pipeline_mode<synchronous>, transform_indices = @transform_8, window_bounds = array<i64: 1, 128>}, {transform_indices = @transform_9, window_bounds = array<i64: 1, 16, 16, 128>}]} {
    %c0 = arith.constant 0 : index
    %c0_0 = arith.constant 0 : index
    %c0_1 = arith.constant 0 : index
    %c0_2 = arith.constant 0 : index
    %0 = vector.load %arg3[%c0, %c0_0, %c0_1, %c0_2] : memref<1x1x16x64xbf16, #tpu.memory_space<vmem>>, vector<1x1x16x64xbf16>
    %1 = vector.shape_cast %0 : vector<1x1x16x64xbf16> to vector<1x16x64xbf16>
    %c0_3 = arith.constant 0 : index
    %c0_4 = arith.constant 0 : index
    %c0_5 = arith.constant 0 : index
    %c0_6 = arith.constant 0 : index
    %2 = vector.load %arg2[%c0_3, %c0_4, %c0_5, %c0_6] : memref<1x16x16x64xbf16, #tpu.memory_space<vmem>>, vector<1x16x16x64xbf16>
    %3 = vector.shape_cast %2 : vector<1x16x16x64xbf16> to vector<16x16x64xbf16>
    %c0_7 = arith.constant 0 : index
    %c0_8 = arith.constant 0 : index
    %c0_9 = arith.constant 0 : index
    %c0_10 = arith.constant 0 : index
    %4 = vector.load %arg4[%c0_7, %c0_8, %c0_9, %c0_10] : memref<1x1x16x64xbf16, #tpu.memory_space<vmem>>, vector<1x1x16x64xbf16>
    %5 = vector.shape_cast %4 : vector<1x1x16x64xbf16> to vector<1x16x64xbf16>
    %6 = tpu.concatenate %1, %3, %5 in 0 : vector<1x16x64xbf16>, vector<16x16x64xbf16>, vector<1x16x64xbf16> -> vector<18x16x64xbf16>
    %7 = vector.shape_cast %6 : vector<18x16x64xbf16> to vector<288x64xbf16>
    %c0_11 = arith.constant 0 : index
    %c0_12 = arith.constant 0 : index
    %8 = vector.load %arg5[%c0_11, %c0_12] : memref<64x128xbf16, #tpu.memory_space<vmem>>, vector<64x128xbf16>
    %cst = arith.constant dense<0.000000e+00> : vector<288x128xf32>
    %9 = tpu.matmul %7, %8, %cst {dimension_numbers = #tpu.dot_dimension_numbers<[1], [0], [0], [1], [0, 0, 1, 1], [], []>} : vector<288x64xbf16>, vector<64x128xbf16>, vector<288x128xf32> -> vector<288x128xf32>
    %c0_13 = arith.constant 0 : index
    %c0_14 = arith.constant 0 : index
    %10 = vector.load %arg6[%c0_13, %c0_14] : memref<1x128xf32, #tpu.memory_space<vmem>>, vector<1x128xf32>
    %11 = vector.broadcast %10 : vector<1x128xf32> to vector<288x128xf32>
    %12 = arith.addf %9, %11 : vector<288x128xf32>
    %cst_15 = arith.constant 0.000000e+00 : f32
    %13 = vector.broadcast %cst_15 : f32 to vector<288x128xf32>
    %14 = arith.maximumf %12, %13 : vector<288x128xf32>
    %15 = vector.shape_cast %14 : vector<288x128xf32> to vector<18x16x128xf32>
    %16 = arith.truncf %15 : vector<18x16x128xf32> to vector<18x16x128xbf16>
    %c0_16 = arith.constant 0 : index
    %c0_17 = arith.constant 0 : index
    %c0_18 = arith.constant 0 : index
    %17 = vector.load %arg12[%c0_16, %c0_17, %c0_18] : memref<18x16x128xbf16, #tpu.memory_space<vmem>>, vector<18x16x128xbf16>
    tpu.vector_store %arg12[%c0_16, %c0_17, %c0_18], %16 {strides = array<i32>} : memref<18x16x128xbf16, #tpu.memory_space<vmem>>, vector<18x16x128xbf16>,
    %cst_19 = arith.constant 0.000000e+00 : bf16
    %18 = vector.broadcast %cst_19 : bf16 to vector<1x16x128xbf16>
    %c0_i32 = arith.constant 0 : i32
    %19 = arith.cmpi eq, %arg1, %c0_i32 : i32
    %20 = arith.extui %19 : i1 to i32
    %c0_i32_20 = arith.constant 0 : i32
    %21 = arith.cmpi ne, %20, %c0_i32_20 : i32
    scf.if %21 {
      %c0_50 = arith.constant 0 : index
      %c0_51 = arith.constant 0 : index
      %c0_52 = arith.constant 0 : index
      %67 = vector.load %arg12[%c0_50, %c0_51, %c0_52] : memref<18x16x128xbf16, #tpu.memory_space<vmem>>, vector<1x16x128xbf16>
      tpu.vector_store %arg12[%c0_50, %c0_51, %c0_52], %18 {strides = array<i32>} : memref<18x16x128xbf16, #tpu.memory_space<vmem>>, vector<1x16x128xbf16>,
    } else {
    }
    %c0_i32_21 = arith.constant 0 : i32
    %22 = arith.cmpi eq, %arg1, %c0_i32_21 : i32
    %23 = arith.extui %22 : i1 to i32
    %c0_i32_22 = arith.constant 0 : i32
    %24 = arith.cmpi ne, %23, %c0_i32_22 : i32
    scf.if %24 {
      %c17 = arith.constant 17 : index
      %c0_50 = arith.constant 0 : index
      %c0_51 = arith.constant 0 : index
      %67 = vector.load %arg12[%c17, %c0_50, %c0_51] : memref<18x16x128xbf16, #tpu.memory_space<vmem>>, vector<1x16x128xbf16>
      tpu.vector_store %arg12[%c17, %c0_50, %c0_51], %18 {strides = array<i32>} : memref<18x16x128xbf16, #tpu.memory_space<vmem>>, vector<1x16x128xbf16>,
    } else {
    }
    %c0_23 = arith.constant 0 : index
    %c0_24 = arith.constant 0 : index
    %c0_25 = arith.constant 0 : index
    %25 = vector.load %arg12[%c0_23, %c0_24, %c0_25] : memref<18x16x128xbf16, #tpu.memory_space<vmem>>, vector<18x16x128xbf16>
    %cst_26 = arith.constant 0.000000e+00 : bf16
    %26 = vector.broadcast %cst_26 : bf16 to vector<18x1x128xbf16>
    %27 = vector.extract_strided_slice %25 {offsets = [0, 0, 0], sizes = [18, 15, 128], strides = [1, 1, 1]} : vector<18x16x128xbf16> to vector<18x15x128xbf16>
    %28 = tpu.concatenate %26, %27 in 1 : vector<18x1x128xbf16>, vector<18x15x128xbf16> -> vector<18x16x128xbf16>
    %29 = vector.extract_strided_slice %25 {offsets = [0, 1, 0], sizes = [18, 15, 128], strides = [1, 1, 1]} : vector<18x16x128xbf16> to vector<18x15x128xbf16>
    %30 = tpu.concatenate %29, %26 in 1 : vector<18x15x128xbf16>, vector<18x1x128xbf16> -> vector<18x16x128xbf16>
    %31 = tpu.concatenate %28, %25, %30 in 2 : vector<18x16x128xbf16>, vector<18x16x128xbf16>, vector<18x16x128xbf16> -> vector<18x16x384xbf16>
    %32 = vector.extract_strided_slice %31 {offsets = [0, 0, 0], sizes = [16, 16, 384], strides = [1, 1, 1]} : vector<18x16x384xbf16> to vector<16x16x384xbf16>
    %33 = vector.shape_cast %32 : vector<16x16x384xbf16> to vector<256x384xbf16>
    %c0_27 = arith.constant 0 : index
    %c0_28 = arith.constant 0 : index
    %c0_29 = arith.constant 0 : index
    %34 = vector.load %arg7[%c0_27, %c0_28, %c0_29] : memref<3x384x128xbf16, #tpu.memory_space<vmem>>, vector<1x384x128xbf16>
    %35 = vector.shape_cast %34 : vector<1x384x128xbf16> to vector<384x128xbf16>
    %cst_30 = arith.constant dense<0.000000e+00> : vector<256x128xf32>
    %36 = tpu.matmul %33, %35, %cst_30 {dimension_numbers = #tpu.dot_dimension_numbers<[1], [0], [0], [1], [0, 0, 1, 1], [], []>} : vector<256x384xbf16>, vector<384x128xbf16>, vector<256x128xf32> -> vector<256x128xf32>
    %37 = vector.extract_strided_slice %31 {offsets = [1, 0, 0], sizes = [16, 16, 384], strides = [1, 1, 1]} : vector<18x16x384xbf16> to vector<16x16x384xbf16>
    %38 = vector.shape_cast %37 : vector<16x16x384xbf16> to vector<256x384xbf16>
    %c1 = arith.constant 1 : index
    %c0_31 = arith.constant 0 : index
    %c0_32 = arith.constant 0 : index
    %39 = vector.load %arg7[%c1, %c0_31, %c0_32] : memref<3x384x128xbf16, #tpu.memory_space<vmem>>, vector<1x384x128xbf16>
    %40 = vector.shape_cast %39 : vector<1x384x128xbf16> to vector<384x128xbf16>
    %cst_33 = arith.constant dense<0.000000e+00> : vector<256x128xf32>
    %41 = tpu.matmul %38, %40, %cst_33 {dimension_numbers = #tpu.dot_dimension_numbers<[1], [0], [0], [1], [0, 0, 1, 1], [], []>} : vector<256x384xbf16>, vector<384x128xbf16>, vector<256x128xf32> -> vector<256x128xf32>
    %42 = arith.addf %36, %41 : vector<256x128xf32>
    %43 = vector.extract_strided_slice %31 {offsets = [2, 0, 0], sizes = [16, 16, 384], strides = [1, 1, 1]} : vector<18x16x384xbf16> to vector<16x16x384xbf16>
    %44 = vector.shape_cast %43 : vector<16x16x384xbf16> to vector<256x384xbf16>
    %c2 = arith.constant 2 : index
    %c0_34 = arith.constant 0 : index
    %c0_35 = arith.constant 0 : index
    %45 = vector.load %arg7[%c2, %c0_34, %c0_35] : memref<3x384x128xbf16, #tpu.memory_space<vmem>>, vector<1x384x128xbf16>
    %46 = vector.shape_cast %45 : vector<1x384x128xbf16> to vector<384x128xbf16>
    %cst_36 = arith.constant dense<0.000000e+00> : vector<256x128xf32>
    %47 = tpu.matmul %44, %46, %cst_36 {dimension_numbers = #tpu.dot_dimension_numbers<[1], [0], [0], [1], [0, 0, 1, 1], [], []>} : vector<256x384xbf16>, vector<384x128xbf16>, vector<256x128xf32> -> vector<256x128xf32>
    %48 = arith.addf %42, %47 : vector<256x128xf32>
    %c0_37 = arith.constant 0 : index
    %c0_38 = arith.constant 0 : index
    %49 = vector.load %arg8[%c0_37, %c0_38] : memref<1x128xf32, #tpu.memory_space<vmem>>, vector<1x128xf32>
    %50 = vector.broadcast %49 : vector<1x128xf32> to vector<256x128xf32>
    %51 = arith.addf %48, %50 : vector<256x128xf32>
    %cst_39 = arith.constant 0.000000e+00 : f32
    %52 = vector.broadcast %cst_39 : f32 to vector<256x128xf32>
    %53 = arith.maximumf %51, %52 : vector<256x128xf32>
    %54 = arith.truncf %53 : vector<256x128xf32> to vector<256x128xbf16>
    %c0_40 = arith.constant 0 : index
    %c0_41 = arith.constant 0 : index
    %55 = vector.load %arg9[%c0_40, %c0_41] : memref<128x128xbf16, #tpu.memory_space<vmem>>, vector<128x128xbf16>
    %cst_42 = arith.constant dense<0.000000e+00> : vector<256x128xf32>
    %56 = tpu.matmul %54, %55, %cst_42 {dimension_numbers = #tpu.dot_dimension_numbers<[1], [0], [0], [1], [0, 0, 1, 1], [], []>} : vector<256x128xbf16>, vector<128x128xbf16>, vector<256x128xf32> -> vector<256x128xf32>
    %c0_43 = arith.constant 0 : index
    %c0_44 = arith.constant 0 : index
    %57 = vector.load %arg10[%c0_43, %c0_44] : memref<1x128xf32, #tpu.memory_space<vmem>>, vector<1x128xf32>
    %58 = vector.broadcast %57 : vector<1x128xf32> to vector<256x128xf32>
    %59 = arith.addf %56, %58 : vector<256x128xf32>
    %cst_45 = arith.constant 0.000000e+00 : f32
    %60 = vector.broadcast %cst_45 : f32 to vector<256x128xf32>
    %61 = arith.maximumf %59, %60 : vector<256x128xf32>
    %62 = vector.shape_cast %61 : vector<256x128xf32> to vector<16x16x128xf32>
    %63 = arith.truncf %62 : vector<16x16x128xf32> to vector<16x16x128xbf16>
    %c0_46 = arith.constant 0 : index
    %c0_47 = arith.constant 0 : index
    %c0_48 = arith.constant 0 : index
    %c0_49 = arith.constant 0 : index
    %64 = vector.load %arg11[%c0_46, %c0_47, %c0_48, %c0_49] : memref<1x16x16x128xbf16, #tpu.memory_space<vmem>>, vector<1x16x16x128xbf16>
    %65 = vector.shape_cast %64 : vector<1x16x16x128xbf16> to vector<16x16x128xbf16>
    %66 = vector.shape_cast %63 : vector<16x16x128xbf16> to vector<1x16x16x128xbf16>
    tpu.vector_store %arg11[%c0_46, %c0_47, %c0_48, %c0_49], %66 {strides = array<i32>} : memref<1x16x16x128xbf16, #tpu.memory_space<vmem>>, vector<1x16x16x128xbf16>,
    return
  }
  func.func @transform_0(%arg0: i32, %arg1: i32) -> (i32, i32, i32, i32) {
    %c0_i32 = arith.constant 0 : i32
    %c0_i32_0 = arith.constant 0 : i32
    %c0_i32_1 = arith.constant 0 : i32
    return %arg0, %arg1, %c0_i32, %c0_i32_0 : i32, i32, i32, i32
  }
  func.func @transform_1(%arg0: i32, %arg1: i32) -> (i32, i32, i32, i32) {
    %c16_i32 = arith.constant 16 : i32
    %0 = arith.muli %arg1, %c16_i32 : i32
    %c1_i32 = arith.constant 1 : i32
    %1 = arith.subi %0, %c1_i32 : i32
    %c0_i32 = arith.constant 0 : i32
    %2 = arith.maxsi %1, %c0_i32 : i32
    %c0_i32_0 = arith.constant 0 : i32
    %c0_i32_1 = arith.constant 0 : i32
    %c0_i32_2 = arith.constant 0 : i32
    return %arg0, %2, %c0_i32_0, %c0_i32_1 : i32, i32, i32, i32
  }
  func.func @transform_2(%arg0: i32, %arg1: i32) -> (i32, i32, i32, i32) {
    %c16_i32 = arith.constant 16 : i32
    %0 = arith.muli %arg1, %c16_i32 : i32
    %c16_i32_0 = arith.constant 16 : i32
    %1 = arith.addi %0, %c16_i32_0 : i32
    %c15_i32 = arith.constant 15 : i32
    %2 = arith.minsi %1, %c15_i32 : i32
    %c0_i32 = arith.constant 0 : i32
    %c0_i32_1 = arith.constant 0 : i32
    %c0_i32_2 = arith.constant 0 : i32
    return %arg0, %2, %c0_i32, %c0_i32_1 : i32, i32, i32, i32
  }
  func.func @transform_3(%arg0: i32, %arg1: i32) -> (i32, i32) {
    %c0_i32 = arith.constant 0 : i32
    %c0_i32_0 = arith.constant 0 : i32
    %c0_i32_1 = arith.constant 0 : i32
    return %c0_i32, %c0_i32_0 : i32, i32
  }
  func.func @transform_4(%arg0: i32, %arg1: i32) -> (i32, i32) {
    %c0_i32 = arith.constant 0 : i32
    %c0_i32_0 = arith.constant 0 : i32
    %c0_i32_1 = arith.constant 0 : i32
    return %c0_i32, %c0_i32_0 : i32, i32
  }
  func.func @transform_5(%arg0: i32, %arg1: i32) -> (i32, i32, i32) {
    %c0_i32 = arith.constant 0 : i32
    %c0_i32_0 = arith.constant 0 : i32
    %c0_i32_1 = arith.constant 0 : i32
    %c0_i32_2 = arith.constant 0 : i32
    return %c0_i32, %c0_i32_0, %c0_i32_1 : i32, i32, i32
  }
  func.func @transform_6(%arg0: i32, %arg1: i32) -> (i32, i32) {
    %c0_i32 = arith.constant 0 : i32
    %c0_i32_0 = arith.constant 0 : i32
    %c0_i32_1 = arith.constant 0 : i32
    return %c0_i32, %c0_i32_0 : i32, i32
  }
  func.func @transform_7(%arg0: i32, %arg1: i32) -> (i32, i32) {
    %c0_i32 = arith.constant 0 : i32
    %c0_i32_0 = arith.constant 0 : i32
    %c0_i32_1 = arith.constant 0 : i32
    return %c0_i32, %c0_i32_0 : i32, i32
  }
  func.func @transform_8(%arg0: i32, %arg1: i32) -> (i32, i32) {
    %c0_i32 = arith.constant 0 : i32
    %c0_i32_0 = arith.constant 0 : i32
    %c0_i32_1 = arith.constant 0 : i32
    return %c0_i32, %c0_i32_0 : i32, i32
  }
  func.func @transform_9(%arg0: i32, %arg1: i32) -> (i32, i32, i32, i32) {
    %c0_i32 = arith.constant 0 : i32
    %c0_i32_0 = arith.constant 0 : i32
    %c0_i32_1 = arith.constant 0 : i32
    return %arg0, %arg1, %c0_i32, %c0_i32_0 : i32, i32, i32, i32
  }
}

module attributes {stable_mosaic.version = 11 : i64} {
  func.func @_conv1x3x1_kernel(%arg0: i32, %arg1: i32, %arg2: memref<1x16x16x4xbf16, #tpu.memory_space<vmem>>, %arg3: memref<1x1x16x4xbf16, #tpu.memory_space<vmem>>, %arg4: memref<1x1x16x4xbf16, #tpu.memory_space<vmem>>, %arg5: memref<4x64xbf16, #tpu.memory_space<vmem>>, %arg6: memref<1x64xf32, #tpu.memory_space<vmem>>, %arg7: memref<3x192x64xbf16, #tpu.memory_space<vmem>>, %arg8: memref<1x64xf32, #tpu.memory_space<vmem>>, %arg9: memref<64x64xbf16, #tpu.memory_space<vmem>>, %arg10: memref<1x64xf32, #tpu.memory_space<vmem>>, %arg11: memref<1x16x16x64xbf16, #tpu.memory_space<vmem>>, %arg12: memref<18x16x64xbf16, #tpu.memory_space<vmem>>) attributes {dimension_semantics = [#tpu.dimension_semantics<parallel>, #tpu.dimension_semantics<parallel>], iteration_bounds = array<i64: 2, 1>, scalar_prefetch = 0 : i64, scratch_operands = 1 : i64, tpu.core_type = #tpu.core_type<tc>, window_params = [{transform_indices = @transform_0, window_bounds = array<i64: 1, 16, 16, 4>}, {transform_indices = @transform_1, window_bounds = array<i64: 1, 1, 16, 4>}, {transform_indices = @transform_2, window_bounds = array<i64: 1, 1, 16, 4>}, {pipeline_mode = #tpu.pipeline_mode<synchronous>, transform_indices = @transform_3, window_bounds = array<i64: 4, 64>}, {pipeline_mode = #tpu.pipeline_mode<synchronous>, transform_indices = @transform_4, window_bounds = array<i64: 1, 64>}, {pipeline_mode = #tpu.pipeline_mode<synchronous>, transform_indices = @transform_5, window_bounds = array<i64: 3, 192, 64>}, {pipeline_mode = #tpu.pipeline_mode<synchronous>, transform_indices = @transform_6, window_bounds = array<i64: 1, 64>}, {pipeline_mode = #tpu.pipeline_mode<synchronous>, transform_indices = @transform_7, window_bounds = array<i64: 64, 64>}, {pipeline_mode = #tpu.pipeline_mode<synchronous>, transform_indices = @transform_8, window_bounds = array<i64: 1, 64>}, {transform_indices = @transform_9, window_bounds = array<i64: 1, 16, 16, 64>}]} {
    %c0 = arith.constant 0 : index
    %c0_0 = arith.constant 0 : index
    %c0_1 = arith.constant 0 : index
    %c0_2 = arith.constant 0 : index
    %0 = vector.load %arg3[%c0, %c0_0, %c0_1, %c0_2] : memref<1x1x16x4xbf16, #tpu.memory_space<vmem>>, vector<1x1x16x4xbf16>
    %1 = vector.shape_cast %0 : vector<1x1x16x4xbf16> to vector<1x16x4xbf16>
    %c0_3 = arith.constant 0 : index
    %c0_4 = arith.constant 0 : index
    %c0_5 = arith.constant 0 : index
    %c0_6 = arith.constant 0 : index
    %2 = vector.load %arg2[%c0_3, %c0_4, %c0_5, %c0_6] : memref<1x16x16x4xbf16, #tpu.memory_space<vmem>>, vector<1x16x16x4xbf16>
    %3 = vector.shape_cast %2 : vector<1x16x16x4xbf16> to vector<16x16x4xbf16>
    %c0_7 = arith.constant 0 : index
    %c0_8 = arith.constant 0 : index
    %c0_9 = arith.constant 0 : index
    %c0_10 = arith.constant 0 : index
    %4 = vector.load %arg4[%c0_7, %c0_8, %c0_9, %c0_10] : memref<1x1x16x4xbf16, #tpu.memory_space<vmem>>, vector<1x1x16x4xbf16>
    %5 = vector.shape_cast %4 : vector<1x1x16x4xbf16> to vector<1x16x4xbf16>
    %6 = tpu.concatenate %1, %3, %5 in 0 : vector<1x16x4xbf16>, vector<16x16x4xbf16>, vector<1x16x4xbf16> -> vector<18x16x4xbf16>
    %7 = vector.shape_cast %6 : vector<18x16x4xbf16> to vector<288x4xbf16>
    %c0_11 = arith.constant 0 : index
    %c0_12 = arith.constant 0 : index
    %8 = vector.load %arg5[%c0_11, %c0_12] : memref<4x64xbf16, #tpu.memory_space<vmem>>, vector<4x64xbf16>
    %cst = arith.constant dense<0.000000e+00> : vector<288x64xf32>
    %9 = tpu.matmul %7, %8, %cst {dimension_numbers = #tpu.dot_dimension_numbers<[1], [0], [0], [1], [0, 0, 1, 1], [], []>} : vector<288x4xbf16>, vector<4x64xbf16>, vector<288x64xf32> -> vector<288x64xf32>
    %c0_13 = arith.constant 0 : index
    %c0_14 = arith.constant 0 : index
    %10 = vector.load %arg6[%c0_13, %c0_14] : memref<1x64xf32, #tpu.memory_space<vmem>>, vector<1x64xf32>
    %11 = vector.broadcast %10 : vector<1x64xf32> to vector<288x64xf32>
    %12 = arith.addf %9, %11 : vector<288x64xf32>
    %cst_15 = arith.constant 0.000000e+00 : f32
    %13 = vector.broadcast %cst_15 : f32 to vector<288x64xf32>
    %14 = arith.maximumf %12, %13 : vector<288x64xf32>
    %15 = vector.shape_cast %14 : vector<288x64xf32> to vector<18x16x64xf32>
    %16 = arith.truncf %15 : vector<18x16x64xf32> to vector<18x16x64xbf16>
    %c0_16 = arith.constant 0 : index
    %c0_17 = arith.constant 0 : index
    %c0_18 = arith.constant 0 : index
    %17 = vector.load %arg12[%c0_16, %c0_17, %c0_18] : memref<18x16x64xbf16, #tpu.memory_space<vmem>>, vector<18x16x64xbf16>
    tpu.vector_store %arg12[%c0_16, %c0_17, %c0_18], %16 {strides = array<i32>} : memref<18x16x64xbf16, #tpu.memory_space<vmem>>, vector<18x16x64xbf16>,
    %cst_19 = arith.constant 0.000000e+00 : bf16
    %18 = vector.broadcast %cst_19 : bf16 to vector<1x16x64xbf16>
    %c0_i32 = arith.constant 0 : i32
    %19 = arith.cmpi eq, %arg1, %c0_i32 : i32
    %20 = arith.extui %19 : i1 to i32
    %c0_i32_20 = arith.constant 0 : i32
    %21 = arith.cmpi ne, %20, %c0_i32_20 : i32
    scf.if %21 {
      %c0_50 = arith.constant 0 : index
      %c0_51 = arith.constant 0 : index
      %c0_52 = arith.constant 0 : index
      %67 = vector.load %arg12[%c0_50, %c0_51, %c0_52] : memref<18x16x64xbf16, #tpu.memory_space<vmem>>, vector<1x16x64xbf16>
      tpu.vector_store %arg12[%c0_50, %c0_51, %c0_52], %18 {strides = array<i32>} : memref<18x16x64xbf16, #tpu.memory_space<vmem>>, vector<1x16x64xbf16>,
    } else {
    }
    %c0_i32_21 = arith.constant 0 : i32
    %22 = arith.cmpi eq, %arg1, %c0_i32_21 : i32
    %23 = arith.extui %22 : i1 to i32
    %c0_i32_22 = arith.constant 0 : i32
    %24 = arith.cmpi ne, %23, %c0_i32_22 : i32
    scf.if %24 {
      %c17 = arith.constant 17 : index
      %c0_50 = arith.constant 0 : index
      %c0_51 = arith.constant 0 : index
      %67 = vector.load %arg12[%c17, %c0_50, %c0_51] : memref<18x16x64xbf16, #tpu.memory_space<vmem>>, vector<1x16x64xbf16>
      tpu.vector_store %arg12[%c17, %c0_50, %c0_51], %18 {strides = array<i32>} : memref<18x16x64xbf16, #tpu.memory_space<vmem>>, vector<1x16x64xbf16>,
    } else {
    }
    %c0_23 = arith.constant 0 : index
    %c0_24 = arith.constant 0 : index
    %c0_25 = arith.constant 0 : index
    %25 = vector.load %arg12[%c0_23, %c0_24, %c0_25] : memref<18x16x64xbf16, #tpu.memory_space<vmem>>, vector<18x16x64xbf16>
    %cst_26 = arith.constant 0.000000e+00 : bf16
    %26 = vector.broadcast %cst_26 : bf16 to vector<18x1x64xbf16>
    %27 = vector.extract_strided_slice %25 {offsets = [0, 0, 0], sizes = [18, 15, 64], strides = [1, 1, 1]} : vector<18x16x64xbf16> to vector<18x15x64xbf16>
    %28 = tpu.concatenate %26, %27 in 1 : vector<18x1x64xbf16>, vector<18x15x64xbf16> -> vector<18x16x64xbf16>
    %29 = vector.extract_strided_slice %25 {offsets = [0, 1, 0], sizes = [18, 15, 64], strides = [1, 1, 1]} : vector<18x16x64xbf16> to vector<18x15x64xbf16>
    %30 = tpu.concatenate %29, %26 in 1 : vector<18x15x64xbf16>, vector<18x1x64xbf16> -> vector<18x16x64xbf16>
    %31 = tpu.concatenate %28, %25, %30 in 2 : vector<18x16x64xbf16>, vector<18x16x64xbf16>, vector<18x16x64xbf16> -> vector<18x16x192xbf16>
    %32 = vector.extract_strided_slice %31 {offsets = [0, 0, 0], sizes = [16, 16, 192], strides = [1, 1, 1]} : vector<18x16x192xbf16> to vector<16x16x192xbf16>
    %33 = vector.shape_cast %32 : vector<16x16x192xbf16> to vector<256x192xbf16>
    %c0_27 = arith.constant 0 : index
    %c0_28 = arith.constant 0 : index
    %c0_29 = arith.constant 0 : index
    %34 = vector.load %arg7[%c0_27, %c0_28, %c0_29] : memref<3x192x64xbf16, #tpu.memory_space<vmem>>, vector<1x192x64xbf16>
    %35 = vector.shape_cast %34 : vector<1x192x64xbf16> to vector<192x64xbf16>
    %cst_30 = arith.constant dense<0.000000e+00> : vector<256x64xf32>
    %36 = tpu.matmul %33, %35, %cst_30 {dimension_numbers = #tpu.dot_dimension_numbers<[1], [0], [0], [1], [0, 0, 1, 1], [], []>} : vector<256x192xbf16>, vector<192x64xbf16>, vector<256x64xf32> -> vector<256x64xf32>
    %37 = vector.extract_strided_slice %31 {offsets = [1, 0, 0], sizes = [16, 16, 192], strides = [1, 1, 1]} : vector<18x16x192xbf16> to vector<16x16x192xbf16>
    %38 = vector.shape_cast %37 : vector<16x16x192xbf16> to vector<256x192xbf16>
    %c1 = arith.constant 1 : index
    %c0_31 = arith.constant 0 : index
    %c0_32 = arith.constant 0 : index
    %39 = vector.load %arg7[%c1, %c0_31, %c0_32] : memref<3x192x64xbf16, #tpu.memory_space<vmem>>, vector<1x192x64xbf16>
    %40 = vector.shape_cast %39 : vector<1x192x64xbf16> to vector<192x64xbf16>
    %cst_33 = arith.constant dense<0.000000e+00> : vector<256x64xf32>
    %41 = tpu.matmul %38, %40, %cst_33 {dimension_numbers = #tpu.dot_dimension_numbers<[1], [0], [0], [1], [0, 0, 1, 1], [], []>} : vector<256x192xbf16>, vector<192x64xbf16>, vector<256x64xf32> -> vector<256x64xf32>
    %42 = arith.addf %36, %41 : vector<256x64xf32>
    %43 = vector.extract_strided_slice %31 {offsets = [2, 0, 0], sizes = [16, 16, 192], strides = [1, 1, 1]} : vector<18x16x192xbf16> to vector<16x16x192xbf16>
    %44 = vector.shape_cast %43 : vector<16x16x192xbf16> to vector<256x192xbf16>
    %c2 = arith.constant 2 : index
    %c0_34 = arith.constant 0 : index
    %c0_35 = arith.constant 0 : index
    %45 = vector.load %arg7[%c2, %c0_34, %c0_35] : memref<3x192x64xbf16, #tpu.memory_space<vmem>>, vector<1x192x64xbf16>
    %46 = vector.shape_cast %45 : vector<1x192x64xbf16> to vector<192x64xbf16>
    %cst_36 = arith.constant dense<0.000000e+00> : vector<256x64xf32>
    %47 = tpu.matmul %44, %46, %cst_36 {dimension_numbers = #tpu.dot_dimension_numbers<[1], [0], [0], [1], [0, 0, 1, 1], [], []>} : vector<256x192xbf16>, vector<192x64xbf16>, vector<256x64xf32> -> vector<256x64xf32>
    %48 = arith.addf %42, %47 : vector<256x64xf32>
    %c0_37 = arith.constant 0 : index
    %c0_38 = arith.constant 0 : index
    %49 = vector.load %arg8[%c0_37, %c0_38] : memref<1x64xf32, #tpu.memory_space<vmem>>, vector<1x64xf32>
    %50 = vector.broadcast %49 : vector<1x64xf32> to vector<256x64xf32>
    %51 = arith.addf %48, %50 : vector<256x64xf32>
    %cst_39 = arith.constant 0.000000e+00 : f32
    %52 = vector.broadcast %cst_39 : f32 to vector<256x64xf32>
    %53 = arith.maximumf %51, %52 : vector<256x64xf32>
    %54 = arith.truncf %53 : vector<256x64xf32> to vector<256x64xbf16>
    %c0_40 = arith.constant 0 : index
    %c0_41 = arith.constant 0 : index
    %55 = vector.load %arg9[%c0_40, %c0_41] : memref<64x64xbf16, #tpu.memory_space<vmem>>, vector<64x64xbf16>
    %cst_42 = arith.constant dense<0.000000e+00> : vector<256x64xf32>
    %56 = tpu.matmul %54, %55, %cst_42 {dimension_numbers = #tpu.dot_dimension_numbers<[1], [0], [0], [1], [0, 0, 1, 1], [], []>} : vector<256x64xbf16>, vector<64x64xbf16>, vector<256x64xf32> -> vector<256x64xf32>
    %c0_43 = arith.constant 0 : index
    %c0_44 = arith.constant 0 : index
    %57 = vector.load %arg10[%c0_43, %c0_44] : memref<1x64xf32, #tpu.memory_space<vmem>>, vector<1x64xf32>
    %58 = vector.broadcast %57 : vector<1x64xf32> to vector<256x64xf32>
    %59 = arith.addf %56, %58 : vector<256x64xf32>
    %cst_45 = arith.constant 0.000000e+00 : f32
    %60 = vector.broadcast %cst_45 : f32 to vector<256x64xf32>
    %61 = arith.maximumf %59, %60 : vector<256x64xf32>
    %62 = vector.shape_cast %61 : vector<256x64xf32> to vector<16x16x64xf32>
    %63 = arith.truncf %62 : vector<16x16x64xf32> to vector<16x16x64xbf16>
    %c0_46 = arith.constant 0 : index
    %c0_47 = arith.constant 0 : index
    %c0_48 = arith.constant 0 : index
    %c0_49 = arith.constant 0 : index
    %64 = vector.load %arg11[%c0_46, %c0_47, %c0_48, %c0_49] : memref<1x16x16x64xbf16, #tpu.memory_space<vmem>>, vector<1x16x16x64xbf16>
    %65 = vector.shape_cast %64 : vector<1x16x16x64xbf16> to vector<16x16x64xbf16>
    %66 = vector.shape_cast %63 : vector<16x16x64xbf16> to vector<1x16x16x64xbf16>
    tpu.vector_store %arg11[%c0_46, %c0_47, %c0_48, %c0_49], %66 {strides = array<i32>} : memref<1x16x16x64xbf16, #tpu.memory_space<vmem>>, vector<1x16x16x64xbf16>,
    return
  }
  func.func @transform_0(%arg0: i32, %arg1: i32) -> (i32, i32, i32, i32) {
    %c0_i32 = arith.constant 0 : i32
    %c0_i32_0 = arith.constant 0 : i32
    %c0_i32_1 = arith.constant 0 : i32
    return %arg0, %arg1, %c0_i32, %c0_i32_0 : i32, i32, i32, i32
  }
  func.func @transform_1(%arg0: i32, %arg1: i32) -> (i32, i32, i32, i32) {
    %c16_i32 = arith.constant 16 : i32
    %0 = arith.muli %arg1, %c16_i32 : i32
    %c1_i32 = arith.constant 1 : i32
    %1 = arith.subi %0, %c1_i32 : i32
    %c0_i32 = arith.constant 0 : i32
    %2 = arith.maxsi %1, %c0_i32 : i32
    %c0_i32_0 = arith.constant 0 : i32
    %c0_i32_1 = arith.constant 0 : i32
    %c0_i32_2 = arith.constant 0 : i32
    return %arg0, %2, %c0_i32_0, %c0_i32_1 : i32, i32, i32, i32
  }
  func.func @transform_2(%arg0: i32, %arg1: i32) -> (i32, i32, i32, i32) {
    %c16_i32 = arith.constant 16 : i32
    %0 = arith.muli %arg1, %c16_i32 : i32
    %c16_i32_0 = arith.constant 16 : i32
    %1 = arith.addi %0, %c16_i32_0 : i32
    %c15_i32 = arith.constant 15 : i32
    %2 = arith.minsi %1, %c15_i32 : i32
    %c0_i32 = arith.constant 0 : i32
    %c0_i32_1 = arith.constant 0 : i32
    %c0_i32_2 = arith.constant 0 : i32
    return %arg0, %2, %c0_i32, %c0_i32_1 : i32, i32, i32, i32
  }
  func.func @transform_3(%arg0: i32, %arg1: i32) -> (i32, i32) {
    %c0_i32 = arith.constant 0 : i32
    %c0_i32_0 = arith.constant 0 : i32
    %c0_i32_1 = arith.constant 0 : i32
    return %c0_i32, %c0_i32_0 : i32, i32
  }
  func.func @transform_4(%arg0: i32, %arg1: i32) -> (i32, i32) {
    %c0_i32 = arith.constant 0 : i32
    %c0_i32_0 = arith.constant 0 : i32
    %c0_i32_1 = arith.constant 0 : i32
    return %c0_i32, %c0_i32_0 : i32, i32
  }
  func.func @transform_5(%arg0: i32, %arg1: i32) -> (i32, i32, i32) {
    %c0_i32 = arith.constant 0 : i32
    %c0_i32_0 = arith.constant 0 : i32
    %c0_i32_1 = arith.constant 0 : i32
    %c0_i32_2 = arith.constant 0 : i32
    return %c0_i32, %c0_i32_0, %c0_i32_1 : i32, i32, i32
  }
  func.func @transform_6(%arg0: i32, %arg1: i32) -> (i32, i32) {
    %c0_i32 = arith.constant 0 : i32
    %c0_i32_0 = arith.constant 0 : i32
    %c0_i32_1 = arith.constant 0 : i32
    return %c0_i32, %c0_i32_0 : i32, i32
  }
  func.func @transform_7(%arg0: i32, %arg1: i32) -> (i32, i32) {
    %c0_i32 = arith.constant 0 : i32
    %c0_i32_0 = arith.constant 0 : i32
    %c0_i32_1 = arith.constant 0 : i32
    return %c0_i32, %c0_i32_0 : i32, i32
  }
  func.func @transform_8(%arg0: i32, %arg1: i32) -> (i32, i32) {
    %c0_i32 = arith.constant 0 : i32
    %c0_i32_0 = arith.constant 0 : i32
    %c0_i32_1 = arith.constant 0 : i32
    return %c0_i32, %c0_i32_0 : i32, i32
  }
  func.func @transform_9(%arg0: i32, %arg1: i32) -> (i32, i32, i32, i32) {
    %c0_i32 = arith.constant 0 : i32
    %c0_i32_0 = arith.constant 0 : i32
    %c0_i32_1 = arith.constant 0 : i32
    return %arg0, %arg1, %c0_i32, %c0_i32_0 : i32, i32, i32, i32
  }
}

module attributes {stable_mosaic.version = 11 : i64} {
  func.func @_conv1x3x1_kernel(%arg0: i32, %arg1: i32, %arg2: memref<1x16x16x128xbf16, #tpu.memory_space<vmem>>, %arg3: memref<1x1x16x128xbf16, #tpu.memory_space<vmem>>, %arg4: memref<1x1x16x128xbf16, #tpu.memory_space<vmem>>, %arg5: memref<128x32xbf16, #tpu.memory_space<vmem>>, %arg6: memref<1x32xf32, #tpu.memory_space<vmem>>, %arg7: memref<3x96x32xbf16, #tpu.memory_space<vmem>>, %arg8: memref<1x32xf32, #tpu.memory_space<vmem>>, %arg9: memref<32x32xbf16, #tpu.memory_space<vmem>>, %arg10: memref<1x32xf32, #tpu.memory_space<vmem>>, %arg11: memref<1x16x16x32xbf16, #tpu.memory_space<vmem>>, %arg12: memref<18x16x32xbf16, #tpu.memory_space<vmem>>) attributes {dimension_semantics = [#tpu.dimension_semantics<parallel>, #tpu.dimension_semantics<parallel>], iteration_bounds = array<i64: 2, 1>, scalar_prefetch = 0 : i64, scratch_operands = 1 : i64, tpu.core_type = #tpu.core_type<tc>, window_params = [{transform_indices = @transform_0, window_bounds = array<i64: 1, 16, 16, 128>}, {transform_indices = @transform_1, window_bounds = array<i64: 1, 1, 16, 128>}, {transform_indices = @transform_2, window_bounds = array<i64: 1, 1, 16, 128>}, {pipeline_mode = #tpu.pipeline_mode<synchronous>, transform_indices = @transform_3, window_bounds = array<i64: 128, 32>}, {pipeline_mode = #tpu.pipeline_mode<synchronous>, transform_indices = @transform_4, window_bounds = array<i64: 1, 32>}, {pipeline_mode = #tpu.pipeline_mode<synchronous>, transform_indices = @transform_5, window_bounds = array<i64: 3, 96, 32>}, {pipeline_mode = #tpu.pipeline_mode<synchronous>, transform_indices = @transform_6, window_bounds = array<i64: 1, 32>}, {pipeline_mode = #tpu.pipeline_mode<synchronous>, transform_indices = @transform_7, window_bounds = array<i64: 32, 32>}, {pipeline_mode = #tpu.pipeline_mode<synchronous>, transform_indices = @transform_8, window_bounds = array<i64: 1, 32>}, {transform_indices = @transform_9, window_bounds = array<i64: 1, 16, 16, 32>}]} {
    %c0 = arith.constant 0 : index
    %c0_0 = arith.constant 0 : index
    %c0_1 = arith.constant 0 : index
    %c0_2 = arith.constant 0 : index
    %0 = vector.load %arg3[%c0, %c0_0, %c0_1, %c0_2] : memref<1x1x16x128xbf16, #tpu.memory_space<vmem>>, vector<1x1x16x128xbf16>
    %1 = vector.shape_cast %0 : vector<1x1x16x128xbf16> to vector<1x16x128xbf16>
    %c0_3 = arith.constant 0 : index
    %c0_4 = arith.constant 0 : index
    %c0_5 = arith.constant 0 : index
    %c0_6 = arith.constant 0 : index
    %2 = vector.load %arg2[%c0_3, %c0_4, %c0_5, %c0_6] : memref<1x16x16x128xbf16, #tpu.memory_space<vmem>>, vector<1x16x16x128xbf16>
    %3 = vector.shape_cast %2 : vector<1x16x16x128xbf16> to vector<16x16x128xbf16>
    %c0_7 = arith.constant 0 : index
    %c0_8 = arith.constant 0 : index
    %c0_9 = arith.constant 0 : index
    %c0_10 = arith.constant 0 : index
    %4 = vector.load %arg4[%c0_7, %c0_8, %c0_9, %c0_10] : memref<1x1x16x128xbf16, #tpu.memory_space<vmem>>, vector<1x1x16x128xbf16>
    %5 = vector.shape_cast %4 : vector<1x1x16x128xbf16> to vector<1x16x128xbf16>
    %6 = tpu.concatenate %1, %3, %5 in 0 : vector<1x16x128xbf16>, vector<16x16x128xbf16>, vector<1x16x128xbf16> -> vector<18x16x128xbf16>
    %7 = vector.shape_cast %6 : vector<18x16x128xbf16> to vector<288x128xbf16>
    %c0_11 = arith.constant 0 : index
    %c0_12 = arith.constant 0 : index
    %8 = vector.load %arg5[%c0_11, %c0_12] : memref<128x32xbf16, #tpu.memory_space<vmem>>, vector<128x32xbf16>
    %cst = arith.constant dense<0.000000e+00> : vector<288x32xf32>
    %9 = tpu.matmul %7, %8, %cst {dimension_numbers = #tpu.dot_dimension_numbers<[1], [0], [0], [1], [0, 0, 1, 1], [], []>} : vector<288x128xbf16>, vector<128x32xbf16>, vector<288x32xf32> -> vector<288x32xf32>
    %c0_13 = arith.constant 0 : index
    %c0_14 = arith.constant 0 : index
    %10 = vector.load %arg6[%c0_13, %c0_14] : memref<1x32xf32, #tpu.memory_space<vmem>>, vector<1x32xf32>
    %11 = vector.broadcast %10 : vector<1x32xf32> to vector<288x32xf32>
    %12 = arith.addf %9, %11 : vector<288x32xf32>
    %cst_15 = arith.constant 0.000000e+00 : f32
    %13 = vector.broadcast %cst_15 : f32 to vector<288x32xf32>
    %14 = arith.maximumf %12, %13 : vector<288x32xf32>
    %15 = vector.shape_cast %14 : vector<288x32xf32> to vector<18x16x32xf32>
    %16 = arith.truncf %15 : vector<18x16x32xf32> to vector<18x16x32xbf16>
    %c0_16 = arith.constant 0 : index
    %c0_17 = arith.constant 0 : index
    %c0_18 = arith.constant 0 : index
    %17 = vector.load %arg12[%c0_16, %c0_17, %c0_18] : memref<18x16x32xbf16, #tpu.memory_space<vmem>>, vector<18x16x32xbf16>
    tpu.vector_store %arg12[%c0_16, %c0_17, %c0_18], %16 {strides = array<i32>} : memref<18x16x32xbf16, #tpu.memory_space<vmem>>, vector<18x16x32xbf16>,
    %cst_19 = arith.constant 0.000000e+00 : bf16
    %18 = vector.broadcast %cst_19 : bf16 to vector<1x16x32xbf16>
    %c0_i32 = arith.constant 0 : i32
    %19 = arith.cmpi eq, %arg1, %c0_i32 : i32
    %20 = arith.extui %19 : i1 to i32
    %c0_i32_20 = arith.constant 0 : i32
    %21 = arith.cmpi ne, %20, %c0_i32_20 : i32
    scf.if %21 {
      %c0_50 = arith.constant 0 : index
      %c0_51 = arith.constant 0 : index
      %c0_52 = arith.constant 0 : index
      %67 = vector.load %arg12[%c0_50, %c0_51, %c0_52] : memref<18x16x32xbf16, #tpu.memory_space<vmem>>, vector<1x16x32xbf16>
      tpu.vector_store %arg12[%c0_50, %c0_51, %c0_52], %18 {strides = array<i32>} : memref<18x16x32xbf16, #tpu.memory_space<vmem>>, vector<1x16x32xbf16>,
    } else {
    }
    %c0_i32_21 = arith.constant 0 : i32
    %22 = arith.cmpi eq, %arg1, %c0_i32_21 : i32
    %23 = arith.extui %22 : i1 to i32
    %c0_i32_22 = arith.constant 0 : i32
    %24 = arith.cmpi ne, %23, %c0_i32_22 : i32
    scf.if %24 {
      %c17 = arith.constant 17 : index
      %c0_50 = arith.constant 0 : index
      %c0_51 = arith.constant 0 : index
      %67 = vector.load %arg12[%c17, %c0_50, %c0_51] : memref<18x16x32xbf16, #tpu.memory_space<vmem>>, vector<1x16x32xbf16>
      tpu.vector_store %arg12[%c17, %c0_50, %c0_51], %18 {strides = array<i32>} : memref<18x16x32xbf16, #tpu.memory_space<vmem>>, vector<1x16x32xbf16>,
    } else {
    }
    %c0_23 = arith.constant 0 : index
    %c0_24 = arith.constant 0 : index
    %c0_25 = arith.constant 0 : index
    %25 = vector.load %arg12[%c0_23, %c0_24, %c0_25] : memref<18x16x32xbf16, #tpu.memory_space<vmem>>, vector<18x16x32xbf16>
    %cst_26 = arith.constant 0.000000e+00 : bf16
    %26 = vector.broadcast %cst_26 : bf16 to vector<18x1x32xbf16>
    %27 = vector.extract_strided_slice %25 {offsets = [0, 0, 0], sizes = [18, 15, 32], strides = [1, 1, 1]} : vector<18x16x32xbf16> to vector<18x15x32xbf16>
    %28 = tpu.concatenate %26, %27 in 1 : vector<18x1x32xbf16>, vector<18x15x32xbf16> -> vector<18x16x32xbf16>
    %29 = vector.extract_strided_slice %25 {offsets = [0, 1, 0], sizes = [18, 15, 32], strides = [1, 1, 1]} : vector<18x16x32xbf16> to vector<18x15x32xbf16>
    %30 = tpu.concatenate %29, %26 in 1 : vector<18x15x32xbf16>, vector<18x1x32xbf16> -> vector<18x16x32xbf16>
    %31 = tpu.concatenate %28, %25, %30 in 2 : vector<18x16x32xbf16>, vector<18x16x32xbf16>, vector<18x16x32xbf16> -> vector<18x16x96xbf16>
    %32 = vector.extract_strided_slice %31 {offsets = [0, 0, 0], sizes = [16, 16, 96], strides = [1, 1, 1]} : vector<18x16x96xbf16> to vector<16x16x96xbf16>
    %33 = vector.shape_cast %32 : vector<16x16x96xbf16> to vector<256x96xbf16>
    %c0_27 = arith.constant 0 : index
    %c0_28 = arith.constant 0 : index
    %c0_29 = arith.constant 0 : index
    %34 = vector.load %arg7[%c0_27, %c0_28, %c0_29] : memref<3x96x32xbf16, #tpu.memory_space<vmem>>, vector<1x96x32xbf16>
    %35 = vector.shape_cast %34 : vector<1x96x32xbf16> to vector<96x32xbf16>
    %cst_30 = arith.constant dense<0.000000e+00> : vector<256x32xf32>
    %36 = tpu.matmul %33, %35, %cst_30 {dimension_numbers = #tpu.dot_dimension_numbers<[1], [0], [0], [1], [0, 0, 1, 1], [], []>} : vector<256x96xbf16>, vector<96x32xbf16>, vector<256x32xf32> -> vector<256x32xf32>
    %37 = vector.extract_strided_slice %31 {offsets = [1, 0, 0], sizes = [16, 16, 96], strides = [1, 1, 1]} : vector<18x16x96xbf16> to vector<16x16x96xbf16>
    %38 = vector.shape_cast %37 : vector<16x16x96xbf16> to vector<256x96xbf16>
    %c1 = arith.constant 1 : index
    %c0_31 = arith.constant 0 : index
    %c0_32 = arith.constant 0 : index
    %39 = vector.load %arg7[%c1, %c0_31, %c0_32] : memref<3x96x32xbf16, #tpu.memory_space<vmem>>, vector<1x96x32xbf16>
    %40 = vector.shape_cast %39 : vector<1x96x32xbf16> to vector<96x32xbf16>
    %cst_33 = arith.constant dense<0.000000e+00> : vector<256x32xf32>
    %41 = tpu.matmul %38, %40, %cst_33 {dimension_numbers = #tpu.dot_dimension_numbers<[1], [0], [0], [1], [0, 0, 1, 1], [], []>} : vector<256x96xbf16>, vector<96x32xbf16>, vector<256x32xf32> -> vector<256x32xf32>
    %42 = arith.addf %36, %41 : vector<256x32xf32>
    %43 = vector.extract_strided_slice %31 {offsets = [2, 0, 0], sizes = [16, 16, 96], strides = [1, 1, 1]} : vector<18x16x96xbf16> to vector<16x16x96xbf16>
    %44 = vector.shape_cast %43 : vector<16x16x96xbf16> to vector<256x96xbf16>
    %c2 = arith.constant 2 : index
    %c0_34 = arith.constant 0 : index
    %c0_35 = arith.constant 0 : index
    %45 = vector.load %arg7[%c2, %c0_34, %c0_35] : memref<3x96x32xbf16, #tpu.memory_space<vmem>>, vector<1x96x32xbf16>
    %46 = vector.shape_cast %45 : vector<1x96x32xbf16> to vector<96x32xbf16>
    %cst_36 = arith.constant dense<0.000000e+00> : vector<256x32xf32>
    %47 = tpu.matmul %44, %46, %cst_36 {dimension_numbers = #tpu.dot_dimension_numbers<[1], [0], [0], [1], [0, 0, 1, 1], [], []>} : vector<256x96xbf16>, vector<96x32xbf16>, vector<256x32xf32> -> vector<256x32xf32>
    %48 = arith.addf %42, %47 : vector<256x32xf32>
    %c0_37 = arith.constant 0 : index
    %c0_38 = arith.constant 0 : index
    %49 = vector.load %arg8[%c0_37, %c0_38] : memref<1x32xf32, #tpu.memory_space<vmem>>, vector<1x32xf32>
    %50 = vector.broadcast %49 : vector<1x32xf32> to vector<256x32xf32>
    %51 = arith.addf %48, %50 : vector<256x32xf32>
    %cst_39 = arith.constant 0.000000e+00 : f32
    %52 = vector.broadcast %cst_39 : f32 to vector<256x32xf32>
    %53 = arith.maximumf %51, %52 : vector<256x32xf32>
    %54 = arith.truncf %53 : vector<256x32xf32> to vector<256x32xbf16>
    %c0_40 = arith.constant 0 : index
    %c0_41 = arith.constant 0 : index
    %55 = vector.load %arg9[%c0_40, %c0_41] : memref<32x32xbf16, #tpu.memory_space<vmem>>, vector<32x32xbf16>
    %cst_42 = arith.constant dense<0.000000e+00> : vector<256x32xf32>
    %56 = tpu.matmul %54, %55, %cst_42 {dimension_numbers = #tpu.dot_dimension_numbers<[1], [0], [0], [1], [0, 0, 1, 1], [], []>} : vector<256x32xbf16>, vector<32x32xbf16>, vector<256x32xf32> -> vector<256x32xf32>
    %c0_43 = arith.constant 0 : index
    %c0_44 = arith.constant 0 : index
    %57 = vector.load %arg10[%c0_43, %c0_44] : memref<1x32xf32, #tpu.memory_space<vmem>>, vector<1x32xf32>
    %58 = vector.broadcast %57 : vector<1x32xf32> to vector<256x32xf32>
    %59 = arith.addf %56, %58 : vector<256x32xf32>
    %cst_45 = arith.constant 0.000000e+00 : f32
    %60 = vector.broadcast %cst_45 : f32 to vector<256x32xf32>
    %61 = arith.maximumf %59, %60 : vector<256x32xf32>
    %62 = vector.shape_cast %61 : vector<256x32xf32> to vector<16x16x32xf32>
    %63 = arith.truncf %62 : vector<16x16x32xf32> to vector<16x16x32xbf16>
    %c0_46 = arith.constant 0 : index
    %c0_47 = arith.constant 0 : index
    %c0_48 = arith.constant 0 : index
    %c0_49 = arith.constant 0 : index
    %64 = vector.load %arg11[%c0_46, %c0_47, %c0_48, %c0_49] : memref<1x16x16x32xbf16, #tpu.memory_space<vmem>>, vector<1x16x16x32xbf16>
    %65 = vector.shape_cast %64 : vector<1x16x16x32xbf16> to vector<16x16x32xbf16>
    %66 = vector.shape_cast %63 : vector<16x16x32xbf16> to vector<1x16x16x32xbf16>
    tpu.vector_store %arg11[%c0_46, %c0_47, %c0_48, %c0_49], %66 {strides = array<i32>} : memref<1x16x16x32xbf16, #tpu.memory_space<vmem>>, vector<1x16x16x32xbf16>,
    return
  }
  func.func @transform_0(%arg0: i32, %arg1: i32) -> (i32, i32, i32, i32) {
    %c0_i32 = arith.constant 0 : i32
    %c0_i32_0 = arith.constant 0 : i32
    %c0_i32_1 = arith.constant 0 : i32
    return %arg0, %arg1, %c0_i32, %c0_i32_0 : i32, i32, i32, i32
  }
  func.func @transform_1(%arg0: i32, %arg1: i32) -> (i32, i32, i32, i32) {
    %c16_i32 = arith.constant 16 : i32
    %0 = arith.muli %arg1, %c16_i32 : i32
    %c1_i32 = arith.constant 1 : i32
    %1 = arith.subi %0, %c1_i32 : i32
    %c0_i32 = arith.constant 0 : i32
    %2 = arith.maxsi %1, %c0_i32 : i32
    %c0_i32_0 = arith.constant 0 : i32
    %c0_i32_1 = arith.constant 0 : i32
    %c0_i32_2 = arith.constant 0 : i32
    return %arg0, %2, %c0_i32_0, %c0_i32_1 : i32, i32, i32, i32
  }
  func.func @transform_2(%arg0: i32, %arg1: i32) -> (i32, i32, i32, i32) {
    %c16_i32 = arith.constant 16 : i32
    %0 = arith.muli %arg1, %c16_i32 : i32
    %c16_i32_0 = arith.constant 16 : i32
    %1 = arith.addi %0, %c16_i32_0 : i32
    %c15_i32 = arith.constant 15 : i32
    %2 = arith.minsi %1, %c15_i32 : i32
    %c0_i32 = arith.constant 0 : i32
    %c0_i32_1 = arith.constant 0 : i32
    %c0_i32_2 = arith.constant 0 : i32
    return %arg0, %2, %c0_i32, %c0_i32_1 : i32, i32, i32, i32
  }
  func.func @transform_3(%arg0: i32, %arg1: i32) -> (i32, i32) {
    %c0_i32 = arith.constant 0 : i32
    %c0_i32_0 = arith.constant 0 : i32
    %c0_i32_1 = arith.constant 0 : i32
    return %c0_i32, %c0_i32_0 : i32, i32
  }
  func.func @transform_4(%arg0: i32, %arg1: i32) -> (i32, i32) {
    %c0_i32 = arith.constant 0 : i32
    %c0_i32_0 = arith.constant 0 : i32
    %c0_i32_1 = arith.constant 0 : i32
    return %c0_i32, %c0_i32_0 : i32, i32
  }
  func.func @transform_5(%arg0: i32, %arg1: i32) -> (i32, i32, i32) {
    %c0_i32 = arith.constant 0 : i32
    %c0_i32_0 = arith.constant 0 : i32
    %c0_i32_1 = arith.constant 0 : i32
    %c0_i32_2 = arith.constant 0 : i32
    return %c0_i32, %c0_i32_0, %c0_i32_1 : i32, i32, i32
  }
  func.func @transform_6(%arg0: i32, %arg1: i32) -> (i32, i32) {
    %c0_i32 = arith.constant 0 : i32
    %c0_i32_0 = arith.constant 0 : i32
    %c0_i32_1 = arith.constant 0 : i32
    return %c0_i32, %c0_i32_0 : i32, i32
  }
  func.func @transform_7(%arg0: i32, %arg1: i32) -> (i32, i32) {
    %c0_i32 = arith.constant 0 : i32
    %c0_i32_0 = arith.constant 0 : i32
    %c0_i32_1 = arith.constant 0 : i32
    return %c0_i32, %c0_i32_0 : i32, i32
  }
  func.func @transform_8(%arg0: i32, %arg1: i32) -> (i32, i32) {
    %c0_i32 = arith.constant 0 : i32
    %c0_i32_0 = arith.constant 0 : i32
    %c0_i32_1 = arith.constant 0 : i32
    return %c0_i32, %c0_i32_0 : i32, i32
  }
  func.func @transform_9(%arg0: i32, %arg1: i32) -> (i32, i32, i32, i32) {
    %c0_i32 = arith.constant 0 : i32
    %c0_i32_0 = arith.constant 0 : i32
    %c0_i32_1 = arith.constant 0 : i32
    return %arg0, %arg1, %c0_i32, %c0_i32_0 : i32, i32, i32, i32
  }
}

</mosaic_0001>

<llo_original>
// kernel: _lambda_.3
$region0: #{_lambda_.3}
  #allocation0 [shape = 'u32[]', space=smem, size = 0x4, offset = 0x4, fixed_abs, tag = 'smem constant byte address 0x4 - core index']
  #allocation1 [shape = 'u32[144,128]{1,0:T(1,128)}', space=vmem, size = 0x12000, scoped, tag = 'internal scratch']
  #allocation2 [shape = 'bf16[18,16,64]{2,1,0:T(8,128)(2,1)}', space=vmem, size = 0x12000, scoped, tag = 'scratch operand']
  %s0 = inlined_call_operand.vmem [shape: bf16[2,16,16,4], index: 0, kind: input, shape index: {}, may-alias: {0,1,2}]
  %s1 = inlined_call_operand.vmem [shape: bf16[2,16,16,4], index: 1, kind: input, shape index: {}, may-alias: {0,1,2}]
  %s2 = inlined_call_operand.vmem [shape: bf16[2,16,16,4], index: 2, kind: input, shape index: {}, may-alias: {0,1,2}]
  %s3 = inlined_call_operand.vmem [shape: bf16[4,64], index: 3, kind: input, shape index: {}]
  %s4 = inlined_call_operand.vmem [shape: f32[1,64], index: 4, kind: input, shape index: {}]
  %s5 = inlined_call_operand.vmem [shape: bf16[3,192,64], index: 5, kind: input, shape index: {}]
  %s6 = inlined_call_operand.vmem [shape: f32[1,64], index: 6, kind: input, shape index: {}]
  %s7 = inlined_call_operand.vmem [shape: bf16[64,64], index: 7, kind: input, shape index: {}]
  %s8 = inlined_call_operand.vmem [shape: f32[1,64], index: 8, kind: input, shape index: {}]
  %s9 = inlined_call_operand.vmem [shape: bf16[2,16,16,64], index: 9, kind: output, shape index: {}]
  %s10 = sld [smem:[#allocation0]]
  $region73: #{_lambda_.3} parent=0
    _
  %s12 = ssub.s32 1, %s10
  %s13 = scalar_select 0, %s12, %s10
  loop: start=0, step=1, limit=4
  $region2: #{_lambda_.3} parent=0 // loop_pre_header
    _
  $region3: #{_lambda_.3} parent=0 // loop_header
    %s15 = sphi 0, %s19
    %p16 = scmp.ge.s32.totalorder %s15, 4
    %s22 = sphi 0, %s34
    %s23 = sphi 0, %s30
    %s24 = sphi 0, %s22
    %s25 = sphi 0, %s23
    %s26 = sphi 0, %s24
    %s27 = sphi 0, %s25
    %s39 = sphi 0, %s41
    %s42 = sphi 0, %s39
    %s43 = sphi 0, %s42
    %s59 = sphi 0, %s43
    %s75 = sphi 0, %s77
    %s78 = sphi 0, %s75
    %s79 = sphi 0, %s78
    %s95 = sphi 0, %s79
    %s111 = sphi 0, %s113
    %s114 = sphi 0, %s111
    %s115 = sphi 0, %s114
    %s131 = sphi 0, %s115
    %s135 = sphi 0, %s135
    %s137 = sphi 0, %s135
    %s138 = sphi 0, %s137
    %s152 = sphi 0, %s138
    %s156 = sphi 0, %s156
    %s158 = sphi 0, %s156
    %s159 = sphi 0, %s158
    %s173 = sphi 0, %s159
    %s177 = sphi 0, %s177
    %s179 = sphi 0, %s177
    %s180 = sphi 0, %s179
    %s194 = sphi 0, %s180
    %s198 = sphi 0, %s198
    %s200 = sphi 0, %s198
    %s201 = sphi 0, %s200
    %s215 = sphi 0, %s201
    %s219 = sphi 0, %s219
    %s221 = sphi 0, %s219
    %s222 = sphi 0, %s221
    %s236 = sphi 0, %s222
    %s240 = sphi 0, %s240
    %s242 = sphi 0, %s240
    %s243 = sphi 0, %s242
    %s257 = sphi 0, %s243
    %s265 = sphi 0, %s267
    %s268 = sphi 0, %s265
    %s269 = sphi 0, %s268
    %s285 = sphi 0, %s269
  $region4: #{_lambda_.3} parent=0 // loop_header_branch
    %18 = sbr.rel (%p16) target = $region8
  $region5: #{_lambda_.3} parent=0 // loop_body
    %s20 = ssub.s32 %s15, 1
    %s21 = ssub.s32 %s15, 2
    %s28 = sadd.s32 1, %s23
    %p29 = scmp.ge.s32.totalorder %s28, 1
    %s30 = scalar_select %p29, 0, %s28
    %s31 = sadd.s32 1, %s22
    %s32 = scalar_select %p29, %s31, %s22
    %p33 = scmp.ge.s32.totalorder %s32, 2
    %s34 = scalar_select %p33, 0, %s32
    %s35 = ssub.s32 %s22, %s34
    %s36 = ssub.s32 %s23, %s30
    %s37 = sor.u32 %s35, %s36
    %p38 = scmp.eq.s32.totalorder %s37, 0
    %s40 = sadd.s32 %s39, 1
    %s41 = scalar_select %p38, %s39, %s40
    %p44 = pneg %p38
    %p45 = scmp.eq.s32.totalorder %s15, 1
    %p46 = por %p44, %p45
    %p47 = scmp.ne.s32.totalorder %s39, %s42
    %p48 = scmp.eq.s32.totalorder %s15, 0
    %p49 = por %p47, %p48
    %p50 = scmp.ne.s32.totalorder %s39, %s42
    %p51 = scmp.eq.s32.totalorder %s20, 1
    %p52 = por %p50, %p51
    %p53 = scmp.ne.s32.totalorder %s42, %s43
    %p54 = scmp.eq.s32.totalorder %s20, 0
    %p55 = por %p53, %p54
    %p56 = scmp.ne.s32.totalorder %s42, %s43
    %p57 = scmp.eq.s32.totalorder %s21, 1
    %p58 = por %p56, %p57
    %p60 = scmp.ne.s32.totalorder %s43, %s59
    %p61 = scmp.eq.s32.totalorder %s21, 0
    %p62 = por %p60, %p61
    %s63 = smul.u32 %s23, 16
    %s64 = ssub.s32 %s63, 1
    %p65 = scmp.gt.s32.totalorder %s64, 0
    %s66 = scalar_select %p65, %s64, 0
    %s67 = smul.u32 %s30, 16
    %s68 = ssub.s32 %s67, 1
    %p69 = scmp.gt.s32.totalorder %s68, 0
    %s70 = scalar_select %p69, %s68, 0
    %s71 = ssub.s32 %s22, %s34
    %s72 = ssub.s32 %s66, %s70
    %s73 = sor.u32 %s71, %s72
    %p74 = scmp.eq.s32.totalorder %s73, 0
    %s76 = sadd.s32 %s75, 1
    %s77 = scalar_select %p74, %s75, %s76
    %p80 = pneg %p74
    %p81 = scmp.eq.s32.totalorder %s15, 1
    %p82 = por %p80, %p81
    %p83 = scmp.ne.s32.totalorder %s75, %s78
    %p84 = scmp.eq.s32.totalorder %s15, 0
    %p85 = por %p83, %p84
    %p86 = scmp.ne.s32.totalorder %s75, %s78
    %p87 = scmp.eq.s32.totalorder %s20, 1
    %p88 = por %p86, %p87
    %p89 = scmp.ne.s32.totalorder %s78, %s79
    %p90 = scmp.eq.s32.totalorder %s20, 0
    %p91 = por %p89, %p90
    %p92 = scmp.ne.s32.totalorder %s78, %s79
    %p93 = scmp.eq.s32.totalorder %s21, 1
    %p94 = por %p92, %p93
    %p96 = scmp.ne.s32.totalorder %s79, %s95
    %p97 = scmp.eq.s32.totalorder %s21, 0
    %p98 = por %p96, %p97
    %s99 = smul.u32 %s23, 16
    %s100 = sadd.s32 %s99, 16
    %p101 = scmp.lt.s32.totalorder %s100, 15
    %s102 = scalar_select %p101, %s100, 15
    %s103 = smul.u32 %s30, 16
    %s104 = sadd.s32 %s103, 16
    %p105 = scmp.lt.s32.totalorder %s104, 15
    %s106 = scalar_select %p105, %s104, 15
    %s107 = ssub.s32 %s22, %s34
    %s108 = ssub.s32 %s102, %s106
    %s109 = sor.u32 %s107, %s108
    %p110 = scmp.eq.s32.totalorder %s109, 0
    %s112 = sadd.s32 %s111, 1
    %s113 = scalar_select %p110, %s111, %s112
    %p116 = pneg %p110
    %p117 = scmp.eq.s32.totalorder %s15, 1
    %p118 = por %p116, %p117
    %p119 = scmp.ne.s32.totalorder %s111, %s114
    %p120 = scmp.eq.s32.totalorder %s15, 0
    %p121 = por %p119, %p120
    %p122 = scmp.ne.s32.totalorder %s111, %s114
    %p123 = scmp.eq.s32.totalorder %s20, 1
    %p124 = por %p122, %p123
    %p125 = scmp.ne.s32.totalorder %s114, %s115
    %p126 = scmp.eq.s32.totalorder %s20, 0
    %p127 = por %p125, %p126
    %p128 = scmp.ne.s32.totalorder %s114, %s115
    %p129 = scmp.eq.s32.totalorder %s21, 1
    %p130 = por %p128, %p129
    %p132 = scmp.ne.s32.totalorder %s115, %s131
    %p133 = scmp.eq.s32.totalorder %s21, 0
    %p134 = por %p132, %p133
    %s136 = sadd.s32 %s135, 1
    %p139 = scmp.eq.s32.totalorder %s15, 1
    %p140 = scmp.ne.s32.totalorder %s135, %s137
    %p141 = scmp.eq.s32.totalorder %s15, 0
    %p142 = por %p140, %p141
    %p143 = scmp.ne.s32.totalorder %s135, %s137
    %p144 = scmp.eq.s32.totalorder %s20, 1
    %p145 = por %p143, %p144
    %p146 = scmp.ne.s32.totalorder %s137, %s138
    %p147 = scmp.eq.s32.totalorder %s20, 0
    %p148 = por %p146, %p147
    %p149 = scmp.ne.s32.totalorder %s137, %s138
    %p150 = scmp.eq.s32.totalorder %s21, 1
    %p151 = por %p149, %p150
    %p153 = scmp.ne.s32.totalorder %s138, %s152
    %p154 = scmp.eq.s32.totalorder %s21, 0
    %p155 = por %p153, %p154
    %s157 = sadd.s32 %s156, 1
    %p160 = scmp.eq.s32.totalorder %s15, 1
    %p161 = scmp.ne.s32.totalorder %s156, %s158
    %p162 = scmp.eq.s32.totalorder %s15, 0
    %p163 = por %p161, %p162
    %p164 = scmp.ne.s32.totalorder %s156, %s158
    %p165 = scmp.eq.s32.totalorder %s20, 1
    %p166 = por %p164, %p165
    %p167 = scmp.ne.s32.totalorder %s158, %s159
    %p168 = scmp.eq.s32.totalorder %s20, 0
    %p169 = por %p167, %p168
    %p170 = scmp.ne.s32.totalorder %s158, %s159
    %p171 = scmp.eq.s32.totalorder %s21, 1
    %p172 = por %p170, %p171
    %p174 = scmp.ne.s32.totalorder %s159, %s173
    %p175 = scmp.eq.s32.totalorder %s21, 0
    %p176 = por %p174, %p175
    %s178 = sadd.s32 %s177, 1
    %p181 = scmp.eq.s32.totalorder %s15, 1
    %p182 = scmp.ne.s32.totalorder %s177, %s179
    %p183 = scmp.eq.s32.totalorder %s15, 0
    %p184 = por %p182, %p183
    %p185 = scmp.ne.s32.totalorder %s177, %s179
    %p186 = scmp.eq.s32.totalorder %s20, 1
    %p187 = por %p185, %p186
    %p188 = scmp.ne.s32.totalorder %s179, %s180
    %p189 = scmp.eq.s32.totalorder %s20, 0
    %p190 = por %p188, %p189
    %p191 = scmp.ne.s32.totalorder %s179, %s180
    %p192 = scmp.eq.s32.totalorder %s21, 1
    %p193 = por %p191, %p192
    %p195 = scmp.ne.s32.totalorder %s180, %s194
    %p196 = scmp.eq.s32.totalorder %s21, 0
    %p197 = por %p195, %p196
    %s199 = sadd.s32 %s198, 1
    %p202 = scmp.eq.s32.totalorder %s15, 1
    %p203 = scmp.ne.s32.totalorder %s198, %s200
    %p204 = scmp.eq.s32.totalorder %s15, 0
    %p205 = por %p203, %p204
    %p206 = scmp.ne.s32.totalorder %s198, %s200
    %p207 = scmp.eq.s32.totalorder %s20, 1
    %p208 = por %p206, %p207
    %p209 = scmp.ne.s32.totalorder %s200, %s201
    %p210 = scmp.eq.s32.totalorder %s20, 0
    %p211 = por %p209, %p210
    %p212 = scmp.ne.s32.totalorder %s200, %s201
    %p213 = scmp.eq.s32.totalorder %s21, 1
    %p214 = por %p212, %p213
    %p216 = scmp.ne.s32.totalorder %s201, %s215
    %p217 = scmp.eq.s32.totalorder %s21, 0
    %p218 = por %p216, %p217
    %s220 = sadd.s32 %s219, 1
    %p223 = scmp.eq.s32.totalorder %s15, 1
    %p224 = scmp.ne.s32.totalorder %s219, %s221
    %p225 = scmp.eq.s32.totalorder %s15, 0
    %p226 = por %p224, %p225
    %p227 = scmp.ne.s32.totalorder %s219, %s221
    %p228 = scmp.eq.s32.totalorder %s20, 1
    %p229 = por %p227, %p228
    %p230 = scmp.ne.s32.totalorder %s221, %s222
    %p231 = scmp.eq.s32.totalorder %s20, 0
    %p232 = por %p230, %p231
    %p233 = scmp.ne.s32.totalorder %s221, %s222
    %p234 = scmp.eq.s32.totalorder %s21, 1
    %p235 = por %p233, %p234
    %p237 = scmp.ne.s32.totalorder %s222, %s236
    %p238 = scmp.eq.s32.totalorder %s21, 0
    %p239 = por %p237, %p238
    %s241 = sadd.s32 %s240, 1
    %p244 = scmp.eq.s32.totalorder %s15, 1
    %p245 = scmp.ne.s32.totalorder %s240, %s242
    %p246 = scmp.eq.s32.totalorder %s15, 0
    %p247 = por %p245, %p246
    %p248 = scmp.ne.s32.totalorder %s240, %s242
    %p249 = scmp.eq.s32.totalorder %s20, 1
    %p250 = por %p248, %p249
    %p251 = scmp.ne.s32.totalorder %s242, %s243
    %p252 = scmp.eq.s32.totalorder %s20, 0
    %p253 = por %p251, %p252
    %p254 = scmp.ne.s32.totalorder %s242, %s243
    %p255 = scmp.eq.s32.totalorder %s21, 1
    %p256 = por %p254, %p255
    %p258 = scmp.ne.s32.totalorder %s243, %s257
    %p259 = scmp.eq.s32.totalorder %s21, 0
    %p260 = por %p258, %p259
    %s261 = ssub.s32 %s22, %s34
    %s262 = ssub.s32 %s23, %s30
    %s263 = sor.u32 %s261, %s262
    %p264 = scmp.eq.s32.totalorder %s263, 0
    %s266 = sadd.s32 %s265, 1
    %s267 = scalar_select %p264, %s265, %s266
    %p270 = pneg %p264
    %p271 = scmp.eq.s32.totalorder %s15, 1
    %p272 = por %p270, %p271
    %p273 = scmp.ne.s32.totalorder %s265, %s268
    %p274 = scmp.eq.s32.totalorder %s15, 0
    %p275 = por %p273, %p274
    %p276 = scmp.ne.s32.totalorder %s265, %s268
    %p277 = scmp.eq.s32.totalorder %s20, 1
    %p278 = por %p276, %p277
    %p279 = scmp.ne.s32.totalorder %s268, %s269
    %p280 = scmp.eq.s32.totalorder %s20, 0
    %p281 = por %p279, %p280
    %p282 = scmp.ne.s32.totalorder %s268, %s269
    %p283 = scmp.eq.s32.totalorder %s21, 1
    %p284 = por %p282, %p283
    %p286 = scmp.ne.s32.totalorder %s269, %s285
    %p287 = scmp.eq.s32.totalorder %s21, 0
    %p288 = por %p286, %p287
    %p289 = scmp.le.s32.totalorder 1, %s15
    %p290 = scmp.lt.s32.totalorder %s15, 3
    %p291 = pnand %p289, %p290
    %p292 = pneg %p291
    // Predicated region
    $region9: #{_lambda_.3} parent=5 // pred_check
      _
    $region10: #{_lambda_.3} parent=5 // pred_check_branch
      %294 = sbr.rel (%p291) target = $region12
    $region11: #{_lambda_.3} parent=5 // pred_region
      %s295 = ssub.s32 %s15, 1
      // Predicated region
      $region13: #{_lambda_.3} parent=11 // pred_check
        %p296 = pneg %p148
      $region14: #{_lambda_.3} parent=11 // pred_check_branch
        %298 = sbr.rel (%p296) target = $region16
      $region15: #{_lambda_.3} parent=11 // pred_region
        _
      $region16: #{_lambda_.3} parent=11 // pred_fallthru
        _
      // Predicated region
      $region17: #{_lambda_.3} parent=11 // pred_check
        %p299 = pneg %p169
      $region18: #{_lambda_.3} parent=11 // pred_check_branch
        %301 = sbr.rel (%p299) target = $region20
      $region19: #{_lambda_.3} parent=11 // pred_region
        _
      $region20: #{_lambda_.3} parent=11 // pred_fallthru
        _
      // Predicated region
      $region21: #{_lambda_.3} parent=11 // pred_check
        %p302 = pneg %p190
      $region22: #{_lambda_.3} parent=11 // pred_check_branch
        %304 = sbr.rel (%p302) target = $region24
      $region23: #{_lambda_.3} parent=11 // pred_region
        _
      $region24: #{_lambda_.3} parent=11 // pred_fallthru
        _
      // Predicated region
      $region25: #{_lambda_.3} parent=11 // pred_check
        %p305 = pneg %p211
      $region26: #{_lambda_.3} parent=11 // pred_check_branch
        %307 = sbr.rel (%p305) target = $region28
      $region27: #{_lambda_.3} parent=11 // pred_region
        _
      $region28: #{_lambda_.3} parent=11 // pred_fallthru
        _
      // Predicated region
      $region29: #{_lambda_.3} parent=11 // pred_check
        %p308 = pneg %p232
      $region30: #{_lambda_.3} parent=11 // pred_check_branch
        %310 = sbr.rel (%p308) target = $region32
      $region31: #{_lambda_.3} parent=11 // pred_region
        _
      $region32: #{_lambda_.3} parent=11 // pred_fallthru
        _
      // Predicated region
      $region33: #{_lambda_.3} parent=11 // pred_check
        %p311 = pneg %p253
      $region34: #{_lambda_.3} parent=11 // pred_check_branch
        %313 = sbr.rel (%p311) target = $region36
      $region35: #{_lambda_.3} parent=11 // pred_region
        _
      $region36: #{_lambda_.3} parent=11 // pred_fallthru
        _
    $region12: #{_lambda_.3} parent=5 // pred_fallthru
      _
    %p314 = scmp.lt.s32.totalorder %s15, 2
    // Predicated region
    $region37: #{_lambda_.3} parent=5 // pred_check
      %p315 = pneg %p314
    $region38: #{_lambda_.3} parent=5 // pred_check_branch
      %317 = sbr.rel (%p315) target = $region40
    $region39: #{_lambda_.3} parent=5 // pred_region
      // Predicated region
      $region41: #{_lambda_.3} parent=39 // pred_check
        %p318 = pneg %p49
      $region42: #{_lambda_.3} parent=39 // pred_check_branch
        %320 = sbr.rel (%p318) target = $region44
      $region43: #{_lambda_.3} parent=39 // pred_region
        %s321 = smul.u32 16, %s23
        %p322 = scmp.lt.s32.totalorder %s22, 1
        %s323 = scalar_select %p322, %s22, 1
        %p324 = scmp.lt.s32.totalorder %s321, 15
        %s325 = scalar_select %p324, %s321, 15
        %s326 = smul.addr %s325, 2
        %s327 = smul.addr %s323, 32
        %s328 = sadd.s32 %s326, %s327
        %s329 = smul.addr %s328, 4
        %s330 = scalar_lea.vmem %s0, %s329
        %s331 = smul.u32 16, %s23
      $region44: #{_lambda_.3} parent=39 // pred_fallthru
        _
      // Predicated region
      $region45: #{_lambda_.3} parent=39 // pred_check
        %p332 = pneg %p85
      $region46: #{_lambda_.3} parent=39 // pred_check_branch
        %334 = sbr.rel (%p332) target = $region48
      $region47: #{_lambda_.3} parent=39 // pred_region
        %s335 = smul.u32 %s23, 16
        %s336 = ssub.s32 %s335, 1
        %p337 = scmp.gt.s32.totalorder %s336, 0
        %s338 = scalar_select %p337, %s336, 0
        %p339 = scmp.lt.s32.totalorder %s22, 1
        %s340 = scalar_select %p339, %s22, 1
        %p341 = scmp.lt.s32.totalorder %s338, 15
        %s342 = scalar_select %p341, %s338, 15
        %s343 = smul.addr %s342, 2
        %s344 = smul.addr %s340, 32
        %s345 = sadd.s32 %s343, %s344
        %s346 = smul.addr %s345, 4
        %s347 = scalar_lea.vmem %s1, %s346
        %s348 = smul.u32 %s23, 16
        %s349 = ssub.s32 %s348, 1
        %p350 = scmp.gt.s32.totalorder %s349, 0
        %s351 = scalar_select %p350, %s349, 0
      $region48: #{_lambda_.3} parent=39 // pred_fallthru
        _
      // Predicated region
      $region49: #{_lambda_.3} parent=39 // pred_check
        %p352 = pneg %p121
      $region50: #{_lambda_.3} parent=39 // pred_check_branch
        %354 = sbr.rel (%p352) target = $region52
      $region51: #{_lambda_.3} parent=39 // pred_region
        %s355 = smul.u32 %s23, 16
        %s356 = sadd.s32 %s355, 16
        %p357 = scmp.lt.s32.totalorder %s356, 15
        %s358 = scalar_select %p357, %s356, 15
        %p359 = scmp.lt.s32.totalorder %s22, 1
        %s360 = scalar_select %p359, %s22, 1
        %p361 = scmp.lt.s32.totalorder %s358, 15
        %s362 = scalar_select %p361, %s358, 15
        %s363 = smul.addr %s362, 2
        %s364 = smul.addr %s360, 32
        %s365 = sadd.s32 %s363, %s364
        %s366 = smul.addr %s365, 4
        %s367 = scalar_lea.vmem %s2, %s366
        %s368 = smul.u32 %s23, 16
        %s369 = sadd.s32 %s368, 16
        %p370 = scmp.lt.s32.totalorder %s369, 15
        %s371 = scalar_select %p370, %s369, 15
      $region52: #{_lambda_.3} parent=39 // pred_fallthru
        _
    $region40: #{_lambda_.3} parent=5 // pred_fallthru
      _
    %p372 = scmp.le.s32.totalorder 1, %s15
    %p373 = scmp.lt.s32.totalorder %s15, 3
    %p374 = pnand %p372, %p373
    %p375 = pneg %p374
    // Predicated region
    $region53: #{_lambda_.3} parent=5 // pred_check
      _
    $region54: #{_lambda_.3} parent=5 // pred_check_branch
      %377 = sbr.rel (%p374) target = $region56
    $region55: #{_lambda_.3} parent=5 // pred_region
      %s378 = ssub.s32 %s15, 1
      %s379 = smul.u32 16, %s25
      %p380 = scmp.lt.s32.totalorder %s24, 1
      %s381 = scalar_select %p380, %s24, 1
      %p382 = scmp.lt.s32.totalorder %s379, 15
      %s383 = scalar_select %p382, %s379, 15
      %s384 = smul.addr %s383, 2
      %s385 = smul.addr %s381, 32
      %s386 = sadd.s32 %s384, %s385
      %s387 = smul.addr %s386, 4
      %s388 = scalar_lea.vmem %s0, %s387
      %p389 = pneg %p55
      %p390 = pneg %p52
      %s391 = smul.u32 %s25, 16
      %s392 = ssub.s32 %s391, 1
      %p393 = scmp.gt.s32.totalorder %s392, 0
      %s394 = scalar_select %p393, %s392, 0
      %p395 = scmp.lt.s32.totalorder %s24, 1
      %s396 = scalar_select %p395, %s24, 1
      %p397 = scmp.lt.s32.totalorder %s394, 15
      %s398 = scalar_select %p397, %s394, 15
      %s399 = smul.addr %s398, 2
      %s400 = smul.addr %s396, 32
      %s401 = sadd.s32 %s399, %s400
      %s402 = smul.addr %s401, 4
      %s403 = scalar_lea.vmem %s1, %s402
      %p404 = pneg %p91
      %p405 = pneg %p88
      %s406 = smul.u32 %s25, 16
      %s407 = sadd.s32 %s406, 16
      %p408 = scmp.lt.s32.totalorder %s407, 15
      %s409 = scalar_select %p408, %s407, 15
      %p410 = scmp.lt.s32.totalorder %s24, 1
      %s411 = scalar_select %p410, %s24, 1
      %p412 = scmp.lt.s32.totalorder %s409, 15
      %s413 = scalar_select %p412, %s409, 15
      %s414 = smul.addr %s413, 2
      %s415 = smul.addr %s411, 32
      %s416 = sadd.s32 %s414, %s415
      %s417 = smul.addr %s416, 4
      %s418 = scalar_lea.vmem %s2, %s417
      %p419 = pneg %p127
      %p420 = pneg %p124
      %p421 = pneg %p148
      %p422 = pneg %p145
      %p423 = pneg %p169
      %p424 = pneg %p166
      %p425 = pneg %p190
      %p426 = pneg %p187
      %p427 = pneg %p211
      %p428 = pneg %p208
      %p429 = pneg %p232
      %p430 = pneg %p229
      %p431 = pneg %p253
      %p432 = pneg %p250
      %p433 = pneg %p281
      %p434 = pneg %p278
      %s435 = smul.u32 16, %s25
      %p436 = scmp.lt.s32.totalorder %s24, 1
      %s437 = scalar_select %p436, %s24, 1
      %p438 = scmp.lt.s32.totalorder %s435, 15
      %s439 = scalar_select %p438, %s435, 15
      %s440 = smul.addr %s439, 2
      %s441 = smul.addr %s437, 32
      %s442 = sadd.s32 %s440, %s441
      %s443 = smul.addr %s442, 4
      %s444 = scalar_lea.vmem %s9, %s443
      %s445 = smul.u32 16, %s25
      %p446 = scmp.lt.s32.totalorder %s24, 1
      %s447 = scalar_select %p446, %s24, 1
      %p448 = scmp.lt.s32.totalorder %s445, 15
      %s449 = scalar_select %p448, %s445, 15
      %s450 = smul.addr %s449, 2
      %s451 = smul.addr %s447, 32
      %s452 = sadd.s32 %s450, %s451
      %s453 = smul.addr %s452, 4
      %s454 = scalar_lea.vmem %s0, %s453
      %s455 = smul.u32 16, %s25
      %s456 = smul.u32 %s25, 16
      %s457 = ssub.s32 %s456, 1
      %p458 = scmp.gt.s32.totalorder %s457, 0
      %s459 = scalar_select %p458, %s457, 0
      %p460 = scmp.lt.s32.totalorder %s24, 1
      %s461 = scalar_select %p460, %s24, 1
      %p462 = scmp.lt.s32.totalorder %s459, 15
      %s463 = scalar_select %p462, %s459, 15
      %s464 = smul.addr %s463, 2
      %s465 = smul.addr %s461, 32
      %s466 = sadd.s32 %s464, %s465
      %s467 = smul.addr %s466, 4
      %s468 = scalar_lea.vmem %s1, %s467
      %s469 = smul.u32 %s25, 16
      %s470 = ssub.s32 %s469, 1
      %p471 = scmp.gt.s32.totalorder %s470, 0
      %s472 = scalar_select %p471, %s470, 0
      %s473 = smul.u32 %s25, 16
      %s474 = sadd.s32 %s473, 16
      %p475 = scmp.lt.s32.totalorder %s474, 15
      %s476 = scalar_select %p475, %s474, 15
      %p477 = scmp.lt.s32.totalorder %s24, 1
      %s478 = scalar_select %p477, %s24, 1
      %p479 = scmp.lt.s32.totalorder %s476, 15
      %s480 = scalar_select %p479, %s476, 15
      %s481 = smul.addr %s480, 2
      %s482 = smul.addr %s478, 32
      %s483 = sadd.s32 %s481, %s482
      %s484 = smul.addr %s483, 4
      %s485 = scalar_lea.vmem %s2, %s484
      %s486 = smul.u32 %s25, 16
      %s487 = sadd.s32 %s486, 16
      %p488 = scmp.lt.s32.totalorder %s487, 15
      %s489 = scalar_select %p488, %s487, 15
      %s490 = smul.u32 16, %s25
      %p491 = scmp.lt.s32.totalorder %s24, 1
      %s492 = scalar_select %p491, %s24, 1
      %p493 = scmp.lt.s32.totalorder %s490, 15
      %s494 = scalar_select %p493, %s490, 15
      %s495 = smul.addr %s494, 2
      %s496 = smul.addr %s492, 32
      %s497 = sadd.s32 %s495, %s496
      %s498 = smul.addr %s497, 4
      %s499 = scalar_lea.vmem %s9, %s498
      %s500 = smul.u32 16, %s25
      %v502 = vld [vmem:[%s468] sm:$0xf]
      %v503 = vld [vmem:[%s468 + $0x4] sm:$0xf]
      %v504 = vld [vmem:[%s454] sm:$0xf]
      %v505 = vld [vmem:[%s454 + $0x4] sm:$0xf]
      %v506 = vld [vmem:[%s454 + $0x8] sm:$0xf]
      %v507 = vld [vmem:[%s454 + $0xc] sm:$0xf]
      %v508 = vld [vmem:[%s454 + $0x10] sm:$0xf]
      %v509 = vld [vmem:[%s454 + $0x14] sm:$0xf]
      %v510 = vld [vmem:[%s454 + $0x18] sm:$0xf]
      %v511 = vld [vmem:[%s454 + $0x1c] sm:$0xf]
      %v512 = vld [vmem:[%s454 + $0x20] sm:$0xf]
      %v513 = vld [vmem:[%s454 + $0x24] sm:$0xf]
      %v514 = vld [vmem:[%s454 + $0x28] sm:$0xf]
      %v515 = vld [vmem:[%s454 + $0x2c] sm:$0xf]
      %v516 = vld [vmem:[%s454 + $0x30] sm:$0xf]
      %v517 = vld [vmem:[%s454 + $0x34] sm:$0xf]
      %v518 = vld [vmem:[%s454 + $0x38] sm:$0xf]
      %v519 = vld [vmem:[%s454 + $0x3c] sm:$0xf]
      %v520 = vld [vmem:[%s454 + $0x40] sm:$0xf]
      %v521 = vld [vmem:[%s454 + $0x44] sm:$0xf]
      %v522 = vld [vmem:[%s454 + $0x48] sm:$0xf]
      %v523 = vld [vmem:[%s454 + $0x4c] sm:$0xf]
      %v524 = vld [vmem:[%s454 + $0x50] sm:$0xf]
      %v525 = vld [vmem:[%s454 + $0x54] sm:$0xf]
      %v526 = vld [vmem:[%s454 + $0x58] sm:$0xf]
      %v527 = vld [vmem:[%s454 + $0x5c] sm:$0xf]
      %v528 = vld [vmem:[%s454 + $0x60] sm:$0xf]
      %v529 = vld [vmem:[%s454 + $0x64] sm:$0xf]
      %v530 = vld [vmem:[%s454 + $0x68] sm:$0xf]
      %v531 = vld [vmem:[%s454 + $0x6c] sm:$0xf]
      %v532 = vld [vmem:[%s454 + $0x70] sm:$0xf]
      %v533 = vld [vmem:[%s454 + $0x74] sm:$0xf]
      %v534 = vld [vmem:[%s454 + $0x78] sm:$0xf]
      %v535 = vld [vmem:[%s454 + $0x7c] sm:$0xf]
      %v536 = vld [vmem:[%s485] sm:$0xf]
      %v537 = vld [vmem:[%s485 + $0x4] sm:$0xf]
      %v538 = vld [vmem:[%s3] sm:$0x3]
      %v539 = vld [vmem:[%s4] sm:$0x1]
      %v541 = vlaneseq
      %v542 = vshrl.u32 %v541, 7
      %v543 = vsub.s32 0, %v542
      %v544 = vrot.slane %v539, %v543
      %v582 = vunpack.c.l.b16 %v502
      %v583 = vunpack.c.l.b16 %v503
      %v584 = vunpack.c.l.b16 %v504
      %v585 = vunpack.c.l.b16 %v505
      %v586 = vunpack.c.l.b16 %v506
      %v587 = vunpack.c.l.b16 %v507
      %v588 = vunpack.c.l.b16 %v508
      %v589 = vunpack.c.l.b16 %v509
      %v590 = vunpack.c.l.b16 %v510
      %v591 = vunpack.c.l.b16 %v511
      %v592 = vunpack.c.l.b16 %v512
      %v593 = vunpack.c.l.b16 %v513
      %v594 = vunpack.c.l.b16 %v514
      %v595 = vunpack.c.l.b16 %v515
      %v596 = vunpack.c.l.b16 %v516
      %v597 = vunpack.c.l.b16 %v517
      %v598 = vunpack.c.l.b16 %v518
      %v599 = vunpack.c.l.b16 %v519
      %v600 = vunpack.c.l.b16 %v520
      %v601 = vunpack.c.l.b16 %v521
      %v602 = vunpack.c.l.b16 %v522
      %v603 = vunpack.c.l.b16 %v523
      %v604 = vunpack.c.l.b16 %v524
      %v605 = vunpack.c.l.b16 %v525
      %v606 = vunpack.c.l.b16 %v526
      %v607 = vunpack.c.l.b16 %v527
      %v608 = vunpack.c.l.b16 %v528
      %v609 = vunpack.c.l.b16 %v529
      %v610 = vunpack.c.l.b16 %v530
      %v611 = vunpack.c.l.b16 %v531
      %v612 = vunpack.c.l.b16 %v532
      %v613 = vunpack.c.l.b16 %v533
      %v614 = vunpack.c.l.b16 %v534
      %v615 = vunpack.c.l.b16 %v535
      %v616 = vunpack.c.l.b16 %v536
      %v617 = vunpack.c.l.b16 %v537
      %v618 = vpack.c.b16 %v583, %v582
      %v619 = vpack.c.b16 %v585, %v584
      %v620 = vpack.c.b16 %v587, %v586
      %v621 = vpack.c.b16 %v589, %v588
      %v622 = vpack.c.b16 %v591, %v590
      %v623 = vpack.c.b16 %v593, %v592
      %v624 = vpack.c.b16 %v595, %v594
      %v625 = vpack.c.b16 %v597, %v596
      %v626 = vpack.c.b16 %v599, %v598
      %v627 = vpack.c.b16 %v601, %v600
      %v628 = vpack.c.b16 %v603, %v602
      %v629 = vpack.c.b16 %v605, %v604
      %v630 = vpack.c.b16 %v607, %v606
      %v631 = vpack.c.b16 %v609, %v608
      %v632 = vpack.c.b16 %v611, %v610
      %v633 = vpack.c.b16 %v613, %v612
      %v634 = vpack.c.b16 %v615, %v614
      %v635 = vpack.c.b16 %v617, %v616
      %vm636 = vcmask 31744
      %v638 = vsel %vm636, %v618, 0
      %v641 = vsel %vm636, %v619, 0
      %v644 = vsel %vm636, %v620, 0
      %v647 = vsel %vm636, %v621, 0
      %v650 = vsel %vm636, %v622, 0
      %v653 = vsel %vm636, %v623, 0
      %v656 = vsel %vm636, %v624, 0
      %v659 = vsel %vm636, %v625, 0
      %v662 = vsel %vm636, %v626, 0
      %v665 = vsel %vm636, %v627, 0
      %v668 = vsel %vm636, %v628, 0
      %v671 = vsel %vm636, %v629, 0
      %v674 = vsel %vm636, %v630, 0
      %v677 = vsel %vm636, %v631, 0
      %v680 = vsel %vm636, %v632, 0
      %v683 = vsel %vm636, %v633, 0
      %v686 = vsel %vm636, %v634, 0
      %v689 = vsel %vm636, %v635, 0
      %vm691 = vcmask 1041408
      %v693 = vsel %vm691, %v538, 0
      %695 = vmatprep.subr.bf16.mxu0 0
      %696 = vmatpush1.bf16.msra.mxu0 0
      %697 = vmatprep.subr.bf16.mxu0 0
      %698 = vmatpush1.bf16.msra.mxu0 0
      %699 = vmatprep.subr.bf16.mxu0 0
      %700 = vmatpush1.bf16.msra.mxu0 0
      %701 = vmatprep.subr.bf16.mxu0 0
      %702 = vmatpush1.bf16.msra.mxu0 0
      %703 = vmatprep.subr.bf16.mxu0 0
      %704 = vmatpush1.bf16.msra.mxu0 0
      %705 = vmatprep.subr.bf16.mxu0 0
      %706 = vmatpush1.bf16.msra.mxu0 0
      %707 = vmatprep.subr.bf16.mxu0 0
      %708 = vmatpush1.bf16.msra.mxu0 0
      %709 = vmatprep.subr.bf16.mxu0 0
      %710 = vmatpush1.bf16.msra.mxu0 %v693
      %711 = vmatprep.subr.bf16.mxu0 0
      %712 = vmatpush2.bf16.msra.mxu0 0
      %713 = vmatprep.subr.bf16.mxu0 0
      %714 = vmatpush2.bf16.msra.mxu0 0
      %715 = vmatprep.subr.bf16.mxu0 0
      %716 = vmatpush2.bf16.msra.mxu0 0
      %717 = vmatprep.subr.bf16.mxu0 0
      %718 = vmatpush2.bf16.msra.mxu0 0
      %719 = vmatprep.subr.bf16.mxu0 0
      %720 = vmatpush2.bf16.msra.mxu0 0
      %721 = vmatprep.subr.bf16.mxu0 0
      %722 = vmatpush2.bf16.msra.mxu0 0
      %723 = vmatprep.subr.bf16.mxu0 0
      %724 = vmatpush2.bf16.msra.mxu0 0
      %725 = vmatprep.subr.bf16.mxu0 0
      %726 = vmatpush2.bf16.msra.mxu0 0
      %727 = vmatprep.mubr.bf16.mxu0 0
      %728 = vmatmul.mubr.bf16.gmra.mxu0 %v638
      %v729 = vpop.f32.mrf.mxu0
      %v730 = vadd.f32 %v544, %v729
      %v731 = vpop.f32.mrf.mxu0
      %v732 = vpop.f32.mrf.mxu0
      %v733 = vadd.f32 %v544, %v732
      %v734 = vpop.f32.mrf.mxu0
      %735 = vmatprep.mubr.bf16.mxu0 0
      %736 = vmatmul.mubr.bf16.gmra.mxu0 %v641
      %v737 = vpop.f32.mrf.mxu0
      %v738 = vadd.f32 %v544, %v737
      %v739 = vpop.f32.mrf.mxu0
      %v740 = vpop.f32.mrf.mxu0
      %v741 = vadd.f32 %v544, %v740
      %v742 = vpop.f32.mrf.mxu0
      %743 = vmatprep.mubr.bf16.mxu0 0
      %744 = vmatmul.mubr.bf16.gmra.mxu0 %v644
      %v745 = vpop.f32.mrf.mxu0
      %v746 = vadd.f32 %v544, %v745
      %v747 = vpop.f32.mrf.mxu0
      %v748 = vpop.f32.mrf.mxu0
      %v749 = vadd.f32 %v544, %v748
      %v750 = vpop.f32.mrf.mxu0
      %751 = vmatprep.mubr.bf16.mxu0 0
      %752 = vmatmul.mubr.bf16.gmra.mxu0 %v647
      %v753 = vpop.f32.mrf.mxu0
      %v754 = vadd.f32 %v544, %v753
      %v755 = vpop.f32.mrf.mxu0
      %v756 = vpop.f32.mrf.mxu0
      %v757 = vadd.f32 %v544, %v756
      %v758 = vpop.f32.mrf.mxu0
      %759 = vmatprep.mubr.bf16.mxu0 0
      %760 = vmatmul.mubr.bf16.gmra.mxu0 %v650
      %v761 = vpop.f32.mrf.mxu0
      %v762 = vadd.f32 %v544, %v761
      %v763 = vpop.f32.mrf.mxu0
      %v764 = vpop.f32.mrf.mxu0
      %v765 = vadd.f32 %v544, %v764
      %v766 = vpop.f32.mrf.mxu0
      %767 = vmatprep.mubr.bf16.mxu0 0
      %768 = vmatmul.mubr.bf16.gmra.mxu0 %v653
      %v769 = vpop.f32.mrf.mxu0
      %v770 = vadd.f32 %v544, %v769
      %v771 = vpop.f32.mrf.mxu0
      %v772 = vpop.f32.mrf.mxu0
      %v773 = vadd.f32 %v544, %v772
      %v774 = vpop.f32.mrf.mxu0
      %775 = vmatprep.mubr.bf16.mxu0 0
      %776 = vmatmul.mubr.bf16.gmra.mxu0 %v656
      %v777 = vpop.f32.mrf.mxu0
      %v778 = vadd.f32 %v544, %v777
      %v779 = vpop.f32.mrf.mxu0
      %v780 = vpop.f32.mrf.mxu0
      %v781 = vadd.f32 %v544, %v780
      %v782 = vpop.f32.mrf.mxu0
      %783 = vmatprep.mubr.bf16.mxu0 0
      %784 = vmatmul.mubr.bf16.gmra.mxu0 %v659
      %v785 = vpop.f32.mrf.mxu0
      %v786 = vadd.f32 %v544, %v785
      %v787 = vpop.f32.mrf.mxu0
      %v788 = vpop.f32.mrf.mxu0
      %v789 = vadd.f32 %v544, %v788
      %v790 = vpop.f32.mrf.mxu0
      %791 = vmatprep.mubr.bf16.mxu0 0
      %792 = vmatmul.mubr.bf16.gmra.mxu0 %v662
      %v793 = vpop.f32.mrf.mxu0
      %v794 = vadd.f32 %v544, %v793
      %v795 = vpop.f32.mrf.mxu0
      %v796 = vpop.f32.mrf.mxu0
      %v797 = vadd.f32 %v544, %v796
      %v798 = vpop.f32.mrf.mxu0
      %799 = vmatprep.mubr.bf16.mxu0 0
      %800 = vmatmul.mubr.bf16.gmra.mxu0 %v665
      %v801 = vpop.f32.mrf.mxu0
      %v802 = vadd.f32 %v544, %v801
      %v803 = vpop.f32.mrf.mxu0
      %v804 = vpop.f32.mrf.mxu0
      %v805 = vadd.f32 %v544, %v804
      %v806 = vpop.f32.mrf.mxu0
      %807 = vmatprep.mubr.bf16.mxu0 0
      %808 = vmatmul.mubr.bf16.gmra.mxu0 %v668
      %v809 = vpop.f32.mrf.mxu0
      %v810 = vadd.f32 %v544, %v809
      %v811 = vpop.f32.mrf.mxu0
      %v812 = vpop.f32.mrf.mxu0
      %v813 = vadd.f32 %v544, %v812
      %v814 = vpop.f32.mrf.mxu0
      %815 = vmatprep.mubr.bf16.mxu0 0
      %816 = vmatmul.mubr.bf16.gmra.mxu0 %v671
      %v817 = vpop.f32.mrf.mxu0
      %v818 = vadd.f32 %v544, %v817
      %v819 = vpop.f32.mrf.mxu0
      %v820 = vpop.f32.mrf.mxu0
      %v821 = vadd.f32 %v544, %v820
      %v822 = vpop.f32.mrf.mxu0
      %823 = vmatprep.mubr.bf16.mxu0 0
      %824 = vmatmul.mubr.bf16.gmra.mxu0 %v674
      %v825 = vpop.f32.mrf.mxu0
      %v826 = vadd.f32 %v544, %v825
      %v827 = vpop.f32.mrf.mxu0
      %v828 = vpop.f32.mrf.mxu0
      %v829 = vadd.f32 %v544, %v828
      %v830 = vpop.f32.mrf.mxu0
      %831 = vmatprep.mubr.bf16.mxu0 0
      %832 = vmatmul.mubr.bf16.gmra.mxu0 %v677
      %v833 = vpop.f32.mrf.mxu0
      %v834 = vadd.f32 %v544, %v833
      %v835 = vpop.f32.mrf.mxu0
      %v836 = vpop.f32.mrf.mxu0
      %v837 = vadd.f32 %v544, %v836
      %v838 = vpop.f32.mrf.mxu0
      %839 = vmatprep.mubr.bf16.mxu0 0
      %840 = vmatmul.mubr.bf16.gmra.mxu0 %v680
      %v841 = vpop.f32.mrf.mxu0
      %v842 = vadd.f32 %v544, %v841
      %v843 = vpop.f32.mrf.mxu0
      %v844 = vpop.f32.mrf.mxu0
      %v845 = vadd.f32 %v544, %v844
      %v846 = vpop.f32.mrf.mxu0
      %847 = vmatprep.mubr.bf16.mxu0 0
      %848 = vmatmul.mubr.bf16.gmra.mxu0 %v683
      %v849 = vpop.f32.mrf.mxu0
      %v850 = vadd.f32 %v544, %v849
      %v851 = vpop.f32.mrf.mxu0
      %v852 = vpop.f32.mrf.mxu0
      %v853 = vadd.f32 %v544, %v852
      %v854 = vpop.f32.mrf.mxu0
      %855 = vmatprep.mubr.bf16.mxu0 0
      %856 = vmatmul.mubr.bf16.gmra.mxu0 %v686
      %v857 = vpop.f32.mrf.mxu0
      %v858 = vadd.f32 %v544, %v857
      %v859 = vpop.f32.mrf.mxu0
      %v860 = vpop.f32.mrf.mxu0
      %v861 = vadd.f32 %v544, %v860
      %v862 = vpop.f32.mrf.mxu0
      %863 = vmatprep.mubr.bf16.mxu0 0
      %864 = vmatmul.mubr.bf16.gmra.mxu0 %v689
      %v865 = vpop.f32.mrf.mxu0
      %v866 = vadd.f32 %v544, %v865
      %v867 = vpop.f32.mrf.mxu0
      %v868 = vpop.f32.mrf.mxu0
      %v869 = vadd.f32 %v544, %v868
      %v870 = vpop.f32.mrf.mxu0
      %871 = vdwg.mxu0
      %v872 = vmax.f32 %v730, 0.0
      %v873 = vmax.f32 %v733, 0.0
      %v874 = vmax.f32 %v738, 0.0
      %v875 = vmax.f32 %v741, 0.0
      %v876 = vmax.f32 %v746, 0.0
      %v877 = vmax.f32 %v749, 0.0
      %v878 = vmax.f32 %v754, 0.0
      %v879 = vmax.f32 %v757, 0.0
      %v880 = vmax.f32 %v762, 0.0
      %v881 = vmax.f32 %v765, 0.0
      %v882 = vmax.f32 %v770, 0.0
      %v883 = vmax.f32 %v773, 0.0
      %v884 = vmax.f32 %v778, 0.0
      %v885 = vmax.f32 %v781, 0.0
      %v886 = vmax.f32 %v786, 0.0
      %v887 = vmax.f32 %v789, 0.0
      %v888 = vmax.f32 %v794, 0.0
      %v889 = vmax.f32 %v797, 0.0
      %v890 = vmax.f32 %v802, 0.0
      %v891 = vmax.f32 %v805, 0.0
      %v892 = vmax.f32 %v810, 0.0
      %v893 = vmax.f32 %v813, 0.0
      %v894 = vmax.f32 %v818, 0.0
      %v895 = vmax.f32 %v821, 0.0
      %v896 = vmax.f32 %v826, 0.0
      %v897 = vmax.f32 %v829, 0.0
      %v898 = vmax.f32 %v834, 0.0
      %v899 = vmax.f32 %v837, 0.0
      %v900 = vmax.f32 %v842, 0.0
      %v901 = vmax.f32 %v845, 0.0
      %v902 = vmax.f32 %v850, 0.0
      %v903 = vmax.f32 %v853, 0.0
      %v904 = vmax.f32 %v858, 0.0
      %v905 = vmax.f32 %v861, 0.0
      %v906 = vmax.f32 %v866, 0.0
      %v907 = vmax.f32 %v869, 0.0
      %v908 = vpack.c.bf16 %v873, %v872
      %v909 = vpack.c.bf16 %v875, %v874
      %v910 = vpack.c.bf16 %v877, %v876
      %v911 = vpack.c.bf16 %v879, %v878
      %v912 = vpack.c.bf16 %v881, %v880
      %v913 = vpack.c.bf16 %v883, %v882
      %v914 = vpack.c.bf16 %v885, %v884
      %v915 = vpack.c.bf16 %v887, %v886
      %v916 = vpack.c.bf16 %v889, %v888
      %v917 = vpack.c.bf16 %v891, %v890
      %v918 = vpack.c.bf16 %v893, %v892
      %v919 = vpack.c.bf16 %v895, %v894
      %v920 = vpack.c.bf16 %v897, %v896
      %v921 = vpack.c.bf16 %v899, %v898
      %v922 = vpack.c.bf16 %v901, %v900
      %v923 = vpack.c.bf16 %v903, %v902
      %v924 = vpack.c.bf16 %v905, %v904
      %v925 = vpack.c.bf16 %v907, %v906
      %v944 = vunpack.c.l.b16 %v908
      %v945 = vunpack.c.h.b16 %v908
      %v946 = vunpack.c.l.b16 %v909
      %v947 = vunpack.c.h.b16 %v909
      %v948 = vunpack.c.l.b16 %v910
      %v949 = vunpack.c.h.b16 %v910
      %v950 = vunpack.c.l.b16 %v911
      %v951 = vunpack.c.h.b16 %v911
      %v952 = vunpack.c.l.b16 %v912
      %v953 = vunpack.c.h.b16 %v912
      %v954 = vunpack.c.l.b16 %v913
      %v955 = vunpack.c.h.b16 %v913
      %v956 = vunpack.c.l.b16 %v914
      %v957 = vunpack.c.h.b16 %v914
      %v958 = vunpack.c.l.b16 %v915
      %v959 = vunpack.c.h.b16 %v915
      %v960 = vunpack.c.l.b16 %v916
      %v961 = vunpack.c.h.b16 %v916
      %v962 = vunpack.c.l.b16 %v917
      %v963 = vunpack.c.h.b16 %v917
      %v964 = vunpack.c.l.b16 %v918
      %v965 = vunpack.c.h.b16 %v918
      %v966 = vunpack.c.l.b16 %v919
      %v967 = vunpack.c.h.b16 %v919
      %v968 = vunpack.c.l.b16 %v920
      %v969 = vunpack.c.h.b16 %v920
      %v970 = vunpack.c.l.b16 %v921
      %v971 = vunpack.c.h.b16 %v921
      %v972 = vunpack.c.l.b16 %v922
      %v973 = vunpack.c.h.b16 %v922
      %v974 = vunpack.c.l.b16 %v923
      %v975 = vunpack.c.h.b16 %v923
      %v976 = vunpack.c.l.b16 %v924
      %v977 = vunpack.c.h.b16 %v924
      %v978 = vunpack.c.l.b16 %v925
      %v979 = vunpack.c.h.b16 %v925
      %v980 = vpack.c.b16 %v944, %v944
      %v981 = vpack.c.b16 %v945, %v945
      %v982 = vpack.c.b16 %v946, %v946
      %v983 = vpack.c.b16 %v947, %v947
      %v984 = vpack.c.b16 %v948, %v948
      %v985 = vpack.c.b16 %v949, %v949
      %v986 = vpack.c.b16 %v950, %v950
      %v987 = vpack.c.b16 %v951, %v951
      %v988 = vpack.c.b16 %v952, %v952
      %v989 = vpack.c.b16 %v953, %v953
      %v990 = vpack.c.b16 %v954, %v954
      %v991 = vpack.c.b16 %v955, %v955
      %v992 = vpack.c.b16 %v956, %v956
      %v993 = vpack.c.b16 %v957, %v957
      %v994 = vpack.c.b16 %v958, %v958
      %v995 = vpack.c.b16 %v959, %v959
      %v996 = vpack.c.b16 %v960, %v960
      %v997 = vpack.c.b16 %v961, %v961
      %v998 = vpack.c.b16 %v962, %v962
      %v999 = vpack.c.b16 %v963, %v963
      %v1000 = vpack.c.b16 %v964, %v964
      %v1001 = vpack.c.b16 %v965, %v965
      %v1002 = vpack.c.b16 %v966, %v966
      %v1003 = vpack.c.b16 %v967, %v967
      %v1004 = vpack.c.b16 %v968, %v968
      %v1005 = vpack.c.b16 %v969, %v969
      %v1006 = vpack.c.b16 %v970, %v970
      %v1007 = vpack.c.b16 %v971, %v971
      %v1008 = vpack.c.b16 %v972, %v972
      %v1009 = vpack.c.b16 %v973, %v973
      %v1010 = vpack.c.b16 %v974, %v974
      %v1011 = vpack.c.b16 %v975, %v975
      %v1012 = vpack.c.b16 %v976, %v976
      %v1013 = vpack.c.b16 %v977, %v977
      %v1014 = vpack.c.b16 %v978, %v978
      %v1015 = vpack.c.b16 %v979, %v979
      %vm1052 = vcmask 519168
      %1053 = vst.msk [vmem:[#allocation2] sm:$0xf] %vm1052, %v980
      %1054 = vst.msk [vmem:[#allocation2 + $0x4] sm:$0xf] %vm1052, %v981
      %1055 = vst.msk [vmem:[#allocation2 + $0x8] sm:$0xf] %vm1052, %v982
      %1056 = vst.msk [vmem:[#allocation2 + $0xc] sm:$0xf] %vm1052, %v983
      %1057 = vst.msk [vmem:[#allocation2 + $0x10] sm:$0xf] %vm1052, %v984
      %1058 = vst.msk [vmem:[#allocation2 + $0x14] sm:$0xf] %vm1052, %v985
      %1059 = vst.msk [vmem:[#allocation2 + $0x18] sm:$0xf] %vm1052, %v986
      %1060 = vst.msk [vmem:[#allocation2 + $0x1c] sm:$0xf] %vm1052, %v987
      %1061 = vst.msk [vmem:[#allocation2 + $0x20] sm:$0xf] %vm1052, %v988
      %1062 = vst.msk [vmem:[#allocation2 + $0x24] sm:$0xf] %vm1052, %v989
      %1063 = vst.msk [vmem:[#allocation2 + $0x28] sm:$0xf] %vm1052, %v990
      %1064 = vst.msk [vmem:[#allocation2 + $0x2c] sm:$0xf] %vm1052, %v991
      %1065 = vst.msk [vmem:[#allocation2 + $0x30] sm:$0xf] %vm1052, %v992
      %1066 = vst.msk [vmem:[#allocation2 + $0x34] sm:$0xf] %vm1052, %v993
      %1067 = vst.msk [vmem:[#allocation2 + $0x38] sm:$0xf] %vm1052, %v994
      %1068 = vst.msk [vmem:[#allocation2 + $0x3c] sm:$0xf] %vm1052, %v995
      %1069 = vst.msk [vmem:[#allocation2 + $0x40] sm:$0xf] %vm1052, %v996
      %1070 = vst.msk [vmem:[#allocation2 + $0x44] sm:$0xf] %vm1052, %v997
      %1071 = vst.msk [vmem:[#allocation2 + $0x48] sm:$0xf] %vm1052, %v998
      %1072 = vst.msk [vmem:[#allocation2 + $0x4c] sm:$0xf] %vm1052, %v999
      %1073 = vst.msk [vmem:[#allocation2 + $0x50] sm:$0xf] %vm1052, %v1000
      %1074 = vst.msk [vmem:[#allocation2 + $0x54] sm:$0xf] %vm1052, %v1001
      %1075 = vst.msk [vmem:[#allocation2 + $0x58] sm:$0xf] %vm1052, %v1002
      %1076 = vst.msk [vmem:[#allocation2 + $0x5c] sm:$0xf] %vm1052, %v1003
      %1077 = vst.msk [vmem:[#allocation2 + $0x60] sm:$0xf] %vm1052, %v1004
      %1078 = vst.msk [vmem:[#allocation2 + $0x64] sm:$0xf] %vm1052, %v1005
      %1079 = vst.msk [vmem:[#allocation2 + $0x68] sm:$0xf] %vm1052, %v1006
      %1080 = vst.msk [vmem:[#allocation2 + $0x6c] sm:$0xf] %vm1052, %v1007
      %1081 = vst.msk [vmem:[#allocation2 + $0x70] sm:$0xf] %vm1052, %v1008
      %1082 = vst.msk [vmem:[#allocation2 + $0x74] sm:$0xf] %vm1052, %v1009
      %1083 = vst.msk [vmem:[#allocation2 + $0x78] sm:$0xf] %vm1052, %v1010
      %1084 = vst.msk [vmem:[#allocation2 + $0x7c] sm:$0xf] %vm1052, %v1011
      %1085 = vst.msk [vmem:[#allocation2 + $0x80] sm:$0xf] %vm1052, %v1012
      %1086 = vst.msk [vmem:[#allocation2 + $0x84] sm:$0xf] %vm1052, %v1013
      %1087 = vst.msk [vmem:[#allocation2 + $0x88] sm:$0xf] %vm1052, %v1014
      %1088 = vst.msk [vmem:[#allocation2 + $0x8c] sm:$0xf] %vm1052, %v1015
      %p1089 = scmp.eq.s32.totalorder %s25, 0
      // Predicated region
      $region57: #{_lambda_.3} parent=55 // pred_check
        %p1090 = pneg %p1089
      $region58: #{_lambda_.3} parent=55 // pred_check_branch
        %1092 = sbr.rel (%p1090) target = $region60
      $region59: #{_lambda_.3} parent=55 // pred_region
        %1093 = vst.msk [vmem:[#allocation2] sm:$0xf] %vm1052, 0
        %1094 = vst.msk [vmem:[#allocation2 + $0x4] sm:$0xf] %vm1052, 0
        %s1095 = scalar_lea.vmem [#allocation2], 136
        %1096 = vst.msk [vmem:[%s1095] sm:$0xf] %vm1052, 0
        %1097 = vst.msk [vmem:[%s1095 + $0x4] sm:$0xf] %vm1052, 0
      $region60: #{_lambda_.3} parent=55 // pred_fallthru
        _
      %v1098 = vld [vmem:[#allocation2] sm:$0xf]
      %v1099 = vld [vmem:[#allocation2 + $0x4] sm:$0xf]
      %v1100 = vld [vmem:[#allocation2 + $0x8] sm:$0xf]
      %v1101 = vld [vmem:[#allocation2 + $0xc] sm:$0xf]
      %v1102 = vld [vmem:[#allocation2 + $0x10] sm:$0xf]
      %v1103 = vld [vmem:[#allocation2 + $0x14] sm:$0xf]
      %v1104 = vld [vmem:[#allocation2 + $0x18] sm:$0xf]
      %v1105 = vld [vmem:[#allocation2 + $0x1c] sm:$0xf]
      %v1106 = vld [vmem:[#allocation2 + $0x20] sm:$0xf]
      %v1107 = vld [vmem:[#allocation2 + $0x24] sm:$0xf]
      %v1108 = vld [vmem:[#allocation2 + $0x28] sm:$0xf]
      %v1109 = vld [vmem:[#allocation2 + $0x2c] sm:$0xf]
      %v1110 = vld [vmem:[#allocation2 + $0x30] sm:$0xf]
      %v1111 = vld [vmem:[#allocation2 + $0x34] sm:$0xf]
      %v1112 = vld [vmem:[#allocation2 + $0x38] sm:$0xf]
      %v1113 = vld [vmem:[#allocation2 + $0x3c] sm:$0xf]
      %v1114 = vld [vmem:[#allocation2 + $0x40] sm:$0xf]
      %v1115 = vld [vmem:[#allocation2 + $0x44] sm:$0xf]
      %v1116 = vld [vmem:[#allocation2 + $0x48] sm:$0xf]
      %v1117 = vld [vmem:[#allocation2 + $0x4c] sm:$0xf]
      %v1118 = vld [vmem:[#allocation2 + $0x50] sm:$0xf]
      %v1119 = vld [vmem:[#allocation2 + $0x54] sm:$0xf]
      %v1120 = vld [vmem:[#allocation2 + $0x58] sm:$0xf]
      %v1121 = vld [vmem:[#allocation2 + $0x5c] sm:$0xf]
      %v1122 = vld [vmem:[#allocation2 + $0x60] sm:$0xf]
      %v1123 = vld [vmem:[#allocation2 + $0x64] sm:$0xf]
      %v1124 = vld [vmem:[#allocation2 + $0x68] sm:$0xf]
      %v1125 = vld [vmem:[#allocation2 + $0x6c] sm:$0xf]
      %v1126 = vld [vmem:[#allocation2 + $0x70] sm:$0xf]
      %v1127 = vld [vmem:[#allocation2 + $0x74] sm:$0xf]
      %v1128 = vld [vmem:[#allocation2 + $0x78] sm:$0xf]
      %v1129 = vld [vmem:[#allocation2 + $0x7c] sm:$0xf]
      %v1130 = vld [vmem:[#allocation2 + $0x80] sm:$0xf]
      %v1131 = vld [vmem:[#allocation2 + $0x84] sm:$0xf]
      %v1132 = vld [vmem:[#allocation2 + $0x88] sm:$0xf]
      %v1133 = vld [vmem:[#allocation2 + $0x8c] sm:$0xf]
      %v1170 = vunpack.c.l.b16 %v1098
      %v1171 = vunpack.c.l.b16 %v1099
      %v1172 = vunpack.c.l.b16 %v1100
      %v1173 = vunpack.c.l.b16 %v1101
      %v1174 = vunpack.c.l.b16 %v1102
      %v1175 = vunpack.c.l.b16 %v1103
      %v1176 = vunpack.c.l.b16 %v1104
      %v1177 = vunpack.c.l.b16 %v1105
      %v1178 = vunpack.c.l.b16 %v1106
      %v1179 = vunpack.c.l.b16 %v1107
      %v1180 = vunpack.c.l.b16 %v1108
      %v1181 = vunpack.c.l.b16 %v1109
      %v1182 = vunpack.c.l.b16 %v1110
      %v1183 = vunpack.c.l.b16 %v1111
      %v1184 = vunpack.c.l.b16 %v1112
      %v1185 = vunpack.c.l.b16 %v1113
      %v1186 = vunpack.c.l.b16 %v1114
      %v1187 = vunpack.c.l.b16 %v1115
      %v1188 = vunpack.c.l.b16 %v1116
      %v1189 = vunpack.c.l.b16 %v1117
      %v1190 = vunpack.c.l.b16 %v1118
      %v1191 = vunpack.c.l.b16 %v1119
      %v1192 = vunpack.c.l.b16 %v1120
      %v1193 = vunpack.c.l.b16 %v1121
      %v1194 = vunpack.c.l.b16 %v1122
      %v1195 = vunpack.c.l.b16 %v1123
      %v1196 = vunpack.c.l.b16 %v1124
      %v1197 = vunpack.c.l.b16 %v1125
      %v1198 = vunpack.c.l.b16 %v1126
      %v1199 = vunpack.c.l.b16 %v1127
      %v1200 = vunpack.c.l.b16 %v1128
      %v1201 = vunpack.c.l.b16 %v1129
      %v1202 = vunpack.c.l.b16 %v1130
      %v1203 = vunpack.c.l.b16 %v1131
      %v1204 = vunpack.c.l.b16 %v1132
      %v1205 = vunpack.c.l.b16 %v1133
      %v1206 = vpack.c.b16 %v1171, %v1170
      %v1207 = vpack.c.b16 %v1173, %v1172
      %v1208 = vpack.c.b16 %v1175, %v1174
      %v1209 = vpack.c.b16 %v1177, %v1176
      %v1210 = vpack.c.b16 %v1179, %v1178
      %v1211 = vpack.c.b16 %v1181, %v1180
      %v1212 = vpack.c.b16 %v1183, %v1182
      %v1213 = vpack.c.b16 %v1185, %v1184
      %v1214 = vpack.c.b16 %v1187, %v1186
      %v1215 = vpack.c.b16 %v1189, %v1188
      %v1216 = vpack.c.b16 %v1191, %v1190
      %v1217 = vpack.c.b16 %v1193, %v1192
      %v1218 = vpack.c.b16 %v1195, %v1194
      %v1219 = vpack.c.b16 %v1197, %v1196
      %v1220 = vpack.c.b16 %v1199, %v1198
      %v1221 = vpack.c.b16 %v1201, %v1200
      %v1222 = vpack.c.b16 %v1203, %v1202
      %v1223 = vpack.c.b16 %v1205, %v1204
      %v1225 = vshrl.u32 %v1206, 16
      %v1227 = vrot.slane %v1225, 7
      %v1228 = vshll.u32 %v1206, 16
      %v1230 = vor.u32 %v1227, %v1228
      %v1232 = vshrl.u32 %v1207, 16
      %v1234 = vrot.slane %v1232, 7
      %v1235 = vshll.u32 %v1207, 16
      %v1237 = vor.u32 %v1234, %v1235
      %v1239 = vshrl.u32 %v1208, 16
      %v1241 = vrot.slane %v1239, 7
      %v1242 = vshll.u32 %v1208, 16
      %v1244 = vor.u32 %v1241, %v1242
      %v1246 = vshrl.u32 %v1209, 16
      %v1248 = vrot.slane %v1246, 7
      %v1249 = vshll.u32 %v1209, 16
      %v1251 = vor.u32 %v1248, %v1249
      %v1253 = vshrl.u32 %v1210, 16
      %v1255 = vrot.slane %v1253, 7
      %v1256 = vshll.u32 %v1210, 16
      %v1258 = vor.u32 %v1255, %v1256
      %v1260 = vshrl.u32 %v1211, 16
      %v1262 = vrot.slane %v1260, 7
      %v1263 = vshll.u32 %v1211, 16
      %v1265 = vor.u32 %v1262, %v1263
      %v1267 = vshrl.u32 %v1212, 16
      %v1269 = vrot.slane %v1267, 7
      %v1270 = vshll.u32 %v1212, 16
      %v1272 = vor.u32 %v1269, %v1270
      %v1274 = vshrl.u32 %v1213, 16
      %v1276 = vrot.slane %v1274, 7
      %v1277 = vshll.u32 %v1213, 16
      %v1279 = vor.u32 %v1276, %v1277
      %v1281 = vshrl.u32 %v1214, 16
      %v1283 = vrot.slane %v1281, 7
      %v1284 = vshll.u32 %v1214, 16
      %v1286 = vor.u32 %v1283, %v1284
      %v1288 = vshrl.u32 %v1215, 16
      %v1290 = vrot.slane %v1288, 7
      %v1291 = vshll.u32 %v1215, 16
      %v1293 = vor.u32 %v1290, %v1291
      %v1295 = vshrl.u32 %v1216, 16
      %v1297 = vrot.slane %v1295, 7
      %v1298 = vshll.u32 %v1216, 16
      %v1300 = vor.u32 %v1297, %v1298
      %v1302 = vshrl.u32 %v1217, 16
      %v1304 = vrot.slane %v1302, 7
      %v1305 = vshll.u32 %v1217, 16
      %v1307 = vor.u32 %v1304, %v1305
      %v1309 = vshrl.u32 %v1218, 16
      %v1311 = vrot.slane %v1309, 7
      %v1312 = vshll.u32 %v1218, 16
      %v1314 = vor.u32 %v1311, %v1312
      %v1316 = vshrl.u32 %v1219, 16
      %v1318 = vrot.slane %v1316, 7
      %v1319 = vshll.u32 %v1219, 16
      %v1321 = vor.u32 %v1318, %v1319
      %v1323 = vshrl.u32 %v1220, 16
      %v1325 = vrot.slane %v1323, 7
      %v1326 = vshll.u32 %v1220, 16
      %v1328 = vor.u32 %v1325, %v1326
      %v1330 = vshrl.u32 %v1221, 16
      %v1332 = vrot.slane %v1330, 7
      %v1333 = vshll.u32 %v1221, 16
      %v1335 = vor.u32 %v1332, %v1333
      %v1337 = vshrl.u32 %v1222, 16
      %v1339 = vrot.slane %v1337, 7
      %v1340 = vshll.u32 %v1222, 16
      %v1342 = vor.u32 %v1339, %v1340
      %v1344 = vshrl.u32 %v1223, 16
      %v1346 = vrot.slane %v1344, 7
      %v1347 = vshll.u32 %v1223, 16
      %v1349 = vor.u32 %v1346, %v1347
      %vm1368 = vcmask 1040384
      %vm1369 = vsmask.f32 256
      %vm1370 = vmand %vm1368, %vm1369
      %v1371 = vsel %vm1370, 0, %v1230
      %v1372 = vsel %vm1370, 0, %v1237
      %v1373 = vsel %vm1370, 0, %v1244
      %v1374 = vsel %vm1370, 0, %v1251
      %v1375 = vsel %vm1370, 0, %v1258
      %v1376 = vsel %vm1370, 0, %v1265
      %v1377 = vsel %vm1370, 0, %v1272
      %v1378 = vsel %vm1370, 0, %v1279
      %v1379 = vsel %vm1370, 0, %v1286
      %v1380 = vsel %vm1370, 0, %v1293
      %v1381 = vsel %vm1370, 0, %v1300
      %v1382 = vsel %vm1370, 0, %v1307
      %v1383 = vsel %vm1370, 0, %v1314
      %v1384 = vsel %vm1370, 0, %v1321
      %v1385 = vsel %vm1370, 0, %v1328
      %v1386 = vsel %vm1370, 0, %v1335
      %v1387 = vsel %vm1370, 0, %v1342
      %v1388 = vsel %vm1370, 0, %v1349
      %v1389 = vrot.slane %v1228, 1
      %v1390 = vor.u32 %v1225, %v1389
      %v1391 = vrot.slane %v1235, 1
      %v1392 = vor.u32 %v1232, %v1391
      %v1393 = vrot.slane %v1242, 1
      %v1394 = vor.u32 %v1239, %v1393
      %v1395 = vrot.slane %v1249, 1
      %v1396 = vor.u32 %v1246, %v1395
      %v1397 = vrot.slane %v1256, 1
      %v1398 = vor.u32 %v1253, %v1397
      %v1399 = vrot.slane %v1263, 1
      %v1400 = vor.u32 %v1260, %v1399
      %v1401 = vrot.slane %v1270, 1
      %v1402 = vor.u32 %v1267, %v1401
      %v1403 = vrot.slane %v1277, 1
      %v1404 = vor.u32 %v1274, %v1403
      %v1405 = vrot.slane %v1284, 1
      %v1406 = vor.u32 %v1281, %v1405
      %v1407 = vrot.slane %v1291, 1
      %v1408 = vor.u32 %v1288, %v1407
      %v1409 = vrot.slane %v1298, 1
      %v1410 = vor.u32 %v1295, %v1409
      %v1411 = vrot.slane %v1305, 1
      %v1412 = vor.u32 %v1302, %v1411
      %v1413 = vrot.slane %v1312, 1
      %v1414 = vor.u32 %v1309, %v1413
      %v1415 = vrot.slane %v1319, 1
      %v1416 = vor.u32 %v1316, %v1415
      %v1417 = vrot.slane %v1326, 1
      %v1418 = vor.u32 %v1323, %v1417
      %v1419 = vrot.slane %v1333, 1
      %v1420 = vor.u32 %v1330, %v1419
      %v1421 = vrot.slane %v1340, 1
      %v1422 = vor.u32 %v1337, %v1421
      %v1423 = vrot.slane %v1347, 1
      %v1424 = vor.u32 %v1344, %v1423
      %vm1443 = vcmask 1047552
      %vm1444 = vsmask.f32 7424
      %vm1445 = vmand %vm1443, %vm1444
      %v1446 = vsel %vm1445, %v1390, 0
      %v1447 = vsel %vm1445, %v1392, 0
      %v1448 = vsel %vm1445, %v1394, 0
      %v1449 = vsel %vm1445, %v1396, 0
      %v1450 = vsel %vm1445, %v1398, 0
      %v1451 = vsel %vm1445, %v1400, 0
      %v1452 = vsel %vm1445, %v1402, 0
      %v1453 = vsel %vm1445, %v1404, 0
      %v1454 = vsel %vm1445, %v1406, 0
      %v1455 = vsel %vm1445, %v1408, 0
      %v1456 = vsel %vm1445, %v1410, 0
      %v1457 = vsel %vm1445, %v1412, 0
      %v1458 = vsel %vm1445, %v1414, 0
      %v1459 = vsel %vm1445, %v1416, 0
      %v1460 = vsel %vm1445, %v1418, 0
      %v1461 = vsel %vm1445, %v1420, 0
      %v1462 = vsel %vm1445, %v1422, 0
      %v1463 = vsel %vm1445, %v1424, 0
      %1464 = vrot.lane.b32.xlu0 %v1206, 64
      %v1465 = vpop.permute.xlu0 %1464
      %1466 = vrot.lane.b32.xlu0 %v1207, 64
      %v1467 = vpop.permute.xlu0 %1466
      %1468 = vrot.lane.b32.xlu0 %v1208, 64
      %v1469 = vpop.permute.xlu0 %1468
      %1470 = vrot.lane.b32.xlu0 %v1209, 64
      %v1471 = vpop.permute.xlu0 %1470
      %1472 = vrot.lane.b32.xlu0 %v1210, 64
      %v1473 = vpop.permute.xlu0 %1472
      %1474 = vrot.lane.b32.xlu0 %v1211, 64
      %v1475 = vpop.permute.xlu0 %1474
      %1476 = vrot.lane.b32.xlu0 %v1212, 64
      %v1477 = vpop.permute.xlu0 %1476
      %1478 = vrot.lane.b32.xlu0 %v1213, 64
      %v1479 = vpop.permute.xlu0 %1478
      %1480 = vrot.lane.b32.xlu0 %v1214, 64
      %v1481 = vpop.permute.xlu0 %1480
      %1482 = vrot.lane.b32.xlu0 %v1215, 64
      %v1483 = vpop.permute.xlu0 %1482
      %1484 = vrot.lane.b32.xlu0 %v1216, 64
      %v1485 = vpop.permute.xlu0 %1484
      %1486 = vrot.lane.b32.xlu0 %v1217, 64
      %v1487 = vpop.permute.xlu0 %1486
      %1488 = vrot.lane.b32.xlu0 %v1218, 64
      %v1489 = vpop.permute.xlu0 %1488
      %1490 = vrot.lane.b32.xlu0 %v1219, 64
      %v1491 = vpop.permute.xlu0 %1490
      %1492 = vrot.lane.b32.xlu0 %v1220, 64
      %v1493 = vpop.permute.xlu0 %1492
      %1494 = vrot.lane.b32.xlu0 %v1221, 64
      %v1495 = vpop.permute.xlu0 %1494
      %1496 = vrot.lane.b32.xlu0 %v1222, 64
      %v1497 = vpop.permute.xlu0 %1496
      %1498 = vrot.lane.b32.xlu0 %v1223, 64
      %v1499 = vpop.permute.xlu0 %1498
      %vm1500 = vcmask 523264
      %v1503 = vsel %vm1500, %v1371, %v1465
      %v1507 = vsel %vm1500, %v1372, %v1467
      %v1511 = vsel %vm1500, %v1373, %v1469
      %v1515 = vsel %vm1500, %v1374, %v1471
      %v1519 = vsel %vm1500, %v1375, %v1473
      %v1523 = vsel %vm1500, %v1376, %v1475
      %v1527 = vsel %vm1500, %v1377, %v1477
      %v1531 = vsel %vm1500, %v1378, %v1479
      %v1535 = vsel %vm1500, %v1379, %v1481
      %v1539 = vsel %vm1500, %v1380, %v1483
      %v1543 = vsel %vm1500, %v1381, %v1485
      %v1547 = vsel %vm1500, %v1382, %v1487
      %v1551 = vsel %vm1500, %v1383, %v1489
      %v1555 = vsel %vm1500, %v1384, %v1491
      %v1559 = vsel %vm1500, %v1385, %v1493
      %v1563 = vsel %vm1500, %v1386, %v1495
      %v1567 = vsel %vm1500, %v1387, %v1497
      %v1571 = vsel %vm1500, %v1388, %v1499
      %v1573 = vld [vmem:[%s5] sm:$0xf]
      %v1574 = vld [vmem:[%s5 + $0x4] sm:$0xf]
      %v1575 = vld [vmem:[%s5 + $0x8] sm:$0xf]
      %v1576 = vld [vmem:[%s5 + $0xc] sm:$0xf]
      %v1577 = vld [vmem:[%s5 + $0x10] sm:$0xf]
      %v1578 = vld [vmem:[%s5 + $0x14] sm:$0xf]
      %v1579 = vld [vmem:[%s5 + $0x18] sm:$0xf]
      %v1580 = vld [vmem:[%s5 + $0x1c] sm:$0xf]
      %v1581 = vld [vmem:[%s5 + $0x20] sm:$0xf]
      %v1582 = vld [vmem:[%s5 + $0x24] sm:$0xf]
      %v1583 = vld [vmem:[%s5 + $0x28] sm:$0xf]
      %v1584 = vld [vmem:[%s5 + $0x2c] sm:$0xf]
      %v1585 = vld [vmem:[%s5 + $0x30] sm:$0xf]
      %v1586 = vld [vmem:[%s5 + $0x34] sm:$0xf]
      %v1587 = vld [vmem:[%s5 + $0x38] sm:$0xf]
      %v1588 = vld [vmem:[%s5 + $0x3c] sm:$0xf]
      %v1589 = vld [vmem:[%s5 + $0x40] sm:$0xf]
      %v1590 = vld [vmem:[%s5 + $0x44] sm:$0xf]
      %v1591 = vld [vmem:[%s5 + $0x48] sm:$0xf]
      %v1592 = vld [vmem:[%s5 + $0x4c] sm:$0xf]
      %v1593 = vld [vmem:[%s5 + $0x50] sm:$0xf]
      %v1594 = vld [vmem:[%s5 + $0x54] sm:$0xf]
      %v1595 = vld [vmem:[%s5 + $0x58] sm:$0xf]
      %v1596 = vld [vmem:[%s5 + $0x5c] sm:$0xf]
      %s1597 = scalar_lea.vmem %s5, 96
      %v1598 = vld [vmem:[%s1597] sm:$0xf]
      %v1599 = vld [vmem:[%s1597 + $0x4] sm:$0xf]
      %v1600 = vld [vmem:[%s1597 + $0x8] sm:$0xf]
      %v1601 = vld [vmem:[%s1597 + $0xc] sm:$0xf]
      %v1602 = vld [vmem:[%s1597 + $0x10] sm:$0xf]
      %v1603 = vld [vmem:[%s1597 + $0x14] sm:$0xf]
      %v1604 = vld [vmem:[%s1597 + $0x18] sm:$0xf]
      %v1605 = vld [vmem:[%s1597 + $0x1c] sm:$0xf]
      %v1606 = vld [vmem:[%s1597 + $0x20] sm:$0xf]
      %v1607 = vld [vmem:[%s1597 + $0x24] sm:$0xf]
      %v1608 = vld [vmem:[%s1597 + $0x28] sm:$0xf]
      %v1609 = vld [vmem:[%s1597 + $0x2c] sm:$0xf]
      %v1610 = vld [vmem:[%s1597 + $0x30] sm:$0xf]
      %v1611 = vld [vmem:[%s1597 + $0x34] sm:$0xf]
      %v1612 = vld [vmem:[%s1597 + $0x38] sm:$0xf]
      %v1613 = vld [vmem:[%s1597 + $0x3c] sm:$0xf]
      %v1614 = vld [vmem:[%s1597 + $0x40] sm:$0xf]
      %v1615 = vld [vmem:[%s1597 + $0x44] sm:$0xf]
      %v1616 = vld [vmem:[%s1597 + $0x48] sm:$0xf]
      %v1617 = vld [vmem:[%s1597 + $0x4c] sm:$0xf]
      %v1618 = vld [vmem:[%s1597 + $0x50] sm:$0xf]
      %v1619 = vld [vmem:[%s1597 + $0x54] sm:$0xf]
      %v1620 = vld [vmem:[%s1597 + $0x58] sm:$0xf]
      %v1621 = vld [vmem:[%s1597 + $0x5c] sm:$0xf]
      %v1646 = vunpack.c.l.b16 %v1598
      %v1647 = vunpack.c.l.b16 %v1599
      %v1648 = vunpack.c.l.b16 %v1600
      %v1649 = vunpack.c.l.b16 %v1601
      %v1650 = vunpack.c.l.b16 %v1602
      %v1651 = vunpack.c.l.b16 %v1603
      %v1652 = vunpack.c.l.b16 %v1604
      %v1653 = vunpack.c.l.b16 %v1605
      %v1654 = vunpack.c.l.b16 %v1606
      %v1655 = vunpack.c.l.b16 %v1607
      %v1656 = vunpack.c.l.b16 %v1608
      %v1657 = vunpack.c.l.b16 %v1609
      %v1658 = vunpack.c.l.b16 %v1610
      %v1659 = vunpack.c.l.b16 %v1611
      %v1660 = vunpack.c.l.b16 %v1612
      %v1661 = vunpack.c.l.b16 %v1613
      %v1662 = vunpack.c.l.b16 %v1614
      %v1663 = vunpack.c.l.b16 %v1615
      %v1664 = vunpack.c.l.b16 %v1616
      %v1665 = vunpack.c.l.b16 %v1617
      %v1666 = vunpack.c.l.b16 %v1618
      %v1667 = vunpack.c.l.b16 %v1619
      %v1668 = vunpack.c.l.b16 %v1620
      %v1669 = vunpack.c.l.b16 %v1621
      %v1670 = vpack.c.b16 %v1647, %v1646
      %v1671 = vpack.c.b16 %v1649, %v1648
      %v1672 = vpack.c.b16 %v1651, %v1650
      %v1673 = vpack.c.b16 %v1653, %v1652
      %v1674 = vpack.c.b16 %v1655, %v1654
      %v1675 = vpack.c.b16 %v1657, %v1656
      %v1676 = vpack.c.b16 %v1659, %v1658
      %v1677 = vpack.c.b16 %v1661, %v1660
      %v1678 = vpack.c.b16 %v1663, %v1662
      %v1679 = vpack.c.b16 %v1665, %v1664
      %v1680 = vpack.c.b16 %v1667, %v1666
      %v1681 = vpack.c.b16 %v1669, %v1668
      %v1695 = vsel %vm1500, %v1447, 0
      %v1698 = vsel %vm1500, %v1448, 0
      %v1701 = vsel %vm1500, %v1449, 0
      %v1704 = vsel %vm1500, %v1450, 0
      %v1707 = vsel %vm1500, %v1451, 0
      %v1710 = vsel %vm1500, %v1452, 0
      %v1713 = vsel %vm1500, %v1453, 0
      %v1716 = vsel %vm1500, %v1454, 0
      %v1719 = vsel %vm1500, %v1455, 0
      %v1722 = vsel %vm1500, %v1456, 0
      %v1725 = vsel %vm1500, %v1457, 0
      %v1728 = vsel %vm1500, %v1458, 0
      %v1731 = vsel %vm1500, %v1459, 0
      %v1734 = vsel %vm1500, %v1460, 0
      %v1737 = vsel %vm1500, %v1461, 0
      %v1740 = vsel %vm1500, %v1462, 0
      %1742 = vmatprep.subr.bf16.mxu0 0
      %1743 = vmatpush1.bf16.msra.mxu0 %v1677
      %1744 = vmatprep.subr.bf16.mxu0 0
      %1745 = vmatpush1.bf16.msra.mxu0 %v1676
      %1746 = vmatprep.subr.bf16.mxu0 0
      %1747 = vmatpush1.bf16.msra.mxu0 %v1675
      %1748 = vmatprep.subr.bf16.mxu0 0
      %1749 = vmatpush1.bf16.msra.mxu0 %v1674
      %1750 = vmatprep.subr.bf16.mxu0 0
      %1751 = vmatpush1.bf16.msra.mxu0 %v1673
      %1752 = vmatprep.subr.bf16.mxu0 0
      %1753 = vmatpush1.bf16.msra.mxu0 %v1672
      %1754 = vmatprep.subr.bf16.mxu0 0
      %1755 = vmatpush1.bf16.msra.mxu0 %v1671
      %1756 = vmatprep.subr.bf16.mxu0 0
      %1757 = vmatpush1.bf16.msra.mxu0 %v1670
      %1758 = vmatprep.subr.bf16.mxu0 0
      %1759 = vmatpush2.bf16.msra.mxu0 0
      %1760 = vmatprep.subr.bf16.mxu0 0
      %1761 = vmatpush2.bf16.msra.mxu0 0
      %1762 = vmatprep.subr.bf16.mxu0 0
      %1763 = vmatpush2.bf16.msra.mxu0 0
      %1764 = vmatprep.subr.bf16.mxu0 0
      %1765 = vmatpush2.bf16.msra.mxu0 0
      %1766 = vmatprep.subr.bf16.mxu0 0
      %1767 = vmatpush2.bf16.msra.mxu0 %v1681
      %1768 = vmatprep.subr.bf16.mxu0 0
      %1769 = vmatpush2.bf16.msra.mxu0 %v1680
      %1770 = vmatprep.subr.bf16.mxu0 0
      %1771 = vmatpush2.bf16.msra.mxu0 %v1679
      %1772 = vmatprep.subr.bf16.mxu0 0
      %1773 = vmatpush2.bf16.msra.mxu0 %v1678
      %1774 = vmatprep.mubr.bf16.mxu0 %v1695
      %1775 = vmatmul.mubr.bf16.gmra.mxu0 %v1507
      %v1776 = vpop.f32.mrf.mxu0
      %v1777 = vadd.f32 0.0, %v1776
      %v1778 = vpop.f32.mrf.mxu0
      %v1779 = vpop.f32.mrf.mxu0
      %v1780 = vadd.f32 0.0, %v1779
      %v1781 = vpop.f32.mrf.mxu0
      %1782 = vmatprep.mubr.bf16.mxu0 %v1698
      %1783 = vmatmul.mubr.bf16.gmra.mxu0 %v1511
      %v1784 = vpop.f32.mrf.mxu0
      %v1785 = vadd.f32 0.0, %v1784
      %v1786 = vpop.f32.mrf.mxu0
      %v1787 = vpop.f32.mrf.mxu0
      %v1788 = vadd.f32 0.0, %v1787
      %v1789 = vpop.f32.mrf.mxu0
      %1790 = vmatprep.mubr.bf16.mxu0 %v1701
      %1791 = vmatmul.mubr.bf16.gmra.mxu0 %v1515
      %v1792 = vpop.f32.mrf.mxu0
      %v1793 = vadd.f32 0.0, %v1792
      %v1794 = vpop.f32.mrf.mxu0
      %v1795 = vpop.f32.mrf.mxu0
      %v1796 = vadd.f32 0.0, %v1795
      %v1797 = vpop.f32.mrf.mxu0
      %1798 = vmatprep.mubr.bf16.mxu0 %v1704
      %1799 = vmatmul.mubr.bf16.gmra.mxu0 %v1519
      %v1800 = vpop.f32.mrf.mxu0
      %v1801 = vadd.f32 0.0, %v1800
      %v1802 = vpop.f32.mrf.mxu0
      %v1803 = vpop.f32.mrf.mxu0
      %v1804 = vadd.f32 0.0, %v1803
      %v1805 = vpop.f32.mrf.mxu0
      %1806 = vmatprep.mubr.bf16.mxu0 %v1707
      %1807 = vmatmul.mubr.bf16.gmra.mxu0 %v1523
      %v1808 = vpop.f32.mrf.mxu0
      %v1809 = vadd.f32 0.0, %v1808
      %v1810 = vpop.f32.mrf.mxu0
      %v1811 = vpop.f32.mrf.mxu0
      %v1812 = vadd.f32 0.0, %v1811
      %v1813 = vpop.f32.mrf.mxu0
      %1814 = vmatprep.mubr.bf16.mxu0 %v1710
      %1815 = vmatmul.mubr.bf16.gmra.mxu0 %v1527
      %v1816 = vpop.f32.mrf.mxu0
      %v1817 = vadd.f32 0.0, %v1816
      %v1818 = vpop.f32.mrf.mxu0
      %v1819 = vpop.f32.mrf.mxu0
      %v1820 = vadd.f32 0.0, %v1819
      %v1821 = vpop.f32.mrf.mxu0
      %1822 = vmatprep.mubr.bf16.mxu0 %v1713
      %1823 = vmatmul.mubr.bf16.gmra.mxu0 %v1531
      %v1824 = vpop.f32.mrf.mxu0
      %v1825 = vadd.f32 0.0, %v1824
      %v1826 = vpop.f32.mrf.mxu0
      %v1827 = vpop.f32.mrf.mxu0
      %v1828 = vadd.f32 0.0, %v1827
      %v1829 = vpop.f32.mrf.mxu0
      %1830 = vmatprep.mubr.bf16.mxu0 %v1716
      %1831 = vmatmul.mubr.bf16.gmra.mxu0 %v1535
      %v1832 = vpop.f32.mrf.mxu0
      %v1833 = vadd.f32 0.0, %v1832
      %v1834 = vpop.f32.mrf.mxu0
      %v1835 = vpop.f32.mrf.mxu0
      %v1836 = vadd.f32 0.0, %v1835
      %v1837 = vpop.f32.mrf.mxu0
      %1838 = vmatprep.mubr.bf16.mxu0 %v1719
      %1839 = vmatmul.mubr.bf16.gmra.mxu0 %v1539
      %v1840 = vpop.f32.mrf.mxu0
      %v1841 = vadd.f32 0.0, %v1840
      %v1842 = vpop.f32.mrf.mxu0
      %v1843 = vpop.f32.mrf.mxu0
      %v1844 = vadd.f32 0.0, %v1843
      %v1845 = vpop.f32.mrf.mxu0
      %1846 = vmatprep.mubr.bf16.mxu0 %v1722
      %1847 = vmatmul.mubr.bf16.gmra.mxu0 %v1543
      %v1848 = vpop.f32.mrf.mxu0
      %v1849 = vadd.f32 0.0, %v1848
      %v1850 = vpop.f32.mrf.mxu0
      %v1851 = vpop.f32.mrf.mxu0
      %v1852 = vadd.f32 0.0, %v1851
      %v1853 = vpop.f32.mrf.mxu0
      %1854 = vmatprep.mubr.bf16.mxu0 %v1725
      %1855 = vmatmul.mubr.bf16.gmra.mxu0 %v1547
      %v1856 = vpop.f32.mrf.mxu0
      %v1857 = vadd.f32 0.0, %v1856
      %v1858 = vpop.f32.mrf.mxu0
      %v1859 = vpop.f32.mrf.mxu0
      %v1860 = vadd.f32 0.0, %v1859
      %v1861 = vpop.f32.mrf.mxu0
      %1862 = vmatprep.mubr.bf16.mxu0 %v1728
      %1863 = vmatmul.mubr.bf16.gmra.mxu0 %v1551
      %v1864 = vpop.f32.mrf.mxu0
      %v1865 = vadd.f32 0.0, %v1864
      %v1866 = vpop.f32.mrf.mxu0
      %v1867 = vpop.f32.mrf.mxu0
      %v1868 = vadd.f32 0.0, %v1867
      %v1869 = vpop.f32.mrf.mxu0
      %1870 = vmatprep.mubr.bf16.mxu0 %v1731
      %1871 = vmatmul.mubr.bf16.gmra.mxu0 %v1555
      %v1872 = vpop.f32.mrf.mxu0
      %v1873 = vadd.f32 0.0, %v1872
      %v1874 = vpop.f32.mrf.mxu0
      %v1875 = vpop.f32.mrf.mxu0
      %v1876 = vadd.f32 0.0, %v1875
      %v1877 = vpop.f32.mrf.mxu0
      %1878 = vmatprep.mubr.bf16.mxu0 %v1734
      %1879 = vmatmul.mubr.bf16.gmra.mxu0 %v1559
      %v1880 = vpop.f32.mrf.mxu0
      %v1881 = vadd.f32 0.0, %v1880
      %v1882 = vpop.f32.mrf.mxu0
      %v1883 = vpop.f32.mrf.mxu0
      %v1884 = vadd.f32 0.0, %v1883
      %v1885 = vpop.f32.mrf.mxu0
      %1886 = vmatprep.mubr.bf16.mxu0 %v1737
      %1887 = vmatmul.mubr.bf16.gmra.mxu0 %v1563
      %v1888 = vpop.f32.mrf.mxu0
      %v1889 = vadd.f32 0.0, %v1888
      %v1890 = vpop.f32.mrf.mxu0
      %v1891 = vpop.f32.mrf.mxu0
      %v1892 = vadd.f32 0.0, %v1891
      %v1893 = vpop.f32.mrf.mxu0
      %1894 = vmatprep.mubr.bf16.mxu0 %v1740
      %1895 = vmatmul.mubr.bf16.gmra.mxu0 %v1567
      %v1896 = vpop.f32.mrf.mxu0
      %v1897 = vadd.f32 0.0, %v1896
      %v1898 = vpop.f32.mrf.mxu0
      %v1899 = vpop.f32.mrf.mxu0
      %v1900 = vadd.f32 0.0, %v1899
      %v1901 = vpop.f32.mrf.mxu0
      %1902 = vdwg.mxu0
      %v1927 = vunpack.c.l.b16 %v1573
      %v1928 = vunpack.c.l.b16 %v1574
      %v1929 = vunpack.c.l.b16 %v1575
      %v1930 = vunpack.c.l.b16 %v1576
      %v1931 = vunpack.c.l.b16 %v1577
      %v1932 = vunpack.c.l.b16 %v1578
      %v1933 = vunpack.c.l.b16 %v1579
      %v1934 = vunpack.c.l.b16 %v1580
      %v1935 = vunpack.c.l.b16 %v1581
      %v1936 = vunpack.c.l.b16 %v1582
      %v1937 = vunpack.c.l.b16 %v1583
      %v1938 = vunpack.c.l.b16 %v1584
      %v1939 = vunpack.c.l.b16 %v1585
      %v1940 = vunpack.c.l.b16 %v1586
      %v1941 = vunpack.c.l.b16 %v1587
      %v1942 = vunpack.c.l.b16 %v1588
      %v1943 = vunpack.c.l.b16 %v1589
      %v1944 = vunpack.c.l.b16 %v1590
      %v1945 = vunpack.c.l.b16 %v1591
      %v1946 = vunpack.c.l.b16 %v1592
      %v1947 = vunpack.c.l.b16 %v1593
      %v1948 = vunpack.c.l.b16 %v1594
      %v1949 = vunpack.c.l.b16 %v1595
      %v1950 = vunpack.c.l.b16 %v1596
      %v1951 = vpack.c.b16 %v1928, %v1927
      %v1952 = vpack.c.b16 %v1930, %v1929
      %v1953 = vpack.c.b16 %v1932, %v1931
      %v1954 = vpack.c.b16 %v1934, %v1933
      %v1955 = vpack.c.b16 %v1936, %v1935
      %v1956 = vpack.c.b16 %v1938, %v1937
      %v1957 = vpack.c.b16 %v1940, %v1939
      %v1958 = vpack.c.b16 %v1942, %v1941
      %v1959 = vpack.c.b16 %v1944, %v1943
      %v1960 = vpack.c.b16 %v1946, %v1945
      %v1961 = vpack.c.b16 %v1948, %v1947
      %v1962 = vpack.c.b16 %v1950, %v1949
      %v1976 = vsel %vm1500, %v1446, 0
      %1978 = vmatprep.subr.bf16.mxu0 0
      %1979 = vmatpush1.bf16.msra.mxu0 %v1958
      %1980 = vmatprep.subr.bf16.mxu0 0
      %1981 = vmatpush1.bf16.msra.mxu0 %v1957
      %1982 = vmatprep.subr.bf16.mxu0 0
      %1983 = vmatpush1.bf16.msra.mxu0 %v1956
      %1984 = vmatprep.subr.bf16.mxu0 0
      %1985 = vmatpush1.bf16.msra.mxu0 %v1955
      %1986 = vmatprep.subr.bf16.mxu0 0
      %1987 = vmatpush1.bf16.msra.mxu0 %v1954
      %1988 = vmatprep.subr.bf16.mxu0 0
      %1989 = vmatpush1.bf16.msra.mxu0 %v1953
      %1990 = vmatprep.subr.bf16.mxu0 0
      %1991 = vmatpush1.bf16.msra.mxu0 %v1952
      %1992 = vmatprep.subr.bf16.mxu0 0
      %1993 = vmatpush1.bf16.msra.mxu0 %v1951
      %1994 = vmatprep.subr.bf16.mxu0 0
      %1995 = vmatpush2.bf16.msra.mxu0 0
      %1996 = vmatprep.subr.bf16.mxu0 0
      %1997 = vmatpush2.bf16.msra.mxu0 0
      %1998 = vmatprep.subr.bf16.mxu0 0
      %1999 = vmatpush2.bf16.msra.mxu0 0
      %2000 = vmatprep.subr.bf16.mxu0 0
      %2001 = vmatpush2.bf16.msra.mxu0 0
      %2002 = vmatprep.subr.bf16.mxu0 0
      %2003 = vmatpush2.bf16.msra.mxu0 %v1962
      %2004 = vmatprep.subr.bf16.mxu0 0
      %2005 = vmatpush2.bf16.msra.mxu0 %v1961
      %2006 = vmatprep.subr.bf16.mxu0 0
      %2007 = vmatpush2.bf16.msra.mxu0 %v1960
      %2008 = vmatprep.subr.bf16.mxu0 0
      %2009 = vmatpush2.bf16.msra.mxu0 %v1959
      %2010 = vmatprep.mubr.bf16.mxu0 %v1976
      %2011 = vmatmul.mubr.bf16.gmra.mxu0 %v1503
      %v2012 = vpop.f32.mrf.mxu0
      %v2013 = vadd.f32 %v1777, %v2012
      %v2014 = vpop.f32.mrf.mxu0
      %v2015 = vpop.f32.mrf.mxu0
      %v2016 = vadd.f32 %v1780, %v2015
      %v2017 = vpop.f32.mrf.mxu0
      %2018 = vmatprep.mubr.bf16.mxu0 %v1695
      %2019 = vmatmul.mubr.bf16.gmra.mxu0 %v1507
      %v2020 = vpop.f32.mrf.mxu0
      %v2021 = vadd.f32 %v1785, %v2020
      %v2022 = vpop.f32.mrf.mxu0
      %v2023 = vpop.f32.mrf.mxu0
      %v2024 = vadd.f32 %v1788, %v2023
      %v2025 = vpop.f32.mrf.mxu0
      %2026 = vmatprep.mubr.bf16.mxu0 %v1698
      %2027 = vmatmul.mubr.bf16.gmra.mxu0 %v1511
      %v2028 = vpop.f32.mrf.mxu0
      %v2029 = vadd.f32 %v1793, %v2028
      %v2030 = vpop.f32.mrf.mxu0
      %v2031 = vpop.f32.mrf.mxu0
      %v2032 = vadd.f32 %v1796, %v2031
      %v2033 = vpop.f32.mrf.mxu0
      %2034 = vmatprep.mubr.bf16.mxu0 %v1701
      %2035 = vmatmul.mubr.bf16.gmra.mxu0 %v1515
      %v2036 = vpop.f32.mrf.mxu0
      %v2037 = vadd.f32 %v1801, %v2036
      %v2038 = vpop.f32.mrf.mxu0
      %v2039 = vpop.f32.mrf.mxu0
      %v2040 = vadd.f32 %v1804, %v2039
      %v2041 = vpop.f32.mrf.mxu0
      %2042 = vmatprep.mubr.bf16.mxu0 %v1704
      %2043 = vmatmul.mubr.bf16.gmra.mxu0 %v1519
      %v2044 = vpop.f32.mrf.mxu0
      %v2045 = vadd.f32 %v1809, %v2044
      %v2046 = vpop.f32.mrf.mxu0
      %v2047 = vpop.f32.mrf.mxu0
      %v2048 = vadd.f32 %v1812, %v2047
      %v2049 = vpop.f32.mrf.mxu0
      %2050 = vmatprep.mubr.bf16.mxu0 %v1707
      %2051 = vmatmul.mubr.bf16.gmra.mxu0 %v1523
      %v2052 = vpop.f32.mrf.mxu0
      %v2053 = vadd.f32 %v1817, %v2052
      %v2054 = vpop.f32.mrf.mxu0
      %v2055 = vpop.f32.mrf.mxu0
      %v2056 = vadd.f32 %v1820, %v2055
      %v2057 = vpop.f32.mrf.mxu0
      %2058 = vmatprep.mubr.bf16.mxu0 %v1710
      %2059 = vmatmul.mubr.bf16.gmra.mxu0 %v1527
      %v2060 = vpop.f32.mrf.mxu0
      %v2061 = vadd.f32 %v1825, %v2060
      %v2062 = vpop.f32.mrf.mxu0
      %v2063 = vpop.f32.mrf.mxu0
      %v2064 = vadd.f32 %v1828, %v2063
      %v2065 = vpop.f32.mrf.mxu0
      %2066 = vmatprep.mubr.bf16.mxu0 %v1713
      %2067 = vmatmul.mubr.bf16.gmra.mxu0 %v1531
      %v2068 = vpop.f32.mrf.mxu0
      %v2069 = vadd.f32 %v1833, %v2068
      %v2070 = vpop.f32.mrf.mxu0
      %v2071 = vpop.f32.mrf.mxu0
      %v2072 = vadd.f32 %v1836, %v2071
      %v2073 = vpop.f32.mrf.mxu0
      %2074 = vmatprep.mubr.bf16.mxu0 %v1716
      %2075 = vmatmul.mubr.bf16.gmra.mxu0 %v1535
      %v2076 = vpop.f32.mrf.mxu0
      %v2077 = vadd.f32 %v1841, %v2076
      %v2078 = vpop.f32.mrf.mxu0
      %v2079 = vpop.f32.mrf.mxu0
      %v2080 = vadd.f32 %v1844, %v2079
      %v2081 = vpop.f32.mrf.mxu0
      %2082 = vmatprep.mubr.bf16.mxu0 %v1719
      %2083 = vmatmul.mubr.bf16.gmra.mxu0 %v1539
      %v2084 = vpop.f32.mrf.mxu0
      %v2085 = vadd.f32 %v1849, %v2084
      %v2086 = vpop.f32.mrf.mxu0
      %v2087 = vpop.f32.mrf.mxu0
      %v2088 = vadd.f32 %v1852, %v2087
      %v2089 = vpop.f32.mrf.mxu0
      %2090 = vmatprep.mubr.bf16.mxu0 %v1722
      %2091 = vmatmul.mubr.bf16.gmra.mxu0 %v1543
      %v2092 = vpop.f32.mrf.mxu0
      %v2093 = vadd.f32 %v1857, %v2092
      %v2094 = vpop.f32.mrf.mxu0
      %v2095 = vpop.f32.mrf.mxu0
      %v2096 = vadd.f32 %v1860, %v2095
      %v2097 = vpop.f32.mrf.mxu0
      %2098 = vmatprep.mubr.bf16.mxu0 %v1725
      %2099 = vmatmul.mubr.bf16.gmra.mxu0 %v1547
      %v2100 = vpop.f32.mrf.mxu0
      %v2101 = vadd.f32 %v1865, %v2100
      %v2102 = vpop.f32.mrf.mxu0
      %v2103 = vpop.f32.mrf.mxu0
      %v2104 = vadd.f32 %v1868, %v2103
      %v2105 = vpop.f32.mrf.mxu0
      %2106 = vmatprep.mubr.bf16.mxu0 %v1728
      %2107 = vmatmul.mubr.bf16.gmra.mxu0 %v1551
      %v2108 = vpop.f32.mrf.mxu0
      %v2109 = vadd.f32 %v1873, %v2108
      %v2110 = vpop.f32.mrf.mxu0
      %v2111 = vpop.f32.mrf.mxu0
      %v2112 = vadd.f32 %v1876, %v2111
      %v2113 = vpop.f32.mrf.mxu0
      %2114 = vmatprep.mubr.bf16.mxu0 %v1731
      %2115 = vmatmul.mubr.bf16.gmra.mxu0 %v1555
      %v2116 = vpop.f32.mrf.mxu0
      %v2117 = vadd.f32 %v1881, %v2116
      %v2118 = vpop.f32.mrf.mxu0
      %v2119 = vpop.f32.mrf.mxu0
      %v2120 = vadd.f32 %v1884, %v2119
      %v2121 = vpop.f32.mrf.mxu0
      %2122 = vmatprep.mubr.bf16.mxu0 %v1734
      %2123 = vmatmul.mubr.bf16.gmra.mxu0 %v1559
      %v2124 = vpop.f32.mrf.mxu0
      %v2125 = vadd.f32 %v1889, %v2124
      %v2126 = vpop.f32.mrf.mxu0
      %v2127 = vpop.f32.mrf.mxu0
      %v2128 = vadd.f32 %v1892, %v2127
      %v2129 = vpop.f32.mrf.mxu0
      %2130 = vmatprep.mubr.bf16.mxu0 %v1737
      %2131 = vmatmul.mubr.bf16.gmra.mxu0 %v1563
      %v2132 = vpop.f32.mrf.mxu0
      %v2133 = vadd.f32 %v1897, %v2132
      %v2134 = vpop.f32.mrf.mxu0
      %v2135 = vpop.f32.mrf.mxu0
      %v2136 = vadd.f32 %v1900, %v2135
      %v2137 = vpop.f32.mrf.mxu0
      %2138 = vdwg.mxu0
      %s2139 = scalar_lea.vmem %s5, 192
      %v2140 = vld [vmem:[%s2139] sm:$0xf]
      %v2141 = vld [vmem:[%s2139 + $0x4] sm:$0xf]
      %v2142 = vld [vmem:[%s2139 + $0x8] sm:$0xf]
      %v2143 = vld [vmem:[%s2139 + $0xc] sm:$0xf]
      %v2144 = vld [vmem:[%s2139 + $0x10] sm:$0xf]
      %v2145 = vld [vmem:[%s2139 + $0x14] sm:$0xf]
      %v2146 = vld [vmem:[%s2139 + $0x18] sm:$0xf]
      %v2147 = vld [vmem:[%s2139 + $0x1c] sm:$0xf]
      %v2148 = vld [vmem:[%s2139 + $0x20] sm:$0xf]
      %v2149 = vld [vmem:[%s2139 + $0x24] sm:$0xf]
      %v2150 = vld [vmem:[%s2139 + $0x28] sm:$0xf]
      %v2151 = vld [vmem:[%s2139 + $0x2c] sm:$0xf]
      %v2152 = vld [vmem:[%s2139 + $0x30] sm:$0xf]
      %v2153 = vld [vmem:[%s2139 + $0x34] sm:$0xf]
      %v2154 = vld [vmem:[%s2139 + $0x38] sm:$0xf]
      %v2155 = vld [vmem:[%s2139 + $0x3c] sm:$0xf]
      %v2156 = vld [vmem:[%s2139 + $0x40] sm:$0xf]
      %v2157 = vld [vmem:[%s2139 + $0x44] sm:$0xf]
      %v2158 = vld [vmem:[%s2139 + $0x48] sm:$0xf]
      %v2159 = vld [vmem:[%s2139 + $0x4c] sm:$0xf]
      %v2160 = vld [vmem:[%s2139 + $0x50] sm:$0xf]
      %v2161 = vld [vmem:[%s2139 + $0x54] sm:$0xf]
      %v2162 = vld [vmem:[%s2139 + $0x58] sm:$0xf]
      %v2163 = vld [vmem:[%s2139 + $0x5c] sm:$0xf]
      %v2188 = vunpack.c.l.b16 %v2140
      %v2189 = vunpack.c.l.b16 %v2141
      %v2190 = vunpack.c.l.b16 %v2142
      %v2191 = vunpack.c.l.b16 %v2143
      %v2192 = vunpack.c.l.b16 %v2144
      %v2193 = vunpack.c.l.b16 %v2145
      %v2194 = vunpack.c.l.b16 %v2146
      %v2195 = vunpack.c.l.b16 %v2147
      %v2196 = vunpack.c.l.b16 %v2148
      %v2197 = vunpack.c.l.b16 %v2149
      %v2198 = vunpack.c.l.b16 %v2150
      %v2199 = vunpack.c.l.b16 %v2151
      %v2200 = vunpack.c.l.b16 %v2152
      %v2201 = vunpack.c.l.b16 %v2153
      %v2202 = vunpack.c.l.b16 %v2154
      %v2203 = vunpack.c.l.b16 %v2155
      %v2204 = vunpack.c.l.b16 %v2156
      %v2205 = vunpack.c.l.b16 %v2157
      %v2206 = vunpack.c.l.b16 %v2158
      %v2207 = vunpack.c.l.b16 %v2159
      %v2208 = vunpack.c.l.b16 %v2160
      %v2209 = vunpack.c.l.b16 %v2161
      %v2210 = vunpack.c.l.b16 %v2162
      %v2211 = vunpack.c.l.b16 %v2163
      %v2212 = vpack.c.b16 %v2189, %v2188
      %v2213 = vpack.c.b16 %v2191, %v2190
      %v2214 = vpack.c.b16 %v2193, %v2192
      %v2215 = vpack.c.b16 %v2195, %v2194
      %v2216 = vpack.c.b16 %v2197, %v2196
      %v2217 = vpack.c.b16 %v2199, %v2198
      %v2218 = vpack.c.b16 %v2201, %v2200
      %v2219 = vpack.c.b16 %v2203, %v2202
      %v2220 = vpack.c.b16 %v2205, %v2204
      %v2221 = vpack.c.b16 %v2207, %v2206
      %v2222 = vpack.c.b16 %v2209, %v2208
      %v2223 = vpack.c.b16 %v2211, %v2210
      %v2237 = vsel %vm1500, %v1463, 0
      %2239 = vmatprep.subr.bf16.mxu0 0
      %2240 = vmatpush1.bf16.msra.mxu0 %v2219
      %2241 = vmatprep.subr.bf16.mxu0 0
      %2242 = vmatpush1.bf16.msra.mxu0 %v2218
      %2243 = vmatprep.subr.bf16.mxu0 0
      %2244 = vmatpush1.bf16.msra.mxu0 %v2217
      %2245 = vmatprep.subr.bf16.mxu0 0
      %2246 = vmatpush1.bf16.msra.mxu0 %v2216
      %2247 = vmatprep.subr.bf16.mxu0 0
      %2248 = vmatpush1.bf16.msra.mxu0 %v2215
      %2249 = vmatprep.subr.bf16.mxu0 0
      %2250 = vmatpush1.bf16.msra.mxu0 %v2214
      %2251 = vmatprep.subr.bf16.mxu0 0
      %2252 = vmatpush1.bf16.msra.mxu0 %v2213
      %2253 = vmatprep.subr.bf16.mxu0 0
      %2254 = vmatpush1.bf16.msra.mxu0 %v2212
      %2255 = vmatprep.subr.bf16.mxu0 0
      %2256 = vmatpush2.bf16.msra.mxu0 0
      %2257 = vmatprep.subr.bf16.mxu0 0
      %2258 = vmatpush2.bf16.msra.mxu0 0
      %2259 = vmatprep.subr.bf16.mxu0 0
      %2260 = vmatpush2.bf16.msra.mxu0 0
      %2261 = vmatprep.subr.bf16.mxu0 0
      %2262 = vmatpush2.bf16.msra.mxu0 0
      %2263 = vmatprep.subr.bf16.mxu0 0
      %2264 = vmatpush2.bf16.msra.mxu0 %v2223
      %2265 = vmatprep.subr.bf16.mxu0 0
      %2266 = vmatpush2.bf16.msra.mxu0 %v2222
      %2267 = vmatprep.subr.bf16.mxu0 0
      %2268 = vmatpush2.bf16.msra.mxu0 %v2221
      %2269 = vmatprep.subr.bf16.mxu0 0
      %2270 = vmatpush2.bf16.msra.mxu0 %v2220
      %2271 = vmatprep.mubr.bf16.mxu0 %v1698
      %2272 = vmatmul.mubr.bf16.gmra.mxu0 %v1511
      %v2273 = vpop.f32.mrf.mxu0
      %v2274 = vadd.f32 0.0, %v2273
      %v2275 = vpop.f32.mrf.mxu0
      %v2276 = vpop.f32.mrf.mxu0
      %v2277 = vadd.f32 0.0, %v2276
      %v2278 = vpop.f32.mrf.mxu0
      %2279 = vmatprep.mubr.bf16.mxu0 %v1701
      %2280 = vmatmul.mubr.bf16.gmra.mxu0 %v1515
      %v2281 = vpop.f32.mrf.mxu0
      %v2282 = vadd.f32 0.0, %v2281
      %v2283 = vpop.f32.mrf.mxu0
      %v2284 = vpop.f32.mrf.mxu0
      %v2285 = vadd.f32 0.0, %v2284
      %v2286 = vpop.f32.mrf.mxu0
      %2287 = vmatprep.mubr.bf16.mxu0 %v1704
      %2288 = vmatmul.mubr.bf16.gmra.mxu0 %v1519
      %v2289 = vpop.f32.mrf.mxu0
      %v2290 = vadd.f32 0.0, %v2289
      %v2291 = vpop.f32.mrf.mxu0
      %v2292 = vpop.f32.mrf.mxu0
      %v2293 = vadd.f32 0.0, %v2292
      %v2294 = vpop.f32.mrf.mxu0
      %2295 = vmatprep.mubr.bf16.mxu0 %v1707
      %2296 = vmatmul.mubr.bf16.gmra.mxu0 %v1523
      %v2297 = vpop.f32.mrf.mxu0
      %v2298 = vadd.f32 0.0, %v2297
      %v2299 = vpop.f32.mrf.mxu0
      %v2300 = vpop.f32.mrf.mxu0
      %v2301 = vadd.f32 0.0, %v2300
      %v2302 = vpop.f32.mrf.mxu0
      %2303 = vmatprep.mubr.bf16.mxu0 %v1710
      %2304 = vmatmul.mubr.bf16.gmra.mxu0 %v1527
      %v2305 = vpop.f32.mrf.mxu0
      %v2306 = vadd.f32 0.0, %v2305
      %v2307 = vpop.f32.mrf.mxu0
      %v2308 = vpop.f32.mrf.mxu0
      %v2309 = vadd.f32 0.0, %v2308
      %v2310 = vpop.f32.mrf.mxu0
      %2311 = vmatprep.mubr.bf16.mxu0 %v1713
      %2312 = vmatmul.mubr.bf16.gmra.mxu0 %v1531
      %v2313 = vpop.f32.mrf.mxu0
      %v2314 = vadd.f32 0.0, %v2313
      %v2315 = vpop.f32.mrf.mxu0
      %v2316 = vpop.f32.mrf.mxu0
      %v2317 = vadd.f32 0.0, %v2316
      %v2318 = vpop.f32.mrf.mxu0
      %2319 = vmatprep.mubr.bf16.mxu0 %v1716
      %2320 = vmatmul.mubr.bf16.gmra.mxu0 %v1535
      %v2321 = vpop.f32.mrf.mxu0
      %v2322 = vadd.f32 0.0, %v2321
      %v2323 = vpop.f32.mrf.mxu0
      %v2324 = vpop.f32.mrf.mxu0
      %v2325 = vadd.f32 0.0, %v2324
      %v2326 = vpop.f32.mrf.mxu0
      %2327 = vmatprep.mubr.bf16.mxu0 %v1719
      %2328 = vmatmul.mubr.bf16.gmra.mxu0 %v1539
      %v2329 = vpop.f32.mrf.mxu0
      %v2330 = vadd.f32 0.0, %v2329
      %v2331 = vpop.f32.mrf.mxu0
      %v2332 = vpop.f32.mrf.mxu0
      %v2333 = vadd.f32 0.0, %v2332
      %v2334 = vpop.f32.mrf.mxu0
      %2335 = vmatprep.mubr.bf16.mxu0 %v1722
      %2336 = vmatmul.mubr.bf16.gmra.mxu0 %v1543
      %v2337 = vpop.f32.mrf.mxu0
      %v2338 = vadd.f32 0.0, %v2337
      %v2339 = vpop.f32.mrf.mxu0
      %v2340 = vpop.f32.mrf.mxu0
      %v2341 = vadd.f32 0.0, %v2340
      %v2342 = vpop.f32.mrf.mxu0
      %2343 = vmatprep.mubr.bf16.mxu0 %v1725
      %2344 = vmatmul.mubr.bf16.gmra.mxu0 %v1547
      %v2345 = vpop.f32.mrf.mxu0
      %v2346 = vadd.f32 0.0, %v2345
      %v2347 = vpop.f32.mrf.mxu0
      %v2348 = vpop.f32.mrf.mxu0
      %v2349 = vadd.f32 0.0, %v2348
      %v2350 = vpop.f32.mrf.mxu0
      %2351 = vmatprep.mubr.bf16.mxu0 %v1728
      %2352 = vmatmul.mubr.bf16.gmra.mxu0 %v1551
      %v2353 = vpop.f32.mrf.mxu0
      %v2354 = vadd.f32 0.0, %v2353
      %v2355 = vpop.f32.mrf.mxu0
      %v2356 = vpop.f32.mrf.mxu0
      %v2357 = vadd.f32 0.0, %v2356
      %v2358 = vpop.f32.mrf.mxu0
      %2359 = vmatprep.mubr.bf16.mxu0 %v1731
      %2360 = vmatmul.mubr.bf16.gmra.mxu0 %v1555
      %v2361 = vpop.f32.mrf.mxu0
      %v2362 = vadd.f32 0.0, %v2361
      %v2363 = vpop.f32.mrf.mxu0
      %v2364 = vpop.f32.mrf.mxu0
      %v2365 = vadd.f32 0.0, %v2364
      %v2366 = vpop.f32.mrf.mxu0
      %2367 = vmatprep.mubr.bf16.mxu0 %v1734
      %2368 = vmatmul.mubr.bf16.gmra.mxu0 %v1559
      %v2369 = vpop.f32.mrf.mxu0
      %v2370 = vadd.f32 0.0, %v2369
      %v2371 = vpop.f32.mrf.mxu0
      %v2372 = vpop.f32.mrf.mxu0
      %v2373 = vadd.f32 0.0, %v2372
      %v2374 = vpop.f32.mrf.mxu0
      %2375 = vmatprep.mubr.bf16.mxu0 %v1737
      %2376 = vmatmul.mubr.bf16.gmra.mxu0 %v1563
      %v2377 = vpop.f32.mrf.mxu0
      %v2378 = vadd.f32 0.0, %v2377
      %v2379 = vpop.f32.mrf.mxu0
      %v2380 = vpop.f32.mrf.mxu0
      %v2381 = vadd.f32 0.0, %v2380
      %v2382 = vpop.f32.mrf.mxu0
      %2383 = vmatprep.mubr.bf16.mxu0 %v1740
      %2384 = vmatmul.mubr.bf16.gmra.mxu0 %v1567
      %v2385 = vpop.f32.mrf.mxu0
      %v2386 = vadd.f32 0.0, %v2385
      %v2387 = vpop.f32.mrf.mxu0
      %v2388 = vpop.f32.mrf.mxu0
      %v2389 = vadd.f32 0.0, %v2388
      %v2390 = vpop.f32.mrf.mxu0
      %2391 = vmatprep.mubr.bf16.mxu0 %v2237
      %2392 = vmatmul.mubr.bf16.gmra.mxu0 %v1571
      %v2393 = vpop.f32.mrf.mxu0
      %v2394 = vadd.f32 0.0, %v2393
      %v2395 = vpop.f32.mrf.mxu0
      %v2396 = vpop.f32.mrf.mxu0
      %v2397 = vadd.f32 0.0, %v2396
      %v2398 = vpop.f32.mrf.mxu0
      %2399 = vdwg.mxu0
      %v2400 = vadd.f32 %v2013, %v2274
      %v2401 = vadd.f32 %v2016, %v2277
      %v2402 = vadd.f32 %v2021, %v2282
      %v2403 = vadd.f32 %v2024, %v2285
      %v2404 = vadd.f32 %v2029, %v2290
      %v2405 = vadd.f32 %v2032, %v2293
      %v2406 = vadd.f32 %v2037, %v2298
      %v2407 = vadd.f32 %v2040, %v2301
      %v2408 = vadd.f32 %v2045, %v2306
      %v2409 = vadd.f32 %v2048, %v2309
      %v2410 = vadd.f32 %v2053, %v2314
      %v2411 = vadd.f32 %v2056, %v2317
      %v2412 = vadd.f32 %v2061, %v2322
      %v2413 = vadd.f32 %v2064, %v2325
      %v2414 = vadd.f32 %v2069, %v2330
      %v2415 = vadd.f32 %v2072, %v2333
      %v2416 = vadd.f32 %v2077, %v2338
      %v2417 = vadd.f32 %v2080, %v2341
      %v2418 = vadd.f32 %v2085, %v2346
      %v2419 = vadd.f32 %v2088, %v2349
      %v2420 = vadd.f32 %v2093, %v2354
      %v2421 = vadd.f32 %v2096, %v2357
      %v2422 = vadd.f32 %v2101, %v2362
      %v2423 = vadd.f32 %v2104, %v2365
      %v2424 = vadd.f32 %v2109, %v2370
      %v2425 = vadd.f32 %v2112, %v2373
      %v2426 = vadd.f32 %v2117, %v2378
      %v2427 = vadd.f32 %v2120, %v2381
      %v2428 = vadd.f32 %v2125, %v2386
      %v2429 = vadd.f32 %v2128, %v2389
      %v2430 = vadd.f32 %v2133, %v2394
      %v2431 = vadd.f32 %v2136, %v2397
      %v2432 = vld [vmem:[%s6] sm:$0x1]
      %v2434 = vlaneseq
      %v2435 = vshrl.u32 %v2434, 7
      %v2436 = vsub.s32 0, %v2435
      %v2437 = vrot.slane %v2432, %v2436
      %v2439 = vadd.f32 %v2400, %v2437
      %v2440 = vadd.f32 %v2401, %v2437
      %v2441 = vadd.f32 %v2402, %v2437
      %v2442 = vadd.f32 %v2403, %v2437
      %v2443 = vadd.f32 %v2404, %v2437
      %v2444 = vadd.f32 %v2405, %v2437
      %v2445 = vadd.f32 %v2406, %v2437
      %v2446 = vadd.f32 %v2407, %v2437
      %v2447 = vadd.f32 %v2408, %v2437
      %v2448 = vadd.f32 %v2409, %v2437
      %v2449 = vadd.f32 %v2410, %v2437
      %v2450 = vadd.f32 %v2411, %v2437
      %v2451 = vadd.f32 %v2412, %v2437
      %v2452 = vadd.f32 %v2413, %v2437
      %v2453 = vadd.f32 %v2414, %v2437
      %v2454 = vadd.f32 %v2415, %v2437
      %v2455 = vadd.f32 %v2416, %v2437
      %v2456 = vadd.f32 %v2417, %v2437
      %v2457 = vadd.f32 %v2418, %v2437
      %v2458 = vadd.f32 %v2419, %v2437
      %v2459 = vadd.f32 %v2420, %v2437
      %v2460 = vadd.f32 %v2421, %v2437
      %v2461 = vadd.f32 %v2422, %v2437
      %v2462 = vadd.f32 %v2423, %v2437
      %v2463 = vadd.f32 %v2424, %v2437
      %v2464 = vadd.f32 %v2425, %v2437
      %v2465 = vadd.f32 %v2426, %v2437
      %v2466 = vadd.f32 %v2427, %v2437
      %v2467 = vadd.f32 %v2428, %v2437
      %v2468 = vadd.f32 %v2429, %v2437
      %v2469 = vadd.f32 %v2430, %v2437
      %v2470 = vadd.f32 %v2431, %v2437
      %v2471 = vmax.f32 %v2439, 0.0
      %v2472 = vmax.f32 %v2440, 0.0
      %v2473 = vmax.f32 %v2441, 0.0
      %v2474 = vmax.f32 %v2442, 0.0
      %v2475 = vmax.f32 %v2443, 0.0
      %v2476 = vmax.f32 %v2444, 0.0
      %v2477 = vmax.f32 %v2445, 0.0
      %v2478 = vmax.f32 %v2446, 0.0
      %v2479 = vmax.f32 %v2447, 0.0
      %v2480 = vmax.f32 %v2448, 0.0
      %v2481 = vmax.f32 %v2449, 0.0
      %v2482 = vmax.f32 %v2450, 0.0
      %v2483 = vmax.f32 %v2451, 0.0
      %v2484 = vmax.f32 %v2452, 0.0
      %v2485 = vmax.f32 %v2453, 0.0
      %v2486 = vmax.f32 %v2454, 0.0
      %v2487 = vmax.f32 %v2455, 0.0
      %v2488 = vmax.f32 %v2456, 0.0
      %v2489 = vmax.f32 %v2457, 0.0
      %v2490 = vmax.f32 %v2458, 0.0
      %v2491 = vmax.f32 %v2459, 0.0
      %v2492 = vmax.f32 %v2460, 0.0
      %v2493 = vmax.f32 %v2461, 0.0
      %v2494 = vmax.f32 %v2462, 0.0
      %v2495 = vmax.f32 %v2463, 0.0
      %v2496 = vmax.f32 %v2464, 0.0
      %v2497 = vmax.f32 %v2465, 0.0
      %v2498 = vmax.f32 %v2466, 0.0
      %v2499 = vmax.f32 %v2467, 0.0
      %v2500 = vmax.f32 %v2468, 0.0
      %v2501 = vmax.f32 %v2469, 0.0
      %v2502 = vmax.f32 %v2470, 0.0
      %v2503 = vpack.c.bf16 %v2472, %v2471
      %v2504 = vpack.c.bf16 %v2474, %v2473
      %v2505 = vpack.c.bf16 %v2476, %v2475
      %v2506 = vpack.c.bf16 %v2478, %v2477
      %v2507 = vpack.c.bf16 %v2480, %v2479
      %v2508 = vpack.c.bf16 %v2482, %v2481
      %v2509 = vpack.c.bf16 %v2484, %v2483
      %v2510 = vpack.c.bf16 %v2486, %v2485
      %v2511 = vpack.c.bf16 %v2488, %v2487
      %v2512 = vpack.c.bf16 %v2490, %v2489
      %v2513 = vpack.c.bf16 %v2492, %v2491
      %v2514 = vpack.c.bf16 %v2494, %v2493
      %v2515 = vpack.c.bf16 %v2496, %v2495
      %v2516 = vpack.c.bf16 %v2498, %v2497
      %v2517 = vpack.c.bf16 %v2500, %v2499
      %v2518 = vpack.c.bf16 %v2502, %v2501
      %v2519 = vld [vmem:[%s7] sm:$0xf]
      %v2520 = vld [vmem:[%s7 + $0x4] sm:$0xf]
      %v2521 = vld [vmem:[%s7 + $0x8] sm:$0xf]
      %v2522 = vld [vmem:[%s7 + $0xc] sm:$0xf]
      %v2523 = vld [vmem:[%s7 + $0x10] sm:$0xf]
      %v2524 = vld [vmem:[%s7 + $0x14] sm:$0xf]
      %v2525 = vld [vmem:[%s7 + $0x18] sm:$0xf]
      %v2526 = vld [vmem:[%s7 + $0x1c] sm:$0xf]
      %v2527 = vld [vmem:[%s8] sm:$0x1]
      %v2529 = vlaneseq
      %v2530 = vshrl.u32 %v2529, 7
      %v2531 = vsub.s32 0, %v2530
      %v2532 = vrot.slane %v2527, %v2531
      %v2542 = vunpack.c.l.b16 %v2519
      %v2543 = vunpack.c.l.b16 %v2520
      %v2544 = vunpack.c.l.b16 %v2521
      %v2545 = vunpack.c.l.b16 %v2522
      %v2546 = vunpack.c.l.b16 %v2523
      %v2547 = vunpack.c.l.b16 %v2524
      %v2548 = vunpack.c.l.b16 %v2525
      %v2549 = vunpack.c.l.b16 %v2526
      %v2550 = vpack.c.b16 %v2543, %v2542
      %v2551 = vpack.c.b16 %v2545, %v2544
      %v2552 = vpack.c.b16 %v2547, %v2546
      %v2553 = vpack.c.b16 %v2549, %v2548
      %v2559 = vsel %vm1500, %v2503, 0
      %v2562 = vsel %vm1500, %v2504, 0
      %v2565 = vsel %vm1500, %v2505, 0
      %v2568 = vsel %vm1500, %v2506, 0
      %v2571 = vsel %vm1500, %v2507, 0
      %v2574 = vsel %vm1500, %v2508, 0
      %v2577 = vsel %vm1500, %v2509, 0
      %v2580 = vsel %vm1500, %v2510, 0
      %v2583 = vsel %vm1500, %v2511, 0
      %v2586 = vsel %vm1500, %v2512, 0
      %v2589 = vsel %vm1500, %v2513, 0
      %v2592 = vsel %vm1500, %v2514, 0
      %v2595 = vsel %vm1500, %v2515, 0
      %v2598 = vsel %vm1500, %v2516, 0
      %v2601 = vsel %vm1500, %v2517, 0
      %v2604 = vsel %vm1500, %v2518, 0
      %2606 = vmatprep.subr.bf16.mxu0 0
      %2607 = vmatpush1.bf16.msra.mxu0 0
      %2608 = vmatprep.subr.bf16.mxu0 0
      %2609 = vmatpush1.bf16.msra.mxu0 0
      %2610 = vmatprep.subr.bf16.mxu0 0
      %2611 = vmatpush1.bf16.msra.mxu0 0
      %2612 = vmatprep.subr.bf16.mxu0 0
      %2613 = vmatpush1.bf16.msra.mxu0 0
      %2614 = vmatprep.subr.bf16.mxu0 0
      %2615 = vmatpush1.bf16.msra.mxu0 %v2553
      %2616 = vmatprep.subr.bf16.mxu0 0
      %2617 = vmatpush1.bf16.msra.mxu0 %v2552
      %2618 = vmatprep.subr.bf16.mxu0 0
      %2619 = vmatpush1.bf16.msra.mxu0 %v2551
      %2620 = vmatprep.subr.bf16.mxu0 0
      %2621 = vmatpush1.bf16.msra.mxu0 %v2550
      %2622 = vmatprep.subr.bf16.mxu0 0
      %2623 = vmatpush2.bf16.msra.mxu0 0
      %2624 = vmatprep.subr.bf16.mxu0 0
      %2625 = vmatpush2.bf16.msra.mxu0 0
      %2626 = vmatprep.subr.bf16.mxu0 0
      %2627 = vmatpush2.bf16.msra.mxu0 0
      %2628 = vmatprep.subr.bf16.mxu0 0
      %2629 = vmatpush2.bf16.msra.mxu0 0
      %2630 = vmatprep.subr.bf16.mxu0 0
      %2631 = vmatpush2.bf16.msra.mxu0 0
      %2632 = vmatprep.subr.bf16.mxu0 0
      %2633 = vmatpush2.bf16.msra.mxu0 0
      %2634 = vmatprep.subr.bf16.mxu0 0
      %2635 = vmatpush2.bf16.msra.mxu0 0
      %2636 = vmatprep.subr.bf16.mxu0 0
      %2637 = vmatpush2.bf16.msra.mxu0 0
      %2638 = vmatprep.mubr.bf16.mxu0 0
      %2639 = vmatmul.mubr.bf16.gmra.mxu0 %v2559
      %v2640 = vpop.f32.mrf.mxu0
      %v2641 = vadd.f32 %v2532, %v2640
      %v2642 = vpop.f32.mrf.mxu0
      %v2643 = vpop.f32.mrf.mxu0
      %v2644 = vadd.f32 %v2532, %v2643
      %v2645 = vpop.f32.mrf.mxu0
      %2646 = vmatprep.mubr.bf16.mxu0 0
      %2647 = vmatmul.mubr.bf16.gmra.mxu0 %v2562
      %v2648 = vpop.f32.mrf.mxu0
      %v2649 = vadd.f32 %v2532, %v2648
      %v2650 = vpop.f32.mrf.mxu0
      %v2651 = vpop.f32.mrf.mxu0
      %v2652 = vadd.f32 %v2532, %v2651
      %v2653 = vpop.f32.mrf.mxu0
      %2654 = vmatprep.mubr.bf16.mxu0 0
      %2655 = vmatmul.mubr.bf16.gmra.mxu0 %v2565
      %v2656 = vpop.f32.mrf.mxu0
      %v2657 = vadd.f32 %v2532, %v2656
      %v2658 = vpop.f32.mrf.mxu0
      %v2659 = vpop.f32.mrf.mxu0
      %v2660 = vadd.f32 %v2532, %v2659
      %v2661 = vpop.f32.mrf.mxu0
      %2662 = vmatprep.mubr.bf16.mxu0 0
      %2663 = vmatmul.mubr.bf16.gmra.mxu0 %v2568
      %v2664 = vpop.f32.mrf.mxu0
      %v2665 = vadd.f32 %v2532, %v2664
      %v2666 = vpop.f32.mrf.mxu0
      %v2667 = vpop.f32.mrf.mxu0
      %v2668 = vadd.f32 %v2532, %v2667
      %v2669 = vpop.f32.mrf.mxu0
      %2670 = vmatprep.mubr.bf16.mxu0 0
      %2671 = vmatmul.mubr.bf16.gmra.mxu0 %v2571
      %v2672 = vpop.f32.mrf.mxu0
      %v2673 = vadd.f32 %v2532, %v2672
      %v2674 = vpop.f32.mrf.mxu0
      %v2675 = vpop.f32.mrf.mxu0
      %v2676 = vadd.f32 %v2532, %v2675
      %v2677 = vpop.f32.mrf.mxu0
      %2678 = vmatprep.mubr.bf16.mxu0 0
      %2679 = vmatmul.mubr.bf16.gmra.mxu0 %v2574
      %v2680 = vpop.f32.mrf.mxu0
      %v2681 = vadd.f32 %v2532, %v2680
      %v2682 = vpop.f32.mrf.mxu0
      %v2683 = vpop.f32.mrf.mxu0
      %v2684 = vadd.f32 %v2532, %v2683
      %v2685 = vpop.f32.mrf.mxu0
      %2686 = vmatprep.mubr.bf16.mxu0 0
      %2687 = vmatmul.mubr.bf16.gmra.mxu0 %v2577
      %v2688 = vpop.f32.mrf.mxu0
      %v2689 = vadd.f32 %v2532, %v2688
      %v2690 = vpop.f32.mrf.mxu0
      %v2691 = vpop.f32.mrf.mxu0
      %v2692 = vadd.f32 %v2532, %v2691
      %v2693 = vpop.f32.mrf.mxu0
      %2694 = vmatprep.mubr.bf16.mxu0 0
      %2695 = vmatmul.mubr.bf16.gmra.mxu0 %v2580
      %v2696 = vpop.f32.mrf.mxu0
      %v2697 = vadd.f32 %v2532, %v2696
      %v2698 = vpop.f32.mrf.mxu0
      %v2699 = vpop.f32.mrf.mxu0
      %v2700 = vadd.f32 %v2532, %v2699
      %v2701 = vpop.f32.mrf.mxu0
      %2702 = vmatprep.mubr.bf16.mxu0 0
      %2703 = vmatmul.mubr.bf16.gmra.mxu0 %v2583
      %v2704 = vpop.f32.mrf.mxu0
      %v2705 = vadd.f32 %v2532, %v2704
      %v2706 = vpop.f32.mrf.mxu0
      %v2707 = vpop.f32.mrf.mxu0
      %v2708 = vadd.f32 %v2532, %v2707
      %v2709 = vpop.f32.mrf.mxu0
      %2710 = vmatprep.mubr.bf16.mxu0 0
      %2711 = vmatmul.mubr.bf16.gmra.mxu0 %v2586
      %v2712 = vpop.f32.mrf.mxu0
      %v2713 = vadd.f32 %v2532, %v2712
      %v2714 = vpop.f32.mrf.mxu0
      %v2715 = vpop.f32.mrf.mxu0
      %v2716 = vadd.f32 %v2532, %v2715
      %v2717 = vpop.f32.mrf.mxu0
      %2718 = vmatprep.mubr.bf16.mxu0 0
      %2719 = vmatmul.mubr.bf16.gmra.mxu0 %v2589
      %v2720 = vpop.f32.mrf.mxu0
      %v2721 = vadd.f32 %v2532, %v2720
      %v2722 = vpop.f32.mrf.mxu0
      %v2723 = vpop.f32.mrf.mxu0
      %v2724 = vadd.f32 %v2532, %v2723
      %v2725 = vpop.f32.mrf.mxu0
      %2726 = vmatprep.mubr.bf16.mxu0 0
      %2727 = vmatmul.mubr.bf16.gmra.mxu0 %v2592
      %v2728 = vpop.f32.mrf.mxu0
      %v2729 = vadd.f32 %v2532, %v2728
      %v2730 = vpop.f32.mrf.mxu0
      %v2731 = vpop.f32.mrf.mxu0
      %v2732 = vadd.f32 %v2532, %v2731
      %v2733 = vpop.f32.mrf.mxu0
      %2734 = vmatprep.mubr.bf16.mxu0 0
      %2735 = vmatmul.mubr.bf16.gmra.mxu0 %v2595
      %v2736 = vpop.f32.mrf.mxu0
      %v2737 = vadd.f32 %v2532, %v2736
      %v2738 = vpop.f32.mrf.mxu0
      %v2739 = vpop.f32.mrf.mxu0
      %v2740 = vadd.f32 %v2532, %v2739
      %v2741 = vpop.f32.mrf.mxu0
      %2742 = vmatprep.mubr.bf16.mxu0 0
      %2743 = vmatmul.mubr.bf16.gmra.mxu0 %v2598
      %v2744 = vpop.f32.mrf.mxu0
      %v2745 = vadd.f32 %v2532, %v2744
      %v2746 = vpop.f32.mrf.mxu0
      %v2747 = vpop.f32.mrf.mxu0
      %v2748 = vadd.f32 %v2532, %v2747
      %v2749 = vpop.f32.mrf.mxu0
      %2750 = vmatprep.mubr.bf16.mxu0 0
      %2751 = vmatmul.mubr.bf16.gmra.mxu0 %v2601
      %v2752 = vpop.f32.mrf.mxu0
      %v2753 = vadd.f32 %v2532, %v2752
      %v2754 = vpop.f32.mrf.mxu0
      %v2755 = vpop.f32.mrf.mxu0
      %v2756 = vadd.f32 %v2532, %v2755
      %v2757 = vpop.f32.mrf.mxu0
      %2758 = vmatprep.mubr.bf16.mxu0 0
      %2759 = vmatmul.mubr.bf16.gmra.mxu0 %v2604
      %v2760 = vpop.f32.mrf.mxu0
      %v2761 = vadd.f32 %v2532, %v2760
      %v2762 = vpop.f32.mrf.mxu0
      %v2763 = vpop.f32.mrf.mxu0
      %v2764 = vadd.f32 %v2532, %v2763
      %v2765 = vpop.f32.mrf.mxu0
      %2766 = vdwg.mxu0
      %v2767 = vmax.f32 %v2641, 0.0
      %v2768 = vmax.f32 %v2644, 0.0
      %v2769 = vmax.f32 %v2649, 0.0
      %v2770 = vmax.f32 %v2652, 0.0
      %v2771 = vmax.f32 %v2657, 0.0
      %v2772 = vmax.f32 %v2660, 0.0
      %v2773 = vmax.f32 %v2665, 0.0
      %v2774 = vmax.f32 %v2668, 0.0
      %v2775 = vmax.f32 %v2673, 0.0
      %v2776 = vmax.f32 %v2676, 0.0
      %v2777 = vmax.f32 %v2681, 0.0
      %v2778 = vmax.f32 %v2684, 0.0
      %v2779 = vmax.f32 %v2689, 0.0
      %v2780 = vmax.f32 %v2692, 0.0
      %v2781 = vmax.f32 %v2697, 0.0
      %v2782 = vmax.f32 %v2700, 0.0
      %v2783 = vmax.f32 %v2705, 0.0
      %v2784 = vmax.f32 %v2708, 0.0
      %v2785 = vmax.f32 %v2713, 0.0
      %v2786 = vmax.f32 %v2716, 0.0
      %v2787 = vmax.f32 %v2721, 0.0
      %v2788 = vmax.f32 %v2724, 0.0
      %v2789 = vmax.f32 %v2729, 0.0
      %v2790 = vmax.f32 %v2732, 0.0
      %v2791 = vmax.f32 %v2737, 0.0
      %v2792 = vmax.f32 %v2740, 0.0
      %v2793 = vmax.f32 %v2745, 0.0
      %v2794 = vmax.f32 %v2748, 0.0
      %v2795 = vmax.f32 %v2753, 0.0
      %v2796 = vmax.f32 %v2756, 0.0
      %v2797 = vmax.f32 %v2761, 0.0
      %v2798 = vmax.f32 %v2764, 0.0
      %v2799 = vpack.c.bf16 %v2768, %v2767
      %v2800 = vpack.c.bf16 %v2770, %v2769
      %v2801 = vpack.c.bf16 %v2772, %v2771
      %v2802 = vpack.c.bf16 %v2774, %v2773
      %v2803 = vpack.c.bf16 %v2776, %v2775
      %v2804 = vpack.c.bf16 %v2778, %v2777
      %v2805 = vpack.c.bf16 %v2780, %v2779
      %v2806 = vpack.c.bf16 %v2782, %v2781
      %v2807 = vpack.c.bf16 %v2784, %v2783
      %v2808 = vpack.c.bf16 %v2786, %v2785
      %v2809 = vpack.c.bf16 %v2788, %v2787
      %v2810 = vpack.c.bf16 %v2790, %v2789
      %v2811 = vpack.c.bf16 %v2792, %v2791
      %v2812 = vpack.c.bf16 %v2794, %v2793
      %v2813 = vpack.c.bf16 %v2796, %v2795
      %v2814 = vpack.c.bf16 %v2798, %v2797
      %v2831 = vunpack.c.l.b16 %v2799
      %v2832 = vunpack.c.h.b16 %v2799
      %v2833 = vunpack.c.l.b16 %v2800
      %v2834 = vunpack.c.h.b16 %v2800
      %v2835 = vunpack.c.l.b16 %v2801
      %v2836 = vunpack.c.h.b16 %v2801
      %v2837 = vunpack.c.l.b16 %v2802
      %v2838 = vunpack.c.h.b16 %v2802
      %v2839 = vunpack.c.l.b16 %v2803
      %v2840 = vunpack.c.h.b16 %v2803
      %v2841 = vunpack.c.l.b16 %v2804
      %v2842 = vunpack.c.h.b16 %v2804
      %v2843 = vunpack.c.l.b16 %v2805
      %v2844 = vunpack.c.h.b16 %v2805
      %v2845 = vunpack.c.l.b16 %v2806
      %v2846 = vunpack.c.h.b16 %v2806
      %v2847 = vunpack.c.l.b16 %v2807
      %v2848 = vunpack.c.h.b16 %v2807
      %v2849 = vunpack.c.l.b16 %v2808
      %v2850 = vunpack.c.h.b16 %v2808
      %v2851 = vunpack.c.l.b16 %v2809
      %v2852 = vunpack.c.h.b16 %v2809
      %v2853 = vunpack.c.l.b16 %v2810
      %v2854 = vunpack.c.h.b16 %v2810
      %v2855 = vunpack.c.l.b16 %v2811
      %v2856 = vunpack.c.h.b16 %v2811
      %v2857 = vunpack.c.l.b16 %v2812
      %v2858 = vunpack.c.h.b16 %v2812
      %v2859 = vunpack.c.l.b16 %v2813
      %v2860 = vunpack.c.h.b16 %v2813
      %v2861 = vunpack.c.l.b16 %v2814
      %v2862 = vunpack.c.h.b16 %v2814
      %v2863 = vpack.c.b16 %v2831, %v2831
      %v2864 = vpack.c.b16 %v2832, %v2832
      %v2865 = vpack.c.b16 %v2833, %v2833
      %v2866 = vpack.c.b16 %v2834, %v2834
      %v2867 = vpack.c.b16 %v2835, %v2835
      %v2868 = vpack.c.b16 %v2836, %v2836
      %v2869 = vpack.c.b16 %v2837, %v2837
      %v2870 = vpack.c.b16 %v2838, %v2838
      %v2871 = vpack.c.b16 %v2839, %v2839
      %v2872 = vpack.c.b16 %v2840, %v2840
      %v2873 = vpack.c.b16 %v2841, %v2841
      %v2874 = vpack.c.b16 %v2842, %v2842
      %v2875 = vpack.c.b16 %v2843, %v2843
      %v2876 = vpack.c.b16 %v2844, %v2844
      %v2877 = vpack.c.b16 %v2845, %v2845
      %v2878 = vpack.c.b16 %v2846, %v2846
      %v2879 = vpack.c.b16 %v2847, %v2847
      %v2880 = vpack.c.b16 %v2848, %v2848
      %v2881 = vpack.c.b16 %v2849, %v2849
      %v2882 = vpack.c.b16 %v2850, %v2850
      %v2883 = vpack.c.b16 %v2851, %v2851
      %v2884 = vpack.c.b16 %v2852, %v2852
      %v2885 = vpack.c.b16 %v2853, %v2853
      %v2886 = vpack.c.b16 %v2854, %v2854
      %v2887 = vpack.c.b16 %v2855, %v2855
      %v2888 = vpack.c.b16 %v2856, %v2856
      %v2889 = vpack.c.b16 %v2857, %v2857
      %v2890 = vpack.c.b16 %v2858, %v2858
      %v2891 = vpack.c.b16 %v2859, %v2859
      %v2892 = vpack.c.b16 %v2860, %v2860
      %v2893 = vpack.c.b16 %v2861, %v2861
      %v2894 = vpack.c.b16 %v2862, %v2862
      %2927 = vst.msk [vmem:[%s499] sm:$0xf] %vm1052, %v2863
      %2928 = vst.msk [vmem:[%s499 + $0x4] sm:$0xf] %vm1052, %v2864
      %2929 = vst.msk [vmem:[%s499 + $0x8] sm:$0xf] %vm1052, %v2865
      %2930 = vst.msk [vmem:[%s499 + $0xc] sm:$0xf] %vm1052, %v2866
      %2931 = vst.msk [vmem:[%s499 + $0x10] sm:$0xf] %vm1052, %v2867
      %2932 = vst.msk [vmem:[%s499 + $0x14] sm:$0xf] %vm1052, %v2868
      %2933 = vst.msk [vmem:[%s499 + $0x18] sm:$0xf] %vm1052, %v2869
      %2934 = vst.msk [vmem:[%s499 + $0x1c] sm:$0xf] %vm1052, %v2870
      %2935 = vst.msk [vmem:[%s499 + $0x20] sm:$0xf] %vm1052, %v2871
      %2936 = vst.msk [vmem:[%s499 + $0x24] sm:$0xf] %vm1052, %v2872
      %2937 = vst.msk [vmem:[%s499 + $0x28] sm:$0xf] %vm1052, %v2873
      %2938 = vst.msk [vmem:[%s499 + $0x2c] sm:$0xf] %vm1052, %v2874
      %2939 = vst.msk [vmem:[%s499 + $0x30] sm:$0xf] %vm1052, %v2875
      %2940 = vst.msk [vmem:[%s499 + $0x34] sm:$0xf] %vm1052, %v2876
      %2941 = vst.msk [vmem:[%s499 + $0x38] sm:$0xf] %vm1052, %v2877
      %2942 = vst.msk [vmem:[%s499 + $0x3c] sm:$0xf] %vm1052, %v2878
      %2943 = vst.msk [vmem:[%s499 + $0x40] sm:$0xf] %vm1052, %v2879
      %2944 = vst.msk [vmem:[%s499 + $0x44] sm:$0xf] %vm1052, %v2880
      %2945 = vst.msk [vmem:[%s499 + $0x48] sm:$0xf] %vm1052, %v2881
      %2946 = vst.msk [vmem:[%s499 + $0x4c] sm:$0xf] %vm1052, %v2882
      %2947 = vst.msk [vmem:[%s499 + $0x50] sm:$0xf] %vm1052, %v2883
      %2948 = vst.msk [vmem:[%s499 + $0x54] sm:$0xf] %vm1052, %v2884
      %2949 = vst.msk [vmem:[%s499 + $0x58] sm:$0xf] %vm1052, %v2885
      %2950 = vst.msk [vmem:[%s499 + $0x5c] sm:$0xf] %vm1052, %v2886
      %2951 = vst.msk [vmem:[%s499 + $0x60] sm:$0xf] %vm1052, %v2887
      %2952 = vst.msk [vmem:[%s499 + $0x64] sm:$0xf] %vm1052, %v2888
      %2953 = vst.msk [vmem:[%s499 + $0x68] sm:$0xf] %vm1052, %v2889
      %2954 = vst.msk [vmem:[%s499 + $0x6c] sm:$0xf] %vm1052, %v2890
      %2955 = vst.msk [vmem:[%s499 + $0x70] sm:$0xf] %vm1052, %v2891
      %2956 = vst.msk [vmem:[%s499 + $0x74] sm:$0xf] %vm1052, %v2892
      %2957 = vst.msk [vmem:[%s499 + $0x78] sm:$0xf] %vm1052, %v2893
      %2958 = vst.msk [vmem:[%s499 + $0x7c] sm:$0xf] %vm1052, %v2894
      %s2959 = smul.u32 16, %s25
      %p2960 = scmp.lt.s32.totalorder %s24, 1
      %s2961 = scalar_select %p2960, %s24, 1
      %p2962 = scmp.lt.s32.totalorder %s2959, 15
      %s2963 = scalar_select %p2962, %s2959, 15
      %s2964 = smul.addr %s2963, 2
      %s2965 = smul.addr %s2961, 32
      %s2966 = sadd.s32 %s2964, %s2965
      %s2967 = smul.addr %s2966, 4
      %s2968 = scalar_lea.vmem %s9, %s2967
      // Predicated region
      $region61: #{_lambda_.3} parent=55 // pred_check
        %p2969 = pneg %p278
      $region62: #{_lambda_.3} parent=55 // pred_check_branch
        %2971 = sbr.rel (%p2969) target = $region64
      $region63: #{_lambda_.3} parent=55 // pred_region
        %s2972 = smul.u32 16, %s25
      $region64: #{_lambda_.3} parent=55 // pred_fallthru
        _
    $region56: #{_lambda_.3} parent=5 // pred_fallthru
      _
    %p2973 = scmp.le.s32.totalorder 2, %s15
    // Predicated region
    $region65: #{_lambda_.3} parent=5 // pred_check
      %p2974 = pneg %p2973
    $region66: #{_lambda_.3} parent=5 // pred_check_branch
      %2976 = sbr.rel (%p2974) target = $region68
    $region67: #{_lambda_.3} parent=5 // pred_region
      %s2977 = ssub.s32 %s15, 2
      // Predicated region
      $region69: #{_lambda_.3} parent=67 // pred_check
        %p2978 = pneg %p284
      $region70: #{_lambda_.3} parent=67 // pred_check_branch
        %2980 = sbr.rel (%p2978) target = $region72
      $region71: #{_lambda_.3} parent=67 // pred_region
        %s2981 = smul.u32 16, %s27
        %p2982 = scmp.lt.s32.totalorder %s26, 1
        %s2983 = scalar_select %p2982, %s26, 1
        %p2984 = scmp.lt.s32.totalorder %s2981, 15
        %s2985 = scalar_select %p2984, %s2981, 15
        %s2986 = smul.addr %s2985, 2
        %s2987 = smul.addr %s2983, 32
        %s2988 = sadd.s32 %s2986, %s2987
        %s2989 = smul.addr %s2988, 4
        %s2990 = scalar_lea.vmem %s9, %s2989
      $region72: #{_lambda_.3} parent=67 // pred_fallthru
        _
    $region68: #{_lambda_.3} parent=5 // pred_fallthru
      _
  $region6: #{_lambda_.3} parent=0 // loop_footer
    %s19 = sadd.s32 1, %s15
  $region7: #{_lambda_.3} parent=0 // loop_footer_branch
    %14 = sbr.rel target = $region3
  $region8: #{_lambda_.3} parent=0 // loop_exit
    _

// kernel: _lambda_.4
$region0: #{_lambda_.4}
  #allocation0 [shape = 'u32[]', space=smem, size = 0x4, offset = 0x4, fixed_abs, tag = 'smem constant byte address 0x4 - core index']
  #allocation1 [shape = 'u32[144,128]{1,0:T(1,128)}', space=vmem, size = 0x12000, scoped, tag = 'internal scratch']
  #allocation2 [shape = 'bf16[18,16,128]{2,1,0:T(8,128)(2,1)}', space=vmem, size = 0x12000, scoped, tag = 'scratch operand']
  %s0 = inlined_call_operand.vmem [shape: bf16[2,16,16,64], index: 0, kind: input, shape index: {}, may-alias: {0,1,2}]
  %s1 = inlined_call_operand.vmem [shape: bf16[2,16,16,64], index: 1, kind: input, shape index: {}, may-alias: {0,1,2}]
  %s2 = inlined_call_operand.vmem [shape: bf16[2,16,16,64], index: 2, kind: input, shape index: {}, may-alias: {0,1,2}]
  %s3 = inlined_call_operand.vmem [shape: bf16[64,128], index: 3, kind: input, shape index: {}]
  %s4 = inlined_call_operand.vmem [shape: f32[1,128], index: 4, kind: input, shape index: {}]
  %s5 = inlined_call_operand.vmem [shape: bf16[3,384,128], index: 5, kind: input, shape index: {}]
  %s6 = inlined_call_operand.vmem [shape: f32[1,128], index: 6, kind: input, shape index: {}]
  %s7 = inlined_call_operand.vmem [shape: bf16[128,128], index: 7, kind: input, shape index: {}]
  %s8 = inlined_call_operand.vmem [shape: f32[1,128], index: 8, kind: input, shape index: {}]
  %s9 = inlined_call_operand.vmem [shape: bf16[2,16,16,128], index: 9, kind: output, shape index: {}]
  %s10 = sld [smem:[#allocation0]]
  $region73: #{_lambda_.4} parent=0
    _
  %s12 = ssub.s32 1, %s10
  %s13 = scalar_select 0, %s12, %s10
  loop: start=0, step=1, limit=4
  $region2: #{_lambda_.4} parent=0 // loop_pre_header
    _
  $region3: #{_lambda_.4} parent=0 // loop_header
    %s15 = sphi 0, %s19
    %p16 = scmp.ge.s32.totalorder %s15, 4
    %s22 = sphi 0, %s34
    %s23 = sphi 0, %s30
    %s24 = sphi 0, %s22
    %s25 = sphi 0, %s23
    %s26 = sphi 0, %s24
    %s27 = sphi 0, %s25
    %s39 = sphi 0, %s41
    %s42 = sphi 0, %s39
    %s43 = sphi 0, %s42
    %s59 = sphi 0, %s43
    %s75 = sphi 0, %s77
    %s78 = sphi 0, %s75
    %s79 = sphi 0, %s78
    %s95 = sphi 0, %s79
    %s111 = sphi 0, %s113
    %s114 = sphi 0, %s111
    %s115 = sphi 0, %s114
    %s131 = sphi 0, %s115
    %s135 = sphi 0, %s135
    %s137 = sphi 0, %s135
    %s138 = sphi 0, %s137
    %s152 = sphi 0, %s138
    %s156 = sphi 0, %s156
    %s158 = sphi 0, %s156
    %s159 = sphi 0, %s158
    %s173 = sphi 0, %s159
    %s177 = sphi 0, %s177
    %s179 = sphi 0, %s177
    %s180 = sphi 0, %s179
    %s194 = sphi 0, %s180
    %s198 = sphi 0, %s198
    %s200 = sphi 0, %s198
    %s201 = sphi 0, %s200
    %s215 = sphi 0, %s201
    %s219 = sphi 0, %s219
    %s221 = sphi 0, %s219
    %s222 = sphi 0, %s221
    %s236 = sphi 0, %s222
    %s240 = sphi 0, %s240
    %s242 = sphi 0, %s240
    %s243 = sphi 0, %s242
    %s257 = sphi 0, %s243
    %s265 = sphi 0, %s267
    %s268 = sphi 0, %s265
    %s269 = sphi 0, %s268
    %s285 = sphi 0, %s269
  $region4: #{_lambda_.4} parent=0 // loop_header_branch
    %18 = sbr.rel (%p16) target = $region8
  $region5: #{_lambda_.4} parent=0 // loop_body
    %s20 = ssub.s32 %s15, 1
    %s21 = ssub.s32 %s15, 2
    %s28 = sadd.s32 1, %s23
    %p29 = scmp.ge.s32.totalorder %s28, 1
    %s30 = scalar_select %p29, 0, %s28
    %s31 = sadd.s32 1, %s22
    %s32 = scalar_select %p29, %s31, %s22
    %p33 = scmp.ge.s32.totalorder %s32, 2
    %s34 = scalar_select %p33, 0, %s32
    %s35 = ssub.s32 %s22, %s34
    %s36 = ssub.s32 %s23, %s30
    %s37 = sor.u32 %s35, %s36
    %p38 = scmp.eq.s32.totalorder %s37, 0
    %s40 = sadd.s32 %s39, 1
    %s41 = scalar_select %p38, %s39, %s40
    %p44 = pneg %p38
    %p45 = scmp.eq.s32.totalorder %s15, 1
    %p46 = por %p44, %p45
    %p47 = scmp.ne.s32.totalorder %s39, %s42
    %p48 = scmp.eq.s32.totalorder %s15, 0
    %p49 = por %p47, %p48
    %p50 = scmp.ne.s32.totalorder %s39, %s42
    %p51 = scmp.eq.s32.totalorder %s20, 1
    %p52 = por %p50, %p51
    %p53 = scmp.ne.s32.totalorder %s42, %s43
    %p54 = scmp.eq.s32.totalorder %s20, 0
    %p55 = por %p53, %p54
    %p56 = scmp.ne.s32.totalorder %s42, %s43
    %p57 = scmp.eq.s32.totalorder %s21, 1
    %p58 = por %p56, %p57
    %p60 = scmp.ne.s32.totalorder %s43, %s59
    %p61 = scmp.eq.s32.totalorder %s21, 0
    %p62 = por %p60, %p61
    %s63 = smul.u32 %s23, 16
    %s64 = ssub.s32 %s63, 1
    %p65 = scmp.gt.s32.totalorder %s64, 0
    %s66 = scalar_select %p65, %s64, 0
    %s67 = smul.u32 %s30, 16
    %s68 = ssub.s32 %s67, 1
    %p69 = scmp.gt.s32.totalorder %s68, 0
    %s70 = scalar_select %p69, %s68, 0
    %s71 = ssub.s32 %s22, %s34
    %s72 = ssub.s32 %s66, %s70
    %s73 = sor.u32 %s71, %s72
    %p74 = scmp.eq.s32.totalorder %s73, 0
    %s76 = sadd.s32 %s75, 1
    %s77 = scalar_select %p74, %s75, %s76
    %p80 = pneg %p74
    %p81 = scmp.eq.s32.totalorder %s15, 1
    %p82 = por %p80, %p81
    %p83 = scmp.ne.s32.totalorder %s75, %s78
    %p84 = scmp.eq.s32.totalorder %s15, 0
    %p85 = por %p83, %p84
    %p86 = scmp.ne.s32.totalorder %s75, %s78
    %p87 = scmp.eq.s32.totalorder %s20, 1
    %p88 = por %p86, %p87
    %p89 = scmp.ne.s32.totalorder %s78, %s79
    %p90 = scmp.eq.s32.totalorder %s20, 0
    %p91 = por %p89, %p90
    %p92 = scmp.ne.s32.totalorder %s78, %s79
    %p93 = scmp.eq.s32.totalorder %s21, 1
    %p94 = por %p92, %p93
    %p96 = scmp.ne.s32.totalorder %s79, %s95
    %p97 = scmp.eq.s32.totalorder %s21, 0
    %p98 = por %p96, %p97
    %s99 = smul.u32 %s23, 16
    %s100 = sadd.s32 %s99, 16
    %p101 = scmp.lt.s32.totalorder %s100, 15
    %s102 = scalar_select %p101, %s100, 15
    %s103 = smul.u32 %s30, 16
    %s104 = sadd.s32 %s103, 16
    %p105 = scmp.lt.s32.totalorder %s104, 15
    %s106 = scalar_select %p105, %s104, 15
    %s107 = ssub.s32 %s22, %s34
    %s108 = ssub.s32 %s102, %s106
    %s109 = sor.u32 %s107, %s108
    %p110 = scmp.eq.s32.totalorder %s109, 0
    %s112 = sadd.s32 %s111, 1
    %s113 = scalar_select %p110, %s111, %s112
    %p116 = pneg %p110
    %p117 = scmp.eq.s32.totalorder %s15, 1
    %p118 = por %p116, %p117
    %p119 = scmp.ne.s32.totalorder %s111, %s114
    %p120 = scmp.eq.s32.totalorder %s15, 0
    %p121 = por %p119, %p120
    %p122 = scmp.ne.s32.totalorder %s111, %s114
    %p123 = scmp.eq.s32.totalorder %s20, 1
    %p124 = por %p122, %p123
    %p125 = scmp.ne.s32.totalorder %s114, %s115
    %p126 = scmp.eq.s32.totalorder %s20, 0
    %p127 = por %p125, %p126
    %p128 = scmp.ne.s32.totalorder %s114, %s115
    %p129 = scmp.eq.s32.totalorder %s21, 1
    %p130 = por %p128, %p129
    %p132 = scmp.ne.s32.totalorder %s115, %s131
    %p133 = scmp.eq.s32.totalorder %s21, 0
    %p134 = por %p132, %p133
    %s136 = sadd.s32 %s135, 1
    %p139 = scmp.eq.s32.totalorder %s15, 1
    %p140 = scmp.ne.s32.totalorder %s135, %s137
    %p141 = scmp.eq.s32.totalorder %s15, 0
    %p142 = por %p140, %p141
    %p143 = scmp.ne.s32.totalorder %s135, %s137
    %p144 = scmp.eq.s32.totalorder %s20, 1
    %p145 = por %p143, %p144
    %p146 = scmp.ne.s32.totalorder %s137, %s138
    %p147 = scmp.eq.s32.totalorder %s20, 0
    %p148 = por %p146, %p147
    %p149 = scmp.ne.s32.totalorder %s137, %s138
    %p150 = scmp.eq.s32.totalorder %s21, 1
    %p151 = por %p149, %p150
    %p153 = scmp.ne.s32.totalorder %s138, %s152
    %p154 = scmp.eq.s32.totalorder %s21, 0
    %p155 = por %p153, %p154
    %s157 = sadd.s32 %s156, 1
    %p160 = scmp.eq.s32.totalorder %s15, 1
    %p161 = scmp.ne.s32.totalorder %s156, %s158
    %p162 = scmp.eq.s32.totalorder %s15, 0
    %p163 = por %p161, %p162
    %p164 = scmp.ne.s32.totalorder %s156, %s158
    %p165 = scmp.eq.s32.totalorder %s20, 1
    %p166 = por %p164, %p165
    %p167 = scmp.ne.s32.totalorder %s158, %s159
    %p168 = scmp.eq.s32.totalorder %s20, 0
    %p169 = por %p167, %p168
    %p170 = scmp.ne.s32.totalorder %s158, %s159
    %p171 = scmp.eq.s32.totalorder %s21, 1
    %p172 = por %p170, %p171
    %p174 = scmp.ne.s32.totalorder %s159, %s173
    %p175 = scmp.eq.s32.totalorder %s21, 0
    %p176 = por %p174, %p175
    %s178 = sadd.s32 %s177, 1
    %p181 = scmp.eq.s32.totalorder %s15, 1
    %p182 = scmp.ne.s32.totalorder %s177, %s179
    %p183 = scmp.eq.s32.totalorder %s15, 0
    %p184 = por %p182, %p183
    %p185 = scmp.ne.s32.totalorder %s177, %s179
    %p186 = scmp.eq.s32.totalorder %s20, 1
    %p187 = por %p185, %p186
    %p188 = scmp.ne.s32.totalorder %s179, %s180
    %p189 = scmp.eq.s32.totalorder %s20, 0
    %p190 = por %p188, %p189
    %p191 = scmp.ne.s32.totalorder %s179, %s180
    %p192 = scmp.eq.s32.totalorder %s21, 1
    %p193 = por %p191, %p192
    %p195 = scmp.ne.s32.totalorder %s180, %s194
    %p196 = scmp.eq.s32.totalorder %s21, 0
    %p197 = por %p195, %p196
    %s199 = sadd.s32 %s198, 1
    %p202 = scmp.eq.s32.totalorder %s15, 1
    %p203 = scmp.ne.s32.totalorder %s198, %s200
    %p204 = scmp.eq.s32.totalorder %s15, 0
    %p205 = por %p203, %p204
    %p206 = scmp.ne.s32.totalorder %s198, %s200
    %p207 = scmp.eq.s32.totalorder %s20, 1
    %p208 = por %p206, %p207
    %p209 = scmp.ne.s32.totalorder %s200, %s201
    %p210 = scmp.eq.s32.totalorder %s20, 0
    %p211 = por %p209, %p210
    %p212 = scmp.ne.s32.totalorder %s200, %s201
    %p213 = scmp.eq.s32.totalorder %s21, 1
    %p214 = por %p212, %p213
    %p216 = scmp.ne.s32.totalorder %s201, %s215
    %p217 = scmp.eq.s32.totalorder %s21, 0
    %p218 = por %p216, %p217
    %s220 = sadd.s32 %s219, 1
    %p223 = scmp.eq.s32.totalorder %s15, 1
    %p224 = scmp.ne.s32.totalorder %s219, %s221
    %p225 = scmp.eq.s32.totalorder %s15, 0
    %p226 = por %p224, %p225
    %p227 = scmp.ne.s32.totalorder %s219, %s221
    %p228 = scmp.eq.s32.totalorder %s20, 1
    %p229 = por %p227, %p228
    %p230 = scmp.ne.s32.totalorder %s221, %s222
    %p231 = scmp.eq.s32.totalorder %s20, 0
    %p232 = por %p230, %p231
    %p233 = scmp.ne.s32.totalorder %s221, %s222
    %p234 = scmp.eq.s32.totalorder %s21, 1
    %p235 = por %p233, %p234
    %p237 = scmp.ne.s32.totalorder %s222, %s236
    %p238 = scmp.eq.s32.totalorder %s21, 0
    %p239 = por %p237, %p238
    %s241 = sadd.s32 %s240, 1
    %p244 = scmp.eq.s32.totalorder %s15, 1
    %p245 = scmp.ne.s32.totalorder %s240, %s242
    %p246 = scmp.eq.s32.totalorder %s15, 0
    %p247 = por %p245, %p246
    %p248 = scmp.ne.s32.totalorder %s240, %s242
    %p249 = scmp.eq.s32.totalorder %s20, 1
    %p250 = por %p248, %p249
    %p251 = scmp.ne.s32.totalorder %s242, %s243
    %p252 = scmp.eq.s32.totalorder %s20, 0
    %p253 = por %p251, %p252
    %p254 = scmp.ne.s32.totalorder %s242, %s243
    %p255 = scmp.eq.s32.totalorder %s21, 1
    %p256 = por %p254, %p255
    %p258 = scmp.ne.s32.totalorder %s243, %s257
    %p259 = scmp.eq.s32.totalorder %s21, 0
    %p260 = por %p258, %p259
    %s261 = ssub.s32 %s22, %s34
    %s262 = ssub.s32 %s23, %s30
    %s263 = sor.u32 %s261, %s262
    %p264 = scmp.eq.s32.totalorder %s263, 0
    %s266 = sadd.s32 %s265, 1
    %s267 = scalar_select %p264, %s265, %s266
    %p270 = pneg %p264
    %p271 = scmp.eq.s32.totalorder %s15, 1
    %p272 = por %p270, %p271
    %p273 = scmp.ne.s32.totalorder %s265, %s268
    %p274 = scmp.eq.s32.totalorder %s15, 0
    %p275 = por %p273, %p274
    %p276 = scmp.ne.s32.totalorder %s265, %s268
    %p277 = scmp.eq.s32.totalorder %s20, 1
    %p278 = por %p276, %p277
    %p279 = scmp.ne.s32.totalorder %s268, %s269
    %p280 = scmp.eq.s32.totalorder %s20, 0
    %p281 = por %p279, %p280
    %p282 = scmp.ne.s32.totalorder %s268, %s269
    %p283 = scmp.eq.s32.totalorder %s21, 1
    %p284 = por %p282, %p283
    %p286 = scmp.ne.s32.totalorder %s269, %s285
    %p287 = scmp.eq.s32.totalorder %s21, 0
    %p288 = por %p286, %p287
    %p289 = scmp.le.s32.totalorder 1, %s15
    %p290 = scmp.lt.s32.totalorder %s15, 3
    %p291 = pnand %p289, %p290
    %p292 = pneg %p291
    // Predicated region
    $region9: #{_lambda_.4} parent=5 // pred_check
      _
    $region10: #{_lambda_.4} parent=5 // pred_check_branch
      %294 = sbr.rel (%p291) target = $region12
    $region11: #{_lambda_.4} parent=5 // pred_region
      %s295 = ssub.s32 %s15, 1
      // Predicated region
      $region13: #{_lambda_.4} parent=11 // pred_check
        %p296 = pneg %p148
      $region14: #{_lambda_.4} parent=11 // pred_check_branch
        %298 = sbr.rel (%p296) target = $region16
      $region15: #{_lambda_.4} parent=11 // pred_region
        _
      $region16: #{_lambda_.4} parent=11 // pred_fallthru
        _
      // Predicated region
      $region17: #{_lambda_.4} parent=11 // pred_check
        %p299 = pneg %p169
      $region18: #{_lambda_.4} parent=11 // pred_check_branch
        %301 = sbr.rel (%p299) target = $region20
      $region19: #{_lambda_.4} parent=11 // pred_region
        _
      $region20: #{_lambda_.4} parent=11 // pred_fallthru
        _
      // Predicated region
      $region21: #{_lambda_.4} parent=11 // pred_check
        %p302 = pneg %p190
      $region22: #{_lambda_.4} parent=11 // pred_check_branch
        %304 = sbr.rel (%p302) target = $region24
      $region23: #{_lambda_.4} parent=11 // pred_region
        _
      $region24: #{_lambda_.4} parent=11 // pred_fallthru
        _
      // Predicated region
      $region25: #{_lambda_.4} parent=11 // pred_check
        %p305 = pneg %p211
      $region26: #{_lambda_.4} parent=11 // pred_check_branch
        %307 = sbr.rel (%p305) target = $region28
      $region27: #{_lambda_.4} parent=11 // pred_region
        _
      $region28: #{_lambda_.4} parent=11 // pred_fallthru
        _
      // Predicated region
      $region29: #{_lambda_.4} parent=11 // pred_check
        %p308 = pneg %p232
      $region30: #{_lambda_.4} parent=11 // pred_check_branch
        %310 = sbr.rel (%p308) target = $region32
      $region31: #{_lambda_.4} parent=11 // pred_region
        _
      $region32: #{_lambda_.4} parent=11 // pred_fallthru
        _
      // Predicated region
      $region33: #{_lambda_.4} parent=11 // pred_check
        %p311 = pneg %p253
      $region34: #{_lambda_.4} parent=11 // pred_check_branch
        %313 = sbr.rel (%p311) target = $region36
      $region35: #{_lambda_.4} parent=11 // pred_region
        _
      $region36: #{_lambda_.4} parent=11 // pred_fallthru
        _
    $region12: #{_lambda_.4} parent=5 // pred_fallthru
      _
    %p314 = scmp.lt.s32.totalorder %s15, 2
    // Predicated region
    $region37: #{_lambda_.4} parent=5 // pred_check
      %p315 = pneg %p314
    $region38: #{_lambda_.4} parent=5 // pred_check_branch
      %317 = sbr.rel (%p315) target = $region40
    $region39: #{_lambda_.4} parent=5 // pred_region
      // Predicated region
      $region41: #{_lambda_.4} parent=39 // pred_check
        %p318 = pneg %p49
      $region42: #{_lambda_.4} parent=39 // pred_check_branch
        %320 = sbr.rel (%p318) target = $region44
      $region43: #{_lambda_.4} parent=39 // pred_region
        %s321 = smul.u32 16, %s23
        %p322 = scmp.lt.s32.totalorder %s22, 1
        %s323 = scalar_select %p322, %s22, 1
        %p324 = scmp.lt.s32.totalorder %s321, 15
        %s325 = scalar_select %p324, %s321, 15
        %s326 = smul.addr %s325, 2
        %s327 = smul.addr %s323, 32
        %s328 = sadd.s32 %s326, %s327
        %s329 = smul.addr %s328, 4
        %s330 = scalar_lea.vmem %s0, %s329
        %s331 = smul.u32 16, %s23
      $region44: #{_lambda_.4} parent=39 // pred_fallthru
        _
      // Predicated region
      $region45: #{_lambda_.4} parent=39 // pred_check
        %p332 = pneg %p85
      $region46: #{_lambda_.4} parent=39 // pred_check_branch
        %334 = sbr.rel (%p332) target = $region48
      $region47: #{_lambda_.4} parent=39 // pred_region
        %s335 = smul.u32 %s23, 16
        %s336 = ssub.s32 %s335, 1
        %p337 = scmp.gt.s32.totalorder %s336, 0
        %s338 = scalar_select %p337, %s336, 0
        %p339 = scmp.lt.s32.totalorder %s22, 1
        %s340 = scalar_select %p339, %s22, 1
        %p341 = scmp.lt.s32.totalorder %s338, 15
        %s342 = scalar_select %p341, %s338, 15
        %s343 = smul.addr %s342, 2
        %s344 = smul.addr %s340, 32
        %s345 = sadd.s32 %s343, %s344
        %s346 = smul.addr %s345, 4
        %s347 = scalar_lea.vmem %s1, %s346
        %s348 = smul.u32 %s23, 16
        %s349 = ssub.s32 %s348, 1
        %p350 = scmp.gt.s32.totalorder %s349, 0
        %s351 = scalar_select %p350, %s349, 0
      $region48: #{_lambda_.4} parent=39 // pred_fallthru
        _
      // Predicated region
      $region49: #{_lambda_.4} parent=39 // pred_check
        %p352 = pneg %p121
      $region50: #{_lambda_.4} parent=39 // pred_check_branch
        %354 = sbr.rel (%p352) target = $region52
      $region51: #{_lambda_.4} parent=39 // pred_region
        %s355 = smul.u32 %s23, 16
        %s356 = sadd.s32 %s355, 16
        %p357 = scmp.lt.s32.totalorder %s356, 15
        %s358 = scalar_select %p357, %s356, 15
        %p359 = scmp.lt.s32.totalorder %s22, 1
        %s360 = scalar_select %p359, %s22, 1
        %p361 = scmp.lt.s32.totalorder %s358, 15
        %s362 = scalar_select %p361, %s358, 15
        %s363 = smul.addr %s362, 2
        %s364 = smul.addr %s360, 32
        %s365 = sadd.s32 %s363, %s364
        %s366 = smul.addr %s365, 4
        %s367 = scalar_lea.vmem %s2, %s366
        %s368 = smul.u32 %s23, 16
        %s369 = sadd.s32 %s368, 16
        %p370 = scmp.lt.s32.totalorder %s369, 15
        %s371 = scalar_select %p370, %s369, 15
      $region52: #{_lambda_.4} parent=39 // pred_fallthru
        _
    $region40: #{_lambda_.4} parent=5 // pred_fallthru
      _
    %p372 = scmp.le.s32.totalorder 1, %s15
    %p373 = scmp.lt.s32.totalorder %s15, 3
    %p374 = pnand %p372, %p373
    %p375 = pneg %p374
    // Predicated region
    $region53: #{_lambda_.4} parent=5 // pred_check
      _
    $region54: #{_lambda_.4} parent=5 // pred_check_branch
      %377 = sbr.rel (%p374) target = $region56
    $region55: #{_lambda_.4} parent=5 // pred_region
      %s378 = ssub.s32 %s15, 1
      %s379 = smul.u32 16, %s25
      %p380 = scmp.lt.s32.totalorder %s24, 1
      %s381 = scalar_select %p380, %s24, 1
      %p382 = scmp.lt.s32.totalorder %s379, 15
      %s383 = scalar_select %p382, %s379, 15
      %s384 = smul.addr %s383, 2
      %s385 = smul.addr %s381, 32
      %s386 = sadd.s32 %s384, %s385
      %s387 = smul.addr %s386, 4
      %s388 = scalar_lea.vmem %s0, %s387
      %p389 = pneg %p55
      %p390 = pneg %p52
      %s391 = smul.u32 %s25, 16
      %s392 = ssub.s32 %s391, 1
      %p393 = scmp.gt.s32.totalorder %s392, 0
      %s394 = scalar_select %p393, %s392, 0
      %p395 = scmp.lt.s32.totalorder %s24, 1
      %s396 = scalar_select %p395, %s24, 1
      %p397 = scmp.lt.s32.totalorder %s394, 15
      %s398 = scalar_select %p397, %s394, 15
      %s399 = smul.addr %s398, 2
      %s400 = smul.addr %s396, 32
      %s401 = sadd.s32 %s399, %s400
      %s402 = smul.addr %s401, 4
      %s403 = scalar_lea.vmem %s1, %s402
      %p404 = pneg %p91
      %p405 = pneg %p88
      %s406 = smul.u32 %s25, 16
      %s407 = sadd.s32 %s406, 16
      %p408 = scmp.lt.s32.totalorder %s407, 15
      %s409 = scalar_select %p408, %s407, 15
      %p410 = scmp.lt.s32.totalorder %s24, 1
      %s411 = scalar_select %p410, %s24, 1
      %p412 = scmp.lt.s32.totalorder %s409, 15
      %s413 = scalar_select %p412, %s409, 15
      %s414 = smul.addr %s413, 2
      %s415 = smul.addr %s411, 32
      %s416 = sadd.s32 %s414, %s415
      %s417 = smul.addr %s416, 4
      %s418 = scalar_lea.vmem %s2, %s417
      %p419 = pneg %p127
      %p420 = pneg %p124
      %p421 = pneg %p148
      %p422 = pneg %p145
      %p423 = pneg %p169
      %p424 = pneg %p166
      %p425 = pneg %p190
      %p426 = pneg %p187
      %p427 = pneg %p211
      %p428 = pneg %p208
      %p429 = pneg %p232
      %p430 = pneg %p229
      %p431 = pneg %p253
      %p432 = pneg %p250
      %p433 = pneg %p281
      %p434 = pneg %p278
      %s435 = smul.u32 16, %s25
      %p436 = scmp.lt.s32.totalorder %s24, 1
      %s437 = scalar_select %p436, %s24, 1
      %p438 = scmp.lt.s32.totalorder %s435, 15
      %s439 = scalar_select %p438, %s435, 15
      %s440 = smul.addr %s439, 2
      %s441 = smul.addr %s437, 32
      %s442 = sadd.s32 %s440, %s441
      %s443 = smul.addr %s442, 4
      %s444 = scalar_lea.vmem %s9, %s443
      %s445 = smul.u32 16, %s25
      %p446 = scmp.lt.s32.totalorder %s24, 1
      %s447 = scalar_select %p446, %s24, 1
      %p448 = scmp.lt.s32.totalorder %s445, 15
      %s449 = scalar_select %p448, %s445, 15
      %s450 = smul.addr %s449, 2
      %s451 = smul.addr %s447, 32
      %s452 = sadd.s32 %s450, %s451
      %s453 = smul.addr %s452, 4
      %s454 = scalar_lea.vmem %s0, %s453
      %s455 = smul.u32 16, %s25
      %s456 = smul.u32 %s25, 16
      %s457 = ssub.s32 %s456, 1
      %p458 = scmp.gt.s32.totalorder %s457, 0
      %s459 = scalar_select %p458, %s457, 0
      %p460 = scmp.lt.s32.totalorder %s24, 1
      %s461 = scalar_select %p460, %s24, 1
      %p462 = scmp.lt.s32.totalorder %s459, 15
      %s463 = scalar_select %p462, %s459, 15
      %s464 = smul.addr %s463, 2
      %s465 = smul.addr %s461, 32
      %s466 = sadd.s32 %s464, %s465
      %s467 = smul.addr %s466, 4
      %s468 = scalar_lea.vmem %s1, %s467
      %s469 = smul.u32 %s25, 16
      %s470 = ssub.s32 %s469, 1
      %p471 = scmp.gt.s32.totalorder %s470, 0
      %s472 = scalar_select %p471, %s470, 0
      %s473 = smul.u32 %s25, 16
      %s474 = sadd.s32 %s473, 16
      %p475 = scmp.lt.s32.totalorder %s474, 15
      %s476 = scalar_select %p475, %s474, 15
      %p477 = scmp.lt.s32.totalorder %s24, 1
      %s478 = scalar_select %p477, %s24, 1
      %p479 = scmp.lt.s32.totalorder %s476, 15
      %s480 = scalar_select %p479, %s476, 15
      %s481 = smul.addr %s480, 2
      %s482 = smul.addr %s478, 32
      %s483 = sadd.s32 %s481, %s482
      %s484 = smul.addr %s483, 4
      %s485 = scalar_lea.vmem %s2, %s484
      %s486 = smul.u32 %s25, 16
      %s487 = sadd.s32 %s486, 16
      %p488 = scmp.lt.s32.totalorder %s487, 15
      %s489 = scalar_select %p488, %s487, 15
      %s490 = smul.u32 16, %s25
      %p491 = scmp.lt.s32.totalorder %s24, 1
      %s492 = scalar_select %p491, %s24, 1
      %p493 = scmp.lt.s32.totalorder %s490, 15
      %s494 = scalar_select %p493, %s490, 15
      %s495 = smul.addr %s494, 2
      %s496 = smul.addr %s492, 32
      %s497 = sadd.s32 %s495, %s496
      %s498 = smul.addr %s497, 4
      %s499 = scalar_lea.vmem %s9, %s498
      %s500 = smul.u32 16, %s25
      %v502 = vld [vmem:[%s468] sm:$0xf]
      %v503 = vld [vmem:[%s468 + $0x4] sm:$0xf]
      %v504 = vld [vmem:[%s454] sm:$0xf]
      %v505 = vld [vmem:[%s454 + $0x4] sm:$0xf]
      %v506 = vld [vmem:[%s454 + $0x8] sm:$0xf]
      %v507 = vld [vmem:[%s454 + $0xc] sm:$0xf]
      %v508 = vld [vmem:[%s454 + $0x10] sm:$0xf]
      %v509 = vld [vmem:[%s454 + $0x14] sm:$0xf]
      %v510 = vld [vmem:[%s454 + $0x18] sm:$0xf]
      %v511 = vld [vmem:[%s454 + $0x1c] sm:$0xf]
      %v512 = vld [vmem:[%s454 + $0x20] sm:$0xf]
      %v513 = vld [vmem:[%s454 + $0x24] sm:$0xf]
      %v514 = vld [vmem:[%s454 + $0x28] sm:$0xf]
      %v515 = vld [vmem:[%s454 + $0x2c] sm:$0xf]
      %v516 = vld [vmem:[%s454 + $0x30] sm:$0xf]
      %v517 = vld [vmem:[%s454 + $0x34] sm:$0xf]
      %v518 = vld [vmem:[%s454 + $0x38] sm:$0xf]
      %v519 = vld [vmem:[%s454 + $0x3c] sm:$0xf]
      %v520 = vld [vmem:[%s454 + $0x40] sm:$0xf]
      %v521 = vld [vmem:[%s454 + $0x44] sm:$0xf]
      %v522 = vld [vmem:[%s454 + $0x48] sm:$0xf]
      %v523 = vld [vmem:[%s454 + $0x4c] sm:$0xf]
      %v524 = vld [vmem:[%s454 + $0x50] sm:$0xf]
      %v525 = vld [vmem:[%s454 + $0x54] sm:$0xf]
      %v526 = vld [vmem:[%s454 + $0x58] sm:$0xf]
      %v527 = vld [vmem:[%s454 + $0x5c] sm:$0xf]
      %v528 = vld [vmem:[%s454 + $0x60] sm:$0xf]
      %v529 = vld [vmem:[%s454 + $0x64] sm:$0xf]
      %v530 = vld [vmem:[%s454 + $0x68] sm:$0xf]
      %v531 = vld [vmem:[%s454 + $0x6c] sm:$0xf]
      %v532 = vld [vmem:[%s454 + $0x70] sm:$0xf]
      %v533 = vld [vmem:[%s454 + $0x74] sm:$0xf]
      %v534 = vld [vmem:[%s454 + $0x78] sm:$0xf]
      %v535 = vld [vmem:[%s454 + $0x7c] sm:$0xf]
      %v536 = vld [vmem:[%s485] sm:$0xf]
      %v537 = vld [vmem:[%s485 + $0x4] sm:$0xf]
      %v538 = vld [vmem:[%s3] sm:$0xf]
      %v539 = vld [vmem:[%s3 + $0x4] sm:$0xf]
      %v540 = vld [vmem:[%s3 + $0x8] sm:$0xf]
      %v541 = vld [vmem:[%s3 + $0xc] sm:$0xf]
      %v542 = vld [vmem:[%s3 + $0x10] sm:$0xf]
      %v543 = vld [vmem:[%s3 + $0x14] sm:$0xf]
      %v544 = vld [vmem:[%s3 + $0x18] sm:$0xf]
      %v545 = vld [vmem:[%s3 + $0x1c] sm:$0xf]
      %v546 = vld [vmem:[%s4] sm:$0x1]
      %v548 = vlaneseq
      %v549 = vshrl.u32 %v548, 7
      %v550 = vsub.s32 0, %v549
      %v551 = vrot.slane %v546, %v550
      %v589 = vunpack.c.l.b16 %v502
      %v590 = vunpack.c.l.b16 %v503
      %v591 = vunpack.c.l.b16 %v504
      %v592 = vunpack.c.l.b16 %v505
      %v593 = vunpack.c.l.b16 %v506
      %v594 = vunpack.c.l.b16 %v507
      %v595 = vunpack.c.l.b16 %v508
      %v596 = vunpack.c.l.b16 %v509
      %v597 = vunpack.c.l.b16 %v510
      %v598 = vunpack.c.l.b16 %v511
      %v599 = vunpack.c.l.b16 %v512
      %v600 = vunpack.c.l.b16 %v513
      %v601 = vunpack.c.l.b16 %v514
      %v602 = vunpack.c.l.b16 %v515
      %v603 = vunpack.c.l.b16 %v516
      %v604 = vunpack.c.l.b16 %v517
      %v605 = vunpack.c.l.b16 %v518
      %v606 = vunpack.c.l.b16 %v519
      %v607 = vunpack.c.l.b16 %v520
      %v608 = vunpack.c.l.b16 %v521
      %v609 = vunpack.c.l.b16 %v522
      %v610 = vunpack.c.l.b16 %v523
      %v611 = vunpack.c.l.b16 %v524
      %v612 = vunpack.c.l.b16 %v525
      %v613 = vunpack.c.l.b16 %v526
      %v614 = vunpack.c.l.b16 %v527
      %v615 = vunpack.c.l.b16 %v528
      %v616 = vunpack.c.l.b16 %v529
      %v617 = vunpack.c.l.b16 %v530
      %v618 = vunpack.c.l.b16 %v531
      %v619 = vunpack.c.l.b16 %v532
      %v620 = vunpack.c.l.b16 %v533
      %v621 = vunpack.c.l.b16 %v534
      %v622 = vunpack.c.l.b16 %v535
      %v623 = vunpack.c.l.b16 %v536
      %v624 = vunpack.c.l.b16 %v537
      %v625 = vpack.c.b16 %v590, %v589
      %v626 = vpack.c.b16 %v592, %v591
      %v627 = vpack.c.b16 %v594, %v593
      %v628 = vpack.c.b16 %v596, %v595
      %v629 = vpack.c.b16 %v598, %v597
      %v630 = vpack.c.b16 %v600, %v599
      %v631 = vpack.c.b16 %v602, %v601
      %v632 = vpack.c.b16 %v604, %v603
      %v633 = vpack.c.b16 %v606, %v605
      %v634 = vpack.c.b16 %v608, %v607
      %v635 = vpack.c.b16 %v610, %v609
      %v636 = vpack.c.b16 %v612, %v611
      %v637 = vpack.c.b16 %v614, %v613
      %v638 = vpack.c.b16 %v616, %v615
      %v639 = vpack.c.b16 %v618, %v617
      %v640 = vpack.c.b16 %v620, %v619
      %v641 = vpack.c.b16 %v622, %v621
      %v642 = vpack.c.b16 %v624, %v623
      %v651 = vunpack.c.l.b16 %v538
      %v652 = vunpack.c.l.b16 %v539
      %v653 = vunpack.c.l.b16 %v540
      %v654 = vunpack.c.l.b16 %v541
      %v655 = vunpack.c.l.b16 %v542
      %v656 = vunpack.c.l.b16 %v543
      %v657 = vunpack.c.l.b16 %v544
      %v658 = vunpack.c.l.b16 %v545
      %v659 = vpack.c.b16 %v652, %v651
      %v660 = vpack.c.b16 %v654, %v653
      %v661 = vpack.c.b16 %v656, %v655
      %v662 = vpack.c.b16 %v658, %v657
      %vm667 = vcmask 523264
      %v669 = vsel %vm667, %v625, 0
      %v672 = vsel %vm667, %v626, 0
      %v675 = vsel %vm667, %v627, 0
      %v678 = vsel %vm667, %v628, 0
      %v681 = vsel %vm667, %v629, 0
      %v684 = vsel %vm667, %v630, 0
      %v687 = vsel %vm667, %v631, 0
      %v690 = vsel %vm667, %v632, 0
      %v693 = vsel %vm667, %v633, 0
      %v696 = vsel %vm667, %v634, 0
      %v699 = vsel %vm667, %v635, 0
      %v702 = vsel %vm667, %v636, 0
      %v705 = vsel %vm667, %v637, 0
      %v708 = vsel %vm667, %v638, 0
      %v711 = vsel %vm667, %v639, 0
      %v714 = vsel %vm667, %v640, 0
      %v717 = vsel %vm667, %v641, 0
      %v720 = vsel %vm667, %v642, 0
      %722 = vmatprep.subr.bf16.mxu0 0
      %723 = vmatpush1.bf16.msra.mxu0 0
      %724 = vmatprep.subr.bf16.mxu0 0
      %725 = vmatpush1.bf16.msra.mxu0 0
      %726 = vmatprep.subr.bf16.mxu0 0
      %727 = vmatpush1.bf16.msra.mxu0 0
      %728 = vmatprep.subr.bf16.mxu0 0
      %729 = vmatpush1.bf16.msra.mxu0 0
      %730 = vmatprep.subr.bf16.mxu0 0
      %731 = vmatpush1.bf16.msra.mxu0 %v662
      %732 = vmatprep.subr.bf16.mxu0 0
      %733 = vmatpush1.bf16.msra.mxu0 %v661
      %734 = vmatprep.subr.bf16.mxu0 0
      %735 = vmatpush1.bf16.msra.mxu0 %v660
      %736 = vmatprep.subr.bf16.mxu0 0
      %737 = vmatpush1.bf16.msra.mxu0 %v659
      %738 = vmatprep.subr.bf16.mxu0 0
      %739 = vmatpush2.bf16.msra.mxu0 0
      %740 = vmatprep.subr.bf16.mxu0 0
      %741 = vmatpush2.bf16.msra.mxu0 0
      %742 = vmatprep.subr.bf16.mxu0 0
      %743 = vmatpush2.bf16.msra.mxu0 0
      %744 = vmatprep.subr.bf16.mxu0 0
      %745 = vmatpush2.bf16.msra.mxu0 0
      %746 = vmatprep.subr.bf16.mxu0 0
      %747 = vmatpush2.bf16.msra.mxu0 0
      %748 = vmatprep.subr.bf16.mxu0 0
      %749 = vmatpush2.bf16.msra.mxu0 0
      %750 = vmatprep.subr.bf16.mxu0 0
      %751 = vmatpush2.bf16.msra.mxu0 0
      %752 = vmatprep.subr.bf16.mxu0 0
      %753 = vmatpush2.bf16.msra.mxu0 0
      %754 = vmatprep.mubr.bf16.mxu0 0
      %755 = vmatmul.mubr.bf16.gmra.mxu0 %v669
      %v756 = vpop.f32.mrf.mxu0
      %v757 = vadd.f32 %v551, %v756
      %v758 = vpop.f32.mrf.mxu0
      %v759 = vpop.f32.mrf.mxu0
      %v760 = vadd.f32 %v551, %v759
      %v761 = vpop.f32.mrf.mxu0
      %762 = vmatprep.mubr.bf16.mxu0 0
      %763 = vmatmul.mubr.bf16.gmra.mxu0 %v672
      %v764 = vpop.f32.mrf.mxu0
      %v765 = vadd.f32 %v551, %v764
      %v766 = vpop.f32.mrf.mxu0
      %v767 = vpop.f32.mrf.mxu0
      %v768 = vadd.f32 %v551, %v767
      %v769 = vpop.f32.mrf.mxu0
      %770 = vmatprep.mubr.bf16.mxu0 0
      %771 = vmatmul.mubr.bf16.gmra.mxu0 %v675
      %v772 = vpop.f32.mrf.mxu0
      %v773 = vadd.f32 %v551, %v772
      %v774 = vpop.f32.mrf.mxu0
      %v775 = vpop.f32.mrf.mxu0
      %v776 = vadd.f32 %v551, %v775
      %v777 = vpop.f32.mrf.mxu0
      %778 = vmatprep.mubr.bf16.mxu0 0
      %779 = vmatmul.mubr.bf16.gmra.mxu0 %v678
      %v780 = vpop.f32.mrf.mxu0
      %v781 = vadd.f32 %v551, %v780
      %v782 = vpop.f32.mrf.mxu0
      %v783 = vpop.f32.mrf.mxu0
      %v784 = vadd.f32 %v551, %v783
      %v785 = vpop.f32.mrf.mxu0
      %786 = vmatprep.mubr.bf16.mxu0 0
      %787 = vmatmul.mubr.bf16.gmra.mxu0 %v681
      %v788 = vpop.f32.mrf.mxu0
      %v789 = vadd.f32 %v551, %v788
      %v790 = vpop.f32.mrf.mxu0
      %v791 = vpop.f32.mrf.mxu0
      %v792 = vadd.f32 %v551, %v791
      %v793 = vpop.f32.mrf.mxu0
      %794 = vmatprep.mubr.bf16.mxu0 0
      %795 = vmatmul.mubr.bf16.gmra.mxu0 %v684
      %v796 = vpop.f32.mrf.mxu0
      %v797 = vadd.f32 %v551, %v796
      %v798 = vpop.f32.mrf.mxu0
      %v799 = vpop.f32.mrf.mxu0
      %v800 = vadd.f32 %v551, %v799
      %v801 = vpop.f32.mrf.mxu0
      %802 = vmatprep.mubr.bf16.mxu0 0
      %803 = vmatmul.mubr.bf16.gmra.mxu0 %v687
      %v804 = vpop.f32.mrf.mxu0
      %v805 = vadd.f32 %v551, %v804
      %v806 = vpop.f32.mrf.mxu0
      %v807 = vpop.f32.mrf.mxu0
      %v808 = vadd.f32 %v551, %v807
      %v809 = vpop.f32.mrf.mxu0
      %810 = vmatprep.mubr.bf16.mxu0 0
      %811 = vmatmul.mubr.bf16.gmra.mxu0 %v690
      %v812 = vpop.f32.mrf.mxu0
      %v813 = vadd.f32 %v551, %v812
      %v814 = vpop.f32.mrf.mxu0
      %v815 = vpop.f32.mrf.mxu0
      %v816 = vadd.f32 %v551, %v815
      %v817 = vpop.f32.mrf.mxu0
      %818 = vmatprep.mubr.bf16.mxu0 0
      %819 = vmatmul.mubr.bf16.gmra.mxu0 %v693
      %v820 = vpop.f32.mrf.mxu0
      %v821 = vadd.f32 %v551, %v820
      %v822 = vpop.f32.mrf.mxu0
      %v823 = vpop.f32.mrf.mxu0
      %v824 = vadd.f32 %v551, %v823
      %v825 = vpop.f32.mrf.mxu0
      %826 = vmatprep.mubr.bf16.mxu0 0
      %827 = vmatmul.mubr.bf16.gmra.mxu0 %v696
      %v828 = vpop.f32.mrf.mxu0
      %v829 = vadd.f32 %v551, %v828
      %v830 = vpop.f32.mrf.mxu0
      %v831 = vpop.f32.mrf.mxu0
      %v832 = vadd.f32 %v551, %v831
      %v833 = vpop.f32.mrf.mxu0
      %834 = vmatprep.mubr.bf16.mxu0 0
      %835 = vmatmul.mubr.bf16.gmra.mxu0 %v699
      %v836 = vpop.f32.mrf.mxu0
      %v837 = vadd.f32 %v551, %v836
      %v838 = vpop.f32.mrf.mxu0
      %v839 = vpop.f32.mrf.mxu0
      %v840 = vadd.f32 %v551, %v839
      %v841 = vpop.f32.mrf.mxu0
      %842 = vmatprep.mubr.bf16.mxu0 0
      %843 = vmatmul.mubr.bf16.gmra.mxu0 %v702
      %v844 = vpop.f32.mrf.mxu0
      %v845 = vadd.f32 %v551, %v844
      %v846 = vpop.f32.mrf.mxu0
      %v847 = vpop.f32.mrf.mxu0
      %v848 = vadd.f32 %v551, %v847
      %v849 = vpop.f32.mrf.mxu0
      %850 = vmatprep.mubr.bf16.mxu0 0
      %851 = vmatmul.mubr.bf16.gmra.mxu0 %v705
      %v852 = vpop.f32.mrf.mxu0
      %v853 = vadd.f32 %v551, %v852
      %v854 = vpop.f32.mrf.mxu0
      %v855 = vpop.f32.mrf.mxu0
      %v856 = vadd.f32 %v551, %v855
      %v857 = vpop.f32.mrf.mxu0
      %858 = vmatprep.mubr.bf16.mxu0 0
      %859 = vmatmul.mubr.bf16.gmra.mxu0 %v708
      %v860 = vpop.f32.mrf.mxu0
      %v861 = vadd.f32 %v551, %v860
      %v862 = vpop.f32.mrf.mxu0
      %v863 = vpop.f32.mrf.mxu0
      %v864 = vadd.f32 %v551, %v863
      %v865 = vpop.f32.mrf.mxu0
      %866 = vmatprep.mubr.bf16.mxu0 0
      %867 = vmatmul.mubr.bf16.gmra.mxu0 %v711
      %v868 = vpop.f32.mrf.mxu0
      %v869 = vadd.f32 %v551, %v868
      %v870 = vpop.f32.mrf.mxu0
      %v871 = vpop.f32.mrf.mxu0
      %v872 = vadd.f32 %v551, %v871
      %v873 = vpop.f32.mrf.mxu0
      %874 = vmatprep.mubr.bf16.mxu0 0
      %875 = vmatmul.mubr.bf16.gmra.mxu0 %v714
      %v876 = vpop.f32.mrf.mxu0
      %v877 = vadd.f32 %v551, %v876
      %v878 = vpop.f32.mrf.mxu0
      %v879 = vpop.f32.mrf.mxu0
      %v880 = vadd.f32 %v551, %v879
      %v881 = vpop.f32.mrf.mxu0
      %882 = vmatprep.mubr.bf16.mxu0 0
      %883 = vmatmul.mubr.bf16.gmra.mxu0 %v717
      %v884 = vpop.f32.mrf.mxu0
      %v885 = vadd.f32 %v551, %v884
      %v886 = vpop.f32.mrf.mxu0
      %v887 = vpop.f32.mrf.mxu0
      %v888 = vadd.f32 %v551, %v887
      %v889 = vpop.f32.mrf.mxu0
      %890 = vmatprep.mubr.bf16.mxu0 0
      %891 = vmatmul.mubr.bf16.gmra.mxu0 %v720
      %v892 = vpop.f32.mrf.mxu0
      %v893 = vadd.f32 %v551, %v892
      %v894 = vpop.f32.mrf.mxu0
      %v895 = vpop.f32.mrf.mxu0
      %v896 = vadd.f32 %v551, %v895
      %v897 = vpop.f32.mrf.mxu0
      %898 = vdwg.mxu0
      %v899 = vmax.f32 %v757, 0.0
      %v900 = vmax.f32 %v760, 0.0
      %v901 = vmax.f32 %v765, 0.0
      %v902 = vmax.f32 %v768, 0.0
      %v903 = vmax.f32 %v773, 0.0
      %v904 = vmax.f32 %v776, 0.0
      %v905 = vmax.f32 %v781, 0.0
      %v906 = vmax.f32 %v784, 0.0
      %v907 = vmax.f32 %v789, 0.0
      %v908 = vmax.f32 %v792, 0.0
      %v909 = vmax.f32 %v797, 0.0
      %v910 = vmax.f32 %v800, 0.0
      %v911 = vmax.f32 %v805, 0.0
      %v912 = vmax.f32 %v808, 0.0
      %v913 = vmax.f32 %v813, 0.0
      %v914 = vmax.f32 %v816, 0.0
      %v915 = vmax.f32 %v821, 0.0
      %v916 = vmax.f32 %v824, 0.0
      %v917 = vmax.f32 %v829, 0.0
      %v918 = vmax.f32 %v832, 0.0
      %v919 = vmax.f32 %v837, 0.0
      %v920 = vmax.f32 %v840, 0.0
      %v921 = vmax.f32 %v845, 0.0
      %v922 = vmax.f32 %v848, 0.0
      %v923 = vmax.f32 %v853, 0.0
      %v924 = vmax.f32 %v856, 0.0
      %v925 = vmax.f32 %v861, 0.0
      %v926 = vmax.f32 %v864, 0.0
      %v927 = vmax.f32 %v869, 0.0
      %v928 = vmax.f32 %v872, 0.0
      %v929 = vmax.f32 %v877, 0.0
      %v930 = vmax.f32 %v880, 0.0
      %v931 = vmax.f32 %v885, 0.0
      %v932 = vmax.f32 %v888, 0.0
      %v933 = vmax.f32 %v893, 0.0
      %v934 = vmax.f32 %v896, 0.0
      %v935 = vpack.c.bf16 %v900, %v899
      %v936 = vpack.c.bf16 %v902, %v901
      %v937 = vpack.c.bf16 %v904, %v903
      %v938 = vpack.c.bf16 %v906, %v905
      %v939 = vpack.c.bf16 %v908, %v907
      %v940 = vpack.c.bf16 %v910, %v909
      %v941 = vpack.c.bf16 %v912, %v911
      %v942 = vpack.c.bf16 %v914, %v913
      %v943 = vpack.c.bf16 %v916, %v915
      %v944 = vpack.c.bf16 %v918, %v917
      %v945 = vpack.c.bf16 %v920, %v919
      %v946 = vpack.c.bf16 %v922, %v921
      %v947 = vpack.c.bf16 %v924, %v923
      %v948 = vpack.c.bf16 %v926, %v925
      %v949 = vpack.c.bf16 %v928, %v927
      %v950 = vpack.c.bf16 %v930, %v929
      %v951 = vpack.c.bf16 %v932, %v931
      %v952 = vpack.c.bf16 %v934, %v933
      %v971 = vunpack.c.l.b16 %v935
      %v972 = vunpack.c.h.b16 %v935
      %v973 = vunpack.c.l.b16 %v936
      %v974 = vunpack.c.h.b16 %v936
      %v975 = vunpack.c.l.b16 %v937
      %v976 = vunpack.c.h.b16 %v937
      %v977 = vunpack.c.l.b16 %v938
      %v978 = vunpack.c.h.b16 %v938
      %v979 = vunpack.c.l.b16 %v939
      %v980 = vunpack.c.h.b16 %v939
      %v981 = vunpack.c.l.b16 %v940
      %v982 = vunpack.c.h.b16 %v940
      %v983 = vunpack.c.l.b16 %v941
      %v984 = vunpack.c.h.b16 %v941
      %v985 = vunpack.c.l.b16 %v942
      %v986 = vunpack.c.h.b16 %v942
      %v987 = vunpack.c.l.b16 %v943
      %v988 = vunpack.c.h.b16 %v943
      %v989 = vunpack.c.l.b16 %v944
      %v990 = vunpack.c.h.b16 %v944
      %v991 = vunpack.c.l.b16 %v945
      %v992 = vunpack.c.h.b16 %v945
      %v993 = vunpack.c.l.b16 %v946
      %v994 = vunpack.c.h.b16 %v946
      %v995 = vunpack.c.l.b16 %v947
      %v996 = vunpack.c.h.b16 %v947
      %v997 = vunpack.c.l.b16 %v948
      %v998 = vunpack.c.h.b16 %v948
      %v999 = vunpack.c.l.b16 %v949
      %v1000 = vunpack.c.h.b16 %v949
      %v1001 = vunpack.c.l.b16 %v950
      %v1002 = vunpack.c.h.b16 %v950
      %v1003 = vunpack.c.l.b16 %v951
      %v1004 = vunpack.c.h.b16 %v951
      %v1005 = vunpack.c.l.b16 %v952
      %v1006 = vunpack.c.h.b16 %v952
      %v1007 = vpack.c.b16 %v971, %v971
      %v1008 = vpack.c.b16 %v972, %v972
      %v1009 = vpack.c.b16 %v973, %v973
      %v1010 = vpack.c.b16 %v974, %v974
      %v1011 = vpack.c.b16 %v975, %v975
      %v1012 = vpack.c.b16 %v976, %v976
      %v1013 = vpack.c.b16 %v977, %v977
      %v1014 = vpack.c.b16 %v978, %v978
      %v1015 = vpack.c.b16 %v979, %v979
      %v1016 = vpack.c.b16 %v980, %v980
      %v1017 = vpack.c.b16 %v981, %v981
      %v1018 = vpack.c.b16 %v982, %v982
      %v1019 = vpack.c.b16 %v983, %v983
      %v1020 = vpack.c.b16 %v984, %v984
      %v1021 = vpack.c.b16 %v985, %v985
      %v1022 = vpack.c.b16 %v986, %v986
      %v1023 = vpack.c.b16 %v987, %v987
      %v1024 = vpack.c.b16 %v988, %v988
      %v1025 = vpack.c.b16 %v989, %v989
      %v1026 = vpack.c.b16 %v990, %v990
      %v1027 = vpack.c.b16 %v991, %v991
      %v1028 = vpack.c.b16 %v992, %v992
      %v1029 = vpack.c.b16 %v993, %v993
      %v1030 = vpack.c.b16 %v994, %v994
      %v1031 = vpack.c.b16 %v995, %v995
      %v1032 = vpack.c.b16 %v996, %v996
      %v1033 = vpack.c.b16 %v997, %v997
      %v1034 = vpack.c.b16 %v998, %v998
      %v1035 = vpack.c.b16 %v999, %v999
      %v1036 = vpack.c.b16 %v1000, %v1000
      %v1037 = vpack.c.b16 %v1001, %v1001
      %v1038 = vpack.c.b16 %v1002, %v1002
      %v1039 = vpack.c.b16 %v1003, %v1003
      %v1040 = vpack.c.b16 %v1004, %v1004
      %v1041 = vpack.c.b16 %v1005, %v1005
      %v1042 = vpack.c.b16 %v1006, %v1006
      %1079 = vst [vmem:[#allocation2] sm:$0xf] %v1007
      %1080 = vst [vmem:[#allocation2 + $0x4] sm:$0xf] %v1008
      %1081 = vst [vmem:[#allocation2 + $0x8] sm:$0xf] %v1009
      %1082 = vst [vmem:[#allocation2 + $0xc] sm:$0xf] %v1010
      %1083 = vst [vmem:[#allocation2 + $0x10] sm:$0xf] %v1011
      %1084 = vst [vmem:[#allocation2 + $0x14] sm:$0xf] %v1012
      %1085 = vst [vmem:[#allocation2 + $0x18] sm:$0xf] %v1013
      %1086 = vst [vmem:[#allocation2 + $0x1c] sm:$0xf] %v1014
      %1087 = vst [vmem:[#allocation2 + $0x20] sm:$0xf] %v1015
      %1088 = vst [vmem:[#allocation2 + $0x24] sm:$0xf] %v1016
      %1089 = vst [vmem:[#allocation2 + $0x28] sm:$0xf] %v1017
      %1090 = vst [vmem:[#allocation2 + $0x2c] sm:$0xf] %v1018
      %1091 = vst [vmem:[#allocation2 + $0x30] sm:$0xf] %v1019
      %1092 = vst [vmem:[#allocation2 + $0x34] sm:$0xf] %v1020
      %1093 = vst [vmem:[#allocation2 + $0x38] sm:$0xf] %v1021
      %1094 = vst [vmem:[#allocation2 + $0x3c] sm:$0xf] %v1022
      %1095 = vst [vmem:[#allocation2 + $0x40] sm:$0xf] %v1023
      %1096 = vst [vmem:[#allocation2 + $0x44] sm:$0xf] %v1024
      %1097 = vst [vmem:[#allocation2 + $0x48] sm:$0xf] %v1025
      %1098 = vst [vmem:[#allocation2 + $0x4c] sm:$0xf] %v1026
      %1099 = vst [vmem:[#allocation2 + $0x50] sm:$0xf] %v1027
      %1100 = vst [vmem:[#allocation2 + $0x54] sm:$0xf] %v1028
      %1101 = vst [vmem:[#allocation2 + $0x58] sm:$0xf] %v1029
      %1102 = vst [vmem:[#allocation2 + $0x5c] sm:$0xf] %v1030
      %1103 = vst [vmem:[#allocation2 + $0x60] sm:$0xf] %v1031
      %1104 = vst [vmem:[#allocation2 + $0x64] sm:$0xf] %v1032
      %1105 = vst [vmem:[#allocation2 + $0x68] sm:$0xf] %v1033
      %1106 = vst [vmem:[#allocation2 + $0x6c] sm:$0xf] %v1034
      %1107 = vst [vmem:[#allocation2 + $0x70] sm:$0xf] %v1035
      %1108 = vst [vmem:[#allocation2 + $0x74] sm:$0xf] %v1036
      %1109 = vst [vmem:[#allocation2 + $0x78] sm:$0xf] %v1037
      %1110 = vst [vmem:[#allocation2 + $0x7c] sm:$0xf] %v1038
      %1111 = vst [vmem:[#allocation2 + $0x80] sm:$0xf] %v1039
      %1112 = vst [vmem:[#allocation2 + $0x84] sm:$0xf] %v1040
      %1113 = vst [vmem:[#allocation2 + $0x88] sm:$0xf] %v1041
      %1114 = vst [vmem:[#allocation2 + $0x8c] sm:$0xf] %v1042
      %p1115 = scmp.eq.s32.totalorder %s25, 0
      // Predicated region
      $region57: #{_lambda_.4} parent=55 // pred_check
        %p1116 = pneg %p1115
      $region58: #{_lambda_.4} parent=55 // pred_check_branch
        %1118 = sbr.rel (%p1116) target = $region60
      $region59: #{_lambda_.4} parent=55 // pred_region
        %1119 = vst [vmem:[#allocation2] sm:$0xf] 0
        %1120 = vst [vmem:[#allocation2 + $0x4] sm:$0xf] 0
        %s1121 = scalar_lea.vmem [#allocation2], 136
        %1122 = vst [vmem:[%s1121] sm:$0xf] 0
        %1123 = vst [vmem:[%s1121 + $0x4] sm:$0xf] 0
      $region60: #{_lambda_.4} parent=55 // pred_fallthru
        _
      %v1124 = vld [vmem:[#allocation2] sm:$0xf]
      %v1125 = vld [vmem:[#allocation2 + $0x4] sm:$0xf]
      %v1126 = vld [vmem:[#allocation2 + $0x8] sm:$0xf]
      %v1127 = vld [vmem:[#allocation2 + $0xc] sm:$0xf]
      %v1128 = vld [vmem:[#allocation2 + $0x10] sm:$0xf]
      %v1129 = vld [vmem:[#allocation2 + $0x14] sm:$0xf]
      %v1130 = vld [vmem:[#allocation2 + $0x18] sm:$0xf]
      %v1131 = vld [vmem:[#allocation2 + $0x1c] sm:$0xf]
      %v1132 = vld [vmem:[#allocation2 + $0x20] sm:$0xf]
      %v1133 = vld [vmem:[#allocation2 + $0x24] sm:$0xf]
      %v1134 = vld [vmem:[#allocation2 + $0x28] sm:$0xf]
      %v1135 = vld [vmem:[#allocation2 + $0x2c] sm:$0xf]
      %v1136 = vld [vmem:[#allocation2 + $0x30] sm:$0xf]
      %v1137 = vld [vmem:[#allocation2 + $0x34] sm:$0xf]
      %v1138 = vld [vmem:[#allocation2 + $0x38] sm:$0xf]
      %v1139 = vld [vmem:[#allocation2 + $0x3c] sm:$0xf]
      %v1140 = vld [vmem:[#allocation2 + $0x40] sm:$0xf]
      %v1141 = vld [vmem:[#allocation2 + $0x44] sm:$0xf]
      %v1142 = vld [vmem:[#allocation2 + $0x48] sm:$0xf]
      %v1143 = vld [vmem:[#allocation2 + $0x4c] sm:$0xf]
      %v1144 = vld [vmem:[#allocation2 + $0x50] sm:$0xf]
      %v1145 = vld [vmem:[#allocation2 + $0x54] sm:$0xf]
      %v1146 = vld [vmem:[#allocation2 + $0x58] sm:$0xf]
      %v1147 = vld [vmem:[#allocation2 + $0x5c] sm:$0xf]
      %v1148 = vld [vmem:[#allocation2 + $0x60] sm:$0xf]
      %v1149 = vld [vmem:[#allocation2 + $0x64] sm:$0xf]
      %v1150 = vld [vmem:[#allocation2 + $0x68] sm:$0xf]
      %v1151 = vld [vmem:[#allocation2 + $0x6c] sm:$0xf]
      %v1152 = vld [vmem:[#allocation2 + $0x70] sm:$0xf]
      %v1153 = vld [vmem:[#allocation2 + $0x74] sm:$0xf]
      %v1154 = vld [vmem:[#allocation2 + $0x78] sm:$0xf]
      %v1155 = vld [vmem:[#allocation2 + $0x7c] sm:$0xf]
      %v1156 = vld [vmem:[#allocation2 + $0x80] sm:$0xf]
      %v1157 = vld [vmem:[#allocation2 + $0x84] sm:$0xf]
      %v1158 = vld [vmem:[#allocation2 + $0x88] sm:$0xf]
      %v1159 = vld [vmem:[#allocation2 + $0x8c] sm:$0xf]
      %v1196 = vunpack.c.l.b16 %v1124
      %v1197 = vunpack.c.l.b16 %v1125
      %v1198 = vunpack.c.l.b16 %v1126
      %v1199 = vunpack.c.l.b16 %v1127
      %v1200 = vunpack.c.l.b16 %v1128
      %v1201 = vunpack.c.l.b16 %v1129
      %v1202 = vunpack.c.l.b16 %v1130
      %v1203 = vunpack.c.l.b16 %v1131
      %v1204 = vunpack.c.l.b16 %v1132
      %v1205 = vunpack.c.l.b16 %v1133
      %v1206 = vunpack.c.l.b16 %v1134
      %v1207 = vunpack.c.l.b16 %v1135
      %v1208 = vunpack.c.l.b16 %v1136
      %v1209 = vunpack.c.l.b16 %v1137
      %v1210 = vunpack.c.l.b16 %v1138
      %v1211 = vunpack.c.l.b16 %v1139
      %v1212 = vunpack.c.l.b16 %v1140
      %v1213 = vunpack.c.l.b16 %v1141
      %v1214 = vunpack.c.l.b16 %v1142
      %v1215 = vunpack.c.l.b16 %v1143
      %v1216 = vunpack.c.l.b16 %v1144
      %v1217 = vunpack.c.l.b16 %v1145
      %v1218 = vunpack.c.l.b16 %v1146
      %v1219 = vunpack.c.l.b16 %v1147
      %v1220 = vunpack.c.l.b16 %v1148
      %v1221 = vunpack.c.l.b16 %v1149
      %v1222 = vunpack.c.l.b16 %v1150
      %v1223 = vunpack.c.l.b16 %v1151
      %v1224 = vunpack.c.l.b16 %v1152
      %v1225 = vunpack.c.l.b16 %v1153
      %v1226 = vunpack.c.l.b16 %v1154
      %v1227 = vunpack.c.l.b16 %v1155
      %v1228 = vunpack.c.l.b16 %v1156
      %v1229 = vunpack.c.l.b16 %v1157
      %v1230 = vunpack.c.l.b16 %v1158
      %v1231 = vunpack.c.l.b16 %v1159
      %v1232 = vpack.c.b16 %v1197, %v1196
      %v1233 = vpack.c.b16 %v1199, %v1198
      %v1234 = vpack.c.b16 %v1201, %v1200
      %v1235 = vpack.c.b16 %v1203, %v1202
      %v1236 = vpack.c.b16 %v1205, %v1204
      %v1237 = vpack.c.b16 %v1207, %v1206
      %v1238 = vpack.c.b16 %v1209, %v1208
      %v1239 = vpack.c.b16 %v1211, %v1210
      %v1240 = vpack.c.b16 %v1213, %v1212
      %v1241 = vpack.c.b16 %v1215, %v1214
      %v1242 = vpack.c.b16 %v1217, %v1216
      %v1243 = vpack.c.b16 %v1219, %v1218
      %v1244 = vpack.c.b16 %v1221, %v1220
      %v1245 = vpack.c.b16 %v1223, %v1222
      %v1246 = vpack.c.b16 %v1225, %v1224
      %v1247 = vpack.c.b16 %v1227, %v1226
      %v1248 = vpack.c.b16 %v1229, %v1228
      %v1249 = vpack.c.b16 %v1231, %v1230
      %v1251 = vshrl.u32 %v1232, 16
      %v1253 = vrot.slane %v1251, 7
      %v1254 = vshll.u32 %v1232, 16
      %v1256 = vor.u32 %v1253, %v1254
      %v1258 = vshrl.u32 %v1233, 16
      %v1260 = vrot.slane %v1258, 7
      %v1261 = vshll.u32 %v1233, 16
      %v1263 = vor.u32 %v1260, %v1261
      %v1265 = vshrl.u32 %v1234, 16
      %v1267 = vrot.slane %v1265, 7
      %v1268 = vshll.u32 %v1234, 16
      %v1270 = vor.u32 %v1267, %v1268
      %v1272 = vshrl.u32 %v1235, 16
      %v1274 = vrot.slane %v1272, 7
      %v1275 = vshll.u32 %v1235, 16
      %v1277 = vor.u32 %v1274, %v1275
      %v1279 = vshrl.u32 %v1236, 16
      %v1281 = vrot.slane %v1279, 7
      %v1282 = vshll.u32 %v1236, 16
      %v1284 = vor.u32 %v1281, %v1282
      %v1286 = vshrl.u32 %v1237, 16
      %v1288 = vrot.slane %v1286, 7
      %v1289 = vshll.u32 %v1237, 16
      %v1291 = vor.u32 %v1288, %v1289
      %v1293 = vshrl.u32 %v1238, 16
      %v1295 = vrot.slane %v1293, 7
      %v1296 = vshll.u32 %v1238, 16
      %v1298 = vor.u32 %v1295, %v1296
      %v1300 = vshrl.u32 %v1239, 16
      %v1302 = vrot.slane %v1300, 7
      %v1303 = vshll.u32 %v1239, 16
      %v1305 = vor.u32 %v1302, %v1303
      %v1307 = vshrl.u32 %v1240, 16
      %v1309 = vrot.slane %v1307, 7
      %v1310 = vshll.u32 %v1240, 16
      %v1312 = vor.u32 %v1309, %v1310
      %v1314 = vshrl.u32 %v1241, 16
      %v1316 = vrot.slane %v1314, 7
      %v1317 = vshll.u32 %v1241, 16
      %v1319 = vor.u32 %v1316, %v1317
      %v1321 = vshrl.u32 %v1242, 16
      %v1323 = vrot.slane %v1321, 7
      %v1324 = vshll.u32 %v1242, 16
      %v1326 = vor.u32 %v1323, %v1324
      %v1328 = vshrl.u32 %v1243, 16
      %v1330 = vrot.slane %v1328, 7
      %v1331 = vshll.u32 %v1243, 16
      %v1333 = vor.u32 %v1330, %v1331
      %v1335 = vshrl.u32 %v1244, 16
      %v1337 = vrot.slane %v1335, 7
      %v1338 = vshll.u32 %v1244, 16
      %v1340 = vor.u32 %v1337, %v1338
      %v1342 = vshrl.u32 %v1245, 16
      %v1344 = vrot.slane %v1342, 7
      %v1345 = vshll.u32 %v1245, 16
      %v1347 = vor.u32 %v1344, %v1345
      %v1349 = vshrl.u32 %v1246, 16
      %v1351 = vrot.slane %v1349, 7
      %v1352 = vshll.u32 %v1246, 16
      %v1354 = vor.u32 %v1351, %v1352
      %v1356 = vshrl.u32 %v1247, 16
      %v1358 = vrot.slane %v1356, 7
      %v1359 = vshll.u32 %v1247, 16
      %v1361 = vor.u32 %v1358, %v1359
      %v1363 = vshrl.u32 %v1248, 16
      %v1365 = vrot.slane %v1363, 7
      %v1366 = vshll.u32 %v1248, 16
      %v1368 = vor.u32 %v1365, %v1366
      %v1370 = vshrl.u32 %v1249, 16
      %v1372 = vrot.slane %v1370, 7
      %v1373 = vshll.u32 %v1249, 16
      %v1375 = vor.u32 %v1372, %v1373
      %vm1394 = vcmask 1040384
      %vm1395 = vsmask.f32 256
      %vm1396 = vmand %vm1394, %vm1395
      %v1397 = vsel %vm1396, 0, %v1256
      %v1398 = vsel %vm1396, 0, %v1263
      %v1399 = vsel %vm1396, 0, %v1270
      %v1400 = vsel %vm1396, 0, %v1277
      %v1401 = vsel %vm1396, 0, %v1284
      %v1402 = vsel %vm1396, 0, %v1291
      %v1403 = vsel %vm1396, 0, %v1298
      %v1404 = vsel %vm1396, 0, %v1305
      %v1405 = vsel %vm1396, 0, %v1312
      %v1406 = vsel %vm1396, 0, %v1319
      %v1407 = vsel %vm1396, 0, %v1326
      %v1408 = vsel %vm1396, 0, %v1333
      %v1409 = vsel %vm1396, 0, %v1340
      %v1410 = vsel %vm1396, 0, %v1347
      %v1411 = vsel %vm1396, 0, %v1354
      %v1412 = vsel %vm1396, 0, %v1361
      %v1413 = vsel %vm1396, 0, %v1368
      %v1414 = vsel %vm1396, 0, %v1375
      %v1415 = vrot.slane %v1254, 1
      %v1416 = vor.u32 %v1251, %v1415
      %v1417 = vrot.slane %v1261, 1
      %v1418 = vor.u32 %v1258, %v1417
      %v1419 = vrot.slane %v1268, 1
      %v1420 = vor.u32 %v1265, %v1419
      %v1421 = vrot.slane %v1275, 1
      %v1422 = vor.u32 %v1272, %v1421
      %v1423 = vrot.slane %v1282, 1
      %v1424 = vor.u32 %v1279, %v1423
      %v1425 = vrot.slane %v1289, 1
      %v1426 = vor.u32 %v1286, %v1425
      %v1427 = vrot.slane %v1296, 1
      %v1428 = vor.u32 %v1293, %v1427
      %v1429 = vrot.slane %v1303, 1
      %v1430 = vor.u32 %v1300, %v1429
      %v1431 = vrot.slane %v1310, 1
      %v1432 = vor.u32 %v1307, %v1431
      %v1433 = vrot.slane %v1317, 1
      %v1434 = vor.u32 %v1314, %v1433
      %v1435 = vrot.slane %v1324, 1
      %v1436 = vor.u32 %v1321, %v1435
      %v1437 = vrot.slane %v1331, 1
      %v1438 = vor.u32 %v1328, %v1437
      %v1439 = vrot.slane %v1338, 1
      %v1440 = vor.u32 %v1335, %v1439
      %v1441 = vrot.slane %v1345, 1
      %v1442 = vor.u32 %v1342, %v1441
      %v1443 = vrot.slane %v1352, 1
      %v1444 = vor.u32 %v1349, %v1443
      %v1445 = vrot.slane %v1359, 1
      %v1446 = vor.u32 %v1356, %v1445
      %v1447 = vrot.slane %v1366, 1
      %v1448 = vor.u32 %v1363, %v1447
      %v1449 = vrot.slane %v1373, 1
      %v1450 = vor.u32 %v1370, %v1449
      %vm1469 = vcmask 1047552
      %vm1470 = vsmask.f32 7424
      %vm1471 = vmand %vm1469, %vm1470
      %v1472 = vsel %vm1471, %v1416, 0
      %v1473 = vsel %vm1471, %v1418, 0
      %v1474 = vsel %vm1471, %v1420, 0
      %v1475 = vsel %vm1471, %v1422, 0
      %v1476 = vsel %vm1471, %v1424, 0
      %v1477 = vsel %vm1471, %v1426, 0
      %v1478 = vsel %vm1471, %v1428, 0
      %v1479 = vsel %vm1471, %v1430, 0
      %v1480 = vsel %vm1471, %v1432, 0
      %v1481 = vsel %vm1471, %v1434, 0
      %v1482 = vsel %vm1471, %v1436, 0
      %v1483 = vsel %vm1471, %v1438, 0
      %v1484 = vsel %vm1471, %v1440, 0
      %v1485 = vsel %vm1471, %v1442, 0
      %v1486 = vsel %vm1471, %v1444, 0
      %v1487 = vsel %vm1471, %v1446, 0
      %v1488 = vsel %vm1471, %v1448, 0
      %v1489 = vsel %vm1471, %v1450, 0
      %v1508 = vld [vmem:[%s5] sm:$0xf]
      %v1509 = vld [vmem:[%s5 + $0x4] sm:$0xf]
      %v1510 = vld [vmem:[%s5 + $0x8] sm:$0xf]
      %v1511 = vld [vmem:[%s5 + $0xc] sm:$0xf]
      %v1512 = vld [vmem:[%s5 + $0x10] sm:$0xf]
      %v1513 = vld [vmem:[%s5 + $0x14] sm:$0xf]
      %v1514 = vld [vmem:[%s5 + $0x18] sm:$0xf]
      %v1515 = vld [vmem:[%s5 + $0x1c] sm:$0xf]
      %v1516 = vld [vmem:[%s5 + $0x20] sm:$0xf]
      %v1517 = vld [vmem:[%s5 + $0x24] sm:$0xf]
      %v1518 = vld [vmem:[%s5 + $0x28] sm:$0xf]
      %v1519 = vld [vmem:[%s5 + $0x2c] sm:$0xf]
      %v1520 = vld [vmem:[%s5 + $0x30] sm:$0xf]
      %v1521 = vld [vmem:[%s5 + $0x34] sm:$0xf]
      %v1522 = vld [vmem:[%s5 + $0x38] sm:$0xf]
      %v1523 = vld [vmem:[%s5 + $0x3c] sm:$0xf]
      %v1524 = vld [vmem:[%s5 + $0x40] sm:$0xf]
      %v1525 = vld [vmem:[%s5 + $0x44] sm:$0xf]
      %v1526 = vld [vmem:[%s5 + $0x48] sm:$0xf]
      %v1527 = vld [vmem:[%s5 + $0x4c] sm:$0xf]
      %v1528 = vld [vmem:[%s5 + $0x50] sm:$0xf]
      %v1529 = vld [vmem:[%s5 + $0x54] sm:$0xf]
      %v1530 = vld [vmem:[%s5 + $0x58] sm:$0xf]
      %v1531 = vld [vmem:[%s5 + $0x5c] sm:$0xf]
      %v1532 = vld [vmem:[%s5 + $0x60] sm:$0xf]
      %v1533 = vld [vmem:[%s5 + $0x64] sm:$0xf]
      %v1534 = vld [vmem:[%s5 + $0x68] sm:$0xf]
      %v1535 = vld [vmem:[%s5 + $0x6c] sm:$0xf]
      %v1536 = vld [vmem:[%s5 + $0x70] sm:$0xf]
      %v1537 = vld [vmem:[%s5 + $0x74] sm:$0xf]
      %v1538 = vld [vmem:[%s5 + $0x78] sm:$0xf]
      %v1539 = vld [vmem:[%s5 + $0x7c] sm:$0xf]
      %v1540 = vld [vmem:[%s5 + $0x80] sm:$0xf]
      %v1541 = vld [vmem:[%s5 + $0x84] sm:$0xf]
      %v1542 = vld [vmem:[%s5 + $0x88] sm:$0xf]
      %v1543 = vld [vmem:[%s5 + $0x8c] sm:$0xf]
      %v1544 = vld [vmem:[%s5 + $0x90] sm:$0xf]
      %v1545 = vld [vmem:[%s5 + $0x94] sm:$0xf]
      %v1546 = vld [vmem:[%s5 + $0x98] sm:$0xf]
      %v1547 = vld [vmem:[%s5 + $0x9c] sm:$0xf]
      %v1548 = vld [vmem:[%s5 + $0xa0] sm:$0xf]
      %v1549 = vld [vmem:[%s5 + $0xa4] sm:$0xf]
      %v1550 = vld [vmem:[%s5 + $0xa8] sm:$0xf]
      %v1551 = vld [vmem:[%s5 + $0xac] sm:$0xf]
      %v1552 = vld [vmem:[%s5 + $0xb0] sm:$0xf]
      %v1553 = vld [vmem:[%s5 + $0xb4] sm:$0xf]
      %v1554 = vld [vmem:[%s5 + $0xb8] sm:$0xf]
      %v1555 = vld [vmem:[%s5 + $0xbc] sm:$0xf]
      %s1556 = scalar_lea.vmem %s5, 192
      %v1557 = vld [vmem:[%s1556] sm:$0xf]
      %v1558 = vld [vmem:[%s1556 + $0x4] sm:$0xf]
      %v1559 = vld [vmem:[%s1556 + $0x8] sm:$0xf]
      %v1560 = vld [vmem:[%s1556 + $0xc] sm:$0xf]
      %v1561 = vld [vmem:[%s1556 + $0x10] sm:$0xf]
      %v1562 = vld [vmem:[%s1556 + $0x14] sm:$0xf]
      %v1563 = vld [vmem:[%s1556 + $0x18] sm:$0xf]
      %v1564 = vld [vmem:[%s1556 + $0x1c] sm:$0xf]
      %v1565 = vld [vmem:[%s1556 + $0x20] sm:$0xf]
      %v1566 = vld [vmem:[%s1556 + $0x24] sm:$0xf]
      %v1567 = vld [vmem:[%s1556 + $0x28] sm:$0xf]
      %v1568 = vld [vmem:[%s1556 + $0x2c] sm:$0xf]
      %v1569 = vld [vmem:[%s1556 + $0x30] sm:$0xf]
      %v1570 = vld [vmem:[%s1556 + $0x34] sm:$0xf]
      %v1571 = vld [vmem:[%s1556 + $0x38] sm:$0xf]
      %v1572 = vld [vmem:[%s1556 + $0x3c] sm:$0xf]
      %v1573 = vld [vmem:[%s1556 + $0x40] sm:$0xf]
      %v1574 = vld [vmem:[%s1556 + $0x44] sm:$0xf]
      %v1575 = vld [vmem:[%s1556 + $0x48] sm:$0xf]
      %v1576 = vld [vmem:[%s1556 + $0x4c] sm:$0xf]
      %v1577 = vld [vmem:[%s1556 + $0x50] sm:$0xf]
      %v1578 = vld [vmem:[%s1556 + $0x54] sm:$0xf]
      %v1579 = vld [vmem:[%s1556 + $0x58] sm:$0xf]
      %v1580 = vld [vmem:[%s1556 + $0x5c] sm:$0xf]
      %v1581 = vld [vmem:[%s1556 + $0x60] sm:$0xf]
      %v1582 = vld [vmem:[%s1556 + $0x64] sm:$0xf]
      %v1583 = vld [vmem:[%s1556 + $0x68] sm:$0xf]
      %v1584 = vld [vmem:[%s1556 + $0x6c] sm:$0xf]
      %v1585 = vld [vmem:[%s1556 + $0x70] sm:$0xf]
      %v1586 = vld [vmem:[%s1556 + $0x74] sm:$0xf]
      %v1587 = vld [vmem:[%s1556 + $0x78] sm:$0xf]
      %v1588 = vld [vmem:[%s1556 + $0x7c] sm:$0xf]
      %v1589 = vld [vmem:[%s1556 + $0x80] sm:$0xf]
      %v1590 = vld [vmem:[%s1556 + $0x84] sm:$0xf]
      %v1591 = vld [vmem:[%s1556 + $0x88] sm:$0xf]
      %v1592 = vld [vmem:[%s1556 + $0x8c] sm:$0xf]
      %v1593 = vld [vmem:[%s1556 + $0x90] sm:$0xf]
      %v1594 = vld [vmem:[%s1556 + $0x94] sm:$0xf]
      %v1595 = vld [vmem:[%s1556 + $0x98] sm:$0xf]
      %v1596 = vld [vmem:[%s1556 + $0x9c] sm:$0xf]
      %v1597 = vld [vmem:[%s1556 + $0xa0] sm:$0xf]
      %v1598 = vld [vmem:[%s1556 + $0xa4] sm:$0xf]
      %v1599 = vld [vmem:[%s1556 + $0xa8] sm:$0xf]
      %v1600 = vld [vmem:[%s1556 + $0xac] sm:$0xf]
      %v1601 = vld [vmem:[%s1556 + $0xb0] sm:$0xf]
      %v1602 = vld [vmem:[%s1556 + $0xb4] sm:$0xf]
      %v1603 = vld [vmem:[%s1556 + $0xb8] sm:$0xf]
      %v1604 = vld [vmem:[%s1556 + $0xbc] sm:$0xf]
      %v1653 = vunpack.c.l.b16 %v1557
      %v1654 = vunpack.c.l.b16 %v1558
      %v1655 = vunpack.c.l.b16 %v1559
      %v1656 = vunpack.c.l.b16 %v1560
      %v1657 = vunpack.c.l.b16 %v1561
      %v1658 = vunpack.c.l.b16 %v1562
      %v1659 = vunpack.c.l.b16 %v1563
      %v1660 = vunpack.c.l.b16 %v1564
      %v1661 = vunpack.c.l.b16 %v1565
      %v1662 = vunpack.c.l.b16 %v1566
      %v1663 = vunpack.c.l.b16 %v1567
      %v1664 = vunpack.c.l.b16 %v1568
      %v1665 = vunpack.c.l.b16 %v1569
      %v1666 = vunpack.c.l.b16 %v1570
      %v1667 = vunpack.c.l.b16 %v1571
      %v1668 = vunpack.c.l.b16 %v1572
      %v1669 = vunpack.c.l.b16 %v1573
      %v1670 = vunpack.c.l.b16 %v1574
      %v1671 = vunpack.c.l.b16 %v1575
      %v1672 = vunpack.c.l.b16 %v1576
      %v1673 = vunpack.c.l.b16 %v1577
      %v1674 = vunpack.c.l.b16 %v1578
      %v1675 = vunpack.c.l.b16 %v1579
      %v1676 = vunpack.c.l.b16 %v1580
      %v1677 = vunpack.c.l.b16 %v1581
      %v1678 = vunpack.c.l.b16 %v1582
      %v1679 = vunpack.c.l.b16 %v1583
      %v1680 = vunpack.c.l.b16 %v1584
      %v1681 = vunpack.c.l.b16 %v1585
      %v1682 = vunpack.c.l.b16 %v1586
      %v1683 = vunpack.c.l.b16 %v1587
      %v1684 = vunpack.c.l.b16 %v1588
      %v1685 = vunpack.c.l.b16 %v1589
      %v1686 = vunpack.c.l.b16 %v1590
      %v1687 = vunpack.c.l.b16 %v1591
      %v1688 = vunpack.c.l.b16 %v1592
      %v1689 = vunpack.c.l.b16 %v1593
      %v1690 = vunpack.c.l.b16 %v1594
      %v1691 = vunpack.c.l.b16 %v1595
      %v1692 = vunpack.c.l.b16 %v1596
      %v1693 = vunpack.c.l.b16 %v1597
      %v1694 = vunpack.c.l.b16 %v1598
      %v1695 = vunpack.c.l.b16 %v1599
      %v1696 = vunpack.c.l.b16 %v1600
      %v1697 = vunpack.c.l.b16 %v1601
      %v1698 = vunpack.c.l.b16 %v1602
      %v1699 = vunpack.c.l.b16 %v1603
      %v1700 = vunpack.c.l.b16 %v1604
      %v1701 = vpack.c.b16 %v1654, %v1653
      %v1702 = vpack.c.b16 %v1656, %v1655
      %v1703 = vpack.c.b16 %v1658, %v1657
      %v1704 = vpack.c.b16 %v1660, %v1659
      %v1705 = vpack.c.b16 %v1662, %v1661
      %v1706 = vpack.c.b16 %v1664, %v1663
      %v1707 = vpack.c.b16 %v1666, %v1665
      %v1708 = vpack.c.b16 %v1668, %v1667
      %v1709 = vpack.c.b16 %v1670, %v1669
      %v1710 = vpack.c.b16 %v1672, %v1671
      %v1711 = vpack.c.b16 %v1674, %v1673
      %v1712 = vpack.c.b16 %v1676, %v1675
      %v1713 = vpack.c.b16 %v1678, %v1677
      %v1714 = vpack.c.b16 %v1680, %v1679
      %v1715 = vpack.c.b16 %v1682, %v1681
      %v1716 = vpack.c.b16 %v1684, %v1683
      %v1717 = vpack.c.b16 %v1686, %v1685
      %v1718 = vpack.c.b16 %v1688, %v1687
      %v1719 = vpack.c.b16 %v1690, %v1689
      %v1720 = vpack.c.b16 %v1692, %v1691
      %v1721 = vpack.c.b16 %v1694, %v1693
      %v1722 = vpack.c.b16 %v1696, %v1695
      %v1723 = vpack.c.b16 %v1698, %v1697
      %v1724 = vpack.c.b16 %v1700, %v1699
      %1749 = vmatprep.subr.bf16.mxu0 0
      %1750 = vmatpush1.bf16.msra.mxu0 %v1708
      %1751 = vmatprep.subr.bf16.mxu0 0
      %1752 = vmatpush1.bf16.msra.mxu0 %v1707
      %1753 = vmatprep.subr.bf16.mxu0 0
      %1754 = vmatpush1.bf16.msra.mxu0 %v1706
      %1755 = vmatprep.subr.bf16.mxu0 0
      %1756 = vmatpush1.bf16.msra.mxu0 %v1705
      %1757 = vmatprep.subr.bf16.mxu0 0
      %1758 = vmatpush1.bf16.msra.mxu0 %v1704
      %1759 = vmatprep.subr.bf16.mxu0 0
      %1760 = vmatpush1.bf16.msra.mxu0 %v1703
      %1761 = vmatprep.subr.bf16.mxu0 0
      %1762 = vmatpush1.bf16.msra.mxu0 %v1702
      %1763 = vmatprep.subr.bf16.mxu0 0
      %1764 = vmatpush1.bf16.msra.mxu0 %v1701
      %1765 = vmatprep.subr.bf16.mxu0 0
      %1766 = vmatpush2.bf16.msra.mxu0 %v1716
      %1767 = vmatprep.subr.bf16.mxu0 0
      %1768 = vmatpush2.bf16.msra.mxu0 %v1715
      %1769 = vmatprep.subr.bf16.mxu0 0
      %1770 = vmatpush2.bf16.msra.mxu0 %v1714
      %1771 = vmatprep.subr.bf16.mxu0 0
      %1772 = vmatpush2.bf16.msra.mxu0 %v1713
      %1773 = vmatprep.subr.bf16.mxu0 0
      %1774 = vmatpush2.bf16.msra.mxu0 %v1712
      %1775 = vmatprep.subr.bf16.mxu0 0
      %1776 = vmatpush2.bf16.msra.mxu0 %v1711
      %1777 = vmatprep.subr.bf16.mxu0 0
      %1778 = vmatpush2.bf16.msra.mxu0 %v1710
      %1779 = vmatprep.subr.bf16.mxu0 0
      %1780 = vmatpush2.bf16.msra.mxu0 %v1709
      %1781 = vmatprep.mubr.bf16.mxu0 %v1233
      %1782 = vmatmul.mubr.bf16.gmra.mxu0 %v1398
      %v1783 = vpop.f32.mrf.mxu0
      %v1784 = vadd.f32 0.0, %v1783
      %v1785 = vpop.f32.mrf.mxu0
      %v1786 = vpop.f32.mrf.mxu0
      %v1787 = vadd.f32 0.0, %v1786
      %v1788 = vpop.f32.mrf.mxu0
      %1789 = vmatprep.mubr.bf16.mxu0 %v1234
      %1790 = vmatmul.mubr.bf16.gmra.mxu0 %v1399
      %v1791 = vpop.f32.mrf.mxu0
      %v1792 = vadd.f32 0.0, %v1791
      %v1793 = vpop.f32.mrf.mxu0
      %v1794 = vpop.f32.mrf.mxu0
      %v1795 = vadd.f32 0.0, %v1794
      %v1796 = vpop.f32.mrf.mxu0
      %1797 = vmatprep.mubr.bf16.mxu0 %v1235
      %1798 = vmatmul.mubr.bf16.gmra.mxu0 %v1400
      %v1799 = vpop.f32.mrf.mxu0
      %v1800 = vadd.f32 0.0, %v1799
      %v1801 = vpop.f32.mrf.mxu0
      %v1802 = vpop.f32.mrf.mxu0
      %v1803 = vadd.f32 0.0, %v1802
      %v1804 = vpop.f32.mrf.mxu0
      %1805 = vmatprep.mubr.bf16.mxu0 %v1236
      %1806 = vmatmul.mubr.bf16.gmra.mxu0 %v1401
      %v1807 = vpop.f32.mrf.mxu0
      %v1808 = vadd.f32 0.0, %v1807
      %v1809 = vpop.f32.mrf.mxu0
      %v1810 = vpop.f32.mrf.mxu0
      %v1811 = vadd.f32 0.0, %v1810
      %v1812 = vpop.f32.mrf.mxu0
      %1813 = vmatprep.mubr.bf16.mxu0 %v1237
      %1814 = vmatmul.mubr.bf16.gmra.mxu0 %v1402
      %v1815 = vpop.f32.mrf.mxu0
      %v1816 = vadd.f32 0.0, %v1815
      %v1817 = vpop.f32.mrf.mxu0
      %v1818 = vpop.f32.mrf.mxu0
      %v1819 = vadd.f32 0.0, %v1818
      %v1820 = vpop.f32.mrf.mxu0
      %1821 = vmatprep.mubr.bf16.mxu0 %v1238
      %1822 = vmatmul.mubr.bf16.gmra.mxu0 %v1403
      %v1823 = vpop.f32.mrf.mxu0
      %v1824 = vadd.f32 0.0, %v1823
      %v1825 = vpop.f32.mrf.mxu0
      %v1826 = vpop.f32.mrf.mxu0
      %v1827 = vadd.f32 0.0, %v1826
      %v1828 = vpop.f32.mrf.mxu0
      %1829 = vmatprep.mubr.bf16.mxu0 %v1239
      %1830 = vmatmul.mubr.bf16.gmra.mxu0 %v1404
      %v1831 = vpop.f32.mrf.mxu0
      %v1832 = vadd.f32 0.0, %v1831
      %v1833 = vpop.f32.mrf.mxu0
      %v1834 = vpop.f32.mrf.mxu0
      %v1835 = vadd.f32 0.0, %v1834
      %v1836 = vpop.f32.mrf.mxu0
      %1837 = vmatprep.mubr.bf16.mxu0 %v1240
      %1838 = vmatmul.mubr.bf16.gmra.mxu0 %v1405
      %v1839 = vpop.f32.mrf.mxu0
      %v1840 = vadd.f32 0.0, %v1839
      %v1841 = vpop.f32.mrf.mxu0
      %v1842 = vpop.f32.mrf.mxu0
      %v1843 = vadd.f32 0.0, %v1842
      %v1844 = vpop.f32.mrf.mxu0
      %1845 = vmatprep.mubr.bf16.mxu0 %v1241
      %1846 = vmatmul.mubr.bf16.gmra.mxu0 %v1406
      %v1847 = vpop.f32.mrf.mxu0
      %v1848 = vadd.f32 0.0, %v1847
      %v1849 = vpop.f32.mrf.mxu0
      %v1850 = vpop.f32.mrf.mxu0
      %v1851 = vadd.f32 0.0, %v1850
      %v1852 = vpop.f32.mrf.mxu0
      %1853 = vmatprep.mubr.bf16.mxu0 %v1242
      %1854 = vmatmul.mubr.bf16.gmra.mxu0 %v1407
      %v1855 = vpop.f32.mrf.mxu0
      %v1856 = vadd.f32 0.0, %v1855
      %v1857 = vpop.f32.mrf.mxu0
      %v1858 = vpop.f32.mrf.mxu0
      %v1859 = vadd.f32 0.0, %v1858
      %v1860 = vpop.f32.mrf.mxu0
      %1861 = vmatprep.mubr.bf16.mxu0 %v1243
      %1862 = vmatmul.mubr.bf16.gmra.mxu0 %v1408
      %v1863 = vpop.f32.mrf.mxu0
      %v1864 = vadd.f32 0.0, %v1863
      %v1865 = vpop.f32.mrf.mxu0
      %v1866 = vpop.f32.mrf.mxu0
      %v1867 = vadd.f32 0.0, %v1866
      %v1868 = vpop.f32.mrf.mxu0
      %1869 = vmatprep.mubr.bf16.mxu0 %v1244
      %1870 = vmatmul.mubr.bf16.gmra.mxu0 %v1409
      %v1871 = vpop.f32.mrf.mxu0
      %v1872 = vadd.f32 0.0, %v1871
      %v1873 = vpop.f32.mrf.mxu0
      %v1874 = vpop.f32.mrf.mxu0
      %v1875 = vadd.f32 0.0, %v1874
      %v1876 = vpop.f32.mrf.mxu0
      %1877 = vmatprep.mubr.bf16.mxu0 %v1245
      %1878 = vmatmul.mubr.bf16.gmra.mxu0 %v1410
      %v1879 = vpop.f32.mrf.mxu0
      %v1880 = vadd.f32 0.0, %v1879
      %v1881 = vpop.f32.mrf.mxu0
      %v1882 = vpop.f32.mrf.mxu0
      %v1883 = vadd.f32 0.0, %v1882
      %v1884 = vpop.f32.mrf.mxu0
      %1885 = vmatprep.mubr.bf16.mxu0 %v1246
      %1886 = vmatmul.mubr.bf16.gmra.mxu0 %v1411
      %v1887 = vpop.f32.mrf.mxu0
      %v1888 = vadd.f32 0.0, %v1887
      %v1889 = vpop.f32.mrf.mxu0
      %v1890 = vpop.f32.mrf.mxu0
      %v1891 = vadd.f32 0.0, %v1890
      %v1892 = vpop.f32.mrf.mxu0
      %1893 = vmatprep.mubr.bf16.mxu0 %v1247
      %1894 = vmatmul.mubr.bf16.gmra.mxu0 %v1412
      %v1895 = vpop.f32.mrf.mxu0
      %v1896 = vadd.f32 0.0, %v1895
      %v1897 = vpop.f32.mrf.mxu0
      %v1898 = vpop.f32.mrf.mxu0
      %v1899 = vadd.f32 0.0, %v1898
      %v1900 = vpop.f32.mrf.mxu0
      %1901 = vmatprep.mubr.bf16.mxu0 %v1248
      %1902 = vmatmul.mubr.bf16.gmra.mxu0 %v1413
      %v1903 = vpop.f32.mrf.mxu0
      %v1904 = vadd.f32 0.0, %v1903
      %v1905 = vpop.f32.mrf.mxu0
      %v1906 = vpop.f32.mrf.mxu0
      %v1907 = vadd.f32 0.0, %v1906
      %v1908 = vpop.f32.mrf.mxu0
      %1909 = vdwg.mxu0
      %1910 = vmatprep.subr.bf16.mxu0 0
      %1911 = vmatpush1.bf16.msra.mxu0 %v1724
      %1912 = vmatprep.subr.bf16.mxu0 0
      %1913 = vmatpush1.bf16.msra.mxu0 %v1723
      %1914 = vmatprep.subr.bf16.mxu0 0
      %1915 = vmatpush1.bf16.msra.mxu0 %v1722
      %1916 = vmatprep.subr.bf16.mxu0 0
      %1917 = vmatpush1.bf16.msra.mxu0 %v1721
      %1918 = vmatprep.subr.bf16.mxu0 0
      %1919 = vmatpush1.bf16.msra.mxu0 %v1720
      %1920 = vmatprep.subr.bf16.mxu0 0
      %1921 = vmatpush1.bf16.msra.mxu0 %v1719
      %1922 = vmatprep.subr.bf16.mxu0 0
      %1923 = vmatpush1.bf16.msra.mxu0 %v1718
      %1924 = vmatprep.subr.bf16.mxu0 0
      %1925 = vmatpush1.bf16.msra.mxu0 %v1717
      %1926 = vmatprep.subr.bf16.mxu0 0
      %1927 = vmatpush2.bf16.msra.mxu0 0
      %1928 = vmatprep.subr.bf16.mxu0 0
      %1929 = vmatpush2.bf16.msra.mxu0 0
      %1930 = vmatprep.subr.bf16.mxu0 0
      %1931 = vmatpush2.bf16.msra.mxu0 0
      %1932 = vmatprep.subr.bf16.mxu0 0
      %1933 = vmatpush2.bf16.msra.mxu0 0
      %1934 = vmatprep.subr.bf16.mxu0 0
      %1935 = vmatpush2.bf16.msra.mxu0 0
      %1936 = vmatprep.subr.bf16.mxu0 0
      %1937 = vmatpush2.bf16.msra.mxu0 0
      %1938 = vmatprep.subr.bf16.mxu0 0
      %1939 = vmatpush2.bf16.msra.mxu0 0
      %1940 = vmatprep.subr.bf16.mxu0 0
      %1941 = vmatpush2.bf16.msra.mxu0 0
      %1942 = vmatprep.mubr.bf16.mxu0 0
      %1943 = vmatmul.mubr.bf16.gmra.mxu0 %v1473
      %v1944 = vpop.f32.mrf.mxu0
      %v1945 = vadd.f32 %v1784, %v1944
      %v1946 = vpop.f32.mrf.mxu0
      %v1947 = vpop.f32.mrf.mxu0
      %v1948 = vadd.f32 %v1787, %v1947
      %v1949 = vpop.f32.mrf.mxu0
      %1950 = vmatprep.mubr.bf16.mxu0 0
      %1951 = vmatmul.mubr.bf16.gmra.mxu0 %v1474
      %v1952 = vpop.f32.mrf.mxu0
      %v1953 = vadd.f32 %v1792, %v1952
      %v1954 = vpop.f32.mrf.mxu0
      %v1955 = vpop.f32.mrf.mxu0
      %v1956 = vadd.f32 %v1795, %v1955
      %v1957 = vpop.f32.mrf.mxu0
      %1958 = vmatprep.mubr.bf16.mxu0 0
      %1959 = vmatmul.mubr.bf16.gmra.mxu0 %v1475
      %v1960 = vpop.f32.mrf.mxu0
      %v1961 = vadd.f32 %v1800, %v1960
      %v1962 = vpop.f32.mrf.mxu0
      %v1963 = vpop.f32.mrf.mxu0
      %v1964 = vadd.f32 %v1803, %v1963
      %v1965 = vpop.f32.mrf.mxu0
      %1966 = vmatprep.mubr.bf16.mxu0 0
      %1967 = vmatmul.mubr.bf16.gmra.mxu0 %v1476
      %v1968 = vpop.f32.mrf.mxu0
      %v1969 = vadd.f32 %v1808, %v1968
      %v1970 = vpop.f32.mrf.mxu0
      %v1971 = vpop.f32.mrf.mxu0
      %v1972 = vadd.f32 %v1811, %v1971
      %v1973 = vpop.f32.mrf.mxu0
      %1974 = vmatprep.mubr.bf16.mxu0 0
      %1975 = vmatmul.mubr.bf16.gmra.mxu0 %v1477
      %v1976 = vpop.f32.mrf.mxu0
      %v1977 = vadd.f32 %v1816, %v1976
      %v1978 = vpop.f32.mrf.mxu0
      %v1979 = vpop.f32.mrf.mxu0
      %v1980 = vadd.f32 %v1819, %v1979
      %v1981 = vpop.f32.mrf.mxu0
      %1982 = vmatprep.mubr.bf16.mxu0 0
      %1983 = vmatmul.mubr.bf16.gmra.mxu0 %v1478
      %v1984 = vpop.f32.mrf.mxu0
      %v1985 = vadd.f32 %v1824, %v1984
      %v1986 = vpop.f32.mrf.mxu0
      %v1987 = vpop.f32.mrf.mxu0
      %v1988 = vadd.f32 %v1827, %v1987
      %v1989 = vpop.f32.mrf.mxu0
      %1990 = vmatprep.mubr.bf16.mxu0 0
      %1991 = vmatmul.mubr.bf16.gmra.mxu0 %v1479
      %v1992 = vpop.f32.mrf.mxu0
      %v1993 = vadd.f32 %v1832, %v1992
      %v1994 = vpop.f32.mrf.mxu0
      %v1995 = vpop.f32.mrf.mxu0
      %v1996 = vadd.f32 %v1835, %v1995
      %v1997 = vpop.f32.mrf.mxu0
      %1998 = vmatprep.mubr.bf16.mxu0 0
      %1999 = vmatmul.mubr.bf16.gmra.mxu0 %v1480
      %v2000 = vpop.f32.mrf.mxu0
      %v2001 = vadd.f32 %v1840, %v2000
      %v2002 = vpop.f32.mrf.mxu0
      %v2003 = vpop.f32.mrf.mxu0
      %v2004 = vadd.f32 %v1843, %v2003
      %v2005 = vpop.f32.mrf.mxu0
      %2006 = vmatprep.mubr.bf16.mxu0 0
      %2007 = vmatmul.mubr.bf16.gmra.mxu0 %v1481
      %v2008 = vpop.f32.mrf.mxu0
      %v2009 = vadd.f32 %v1848, %v2008
      %v2010 = vpop.f32.mrf.mxu0
      %v2011 = vpop.f32.mrf.mxu0
      %v2012 = vadd.f32 %v1851, %v2011
      %v2013 = vpop.f32.mrf.mxu0
      %2014 = vmatprep.mubr.bf16.mxu0 0
      %2015 = vmatmul.mubr.bf16.gmra.mxu0 %v1482
      %v2016 = vpop.f32.mrf.mxu0
      %v2017 = vadd.f32 %v1856, %v2016
      %v2018 = vpop.f32.mrf.mxu0
      %v2019 = vpop.f32.mrf.mxu0
      %v2020 = vadd.f32 %v1859, %v2019
      %v2021 = vpop.f32.mrf.mxu0
      %2022 = vmatprep.mubr.bf16.mxu0 0
      %2023 = vmatmul.mubr.bf16.gmra.mxu0 %v1483
      %v2024 = vpop.f32.mrf.mxu0
      %v2025 = vadd.f32 %v1864, %v2024
      %v2026 = vpop.f32.mrf.mxu0
      %v2027 = vpop.f32.mrf.mxu0
      %v2028 = vadd.f32 %v1867, %v2027
      %v2029 = vpop.f32.mrf.mxu0
      %2030 = vmatprep.mubr.bf16.mxu0 0
      %2031 = vmatmul.mubr.bf16.gmra.mxu0 %v1484
      %v2032 = vpop.f32.mrf.mxu0
      %v2033 = vadd.f32 %v1872, %v2032
      %v2034 = vpop.f32.mrf.mxu0
      %v2035 = vpop.f32.mrf.mxu0
      %v2036 = vadd.f32 %v1875, %v2035
      %v2037 = vpop.f32.mrf.mxu0
      %2038 = vmatprep.mubr.bf16.mxu0 0
      %2039 = vmatmul.mubr.bf16.gmra.mxu0 %v1485
      %v2040 = vpop.f32.mrf.mxu0
      %v2041 = vadd.f32 %v1880, %v2040
      %v2042 = vpop.f32.mrf.mxu0
      %v2043 = vpop.f32.mrf.mxu0
      %v2044 = vadd.f32 %v1883, %v2043
      %v2045 = vpop.f32.mrf.mxu0
      %2046 = vmatprep.mubr.bf16.mxu0 0
      %2047 = vmatmul.mubr.bf16.gmra.mxu0 %v1486
      %v2048 = vpop.f32.mrf.mxu0
      %v2049 = vadd.f32 %v1888, %v2048
      %v2050 = vpop.f32.mrf.mxu0
      %v2051 = vpop.f32.mrf.mxu0
      %v2052 = vadd.f32 %v1891, %v2051
      %v2053 = vpop.f32.mrf.mxu0
      %2054 = vmatprep.mubr.bf16.mxu0 0
      %2055 = vmatmul.mubr.bf16.gmra.mxu0 %v1487
      %v2056 = vpop.f32.mrf.mxu0
      %v2057 = vadd.f32 %v1896, %v2056
      %v2058 = vpop.f32.mrf.mxu0
      %v2059 = vpop.f32.mrf.mxu0
      %v2060 = vadd.f32 %v1899, %v2059
      %v2061 = vpop.f32.mrf.mxu0
      %2062 = vmatprep.mubr.bf16.mxu0 0
      %2063 = vmatmul.mubr.bf16.gmra.mxu0 %v1488
      %v2064 = vpop.f32.mrf.mxu0
      %v2065 = vadd.f32 %v1904, %v2064
      %v2066 = vpop.f32.mrf.mxu0
      %v2067 = vpop.f32.mrf.mxu0
      %v2068 = vadd.f32 %v1907, %v2067
      %v2069 = vpop.f32.mrf.mxu0
      %2070 = vdwg.mxu0
      %v2119 = vunpack.c.l.b16 %v1508
      %v2120 = vunpack.c.l.b16 %v1509
      %v2121 = vunpack.c.l.b16 %v1510
      %v2122 = vunpack.c.l.b16 %v1511
      %v2123 = vunpack.c.l.b16 %v1512
      %v2124 = vunpack.c.l.b16 %v1513
      %v2125 = vunpack.c.l.b16 %v1514
      %v2126 = vunpack.c.l.b16 %v1515
      %v2127 = vunpack.c.l.b16 %v1516
      %v2128 = vunpack.c.l.b16 %v1517
      %v2129 = vunpack.c.l.b16 %v1518
      %v2130 = vunpack.c.l.b16 %v1519
      %v2131 = vunpack.c.l.b16 %v1520
      %v2132 = vunpack.c.l.b16 %v1521
      %v2133 = vunpack.c.l.b16 %v1522
      %v2134 = vunpack.c.l.b16 %v1523
      %v2135 = vunpack.c.l.b16 %v1524
      %v2136 = vunpack.c.l.b16 %v1525
      %v2137 = vunpack.c.l.b16 %v1526
      %v2138 = vunpack.c.l.b16 %v1527
      %v2139 = vunpack.c.l.b16 %v1528
      %v2140 = vunpack.c.l.b16 %v1529
      %v2141 = vunpack.c.l.b16 %v1530
      %v2142 = vunpack.c.l.b16 %v1531
      %v2143 = vunpack.c.l.b16 %v1532
      %v2144 = vunpack.c.l.b16 %v1533
      %v2145 = vunpack.c.l.b16 %v1534
      %v2146 = vunpack.c.l.b16 %v1535
      %v2147 = vunpack.c.l.b16 %v1536
      %v2148 = vunpack.c.l.b16 %v1537
      %v2149 = vunpack.c.l.b16 %v1538
      %v2150 = vunpack.c.l.b16 %v1539
      %v2151 = vunpack.c.l.b16 %v1540
      %v2152 = vunpack.c.l.b16 %v1541
      %v2153 = vunpack.c.l.b16 %v1542
      %v2154 = vunpack.c.l.b16 %v1543
      %v2155 = vunpack.c.l.b16 %v1544
      %v2156 = vunpack.c.l.b16 %v1545
      %v2157 = vunpack.c.l.b16 %v1546
      %v2158 = vunpack.c.l.b16 %v1547
      %v2159 = vunpack.c.l.b16 %v1548
      %v2160 = vunpack.c.l.b16 %v1549
      %v2161 = vunpack.c.l.b16 %v1550
      %v2162 = vunpack.c.l.b16 %v1551
      %v2163 = vunpack.c.l.b16 %v1552
      %v2164 = vunpack.c.l.b16 %v1553
      %v2165 = vunpack.c.l.b16 %v1554
      %v2166 = vunpack.c.l.b16 %v1555
      %v2167 = vpack.c.b16 %v2120, %v2119
      %v2168 = vpack.c.b16 %v2122, %v2121
      %v2169 = vpack.c.b16 %v2124, %v2123
      %v2170 = vpack.c.b16 %v2126, %v2125
      %v2171 = vpack.c.b16 %v2128, %v2127
      %v2172 = vpack.c.b16 %v2130, %v2129
      %v2173 = vpack.c.b16 %v2132, %v2131
      %v2174 = vpack.c.b16 %v2134, %v2133
      %v2175 = vpack.c.b16 %v2136, %v2135
      %v2176 = vpack.c.b16 %v2138, %v2137
      %v2177 = vpack.c.b16 %v2140, %v2139
      %v2178 = vpack.c.b16 %v2142, %v2141
      %v2179 = vpack.c.b16 %v2144, %v2143
      %v2180 = vpack.c.b16 %v2146, %v2145
      %v2181 = vpack.c.b16 %v2148, %v2147
      %v2182 = vpack.c.b16 %v2150, %v2149
      %v2183 = vpack.c.b16 %v2152, %v2151
      %v2184 = vpack.c.b16 %v2154, %v2153
      %v2185 = vpack.c.b16 %v2156, %v2155
      %v2186 = vpack.c.b16 %v2158, %v2157
      %v2187 = vpack.c.b16 %v2160, %v2159
      %v2188 = vpack.c.b16 %v2162, %v2161
      %v2189 = vpack.c.b16 %v2164, %v2163
      %v2190 = vpack.c.b16 %v2166, %v2165
      %2215 = vmatprep.subr.bf16.mxu0 0
      %2216 = vmatpush1.bf16.msra.mxu0 %v2174
      %2217 = vmatprep.subr.bf16.mxu0 0
      %2218 = vmatpush1.bf16.msra.mxu0 %v2173
      %2219 = vmatprep.subr.bf16.mxu0 0
      %2220 = vmatpush1.bf16.msra.mxu0 %v2172
      %2221 = vmatprep.subr.bf16.mxu0 0
      %2222 = vmatpush1.bf16.msra.mxu0 %v2171
      %2223 = vmatprep.subr.bf16.mxu0 0
      %2224 = vmatpush1.bf16.msra.mxu0 %v2170
      %2225 = vmatprep.subr.bf16.mxu0 0
      %2226 = vmatpush1.bf16.msra.mxu0 %v2169
      %2227 = vmatprep.subr.bf16.mxu0 0
      %2228 = vmatpush1.bf16.msra.mxu0 %v2168
      %2229 = vmatprep.subr.bf16.mxu0 0
      %2230 = vmatpush1.bf16.msra.mxu0 %v2167
      %2231 = vmatprep.subr.bf16.mxu0 0
      %2232 = vmatpush2.bf16.msra.mxu0 %v2182
      %2233 = vmatprep.subr.bf16.mxu0 0
      %2234 = vmatpush2.bf16.msra.mxu0 %v2181
      %2235 = vmatprep.subr.bf16.mxu0 0
      %2236 = vmatpush2.bf16.msra.mxu0 %v2180
      %2237 = vmatprep.subr.bf16.mxu0 0
      %2238 = vmatpush2.bf16.msra.mxu0 %v2179
      %2239 = vmatprep.subr.bf16.mxu0 0
      %2240 = vmatpush2.bf16.msra.mxu0 %v2178
      %2241 = vmatprep.subr.bf16.mxu0 0
      %2242 = vmatpush2.bf16.msra.mxu0 %v2177
      %2243 = vmatprep.subr.bf16.mxu0 0
      %2244 = vmatpush2.bf16.msra.mxu0 %v2176
      %2245 = vmatprep.subr.bf16.mxu0 0
      %2246 = vmatpush2.bf16.msra.mxu0 %v2175
      %2247 = vmatprep.mubr.bf16.mxu0 %v1232
      %2248 = vmatmul.mubr.bf16.gmra.mxu0 %v1397
      %v2249 = vpop.f32.mrf.mxu0
      %v2250 = vadd.f32 %v1945, %v2249
      %v2251 = vpop.f32.mrf.mxu0
      %v2252 = vpop.f32.mrf.mxu0
      %v2253 = vadd.f32 %v1948, %v2252
      %v2254 = vpop.f32.mrf.mxu0
      %2255 = vmatprep.mubr.bf16.mxu0 %v1233
      %2256 = vmatmul.mubr.bf16.gmra.mxu0 %v1398
      %v2257 = vpop.f32.mrf.mxu0
      %v2258 = vadd.f32 %v1953, %v2257
      %v2259 = vpop.f32.mrf.mxu0
      %v2260 = vpop.f32.mrf.mxu0
      %v2261 = vadd.f32 %v1956, %v2260
      %v2262 = vpop.f32.mrf.mxu0
      %2263 = vmatprep.mubr.bf16.mxu0 %v1234
      %2264 = vmatmul.mubr.bf16.gmra.mxu0 %v1399
      %v2265 = vpop.f32.mrf.mxu0
      %v2266 = vadd.f32 %v1961, %v2265
      %v2267 = vpop.f32.mrf.mxu0
      %v2268 = vpop.f32.mrf.mxu0
      %v2269 = vadd.f32 %v1964, %v2268
      %v2270 = vpop.f32.mrf.mxu0
      %2271 = vmatprep.mubr.bf16.mxu0 %v1235
      %2272 = vmatmul.mubr.bf16.gmra.mxu0 %v1400
      %v2273 = vpop.f32.mrf.mxu0
      %v2274 = vadd.f32 %v1969, %v2273
      %v2275 = vpop.f32.mrf.mxu0
      %v2276 = vpop.f32.mrf.mxu0
      %v2277 = vadd.f32 %v1972, %v2276
      %v2278 = vpop.f32.mrf.mxu0
      %2279 = vmatprep.mubr.bf16.mxu0 %v1236
      %2280 = vmatmul.mubr.bf16.gmra.mxu0 %v1401
      %v2281 = vpop.f32.mrf.mxu0
      %v2282 = vadd.f32 %v1977, %v2281
      %v2283 = vpop.f32.mrf.mxu0
      %v2284 = vpop.f32.mrf.mxu0
      %v2285 = vadd.f32 %v1980, %v2284
      %v2286 = vpop.f32.mrf.mxu0
      %2287 = vmatprep.mubr.bf16.mxu0 %v1237
      %2288 = vmatmul.mubr.bf16.gmra.mxu0 %v1402
      %v2289 = vpop.f32.mrf.mxu0
      %v2290 = vadd.f32 %v1985, %v2289
      %v2291 = vpop.f32.mrf.mxu0
      %v2292 = vpop.f32.mrf.mxu0
      %v2293 = vadd.f32 %v1988, %v2292
      %v2294 = vpop.f32.mrf.mxu0
      %2295 = vmatprep.mubr.bf16.mxu0 %v1238
      %2296 = vmatmul.mubr.bf16.gmra.mxu0 %v1403
      %v2297 = vpop.f32.mrf.mxu0
      %v2298 = vadd.f32 %v1993, %v2297
      %v2299 = vpop.f32.mrf.mxu0
      %v2300 = vpop.f32.mrf.mxu0
      %v2301 = vadd.f32 %v1996, %v2300
      %v2302 = vpop.f32.mrf.mxu0
      %2303 = vmatprep.mubr.bf16.mxu0 %v1239
      %2304 = vmatmul.mubr.bf16.gmra.mxu0 %v1404
      %v2305 = vpop.f32.mrf.mxu0
      %v2306 = vadd.f32 %v2001, %v2305
      %v2307 = vpop.f32.mrf.mxu0
      %v2308 = vpop.f32.mrf.mxu0
      %v2309 = vadd.f32 %v2004, %v2308
      %v2310 = vpop.f32.mrf.mxu0
      %2311 = vmatprep.mubr.bf16.mxu0 %v1240
      %2312 = vmatmul.mubr.bf16.gmra.mxu0 %v1405
      %v2313 = vpop.f32.mrf.mxu0
      %v2314 = vadd.f32 %v2009, %v2313
      %v2315 = vpop.f32.mrf.mxu0
      %v2316 = vpop.f32.mrf.mxu0
      %v2317 = vadd.f32 %v2012, %v2316
      %v2318 = vpop.f32.mrf.mxu0
      %2319 = vmatprep.mubr.bf16.mxu0 %v1241
      %2320 = vmatmul.mubr.bf16.gmra.mxu0 %v1406
      %v2321 = vpop.f32.mrf.mxu0
      %v2322 = vadd.f32 %v2017, %v2321
      %v2323 = vpop.f32.mrf.mxu0
      %v2324 = vpop.f32.mrf.mxu0
      %v2325 = vadd.f32 %v2020, %v2324
      %v2326 = vpop.f32.mrf.mxu0
      %2327 = vmatprep.mubr.bf16.mxu0 %v1242
      %2328 = vmatmul.mubr.bf16.gmra.mxu0 %v1407
      %v2329 = vpop.f32.mrf.mxu0
      %v2330 = vadd.f32 %v2025, %v2329
      %v2331 = vpop.f32.mrf.mxu0
      %v2332 = vpop.f32.mrf.mxu0
      %v2333 = vadd.f32 %v2028, %v2332
      %v2334 = vpop.f32.mrf.mxu0
      %2335 = vmatprep.mubr.bf16.mxu0 %v1243
      %2336 = vmatmul.mubr.bf16.gmra.mxu0 %v1408
      %v2337 = vpop.f32.mrf.mxu0
      %v2338 = vadd.f32 %v2033, %v2337
      %v2339 = vpop.f32.mrf.mxu0
      %v2340 = vpop.f32.mrf.mxu0
      %v2341 = vadd.f32 %v2036, %v2340
      %v2342 = vpop.f32.mrf.mxu0
      %2343 = vmatprep.mubr.bf16.mxu0 %v1244
      %2344 = vmatmul.mubr.bf16.gmra.mxu0 %v1409
      %v2345 = vpop.f32.mrf.mxu0
      %v2346 = vadd.f32 %v2041, %v2345
      %v2347 = vpop.f32.mrf.mxu0
      %v2348 = vpop.f32.mrf.mxu0
      %v2349 = vadd.f32 %v2044, %v2348
      %v2350 = vpop.f32.mrf.mxu0
      %2351 = vmatprep.mubr.bf16.mxu0 %v1245
      %2352 = vmatmul.mubr.bf16.gmra.mxu0 %v1410
      %v2353 = vpop.f32.mrf.mxu0
      %v2354 = vadd.f32 %v2049, %v2353
      %v2355 = vpop.f32.mrf.mxu0
      %v2356 = vpop.f32.mrf.mxu0
      %v2357 = vadd.f32 %v2052, %v2356
      %v2358 = vpop.f32.mrf.mxu0
      %2359 = vmatprep.mubr.bf16.mxu0 %v1246
      %2360 = vmatmul.mubr.bf16.gmra.mxu0 %v1411
      %v2361 = vpop.f32.mrf.mxu0
      %v2362 = vadd.f32 %v2057, %v2361
      %v2363 = vpop.f32.mrf.mxu0
      %v2364 = vpop.f32.mrf.mxu0
      %v2365 = vadd.f32 %v2060, %v2364
      %v2366 = vpop.f32.mrf.mxu0
      %2367 = vmatprep.mubr.bf16.mxu0 %v1247
      %2368 = vmatmul.mubr.bf16.gmra.mxu0 %v1412
      %v2369 = vpop.f32.mrf.mxu0
      %v2370 = vadd.f32 %v2065, %v2369
      %v2371 = vpop.f32.mrf.mxu0
      %v2372 = vpop.f32.mrf.mxu0
      %v2373 = vadd.f32 %v2068, %v2372
      %v2374 = vpop.f32.mrf.mxu0
      %2375 = vdwg.mxu0
      %2376 = vmatprep.subr.bf16.mxu0 0
      %2377 = vmatpush1.bf16.msra.mxu0 %v2190
      %2378 = vmatprep.subr.bf16.mxu0 0
      %2379 = vmatpush1.bf16.msra.mxu0 %v2189
      %2380 = vmatprep.subr.bf16.mxu0 0
      %2381 = vmatpush1.bf16.msra.mxu0 %v2188
      %2382 = vmatprep.subr.bf16.mxu0 0
      %2383 = vmatpush1.bf16.msra.mxu0 %v2187
      %2384 = vmatprep.subr.bf16.mxu0 0
      %2385 = vmatpush1.bf16.msra.mxu0 %v2186
      %2386 = vmatprep.subr.bf16.mxu0 0
      %2387 = vmatpush1.bf16.msra.mxu0 %v2185
      %2388 = vmatprep.subr.bf16.mxu0 0
      %2389 = vmatpush1.bf16.msra.mxu0 %v2184
      %2390 = vmatprep.subr.bf16.mxu0 0
      %2391 = vmatpush1.bf16.msra.mxu0 %v2183
      %2392 = vmatprep.subr.bf16.mxu0 0
      %2393 = vmatpush2.bf16.msra.mxu0 0
      %2394 = vmatprep.subr.bf16.mxu0 0
      %2395 = vmatpush2.bf16.msra.mxu0 0
      %2396 = vmatprep.subr.bf16.mxu0 0
      %2397 = vmatpush2.bf16.msra.mxu0 0
      %2398 = vmatprep.subr.bf16.mxu0 0
      %2399 = vmatpush2.bf16.msra.mxu0 0
      %2400 = vmatprep.subr.bf16.mxu0 0
      %2401 = vmatpush2.bf16.msra.mxu0 0
      %2402 = vmatprep.subr.bf16.mxu0 0
      %2403 = vmatpush2.bf16.msra.mxu0 0
      %2404 = vmatprep.subr.bf16.mxu0 0
      %2405 = vmatpush2.bf16.msra.mxu0 0
      %2406 = vmatprep.subr.bf16.mxu0 0
      %2407 = vmatpush2.bf16.msra.mxu0 0
      %2408 = vmatprep.mubr.bf16.mxu0 0
      %2409 = vmatmul.mubr.bf16.gmra.mxu0 %v1472
      %v2410 = vpop.f32.mrf.mxu0
      %v2411 = vadd.f32 %v2250, %v2410
      %v2412 = vpop.f32.mrf.mxu0
      %v2413 = vpop.f32.mrf.mxu0
      %v2414 = vadd.f32 %v2253, %v2413
      %v2415 = vpop.f32.mrf.mxu0
      %2416 = vmatprep.mubr.bf16.mxu0 0
      %2417 = vmatmul.mubr.bf16.gmra.mxu0 %v1473
      %v2418 = vpop.f32.mrf.mxu0
      %v2419 = vadd.f32 %v2258, %v2418
      %v2420 = vpop.f32.mrf.mxu0
      %v2421 = vpop.f32.mrf.mxu0
      %v2422 = vadd.f32 %v2261, %v2421
      %v2423 = vpop.f32.mrf.mxu0
      %2424 = vmatprep.mubr.bf16.mxu0 0
      %2425 = vmatmul.mubr.bf16.gmra.mxu0 %v1474
      %v2426 = vpop.f32.mrf.mxu0
      %v2427 = vadd.f32 %v2266, %v2426
      %v2428 = vpop.f32.mrf.mxu0
      %v2429 = vpop.f32.mrf.mxu0
      %v2430 = vadd.f32 %v2269, %v2429
      %v2431 = vpop.f32.mrf.mxu0
      %2432 = vmatprep.mubr.bf16.mxu0 0
      %2433 = vmatmul.mubr.bf16.gmra.mxu0 %v1475
      %v2434 = vpop.f32.mrf.mxu0
      %v2435 = vadd.f32 %v2274, %v2434
      %v2436 = vpop.f32.mrf.mxu0
      %v2437 = vpop.f32.mrf.mxu0
      %v2438 = vadd.f32 %v2277, %v2437
      %v2439 = vpop.f32.mrf.mxu0
      %2440 = vmatprep.mubr.bf16.mxu0 0
      %2441 = vmatmul.mubr.bf16.gmra.mxu0 %v1476
      %v2442 = vpop.f32.mrf.mxu0
      %v2443 = vadd.f32 %v2282, %v2442
      %v2444 = vpop.f32.mrf.mxu0
      %v2445 = vpop.f32.mrf.mxu0
      %v2446 = vadd.f32 %v2285, %v2445
      %v2447 = vpop.f32.mrf.mxu0
      %2448 = vmatprep.mubr.bf16.mxu0 0
      %2449 = vmatmul.mubr.bf16.gmra.mxu0 %v1477
      %v2450 = vpop.f32.mrf.mxu0
      %v2451 = vadd.f32 %v2290, %v2450
      %v2452 = vpop.f32.mrf.mxu0
      %v2453 = vpop.f32.mrf.mxu0
      %v2454 = vadd.f32 %v2293, %v2453
      %v2455 = vpop.f32.mrf.mxu0
      %2456 = vmatprep.mubr.bf16.mxu0 0
      %2457 = vmatmul.mubr.bf16.gmra.mxu0 %v1478
      %v2458 = vpop.f32.mrf.mxu0
      %v2459 = vadd.f32 %v2298, %v2458
      %v2460 = vpop.f32.mrf.mxu0
      %v2461 = vpop.f32.mrf.mxu0
      %v2462 = vadd.f32 %v2301, %v2461
      %v2463 = vpop.f32.mrf.mxu0
      %2464 = vmatprep.mubr.bf16.mxu0 0
      %2465 = vmatmul.mubr.bf16.gmra.mxu0 %v1479
      %v2466 = vpop.f32.mrf.mxu0
      %v2467 = vadd.f32 %v2306, %v2466
      %v2468 = vpop.f32.mrf.mxu0
      %v2469 = vpop.f32.mrf.mxu0
      %v2470 = vadd.f32 %v2309, %v2469
      %v2471 = vpop.f32.mrf.mxu0
      %2472 = vmatprep.mubr.bf16.mxu0 0
      %2473 = vmatmul.mubr.bf16.gmra.mxu0 %v1480
      %v2474 = vpop.f32.mrf.mxu0
      %v2475 = vadd.f32 %v2314, %v2474
      %v2476 = vpop.f32.mrf.mxu0
      %v2477 = vpop.f32.mrf.mxu0
      %v2478 = vadd.f32 %v2317, %v2477
      %v2479 = vpop.f32.mrf.mxu0
      %2480 = vmatprep.mubr.bf16.mxu0 0
      %2481 = vmatmul.mubr.bf16.gmra.mxu0 %v1481
      %v2482 = vpop.f32.mrf.mxu0
      %v2483 = vadd.f32 %v2322, %v2482
      %v2484 = vpop.f32.mrf.mxu0
      %v2485 = vpop.f32.mrf.mxu0
      %v2486 = vadd.f32 %v2325, %v2485
      %v2487 = vpop.f32.mrf.mxu0
      %2488 = vmatprep.mubr.bf16.mxu0 0
      %2489 = vmatmul.mubr.bf16.gmra.mxu0 %v1482
      %v2490 = vpop.f32.mrf.mxu0
      %v2491 = vadd.f32 %v2330, %v2490
      %v2492 = vpop.f32.mrf.mxu0
      %v2493 = vpop.f32.mrf.mxu0
      %v2494 = vadd.f32 %v2333, %v2493
      %v2495 = vpop.f32.mrf.mxu0
      %2496 = vmatprep.mubr.bf16.mxu0 0
      %2497 = vmatmul.mubr.bf16.gmra.mxu0 %v1483
      %v2498 = vpop.f32.mrf.mxu0
      %v2499 = vadd.f32 %v2338, %v2498
      %v2500 = vpop.f32.mrf.mxu0
      %v2501 = vpop.f32.mrf.mxu0
      %v2502 = vadd.f32 %v2341, %v2501
      %v2503 = vpop.f32.mrf.mxu0
      %2504 = vmatprep.mubr.bf16.mxu0 0
      %2505 = vmatmul.mubr.bf16.gmra.mxu0 %v1484
      %v2506 = vpop.f32.mrf.mxu0
      %v2507 = vadd.f32 %v2346, %v2506
      %v2508 = vpop.f32.mrf.mxu0
      %v2509 = vpop.f32.mrf.mxu0
      %v2510 = vadd.f32 %v2349, %v2509
      %v2511 = vpop.f32.mrf.mxu0
      %2512 = vmatprep.mubr.bf16.mxu0 0
      %2513 = vmatmul.mubr.bf16.gmra.mxu0 %v1485
      %v2514 = vpop.f32.mrf.mxu0
      %v2515 = vadd.f32 %v2354, %v2514
      %v2516 = vpop.f32.mrf.mxu0
      %v2517 = vpop.f32.mrf.mxu0
      %v2518 = vadd.f32 %v2357, %v2517
      %v2519 = vpop.f32.mrf.mxu0
      %2520 = vmatprep.mubr.bf16.mxu0 0
      %2521 = vmatmul.mubr.bf16.gmra.mxu0 %v1486
      %v2522 = vpop.f32.mrf.mxu0
      %v2523 = vadd.f32 %v2362, %v2522
      %v2524 = vpop.f32.mrf.mxu0
      %v2525 = vpop.f32.mrf.mxu0
      %v2526 = vadd.f32 %v2365, %v2525
      %v2527 = vpop.f32.mrf.mxu0
      %2528 = vmatprep.mubr.bf16.mxu0 0
      %2529 = vmatmul.mubr.bf16.gmra.mxu0 %v1487
      %v2530 = vpop.f32.mrf.mxu0
      %v2531 = vadd.f32 %v2370, %v2530
      %v2532 = vpop.f32.mrf.mxu0
      %v2533 = vpop.f32.mrf.mxu0
      %v2534 = vadd.f32 %v2373, %v2533
      %v2535 = vpop.f32.mrf.mxu0
      %2536 = vdwg.mxu0
      %s2537 = scalar_lea.vmem %s5, 384
      %v2538 = vld [vmem:[%s2537] sm:$0xf]
      %v2539 = vld [vmem:[%s2537 + $0x4] sm:$0xf]
      %v2540 = vld [vmem:[%s2537 + $0x8] sm:$0xf]
      %v2541 = vld [vmem:[%s2537 + $0xc] sm:$0xf]
      %v2542 = vld [vmem:[%s2537 + $0x10] sm:$0xf]
      %v2543 = vld [vmem:[%s2537 + $0x14] sm:$0xf]
      %v2544 = vld [vmem:[%s2537 + $0x18] sm:$0xf]
      %v2545 = vld [vmem:[%s2537 + $0x1c] sm:$0xf]
      %v2546 = vld [vmem:[%s2537 + $0x20] sm:$0xf]
      %v2547 = vld [vmem:[%s2537 + $0x24] sm:$0xf]
      %v2548 = vld [vmem:[%s2537 + $0x28] sm:$0xf]
      %v2549 = vld [vmem:[%s2537 + $0x2c] sm:$0xf]
      %v2550 = vld [vmem:[%s2537 + $0x30] sm:$0xf]
      %v2551 = vld [vmem:[%s2537 + $0x34] sm:$0xf]
      %v2552 = vld [vmem:[%s2537 + $0x38] sm:$0xf]
      %v2553 = vld [vmem:[%s2537 + $0x3c] sm:$0xf]
      %v2554 = vld [vmem:[%s2537 + $0x40] sm:$0xf]
      %v2555 = vld [vmem:[%s2537 + $0x44] sm:$0xf]
      %v2556 = vld [vmem:[%s2537 + $0x48] sm:$0xf]
      %v2557 = vld [vmem:[%s2537 + $0x4c] sm:$0xf]
      %v2558 = vld [vmem:[%s2537 + $0x50] sm:$0xf]
      %v2559 = vld [vmem:[%s2537 + $0x54] sm:$0xf]
      %v2560 = vld [vmem:[%s2537 + $0x58] sm:$0xf]
      %v2561 = vld [vmem:[%s2537 + $0x5c] sm:$0xf]
      %v2562 = vld [vmem:[%s2537 + $0x60] sm:$0xf]
      %v2563 = vld [vmem:[%s2537 + $0x64] sm:$0xf]
      %v2564 = vld [vmem:[%s2537 + $0x68] sm:$0xf]
      %v2565 = vld [vmem:[%s2537 + $0x6c] sm:$0xf]
      %v2566 = vld [vmem:[%s2537 + $0x70] sm:$0xf]
      %v2567 = vld [vmem:[%s2537 + $0x74] sm:$0xf]
      %v2568 = vld [vmem:[%s2537 + $0x78] sm:$0xf]
      %v2569 = vld [vmem:[%s2537 + $0x7c] sm:$0xf]
      %v2570 = vld [vmem:[%s2537 + $0x80] sm:$0xf]
      %v2571 = vld [vmem:[%s2537 + $0x84] sm:$0xf]
      %v2572 = vld [vmem:[%s2537 + $0x88] sm:$0xf]
      %v2573 = vld [vmem:[%s2537 + $0x8c] sm:$0xf]
      %v2574 = vld [vmem:[%s2537 + $0x90] sm:$0xf]
      %v2575 = vld [vmem:[%s2537 + $0x94] sm:$0xf]
      %v2576 = vld [vmem:[%s2537 + $0x98] sm:$0xf]
      %v2577 = vld [vmem:[%s2537 + $0x9c] sm:$0xf]
      %v2578 = vld [vmem:[%s2537 + $0xa0] sm:$0xf]
      %v2579 = vld [vmem:[%s2537 + $0xa4] sm:$0xf]
      %v2580 = vld [vmem:[%s2537 + $0xa8] sm:$0xf]
      %v2581 = vld [vmem:[%s2537 + $0xac] sm:$0xf]
      %v2582 = vld [vmem:[%s2537 + $0xb0] sm:$0xf]
      %v2583 = vld [vmem:[%s2537 + $0xb4] sm:$0xf]
      %v2584 = vld [vmem:[%s2537 + $0xb8] sm:$0xf]
      %v2585 = vld [vmem:[%s2537 + $0xbc] sm:$0xf]
      %v2634 = vunpack.c.l.b16 %v2538
      %v2635 = vunpack.c.l.b16 %v2539
      %v2636 = vunpack.c.l.b16 %v2540
      %v2637 = vunpack.c.l.b16 %v2541
      %v2638 = vunpack.c.l.b16 %v2542
      %v2639 = vunpack.c.l.b16 %v2543
      %v2640 = vunpack.c.l.b16 %v2544
      %v2641 = vunpack.c.l.b16 %v2545
      %v2642 = vunpack.c.l.b16 %v2546
      %v2643 = vunpack.c.l.b16 %v2547
      %v2644 = vunpack.c.l.b16 %v2548
      %v2645 = vunpack.c.l.b16 %v2549
      %v2646 = vunpack.c.l.b16 %v2550
      %v2647 = vunpack.c.l.b16 %v2551
      %v2648 = vunpack.c.l.b16 %v2552
      %v2649 = vunpack.c.l.b16 %v2553
      %v2650 = vunpack.c.l.b16 %v2554
      %v2651 = vunpack.c.l.b16 %v2555
      %v2652 = vunpack.c.l.b16 %v2556
      %v2653 = vunpack.c.l.b16 %v2557
      %v2654 = vunpack.c.l.b16 %v2558
      %v2655 = vunpack.c.l.b16 %v2559
      %v2656 = vunpack.c.l.b16 %v2560
      %v2657 = vunpack.c.l.b16 %v2561
      %v2658 = vunpack.c.l.b16 %v2562
      %v2659 = vunpack.c.l.b16 %v2563
      %v2660 = vunpack.c.l.b16 %v2564
      %v2661 = vunpack.c.l.b16 %v2565
      %v2662 = vunpack.c.l.b16 %v2566
      %v2663 = vunpack.c.l.b16 %v2567
      %v2664 = vunpack.c.l.b16 %v2568
      %v2665 = vunpack.c.l.b16 %v2569
      %v2666 = vunpack.c.l.b16 %v2570
      %v2667 = vunpack.c.l.b16 %v2571
      %v2668 = vunpack.c.l.b16 %v2572
      %v2669 = vunpack.c.l.b16 %v2573
      %v2670 = vunpack.c.l.b16 %v2574
      %v2671 = vunpack.c.l.b16 %v2575
      %v2672 = vunpack.c.l.b16 %v2576
      %v2673 = vunpack.c.l.b16 %v2577
      %v2674 = vunpack.c.l.b16 %v2578
      %v2675 = vunpack.c.l.b16 %v2579
      %v2676 = vunpack.c.l.b16 %v2580
      %v2677 = vunpack.c.l.b16 %v2581
      %v2678 = vunpack.c.l.b16 %v2582
      %v2679 = vunpack.c.l.b16 %v2583
      %v2680 = vunpack.c.l.b16 %v2584
      %v2681 = vunpack.c.l.b16 %v2585
      %v2682 = vpack.c.b16 %v2635, %v2634
      %v2683 = vpack.c.b16 %v2637, %v2636
      %v2684 = vpack.c.b16 %v2639, %v2638
      %v2685 = vpack.c.b16 %v2641, %v2640
      %v2686 = vpack.c.b16 %v2643, %v2642
      %v2687 = vpack.c.b16 %v2645, %v2644
      %v2688 = vpack.c.b16 %v2647, %v2646
      %v2689 = vpack.c.b16 %v2649, %v2648
      %v2690 = vpack.c.b16 %v2651, %v2650
      %v2691 = vpack.c.b16 %v2653, %v2652
      %v2692 = vpack.c.b16 %v2655, %v2654
      %v2693 = vpack.c.b16 %v2657, %v2656
      %v2694 = vpack.c.b16 %v2659, %v2658
      %v2695 = vpack.c.b16 %v2661, %v2660
      %v2696 = vpack.c.b16 %v2663, %v2662
      %v2697 = vpack.c.b16 %v2665, %v2664
      %v2698 = vpack.c.b16 %v2667, %v2666
      %v2699 = vpack.c.b16 %v2669, %v2668
      %v2700 = vpack.c.b16 %v2671, %v2670
      %v2701 = vpack.c.b16 %v2673, %v2672
      %v2702 = vpack.c.b16 %v2675, %v2674
      %v2703 = vpack.c.b16 %v2677, %v2676
      %v2704 = vpack.c.b16 %v2679, %v2678
      %v2705 = vpack.c.b16 %v2681, %v2680
      %2730 = vmatprep.subr.bf16.mxu0 0
      %2731 = vmatpush1.bf16.msra.mxu0 %v2689
      %2732 = vmatprep.subr.bf16.mxu0 0
      %2733 = vmatpush1.bf16.msra.mxu0 %v2688
      %2734 = vmatprep.subr.bf16.mxu0 0
      %2735 = vmatpush1.bf16.msra.mxu0 %v2687
      %2736 = vmatprep.subr.bf16.mxu0 0
      %2737 = vmatpush1.bf16.msra.mxu0 %v2686
      %2738 = vmatprep.subr.bf16.mxu0 0
      %2739 = vmatpush1.bf16.msra.mxu0 %v2685
      %2740 = vmatprep.subr.bf16.mxu0 0
      %2741 = vmatpush1.bf16.msra.mxu0 %v2684
      %2742 = vmatprep.subr.bf16.mxu0 0
      %2743 = vmatpush1.bf16.msra.mxu0 %v2683
      %2744 = vmatprep.subr.bf16.mxu0 0
      %2745 = vmatpush1.bf16.msra.mxu0 %v2682
      %2746 = vmatprep.subr.bf16.mxu0 0
      %2747 = vmatpush2.bf16.msra.mxu0 %v2697
      %2748 = vmatprep.subr.bf16.mxu0 0
      %2749 = vmatpush2.bf16.msra.mxu0 %v2696
      %2750 = vmatprep.subr.bf16.mxu0 0
      %2751 = vmatpush2.bf16.msra.mxu0 %v2695
      %2752 = vmatprep.subr.bf16.mxu0 0
      %2753 = vmatpush2.bf16.msra.mxu0 %v2694
      %2754 = vmatprep.subr.bf16.mxu0 0
      %2755 = vmatpush2.bf16.msra.mxu0 %v2693
      %2756 = vmatprep.subr.bf16.mxu0 0
      %2757 = vmatpush2.bf16.msra.mxu0 %v2692
      %2758 = vmatprep.subr.bf16.mxu0 0
      %2759 = vmatpush2.bf16.msra.mxu0 %v2691
      %2760 = vmatprep.subr.bf16.mxu0 0
      %2761 = vmatpush2.bf16.msra.mxu0 %v2690
      %2762 = vmatprep.mubr.bf16.mxu0 %v1234
      %2763 = vmatmul.mubr.bf16.gmra.mxu0 %v1399
      %v2764 = vpop.f32.mrf.mxu0
      %v2765 = vadd.f32 0.0, %v2764
      %v2766 = vpop.f32.mrf.mxu0
      %v2767 = vpop.f32.mrf.mxu0
      %v2768 = vadd.f32 0.0, %v2767
      %v2769 = vpop.f32.mrf.mxu0
      %2770 = vmatprep.mubr.bf16.mxu0 %v1235
      %2771 = vmatmul.mubr.bf16.gmra.mxu0 %v1400
      %v2772 = vpop.f32.mrf.mxu0
      %v2773 = vadd.f32 0.0, %v2772
      %v2774 = vpop.f32.mrf.mxu0
      %v2775 = vpop.f32.mrf.mxu0
      %v2776 = vadd.f32 0.0, %v2775
      %v2777 = vpop.f32.mrf.mxu0
      %2778 = vmatprep.mubr.bf16.mxu0 %v1236
      %2779 = vmatmul.mubr.bf16.gmra.mxu0 %v1401
      %v2780 = vpop.f32.mrf.mxu0
      %v2781 = vadd.f32 0.0, %v2780
      %v2782 = vpop.f32.mrf.mxu0
      %v2783 = vpop.f32.mrf.mxu0
      %v2784 = vadd.f32 0.0, %v2783
      %v2785 = vpop.f32.mrf.mxu0
      %2786 = vmatprep.mubr.bf16.mxu0 %v1237
      %2787 = vmatmul.mubr.bf16.gmra.mxu0 %v1402
      %v2788 = vpop.f32.mrf.mxu0
      %v2789 = vadd.f32 0.0, %v2788
      %v2790 = vpop.f32.mrf.mxu0
      %v2791 = vpop.f32.mrf.mxu0
      %v2792 = vadd.f32 0.0, %v2791
      %v2793 = vpop.f32.mrf.mxu0
      %2794 = vmatprep.mubr.bf16.mxu0 %v1238
      %2795 = vmatmul.mubr.bf16.gmra.mxu0 %v1403
      %v2796 = vpop.f32.mrf.mxu0
      %v2797 = vadd.f32 0.0, %v2796
      %v2798 = vpop.f32.mrf.mxu0
      %v2799 = vpop.f32.mrf.mxu0
      %v2800 = vadd.f32 0.0, %v2799
      %v2801 = vpop.f32.mrf.mxu0
      %2802 = vmatprep.mubr.bf16.mxu0 %v1239
      %2803 = vmatmul.mubr.bf16.gmra.mxu0 %v1404
      %v2804 = vpop.f32.mrf.mxu0
      %v2805 = vadd.f32 0.0, %v2804
      %v2806 = vpop.f32.mrf.mxu0
      %v2807 = vpop.f32.mrf.mxu0
      %v2808 = vadd.f32 0.0, %v2807
      %v2809 = vpop.f32.mrf.mxu0
      %2810 = vmatprep.mubr.bf16.mxu0 %v1240
      %2811 = vmatmul.mubr.bf16.gmra.mxu0 %v1405
      %v2812 = vpop.f32.mrf.mxu0
      %v2813 = vadd.f32 0.0, %v2812
      %v2814 = vpop.f32.mrf.mxu0
      %v2815 = vpop.f32.mrf.mxu0
      %v2816 = vadd.f32 0.0, %v2815
      %v2817 = vpop.f32.mrf.mxu0
      %2818 = vmatprep.mubr.bf16.mxu0 %v1241
      %2819 = vmatmul.mubr.bf16.gmra.mxu0 %v1406
      %v2820 = vpop.f32.mrf.mxu0
      %v2821 = vadd.f32 0.0, %v2820
      %v2822 = vpop.f32.mrf.mxu0
      %v2823 = vpop.f32.mrf.mxu0
      %v2824 = vadd.f32 0.0, %v2823
      %v2825 = vpop.f32.mrf.mxu0
      %2826 = vmatprep.mubr.bf16.mxu0 %v1242
      %2827 = vmatmul.mubr.bf16.gmra.mxu0 %v1407
      %v2828 = vpop.f32.mrf.mxu0
      %v2829 = vadd.f32 0.0, %v2828
      %v2830 = vpop.f32.mrf.mxu0
      %v2831 = vpop.f32.mrf.mxu0
      %v2832 = vadd.f32 0.0, %v2831
      %v2833 = vpop.f32.mrf.mxu0
      %2834 = vmatprep.mubr.bf16.mxu0 %v1243
      %2835 = vmatmul.mubr.bf16.gmra.mxu0 %v1408
      %v2836 = vpop.f32.mrf.mxu0
      %v2837 = vadd.f32 0.0, %v2836
      %v2838 = vpop.f32.mrf.mxu0
      %v2839 = vpop.f32.mrf.mxu0
      %v2840 = vadd.f32 0.0, %v2839
      %v2841 = vpop.f32.mrf.mxu0
      %2842 = vmatprep.mubr.bf16.mxu0 %v1244
      %2843 = vmatmul.mubr.bf16.gmra.mxu0 %v1409
      %v2844 = vpop.f32.mrf.mxu0
      %v2845 = vadd.f32 0.0, %v2844
      %v2846 = vpop.f32.mrf.mxu0
      %v2847 = vpop.f32.mrf.mxu0
      %v2848 = vadd.f32 0.0, %v2847
      %v2849 = vpop.f32.mrf.mxu0
      %2850 = vmatprep.mubr.bf16.mxu0 %v1245
      %2851 = vmatmul.mubr.bf16.gmra.mxu0 %v1410
      %v2852 = vpop.f32.mrf.mxu0
      %v2853 = vadd.f32 0.0, %v2852
      %v2854 = vpop.f32.mrf.mxu0
      %v2855 = vpop.f32.mrf.mxu0
      %v2856 = vadd.f32 0.0, %v2855
      %v2857 = vpop.f32.mrf.mxu0
      %2858 = vmatprep.mubr.bf16.mxu0 %v1246
      %2859 = vmatmul.mubr.bf16.gmra.mxu0 %v1411
      %v2860 = vpop.f32.mrf.mxu0
      %v2861 = vadd.f32 0.0, %v2860
      %v2862 = vpop.f32.mrf.mxu0
      %v2863 = vpop.f32.mrf.mxu0
      %v2864 = vadd.f32 0.0, %v2863
      %v2865 = vpop.f32.mrf.mxu0
      %2866 = vmatprep.mubr.bf16.mxu0 %v1247
      %2867 = vmatmul.mubr.bf16.gmra.mxu0 %v1412
      %v2868 = vpop.f32.mrf.mxu0
      %v2869 = vadd.f32 0.0, %v2868
      %v2870 = vpop.f32.mrf.mxu0
      %v2871 = vpop.f32.mrf.mxu0
      %v2872 = vadd.f32 0.0, %v2871
      %v2873 = vpop.f32.mrf.mxu0
      %2874 = vmatprep.mubr.bf16.mxu0 %v1248
      %2875 = vmatmul.mubr.bf16.gmra.mxu0 %v1413
      %v2876 = vpop.f32.mrf.mxu0
      %v2877 = vadd.f32 0.0, %v2876
      %v2878 = vpop.f32.mrf.mxu0
      %v2879 = vpop.f32.mrf.mxu0
      %v2880 = vadd.f32 0.0, %v2879
      %v2881 = vpop.f32.mrf.mxu0
      %2882 = vmatprep.mubr.bf16.mxu0 %v1249
      %2883 = vmatmul.mubr.bf16.gmra.mxu0 %v1414
      %v2884 = vpop.f32.mrf.mxu0
      %v2885 = vadd.f32 0.0, %v2884
      %v2886 = vpop.f32.mrf.mxu0
      %v2887 = vpop.f32.mrf.mxu0
      %v2888 = vadd.f32 0.0, %v2887
      %v2889 = vpop.f32.mrf.mxu0
      %2890 = vdwg.mxu0
      %2891 = vmatprep.subr.bf16.mxu0 0
      %2892 = vmatpush1.bf16.msra.mxu0 %v2705
      %2893 = vmatprep.subr.bf16.mxu0 0
      %2894 = vmatpush1.bf16.msra.mxu0 %v2704
      %2895 = vmatprep.subr.bf16.mxu0 0
      %2896 = vmatpush1.bf16.msra.mxu0 %v2703
      %2897 = vmatprep.subr.bf16.mxu0 0
      %2898 = vmatpush1.bf16.msra.mxu0 %v2702
      %2899 = vmatprep.subr.bf16.mxu0 0
      %2900 = vmatpush1.bf16.msra.mxu0 %v2701
      %2901 = vmatprep.subr.bf16.mxu0 0
      %2902 = vmatpush1.bf16.msra.mxu0 %v2700
      %2903 = vmatprep.subr.bf16.mxu0 0
      %2904 = vmatpush1.bf16.msra.mxu0 %v2699
      %2905 = vmatprep.subr.bf16.mxu0 0
      %2906 = vmatpush1.bf16.msra.mxu0 %v2698
      %2907 = vmatprep.subr.bf16.mxu0 0
      %2908 = vmatpush2.bf16.msra.mxu0 0
      %2909 = vmatprep.subr.bf16.mxu0 0
      %2910 = vmatpush2.bf16.msra.mxu0 0
      %2911 = vmatprep.subr.bf16.mxu0 0
      %2912 = vmatpush2.bf16.msra.mxu0 0
      %2913 = vmatprep.subr.bf16.mxu0 0
      %2914 = vmatpush2.bf16.msra.mxu0 0
      %2915 = vmatprep.subr.bf16.mxu0 0
      %2916 = vmatpush2.bf16.msra.mxu0 0
      %2917 = vmatprep.subr.bf16.mxu0 0
      %2918 = vmatpush2.bf16.msra.mxu0 0
      %2919 = vmatprep.subr.bf16.mxu0 0
      %2920 = vmatpush2.bf16.msra.mxu0 0
      %2921 = vmatprep.subr.bf16.mxu0 0
      %2922 = vmatpush2.bf16.msra.mxu0 0
      %2923 = vmatprep.mubr.bf16.mxu0 0
      %2924 = vmatmul.mubr.bf16.gmra.mxu0 %v1474
      %v2925 = vpop.f32.mrf.mxu0
      %v2926 = vadd.f32 %v2765, %v2925
      %v2927 = vpop.f32.mrf.mxu0
      %v2928 = vpop.f32.mrf.mxu0
      %v2929 = vadd.f32 %v2768, %v2928
      %v2930 = vpop.f32.mrf.mxu0
      %2931 = vmatprep.mubr.bf16.mxu0 0
      %2932 = vmatmul.mubr.bf16.gmra.mxu0 %v1475
      %v2933 = vpop.f32.mrf.mxu0
      %v2934 = vadd.f32 %v2773, %v2933
      %v2935 = vpop.f32.mrf.mxu0
      %v2936 = vpop.f32.mrf.mxu0
      %v2937 = vadd.f32 %v2776, %v2936
      %v2938 = vpop.f32.mrf.mxu0
      %2939 = vmatprep.mubr.bf16.mxu0 0
      %2940 = vmatmul.mubr.bf16.gmra.mxu0 %v1476
      %v2941 = vpop.f32.mrf.mxu0
      %v2942 = vadd.f32 %v2781, %v2941
      %v2943 = vpop.f32.mrf.mxu0
      %v2944 = vpop.f32.mrf.mxu0
      %v2945 = vadd.f32 %v2784, %v2944
      %v2946 = vpop.f32.mrf.mxu0
      %2947 = vmatprep.mubr.bf16.mxu0 0
      %2948 = vmatmul.mubr.bf16.gmra.mxu0 %v1477
      %v2949 = vpop.f32.mrf.mxu0
      %v2950 = vadd.f32 %v2789, %v2949
      %v2951 = vpop.f32.mrf.mxu0
      %v2952 = vpop.f32.mrf.mxu0
      %v2953 = vadd.f32 %v2792, %v2952
      %v2954 = vpop.f32.mrf.mxu0
      %2955 = vmatprep.mubr.bf16.mxu0 0
      %2956 = vmatmul.mubr.bf16.gmra.mxu0 %v1478
      %v2957 = vpop.f32.mrf.mxu0
      %v2958 = vadd.f32 %v2797, %v2957
      %v2959 = vpop.f32.mrf.mxu0
      %v2960 = vpop.f32.mrf.mxu0
      %v2961 = vadd.f32 %v2800, %v2960
      %v2962 = vpop.f32.mrf.mxu0
      %2963 = vmatprep.mubr.bf16.mxu0 0
      %2964 = vmatmul.mubr.bf16.gmra.mxu0 %v1479
      %v2965 = vpop.f32.mrf.mxu0
      %v2966 = vadd.f32 %v2805, %v2965
      %v2967 = vpop.f32.mrf.mxu0
      %v2968 = vpop.f32.mrf.mxu0
      %v2969 = vadd.f32 %v2808, %v2968
      %v2970 = vpop.f32.mrf.mxu0
      %2971 = vmatprep.mubr.bf16.mxu0 0
      %2972 = vmatmul.mubr.bf16.gmra.mxu0 %v1480
      %v2973 = vpop.f32.mrf.mxu0
      %v2974 = vadd.f32 %v2813, %v2973
      %v2975 = vpop.f32.mrf.mxu0
      %v2976 = vpop.f32.mrf.mxu0
      %v2977 = vadd.f32 %v2816, %v2976
      %v2978 = vpop.f32.mrf.mxu0
      %2979 = vmatprep.mubr.bf16.mxu0 0
      %2980 = vmatmul.mubr.bf16.gmra.mxu0 %v1481
      %v2981 = vpop.f32.mrf.mxu0
      %v2982 = vadd.f32 %v2821, %v2981
      %v2983 = vpop.f32.mrf.mxu0
      %v2984 = vpop.f32.mrf.mxu0
      %v2985 = vadd.f32 %v2824, %v2984
      %v2986 = vpop.f32.mrf.mxu0
      %2987 = vmatprep.mubr.bf16.mxu0 0
      %2988 = vmatmul.mubr.bf16.gmra.mxu0 %v1482
      %v2989 = vpop.f32.mrf.mxu0
      %v2990 = vadd.f32 %v2829, %v2989
      %v2991 = vpop.f32.mrf.mxu0
      %v2992 = vpop.f32.mrf.mxu0
      %v2993 = vadd.f32 %v2832, %v2992
      %v2994 = vpop.f32.mrf.mxu0
      %2995 = vmatprep.mubr.bf16.mxu0 0
      %2996 = vmatmul.mubr.bf16.gmra.mxu0 %v1483
      %v2997 = vpop.f32.mrf.mxu0
      %v2998 = vadd.f32 %v2837, %v2997
      %v2999 = vpop.f32.mrf.mxu0
      %v3000 = vpop.f32.mrf.mxu0
      %v3001 = vadd.f32 %v2840, %v3000
      %v3002 = vpop.f32.mrf.mxu0
      %3003 = vmatprep.mubr.bf16.mxu0 0
      %3004 = vmatmul.mubr.bf16.gmra.mxu0 %v1484
      %v3005 = vpop.f32.mrf.mxu0
      %v3006 = vadd.f32 %v2845, %v3005
      %v3007 = vpop.f32.mrf.mxu0
      %v3008 = vpop.f32.mrf.mxu0
      %v3009 = vadd.f32 %v2848, %v3008
      %v3010 = vpop.f32.mrf.mxu0
      %3011 = vmatprep.mubr.bf16.mxu0 0
      %3012 = vmatmul.mubr.bf16.gmra.mxu0 %v1485
      %v3013 = vpop.f32.mrf.mxu0
      %v3014 = vadd.f32 %v2853, %v3013
      %v3015 = vpop.f32.mrf.mxu0
      %v3016 = vpop.f32.mrf.mxu0
      %v3017 = vadd.f32 %v2856, %v3016
      %v3018 = vpop.f32.mrf.mxu0
      %3019 = vmatprep.mubr.bf16.mxu0 0
      %3020 = vmatmul.mubr.bf16.gmra.mxu0 %v1486
      %v3021 = vpop.f32.mrf.mxu0
      %v3022 = vadd.f32 %v2861, %v3021
      %v3023 = vpop.f32.mrf.mxu0
      %v3024 = vpop.f32.mrf.mxu0
      %v3025 = vadd.f32 %v2864, %v3024
      %v3026 = vpop.f32.mrf.mxu0
      %3027 = vmatprep.mubr.bf16.mxu0 0
      %3028 = vmatmul.mubr.bf16.gmra.mxu0 %v1487
      %v3029 = vpop.f32.mrf.mxu0
      %v3030 = vadd.f32 %v2869, %v3029
      %v3031 = vpop.f32.mrf.mxu0
      %v3032 = vpop.f32.mrf.mxu0
      %v3033 = vadd.f32 %v2872, %v3032
      %v3034 = vpop.f32.mrf.mxu0
      %3035 = vmatprep.mubr.bf16.mxu0 0
      %3036 = vmatmul.mubr.bf16.gmra.mxu0 %v1488
      %v3037 = vpop.f32.mrf.mxu0
      %v3038 = vadd.f32 %v2877, %v3037
      %v3039 = vpop.f32.mrf.mxu0
      %v3040 = vpop.f32.mrf.mxu0
      %v3041 = vadd.f32 %v2880, %v3040
      %v3042 = vpop.f32.mrf.mxu0
      %3043 = vmatprep.mubr.bf16.mxu0 0
      %3044 = vmatmul.mubr.bf16.gmra.mxu0 %v1489
      %v3045 = vpop.f32.mrf.mxu0
      %v3046 = vadd.f32 %v2885, %v3045
      %v3047 = vpop.f32.mrf.mxu0
      %v3048 = vpop.f32.mrf.mxu0
      %v3049 = vadd.f32 %v2888, %v3048
      %v3050 = vpop.f32.mrf.mxu0
      %3051 = vdwg.mxu0
      %v3052 = vadd.f32 %v2411, %v2926
      %v3053 = vadd.f32 %v2414, %v2929
      %v3054 = vadd.f32 %v2419, %v2934
      %v3055 = vadd.f32 %v2422, %v2937
      %v3056 = vadd.f32 %v2427, %v2942
      %v3057 = vadd.f32 %v2430, %v2945
      %v3058 = vadd.f32 %v2435, %v2950
      %v3059 = vadd.f32 %v2438, %v2953
      %v3060 = vadd.f32 %v2443, %v2958
      %v3061 = vadd.f32 %v2446, %v2961
      %v3062 = vadd.f32 %v2451, %v2966
      %v3063 = vadd.f32 %v2454, %v2969
      %v3064 = vadd.f32 %v2459, %v2974
      %v3065 = vadd.f32 %v2462, %v2977
      %v3066 = vadd.f32 %v2467, %v2982
      %v3067 = vadd.f32 %v2470, %v2985
      %v3068 = vadd.f32 %v2475, %v2990
      %v3069 = vadd.f32 %v2478, %v2993
      %v3070 = vadd.f32 %v2483, %v2998
      %v3071 = vadd.f32 %v2486, %v3001
      %v3072 = vadd.f32 %v2491, %v3006
      %v3073 = vadd.f32 %v2494, %v3009
      %v3074 = vadd.f32 %v2499, %v3014
      %v3075 = vadd.f32 %v2502, %v3017
      %v3076 = vadd.f32 %v2507, %v3022
      %v3077 = vadd.f32 %v2510, %v3025
      %v3078 = vadd.f32 %v2515, %v3030
      %v3079 = vadd.f32 %v2518, %v3033
      %v3080 = vadd.f32 %v2523, %v3038
      %v3081 = vadd.f32 %v2526, %v3041
      %v3082 = vadd.f32 %v2531, %v3046
      %v3083 = vadd.f32 %v2534, %v3049
      %v3084 = vld [vmem:[%s6] sm:$0x1]
      %v3086 = vlaneseq
      %v3087 = vshrl.u32 %v3086, 7
      %v3088 = vsub.s32 0, %v3087
      %v3089 = vrot.slane %v3084, %v3088
      %v3091 = vadd.f32 %v3052, %v3089
      %v3092 = vadd.f32 %v3053, %v3089
      %v3093 = vadd.f32 %v3054, %v3089
      %v3094 = vadd.f32 %v3055, %v3089
      %v3095 = vadd.f32 %v3056, %v3089
      %v3096 = vadd.f32 %v3057, %v3089
      %v3097 = vadd.f32 %v3058, %v3089
      %v3098 = vadd.f32 %v3059, %v3089
      %v3099 = vadd.f32 %v3060, %v3089
      %v3100 = vadd.f32 %v3061, %v3089
      %v3101 = vadd.f32 %v3062, %v3089
      %v3102 = vadd.f32 %v3063, %v3089
      %v3103 = vadd.f32 %v3064, %v3089
      %v3104 = vadd.f32 %v3065, %v3089
      %v3105 = vadd.f32 %v3066, %v3089
      %v3106 = vadd.f32 %v3067, %v3089
      %v3107 = vadd.f32 %v3068, %v3089
      %v3108 = vadd.f32 %v3069, %v3089
      %v3109 = vadd.f32 %v3070, %v3089
      %v3110 = vadd.f32 %v3071, %v3089
      %v3111 = vadd.f32 %v3072, %v3089
      %v3112 = vadd.f32 %v3073, %v3089
      %v3113 = vadd.f32 %v3074, %v3089
      %v3114 = vadd.f32 %v3075, %v3089
      %v3115 = vadd.f32 %v3076, %v3089
      %v3116 = vadd.f32 %v3077, %v3089
      %v3117 = vadd.f32 %v3078, %v3089
      %v3118 = vadd.f32 %v3079, %v3089
      %v3119 = vadd.f32 %v3080, %v3089
      %v3120 = vadd.f32 %v3081, %v3089
      %v3121 = vadd.f32 %v3082, %v3089
      %v3122 = vadd.f32 %v3083, %v3089
      %v3123 = vmax.f32 %v3091, 0.0
      %v3124 = vmax.f32 %v3092, 0.0
      %v3125 = vmax.f32 %v3093, 0.0
      %v3126 = vmax.f32 %v3094, 0.0
      %v3127 = vmax.f32 %v3095, 0.0
      %v3128 = vmax.f32 %v3096, 0.0
      %v3129 = vmax.f32 %v3097, 0.0
      %v3130 = vmax.f32 %v3098, 0.0
      %v3131 = vmax.f32 %v3099, 0.0
      %v3132 = vmax.f32 %v3100, 0.0
      %v3133 = vmax.f32 %v3101, 0.0
      %v3134 = vmax.f32 %v3102, 0.0
      %v3135 = vmax.f32 %v3103, 0.0
      %v3136 = vmax.f32 %v3104, 0.0
      %v3137 = vmax.f32 %v3105, 0.0
      %v3138 = vmax.f32 %v3106, 0.0
      %v3139 = vmax.f32 %v3107, 0.0
      %v3140 = vmax.f32 %v3108, 0.0
      %v3141 = vmax.f32 %v3109, 0.0
      %v3142 = vmax.f32 %v3110, 0.0
      %v3143 = vmax.f32 %v3111, 0.0
      %v3144 = vmax.f32 %v3112, 0.0
      %v3145 = vmax.f32 %v3113, 0.0
      %v3146 = vmax.f32 %v3114, 0.0
      %v3147 = vmax.f32 %v3115, 0.0
      %v3148 = vmax.f32 %v3116, 0.0
      %v3149 = vmax.f32 %v3117, 0.0
      %v3150 = vmax.f32 %v3118, 0.0
      %v3151 = vmax.f32 %v3119, 0.0
      %v3152 = vmax.f32 %v3120, 0.0
      %v3153 = vmax.f32 %v3121, 0.0
      %v3154 = vmax.f32 %v3122, 0.0
      %v3155 = vpack.c.bf16 %v3124, %v3123
      %v3156 = vpack.c.bf16 %v3126, %v3125
      %v3157 = vpack.c.bf16 %v3128, %v3127
      %v3158 = vpack.c.bf16 %v3130, %v3129
      %v3159 = vpack.c.bf16 %v3132, %v3131
      %v3160 = vpack.c.bf16 %v3134, %v3133
      %v3161 = vpack.c.bf16 %v3136, %v3135
      %v3162 = vpack.c.bf16 %v3138, %v3137
      %v3163 = vpack.c.bf16 %v3140, %v3139
      %v3164 = vpack.c.bf16 %v3142, %v3141
      %v3165 = vpack.c.bf16 %v3144, %v3143
      %v3166 = vpack.c.bf16 %v3146, %v3145
      %v3167 = vpack.c.bf16 %v3148, %v3147
      %v3168 = vpack.c.bf16 %v3150, %v3149
      %v3169 = vpack.c.bf16 %v3152, %v3151
      %v3170 = vpack.c.bf16 %v3154, %v3153
      %v3171 = vld [vmem:[%s7] sm:$0xf]
      %v3172 = vld [vmem:[%s7 + $0x4] sm:$0xf]
      %v3173 = vld [vmem:[%s7 + $0x8] sm:$0xf]
      %v3174 = vld [vmem:[%s7 + $0xc] sm:$0xf]
      %v3175 = vld [vmem:[%s7 + $0x10] sm:$0xf]
      %v3176 = vld [vmem:[%s7 + $0x14] sm:$0xf]
      %v3177 = vld [vmem:[%s7 + $0x18] sm:$0xf]
      %v3178 = vld [vmem:[%s7 + $0x1c] sm:$0xf]
      %v3179 = vld [vmem:[%s7 + $0x20] sm:$0xf]
      %v3180 = vld [vmem:[%s7 + $0x24] sm:$0xf]
      %v3181 = vld [vmem:[%s7 + $0x28] sm:$0xf]
      %v3182 = vld [vmem:[%s7 + $0x2c] sm:$0xf]
      %v3183 = vld [vmem:[%s7 + $0x30] sm:$0xf]
      %v3184 = vld [vmem:[%s7 + $0x34] sm:$0xf]
      %v3185 = vld [vmem:[%s7 + $0x38] sm:$0xf]
      %v3186 = vld [vmem:[%s7 + $0x3c] sm:$0xf]
      %v3187 = vld [vmem:[%s8] sm:$0x1]
      %v3189 = vlaneseq
      %v3190 = vshrl.u32 %v3189, 7
      %v3191 = vsub.s32 0, %v3190
      %v3192 = vrot.slane %v3187, %v3191
      %v3210 = vunpack.c.l.b16 %v3171
      %v3211 = vunpack.c.l.b16 %v3172
      %v3212 = vunpack.c.l.b16 %v3173
      %v3213 = vunpack.c.l.b16 %v3174
      %v3214 = vunpack.c.l.b16 %v3175
      %v3215 = vunpack.c.l.b16 %v3176
      %v3216 = vunpack.c.l.b16 %v3177
      %v3217 = vunpack.c.l.b16 %v3178
      %v3218 = vunpack.c.l.b16 %v3179
      %v3219 = vunpack.c.l.b16 %v3180
      %v3220 = vunpack.c.l.b16 %v3181
      %v3221 = vunpack.c.l.b16 %v3182
      %v3222 = vunpack.c.l.b16 %v3183
      %v3223 = vunpack.c.l.b16 %v3184
      %v3224 = vunpack.c.l.b16 %v3185
      %v3225 = vunpack.c.l.b16 %v3186
      %v3226 = vpack.c.b16 %v3211, %v3210
      %v3227 = vpack.c.b16 %v3213, %v3212
      %v3228 = vpack.c.b16 %v3215, %v3214
      %v3229 = vpack.c.b16 %v3217, %v3216
      %v3230 = vpack.c.b16 %v3219, %v3218
      %v3231 = vpack.c.b16 %v3221, %v3220
      %v3232 = vpack.c.b16 %v3223, %v3222
      %v3233 = vpack.c.b16 %v3225, %v3224
      %3242 = vmatprep.subr.bf16.mxu0 0
      %3243 = vmatpush1.bf16.msra.mxu0 %v3233
      %3244 = vmatprep.subr.bf16.mxu0 0
      %3245 = vmatpush1.bf16.msra.mxu0 %v3232
      %3246 = vmatprep.subr.bf16.mxu0 0
      %3247 = vmatpush1.bf16.msra.mxu0 %v3231
      %3248 = vmatprep.subr.bf16.mxu0 0
      %3249 = vmatpush1.bf16.msra.mxu0 %v3230
      %3250 = vmatprep.subr.bf16.mxu0 0
      %3251 = vmatpush1.bf16.msra.mxu0 %v3229
      %3252 = vmatprep.subr.bf16.mxu0 0
      %3253 = vmatpush1.bf16.msra.mxu0 %v3228
      %3254 = vmatprep.subr.bf16.mxu0 0
      %3255 = vmatpush1.bf16.msra.mxu0 %v3227
      %3256 = vmatprep.subr.bf16.mxu0 0
      %3257 = vmatpush1.bf16.msra.mxu0 %v3226
      %3258 = vmatprep.subr.bf16.mxu0 0
      %3259 = vmatpush2.bf16.msra.mxu0 0
      %3260 = vmatprep.subr.bf16.mxu0 0
      %3261 = vmatpush2.bf16.msra.mxu0 0
      %3262 = vmatprep.subr.bf16.mxu0 0
      %3263 = vmatpush2.bf16.msra.mxu0 0
      %3264 = vmatprep.subr.bf16.mxu0 0
      %3265 = vmatpush2.bf16.msra.mxu0 0
      %3266 = vmatprep.subr.bf16.mxu0 0
      %3267 = vmatpush2.bf16.msra.mxu0 0
      %3268 = vmatprep.subr.bf16.mxu0 0
      %3269 = vmatpush2.bf16.msra.mxu0 0
      %3270 = vmatprep.subr.bf16.mxu0 0
      %3271 = vmatpush2.bf16.msra.mxu0 0
      %3272 = vmatprep.subr.bf16.mxu0 0
      %3273 = vmatpush2.bf16.msra.mxu0 0
      %3274 = vmatprep.mubr.bf16.mxu0 0
      %3275 = vmatmul.mubr.bf16.gmra.mxu0 %v3155
      %v3276 = vpop.f32.mrf.mxu0
      %v3277 = vadd.f32 %v3192, %v3276
      %v3278 = vpop.f32.mrf.mxu0
      %v3279 = vpop.f32.mrf.mxu0
      %v3280 = vadd.f32 %v3192, %v3279
      %v3281 = vpop.f32.mrf.mxu0
      %3282 = vmatprep.mubr.bf16.mxu0 0
      %3283 = vmatmul.mubr.bf16.gmra.mxu0 %v3156
      %v3284 = vpop.f32.mrf.mxu0
      %v3285 = vadd.f32 %v3192, %v3284
      %v3286 = vpop.f32.mrf.mxu0
      %v3287 = vpop.f32.mrf.mxu0
      %v3288 = vadd.f32 %v3192, %v3287
      %v3289 = vpop.f32.mrf.mxu0
      %3290 = vmatprep.mubr.bf16.mxu0 0
      %3291 = vmatmul.mubr.bf16.gmra.mxu0 %v3157
      %v3292 = vpop.f32.mrf.mxu0
      %v3293 = vadd.f32 %v3192, %v3292
      %v3294 = vpop.f32.mrf.mxu0
      %v3295 = vpop.f32.mrf.mxu0
      %v3296 = vadd.f32 %v3192, %v3295
      %v3297 = vpop.f32.mrf.mxu0
      %3298 = vmatprep.mubr.bf16.mxu0 0
      %3299 = vmatmul.mubr.bf16.gmra.mxu0 %v3158
      %v3300 = vpop.f32.mrf.mxu0
      %v3301 = vadd.f32 %v3192, %v3300
      %v3302 = vpop.f32.mrf.mxu0
      %v3303 = vpop.f32.mrf.mxu0
      %v3304 = vadd.f32 %v3192, %v3303
      %v3305 = vpop.f32.mrf.mxu0
      %3306 = vmatprep.mubr.bf16.mxu0 0
      %3307 = vmatmul.mubr.bf16.gmra.mxu0 %v3159
      %v3308 = vpop.f32.mrf.mxu0
      %v3309 = vadd.f32 %v3192, %v3308
      %v3310 = vpop.f32.mrf.mxu0
      %v3311 = vpop.f32.mrf.mxu0
      %v3312 = vadd.f32 %v3192, %v3311
      %v3313 = vpop.f32.mrf.mxu0
      %3314 = vmatprep.mubr.bf16.mxu0 0
      %3315 = vmatmul.mubr.bf16.gmra.mxu0 %v3160
      %v3316 = vpop.f32.mrf.mxu0
      %v3317 = vadd.f32 %v3192, %v3316
      %v3318 = vpop.f32.mrf.mxu0
      %v3319 = vpop.f32.mrf.mxu0
      %v3320 = vadd.f32 %v3192, %v3319
      %v3321 = vpop.f32.mrf.mxu0
      %3322 = vmatprep.mubr.bf16.mxu0 0
      %3323 = vmatmul.mubr.bf16.gmra.mxu0 %v3161
      %v3324 = vpop.f32.mrf.mxu0
      %v3325 = vadd.f32 %v3192, %v3324
      %v3326 = vpop.f32.mrf.mxu0
      %v3327 = vpop.f32.mrf.mxu0
      %v3328 = vadd.f32 %v3192, %v3327
      %v3329 = vpop.f32.mrf.mxu0
      %3330 = vmatprep.mubr.bf16.mxu0 0
      %3331 = vmatmul.mubr.bf16.gmra.mxu0 %v3162
      %v3332 = vpop.f32.mrf.mxu0
      %v3333 = vadd.f32 %v3192, %v3332
      %v3334 = vpop.f32.mrf.mxu0
      %v3335 = vpop.f32.mrf.mxu0
      %v3336 = vadd.f32 %v3192, %v3335
      %v3337 = vpop.f32.mrf.mxu0
      %3338 = vmatprep.mubr.bf16.mxu0 0
      %3339 = vmatmul.mubr.bf16.gmra.mxu0 %v3163
      %v3340 = vpop.f32.mrf.mxu0
      %v3341 = vadd.f32 %v3192, %v3340
      %v3342 = vpop.f32.mrf.mxu0
      %v3343 = vpop.f32.mrf.mxu0
      %v3344 = vadd.f32 %v3192, %v3343
      %v3345 = vpop.f32.mrf.mxu0
      %3346 = vmatprep.mubr.bf16.mxu0 0
      %3347 = vmatmul.mubr.bf16.gmra.mxu0 %v3164
      %v3348 = vpop.f32.mrf.mxu0
      %v3349 = vadd.f32 %v3192, %v3348
      %v3350 = vpop.f32.mrf.mxu0
      %v3351 = vpop.f32.mrf.mxu0
      %v3352 = vadd.f32 %v3192, %v3351
      %v3353 = vpop.f32.mrf.mxu0
      %3354 = vmatprep.mubr.bf16.mxu0 0
      %3355 = vmatmul.mubr.bf16.gmra.mxu0 %v3165
      %v3356 = vpop.f32.mrf.mxu0
      %v3357 = vadd.f32 %v3192, %v3356
      %v3358 = vpop.f32.mrf.mxu0
      %v3359 = vpop.f32.mrf.mxu0
      %v3360 = vadd.f32 %v3192, %v3359
      %v3361 = vpop.f32.mrf.mxu0
      %3362 = vmatprep.mubr.bf16.mxu0 0
      %3363 = vmatmul.mubr.bf16.gmra.mxu0 %v3166
      %v3364 = vpop.f32.mrf.mxu0
      %v3365 = vadd.f32 %v3192, %v3364
      %v3366 = vpop.f32.mrf.mxu0
      %v3367 = vpop.f32.mrf.mxu0
      %v3368 = vadd.f32 %v3192, %v3367
      %v3369 = vpop.f32.mrf.mxu0
      %3370 = vmatprep.mubr.bf16.mxu0 0
      %3371 = vmatmul.mubr.bf16.gmra.mxu0 %v3167
      %v3372 = vpop.f32.mrf.mxu0
      %v3373 = vadd.f32 %v3192, %v3372
      %v3374 = vpop.f32.mrf.mxu0
      %v3375 = vpop.f32.mrf.mxu0
      %v3376 = vadd.f32 %v3192, %v3375
      %v3377 = vpop.f32.mrf.mxu0
      %3378 = vmatprep.mubr.bf16.mxu0 0
      %3379 = vmatmul.mubr.bf16.gmra.mxu0 %v3168
      %v3380 = vpop.f32.mrf.mxu0
      %v3381 = vadd.f32 %v3192, %v3380
      %v3382 = vpop.f32.mrf.mxu0
      %v3383 = vpop.f32.mrf.mxu0
      %v3384 = vadd.f32 %v3192, %v3383
      %v3385 = vpop.f32.mrf.mxu0
      %3386 = vmatprep.mubr.bf16.mxu0 0
      %3387 = vmatmul.mubr.bf16.gmra.mxu0 %v3169
      %v3388 = vpop.f32.mrf.mxu0
      %v3389 = vadd.f32 %v3192, %v3388
      %v3390 = vpop.f32.mrf.mxu0
      %v3391 = vpop.f32.mrf.mxu0
      %v3392 = vadd.f32 %v3192, %v3391
      %v3393 = vpop.f32.mrf.mxu0
      %3394 = vmatprep.mubr.bf16.mxu0 0
      %3395 = vmatmul.mubr.bf16.gmra.mxu0 %v3170
      %v3396 = vpop.f32.mrf.mxu0
      %v3397 = vadd.f32 %v3192, %v3396
      %v3398 = vpop.f32.mrf.mxu0
      %v3399 = vpop.f32.mrf.mxu0
      %v3400 = vadd.f32 %v3192, %v3399
      %v3401 = vpop.f32.mrf.mxu0
      %3402 = vdwg.mxu0
      %v3403 = vmax.f32 %v3277, 0.0
      %v3404 = vmax.f32 %v3280, 0.0
      %v3405 = vmax.f32 %v3285, 0.0
      %v3406 = vmax.f32 %v3288, 0.0
      %v3407 = vmax.f32 %v3293, 0.0
      %v3408 = vmax.f32 %v3296, 0.0
      %v3409 = vmax.f32 %v3301, 0.0
      %v3410 = vmax.f32 %v3304, 0.0
      %v3411 = vmax.f32 %v3309, 0.0
      %v3412 = vmax.f32 %v3312, 0.0
      %v3413 = vmax.f32 %v3317, 0.0
      %v3414 = vmax.f32 %v3320, 0.0
      %v3415 = vmax.f32 %v3325, 0.0
      %v3416 = vmax.f32 %v3328, 0.0
      %v3417 = vmax.f32 %v3333, 0.0
      %v3418 = vmax.f32 %v3336, 0.0
      %v3419 = vmax.f32 %v3341, 0.0
      %v3420 = vmax.f32 %v3344, 0.0
      %v3421 = vmax.f32 %v3349, 0.0
      %v3422 = vmax.f32 %v3352, 0.0
      %v3423 = vmax.f32 %v3357, 0.0
      %v3424 = vmax.f32 %v3360, 0.0
      %v3425 = vmax.f32 %v3365, 0.0
      %v3426 = vmax.f32 %v3368, 0.0
      %v3427 = vmax.f32 %v3373, 0.0
      %v3428 = vmax.f32 %v3376, 0.0
      %v3429 = vmax.f32 %v3381, 0.0
      %v3430 = vmax.f32 %v3384, 0.0
      %v3431 = vmax.f32 %v3389, 0.0
      %v3432 = vmax.f32 %v3392, 0.0
      %v3433 = vmax.f32 %v3397, 0.0
      %v3434 = vmax.f32 %v3400, 0.0
      %v3435 = vpack.c.bf16 %v3404, %v3403
      %v3436 = vpack.c.bf16 %v3406, %v3405
      %v3437 = vpack.c.bf16 %v3408, %v3407
      %v3438 = vpack.c.bf16 %v3410, %v3409
      %v3439 = vpack.c.bf16 %v3412, %v3411
      %v3440 = vpack.c.bf16 %v3414, %v3413
      %v3441 = vpack.c.bf16 %v3416, %v3415
      %v3442 = vpack.c.bf16 %v3418, %v3417
      %v3443 = vpack.c.bf16 %v3420, %v3419
      %v3444 = vpack.c.bf16 %v3422, %v3421
      %v3445 = vpack.c.bf16 %v3424, %v3423
      %v3446 = vpack.c.bf16 %v3426, %v3425
      %v3447 = vpack.c.bf16 %v3428, %v3427
      %v3448 = vpack.c.bf16 %v3430, %v3429
      %v3449 = vpack.c.bf16 %v3432, %v3431
      %v3450 = vpack.c.bf16 %v3434, %v3433
      %v3467 = vunpack.c.l.b16 %v3435
      %v3468 = vunpack.c.h.b16 %v3435
      %v3469 = vunpack.c.l.b16 %v3436
      %v3470 = vunpack.c.h.b16 %v3436
      %v3471 = vunpack.c.l.b16 %v3437
      %v3472 = vunpack.c.h.b16 %v3437
      %v3473 = vunpack.c.l.b16 %v3438
      %v3474 = vunpack.c.h.b16 %v3438
      %v3475 = vunpack.c.l.b16 %v3439
      %v3476 = vunpack.c.h.b16 %v3439
      %v3477 = vunpack.c.l.b16 %v3440
      %v3478 = vunpack.c.h.b16 %v3440
      %v3479 = vunpack.c.l.b16 %v3441
      %v3480 = vunpack.c.h.b16 %v3441
      %v3481 = vunpack.c.l.b16 %v3442
      %v3482 = vunpack.c.h.b16 %v3442
      %v3483 = vunpack.c.l.b16 %v3443
      %v3484 = vunpack.c.h.b16 %v3443
      %v3485 = vunpack.c.l.b16 %v3444
      %v3486 = vunpack.c.h.b16 %v3444
      %v3487 = vunpack.c.l.b16 %v3445
      %v3488 = vunpack.c.h.b16 %v3445
      %v3489 = vunpack.c.l.b16 %v3446
      %v3490 = vunpack.c.h.b16 %v3446
      %v3491 = vunpack.c.l.b16 %v3447
      %v3492 = vunpack.c.h.b16 %v3447
      %v3493 = vunpack.c.l.b16 %v3448
      %v3494 = vunpack.c.h.b16 %v3448
      %v3495 = vunpack.c.l.b16 %v3449
      %v3496 = vunpack.c.h.b16 %v3449
      %v3497 = vunpack.c.l.b16 %v3450
      %v3498 = vunpack.c.h.b16 %v3450
      %v3499 = vpack.c.b16 %v3467, %v3467
      %v3500 = vpack.c.b16 %v3468, %v3468
      %v3501 = vpack.c.b16 %v3469, %v3469
      %v3502 = vpack.c.b16 %v3470, %v3470
      %v3503 = vpack.c.b16 %v3471, %v3471
      %v3504 = vpack.c.b16 %v3472, %v3472
      %v3505 = vpack.c.b16 %v3473, %v3473
      %v3506 = vpack.c.b16 %v3474, %v3474
      %v3507 = vpack.c.b16 %v3475, %v3475
      %v3508 = vpack.c.b16 %v3476, %v3476
      %v3509 = vpack.c.b16 %v3477, %v3477
      %v3510 = vpack.c.b16 %v3478, %v3478
      %v3511 = vpack.c.b16 %v3479, %v3479
      %v3512 = vpack.c.b16 %v3480, %v3480
      %v3513 = vpack.c.b16 %v3481, %v3481
      %v3514 = vpack.c.b16 %v3482, %v3482
      %v3515 = vpack.c.b16 %v3483, %v3483
      %v3516 = vpack.c.b16 %v3484, %v3484
      %v3517 = vpack.c.b16 %v3485, %v3485
      %v3518 = vpack.c.b16 %v3486, %v3486
      %v3519 = vpack.c.b16 %v3487, %v3487
      %v3520 = vpack.c.b16 %v3488, %v3488
      %v3521 = vpack.c.b16 %v3489, %v3489
      %v3522 = vpack.c.b16 %v3490, %v3490
      %v3523 = vpack.c.b16 %v3491, %v3491
      %v3524 = vpack.c.b16 %v3492, %v3492
      %v3525 = vpack.c.b16 %v3493, %v3493
      %v3526 = vpack.c.b16 %v3494, %v3494
      %v3527 = vpack.c.b16 %v3495, %v3495
      %v3528 = vpack.c.b16 %v3496, %v3496
      %v3529 = vpack.c.b16 %v3497, %v3497
      %v3530 = vpack.c.b16 %v3498, %v3498
      %3563 = vst [vmem:[%s499] sm:$0xf] %v3499
      %3564 = vst [vmem:[%s499 + $0x4] sm:$0xf] %v3500
      %3565 = vst [vmem:[%s499 + $0x8] sm:$0xf] %v3501
      %3566 = vst [vmem:[%s499 + $0xc] sm:$0xf] %v3502
      %3567 = vst [vmem:[%s499 + $0x10] sm:$0xf] %v3503
      %3568 = vst [vmem:[%s499 + $0x14] sm:$0xf] %v3504
      %3569 = vst [vmem:[%s499 + $0x18] sm:$0xf] %v3505
      %3570 = vst [vmem:[%s499 + $0x1c] sm:$0xf] %v3506
      %3571 = vst [vmem:[%s499 + $0x20] sm:$0xf] %v3507
      %3572 = vst [vmem:[%s499 + $0x24] sm:$0xf] %v3508
      %3573 = vst [vmem:[%s499 + $0x28] sm:$0xf] %v3509
      %3574 = vst [vmem:[%s499 + $0x2c] sm:$0xf] %v3510
      %3575 = vst [vmem:[%s499 + $0x30] sm:$0xf] %v3511
      %3576 = vst [vmem:[%s499 + $0x34] sm:$0xf] %v3512
      %3577 = vst [vmem:[%s499 + $0x38] sm:$0xf] %v3513
      %3578 = vst [vmem:[%s499 + $0x3c] sm:$0xf] %v3514
      %3579 = vst [vmem:[%s499 + $0x40] sm:$0xf] %v3515
      %3580 = vst [vmem:[%s499 + $0x44] sm:$0xf] %v3516
      %3581 = vst [vmem:[%s499 + $0x48] sm:$0xf] %v3517
      %3582 = vst [vmem:[%s499 + $0x4c] sm:$0xf] %v3518
      %3583 = vst [vmem:[%s499 + $0x50] sm:$0xf] %v3519
      %3584 = vst [vmem:[%s499 + $0x54] sm:$0xf] %v3520
      %3585 = vst [vmem:[%s499 + $0x58] sm:$0xf] %v3521
      %3586 = vst [vmem:[%s499 + $0x5c] sm:$0xf] %v3522
      %3587 = vst [vmem:[%s499 + $0x60] sm:$0xf] %v3523
      %3588 = vst [vmem:[%s499 + $0x64] sm:$0xf] %v3524
      %3589 = vst [vmem:[%s499 + $0x68] sm:$0xf] %v3525
      %3590 = vst [vmem:[%s499 + $0x6c] sm:$0xf] %v3526
      %3591 = vst [vmem:[%s499 + $0x70] sm:$0xf] %v3527
      %3592 = vst [vmem:[%s499 + $0x74] sm:$0xf] %v3528
      %3593 = vst [vmem:[%s499 + $0x78] sm:$0xf] %v3529
      %3594 = vst [vmem:[%s499 + $0x7c] sm:$0xf] %v3530
      %s3595 = smul.u32 16, %s25
      %p3596 = scmp.lt.s32.totalorder %s24, 1
      %s3597 = scalar_select %p3596, %s24, 1
      %p3598 = scmp.lt.s32.totalorder %s3595, 15
      %s3599 = scalar_select %p3598, %s3595, 15
      %s3600 = smul.addr %s3599, 2
      %s3601 = smul.addr %s3597, 32
      %s3602 = sadd.s32 %s3600, %s3601
      %s3603 = smul.addr %s3602, 4
      %s3604 = scalar_lea.vmem %s9, %s3603
      // Predicated region
      $region61: #{_lambda_.4} parent=55 // pred_check
        %p3605 = pneg %p278
      $region62: #{_lambda_.4} parent=55 // pred_check_branch
        %3607 = sbr.rel (%p3605) target = $region64
      $region63: #{_lambda_.4} parent=55 // pred_region
        %s3608 = smul.u32 16, %s25
      $region64: #{_lambda_.4} parent=55 // pred_fallthru
        _
    $region56: #{_lambda_.4} parent=5 // pred_fallthru
      _
    %p3609 = scmp.le.s32.totalorder 2, %s15
    // Predicated region
    $region65: #{_lambda_.4} parent=5 // pred_check
      %p3610 = pneg %p3609
    $region66: #{_lambda_.4} parent=5 // pred_check_branch
      %3612 = sbr.rel (%p3610) target = $region68
    $region67: #{_lambda_.4} parent=5 // pred_region
      %s3613 = ssub.s32 %s15, 2
      // Predicated region
      $region69: #{_lambda_.4} parent=67 // pred_check
        %p3614 = pneg %p284
      $region70: #{_lambda_.4} parent=67 // pred_check_branch
        %3616 = sbr.rel (%p3614) target = $region72
      $region71: #{_lambda_.4} parent=67 // pred_region
        %s3617 = smul.u32 16, %s27
        %p3618 = scmp.lt.s32.totalorder %s26, 1
        %s3619 = scalar_select %p3618, %s26, 1
        %p3620 = scmp.lt.s32.totalorder %s3617, 15
        %s3621 = scalar_select %p3620, %s3617, 15
        %s3622 = smul.addr %s3621, 2
        %s3623 = smul.addr %s3619, 32
        %s3624 = sadd.s32 %s3622, %s3623
        %s3625 = smul.addr %s3624, 4
        %s3626 = scalar_lea.vmem %s9, %s3625
      $region72: #{_lambda_.4} parent=67 // pred_fallthru
        _
    $region68: #{_lambda_.4} parent=5 // pred_fallthru
      _
  $region6: #{_lambda_.4} parent=0 // loop_footer
    %s19 = sadd.s32 1, %s15
  $region7: #{_lambda_.4} parent=0 // loop_footer_branch
    %14 = sbr.rel target = $region3
  $region8: #{_lambda_.4} parent=0 // loop_exit
    _

// kernel: _lambda_.5
$region0: #{_lambda_.5}
  #allocation0 [shape = 'u32[]', space=smem, size = 0x4, offset = 0x4, fixed_abs, tag = 'smem constant byte address 0x4 - core index']
  #allocation1 [shape = 'u32[144,128]{1,0:T(1,128)}', space=vmem, size = 0x12000, scoped, tag = 'internal scratch']
  #allocation2 [shape = 'bf16[18,16,32]{2,1,0:T(8,128)(2,1)}', space=vmem, size = 0x12000, scoped, tag = 'scratch operand']
  %s0 = inlined_call_operand.vmem [shape: bf16[2,16,16,128], index: 0, kind: input, shape index: {}, may-alias: {0,1,2}]
  %s1 = inlined_call_operand.vmem [shape: bf16[2,16,16,128], index: 1, kind: input, shape index: {}, may-alias: {0,1,2}]
  %s2 = inlined_call_operand.vmem [shape: bf16[2,16,16,128], index: 2, kind: input, shape index: {}, may-alias: {0,1,2}]
  %s3 = inlined_call_operand.vmem [shape: bf16[128,32], index: 3, kind: input, shape index: {}]
  %s4 = inlined_call_operand.vmem [shape: f32[1,32], index: 4, kind: input, shape index: {}]
  %s5 = inlined_call_operand.vmem [shape: bf16[3,96,32], index: 5, kind: input, shape index: {}]
  %s6 = inlined_call_operand.vmem [shape: f32[1,32], index: 6, kind: input, shape index: {}]
  %s7 = inlined_call_operand.vmem [shape: bf16[32,32], index: 7, kind: input, shape index: {}]
  %s8 = inlined_call_operand.vmem [shape: f32[1,32], index: 8, kind: input, shape index: {}]
  %s9 = inlined_call_operand.hbm [shape: bf16[2,16,16,32], index: 9, kind: output, shape index: {}]
  %s10 = sld [smem:[#allocation0]]
  $region73: #{_lambda_.5} parent=0
    _
  %s12 = ssub.s32 1, %s10
  %s13 = scalar_select 0, %s12, %s10
  $region1: #{_lambda_.5} parent=0
    #allocation3 [shape = 'u8[131072]{0}', space=vmem, size = 0x20000, scoped, tag = 'output window, operand 0']
    #allocation4 [shape = 's32[2]{0}', space=sflag, size = 0x8, scoped, tag = 'scoped memory for _lambda_.5']
    %14 = vsyncpa [#allocation4], 0
    %s15 = scalar_lea.sflag [#allocation4], 1
    %16 = vsyncpa %s15, 0
    loop: start=0, step=1, limit=4
    $region2: #{_lambda_.5} parent=1 // loop_pre_header
      _
    $region3: #{_lambda_.5} parent=1 // loop_header
      %s18 = sphi 0, %s22
      %p19 = scmp.ge.s32.totalorder %s18, 4
      %s25 = sphi 0, %s37
      %s26 = sphi 0, %s33
      %s27 = sphi 0, %s25
      %s28 = sphi 0, %s26
      %s29 = sphi 0, %s27
      %s30 = sphi 0, %s28
      %s42 = sphi 0, %s44
      %s45 = sphi 0, %s42
      %s46 = sphi 0, %s45
      %s62 = sphi 0, %s46
      %s78 = sphi 0, %s80
      %s81 = sphi 0, %s78
      %s82 = sphi 0, %s81
      %s98 = sphi 0, %s82
      %s114 = sphi 0, %s116
      %s117 = sphi 0, %s114
      %s118 = sphi 0, %s117
      %s134 = sphi 0, %s118
      %s138 = sphi 0, %s138
      %s140 = sphi 0, %s138
      %s141 = sphi 0, %s140
      %s155 = sphi 0, %s141
      %s159 = sphi 0, %s159
      %s161 = sphi 0, %s159
      %s162 = sphi 0, %s161
      %s176 = sphi 0, %s162
      %s180 = sphi 0, %s180
      %s182 = sphi 0, %s180
      %s183 = sphi 0, %s182
      %s197 = sphi 0, %s183
      %s201 = sphi 0, %s201
      %s203 = sphi 0, %s201
      %s204 = sphi 0, %s203
      %s218 = sphi 0, %s204
      %s222 = sphi 0, %s222
      %s224 = sphi 0, %s222
      %s225 = sphi 0, %s224
      %s239 = sphi 0, %s225
      %s243 = sphi 0, %s243
      %s245 = sphi 0, %s243
      %s246 = sphi 0, %s245
      %s260 = sphi 0, %s246
      %s268 = sphi 0, %s270
      %s271 = sphi 0, %s268
      %s272 = sphi 0, %s271
      %s288 = sphi 0, %s272
    $region4: #{_lambda_.5} parent=1 // loop_header_branch
      %21 = sbr.rel (%p19) target = $region8
    $region5: #{_lambda_.5} parent=1 // loop_body
      %s23 = ssub.s32 %s18, 1
      %s24 = ssub.s32 %s18, 2
      %s31 = sadd.s32 1, %s26
      %p32 = scmp.ge.s32.totalorder %s31, 1
      %s33 = scalar_select %p32, 0, %s31
      %s34 = sadd.s32 1, %s25
      %s35 = scalar_select %p32, %s34, %s25
      %p36 = scmp.ge.s32.totalorder %s35, 2
      %s37 = scalar_select %p36, 0, %s35
      %s38 = ssub.s32 %s25, %s37
      %s39 = ssub.s32 %s26, %s33
      %s40 = sor.u32 %s38, %s39
      %p41 = scmp.eq.s32.totalorder %s40, 0
      %s43 = sadd.s32 %s42, 1
      %s44 = scalar_select %p41, %s42, %s43
      %p47 = pneg %p41
      %p48 = scmp.eq.s32.totalorder %s18, 1
      %p49 = por %p47, %p48
      %p50 = scmp.ne.s32.totalorder %s42, %s45
      %p51 = scmp.eq.s32.totalorder %s18, 0
      %p52 = por %p50, %p51
      %p53 = scmp.ne.s32.totalorder %s42, %s45
      %p54 = scmp.eq.s32.totalorder %s23, 1
      %p55 = por %p53, %p54
      %p56 = scmp.ne.s32.totalorder %s45, %s46
      %p57 = scmp.eq.s32.totalorder %s23, 0
      %p58 = por %p56, %p57
      %p59 = scmp.ne.s32.totalorder %s45, %s46
      %p60 = scmp.eq.s32.totalorder %s24, 1
      %p61 = por %p59, %p60
      %p63 = scmp.ne.s32.totalorder %s46, %s62
      %p64 = scmp.eq.s32.totalorder %s24, 0
      %p65 = por %p63, %p64
      %s66 = smul.u32 %s26, 16
      %s67 = ssub.s32 %s66, 1
      %p68 = scmp.gt.s32.totalorder %s67, 0
      %s69 = scalar_select %p68, %s67, 0
      %s70 = smul.u32 %s33, 16
      %s71 = ssub.s32 %s70, 1
      %p72 = scmp.gt.s32.totalorder %s71, 0
      %s73 = scalar_select %p72, %s71, 0
      %s74 = ssub.s32 %s25, %s37
      %s75 = ssub.s32 %s69, %s73
      %s76 = sor.u32 %s74, %s75
      %p77 = scmp.eq.s32.totalorder %s76, 0
      %s79 = sadd.s32 %s78, 1
      %s80 = scalar_select %p77, %s78, %s79
      %p83 = pneg %p77
      %p84 = scmp.eq.s32.totalorder %s18, 1
      %p85 = por %p83, %p84
      %p86 = scmp.ne.s32.totalorder %s78, %s81
      %p87 = scmp.eq.s32.totalorder %s18, 0
      %p88 = por %p86, %p87
      %p89 = scmp.ne.s32.totalorder %s78, %s81
      %p90 = scmp.eq.s32.totalorder %s23, 1
      %p91 = por %p89, %p90
      %p92 = scmp.ne.s32.totalorder %s81, %s82
      %p93 = scmp.eq.s32.totalorder %s23, 0
      %p94 = por %p92, %p93
      %p95 = scmp.ne.s32.totalorder %s81, %s82
      %p96 = scmp.eq.s32.totalorder %s24, 1
      %p97 = por %p95, %p96
      %p99 = scmp.ne.s32.totalorder %s82, %s98
      %p100 = scmp.eq.s32.totalorder %s24, 0
      %p101 = por %p99, %p100
      %s102 = smul.u32 %s26, 16
      %s103 = sadd.s32 %s102, 16
      %p104 = scmp.lt.s32.totalorder %s103, 15
      %s105 = scalar_select %p104, %s103, 15
      %s106 = smul.u32 %s33, 16
      %s107 = sadd.s32 %s106, 16
      %p108 = scmp.lt.s32.totalorder %s107, 15
      %s109 = scalar_select %p108, %s107, 15
      %s110 = ssub.s32 %s25, %s37
      %s111 = ssub.s32 %s105, %s109
      %s112 = sor.u32 %s110, %s111
      %p113 = scmp.eq.s32.totalorder %s112, 0
      %s115 = sadd.s32 %s114, 1
      %s116 = scalar_select %p113, %s114, %s115
      %p119 = pneg %p113
      %p120 = scmp.eq.s32.totalorder %s18, 1
      %p121 = por %p119, %p120
      %p122 = scmp.ne.s32.totalorder %s114, %s117
      %p123 = scmp.eq.s32.totalorder %s18, 0
      %p124 = por %p122, %p123
      %p125 = scmp.ne.s32.totalorder %s114, %s117
      %p126 = scmp.eq.s32.totalorder %s23, 1
      %p127 = por %p125, %p126
      %p128 = scmp.ne.s32.totalorder %s117, %s118
      %p129 = scmp.eq.s32.totalorder %s23, 0
      %p130 = por %p128, %p129
      %p131 = scmp.ne.s32.totalorder %s117, %s118
      %p132 = scmp.eq.s32.totalorder %s24, 1
      %p133 = por %p131, %p132
      %p135 = scmp.ne.s32.totalorder %s118, %s134
      %p136 = scmp.eq.s32.totalorder %s24, 0
      %p137 = por %p135, %p136
      %s139 = sadd.s32 %s138, 1
      %p142 = scmp.eq.s32.totalorder %s18, 1
      %p143 = scmp.ne.s32.totalorder %s138, %s140
      %p144 = scmp.eq.s32.totalorder %s18, 0
      %p145 = por %p143, %p144
      %p146 = scmp.ne.s32.totalorder %s138, %s140
      %p147 = scmp.eq.s32.totalorder %s23, 1
      %p148 = por %p146, %p147
      %p149 = scmp.ne.s32.totalorder %s140, %s141
      %p150 = scmp.eq.s32.totalorder %s23, 0
      %p151 = por %p149, %p150
      %p152 = scmp.ne.s32.totalorder %s140, %s141
      %p153 = scmp.eq.s32.totalorder %s24, 1
      %p154 = por %p152, %p153
      %p156 = scmp.ne.s32.totalorder %s141, %s155
      %p157 = scmp.eq.s32.totalorder %s24, 0
      %p158 = por %p156, %p157
      %s160 = sadd.s32 %s159, 1
      %p163 = scmp.eq.s32.totalorder %s18, 1
      %p164 = scmp.ne.s32.totalorder %s159, %s161
      %p165 = scmp.eq.s32.totalorder %s18, 0
      %p166 = por %p164, %p165
      %p167 = scmp.ne.s32.totalorder %s159, %s161
      %p168 = scmp.eq.s32.totalorder %s23, 1
      %p169 = por %p167, %p168
      %p170 = scmp.ne.s32.totalorder %s161, %s162
      %p171 = scmp.eq.s32.totalorder %s23, 0
      %p172 = por %p170, %p171
      %p173 = scmp.ne.s32.totalorder %s161, %s162
      %p174 = scmp.eq.s32.totalorder %s24, 1
      %p175 = por %p173, %p174
      %p177 = scmp.ne.s32.totalorder %s162, %s176
      %p178 = scmp.eq.s32.totalorder %s24, 0
      %p179 = por %p177, %p178
      %s181 = sadd.s32 %s180, 1
      %p184 = scmp.eq.s32.totalorder %s18, 1
      %p185 = scmp.ne.s32.totalorder %s180, %s182
      %p186 = scmp.eq.s32.totalorder %s18, 0
      %p187 = por %p185, %p186
      %p188 = scmp.ne.s32.totalorder %s180, %s182
      %p189 = scmp.eq.s32.totalorder %s23, 1
      %p190 = por %p188, %p189
      %p191 = scmp.ne.s32.totalorder %s182, %s183
      %p192 = scmp.eq.s32.totalorder %s23, 0
      %p193 = por %p191, %p192
      %p194 = scmp.ne.s32.totalorder %s182, %s183
      %p195 = scmp.eq.s32.totalorder %s24, 1
      %p196 = por %p194, %p195
      %p198 = scmp.ne.s32.totalorder %s183, %s197
      %p199 = scmp.eq.s32.totalorder %s24, 0
      %p200 = por %p198, %p199
      %s202 = sadd.s32 %s201, 1
      %p205 = scmp.eq.s32.totalorder %s18, 1
      %p206 = scmp.ne.s32.totalorder %s201, %s203
      %p207 = scmp.eq.s32.totalorder %s18, 0
      %p208 = por %p206, %p207
      %p209 = scmp.ne.s32.totalorder %s201, %s203
      %p210 = scmp.eq.s32.totalorder %s23, 1
      %p211 = por %p209, %p210
      %p212 = scmp.ne.s32.totalorder %s203, %s204
      %p213 = scmp.eq.s32.totalorder %s23, 0
      %p214 = por %p212, %p213
      %p215 = scmp.ne.s32.totalorder %s203, %s204
      %p216 = scmp.eq.s32.totalorder %s24, 1
      %p217 = por %p215, %p216
      %p219 = scmp.ne.s32.totalorder %s204, %s218
      %p220 = scmp.eq.s32.totalorder %s24, 0
      %p221 = por %p219, %p220
      %s223 = sadd.s32 %s222, 1
      %p226 = scmp.eq.s32.totalorder %s18, 1
      %p227 = scmp.ne.s32.totalorder %s222, %s224
      %p228 = scmp.eq.s32.totalorder %s18, 0
      %p229 = por %p227, %p228
      %p230 = scmp.ne.s32.totalorder %s222, %s224
      %p231 = scmp.eq.s32.totalorder %s23, 1
      %p232 = por %p230, %p231
      %p233 = scmp.ne.s32.totalorder %s224, %s225
      %p234 = scmp.eq.s32.totalorder %s23, 0
      %p235 = por %p233, %p234
      %p236 = scmp.ne.s32.totalorder %s224, %s225
      %p237 = scmp.eq.s32.totalorder %s24, 1
      %p238 = por %p236, %p237
      %p240 = scmp.ne.s32.totalorder %s225, %s239
      %p241 = scmp.eq.s32.totalorder %s24, 0
      %p242 = por %p240, %p241
      %s244 = sadd.s32 %s243, 1
      %p247 = scmp.eq.s32.totalorder %s18, 1
      %p248 = scmp.ne.s32.totalorder %s243, %s245
      %p249 = scmp.eq.s32.totalorder %s18, 0
      %p250 = por %p248, %p249
      %p251 = scmp.ne.s32.totalorder %s243, %s245
      %p252 = scmp.eq.s32.totalorder %s23, 1
      %p253 = por %p251, %p252
      %p254 = scmp.ne.s32.totalorder %s245, %s246
      %p255 = scmp.eq.s32.totalorder %s23, 0
      %p256 = por %p254, %p255
      %p257 = scmp.ne.s32.totalorder %s245, %s246
      %p258 = scmp.eq.s32.totalorder %s24, 1
      %p259 = por %p257, %p258
      %p261 = scmp.ne.s32.totalorder %s246, %s260
      %p262 = scmp.eq.s32.totalorder %s24, 0
      %p263 = por %p261, %p262
      %s264 = ssub.s32 %s25, %s37
      %s265 = ssub.s32 %s26, %s33
      %s266 = sor.u32 %s264, %s265
      %p267 = scmp.eq.s32.totalorder %s266, 0
      %s269 = sadd.s32 %s268, 1
      %s270 = scalar_select %p267, %s268, %s269
      %p273 = pneg %p267
      %p274 = scmp.eq.s32.totalorder %s18, 1
      %p275 = por %p273, %p274
      %p276 = scmp.ne.s32.totalorder %s268, %s271
      %p277 = scmp.eq.s32.totalorder %s18, 0
      %p278 = por %p276, %p277
      %p279 = scmp.ne.s32.totalorder %s268, %s271
      %p280 = scmp.eq.s32.totalorder %s23, 1
      %p281 = por %p279, %p280
      %p282 = scmp.ne.s32.totalorder %s271, %s272
      %p283 = scmp.eq.s32.totalorder %s23, 0
      %p284 = por %p282, %p283
      %p285 = scmp.ne.s32.totalorder %s271, %s272
      %p286 = scmp.eq.s32.totalorder %s24, 1
      %p287 = por %p285, %p286
      %p289 = scmp.ne.s32.totalorder %s272, %s288
      %p290 = scmp.eq.s32.totalorder %s24, 0
      %p291 = por %p289, %p290
      %p292 = scmp.le.s32.totalorder 1, %s18
      %p293 = scmp.lt.s32.totalorder %s18, 3
      %p294 = pnand %p292, %p293
      %p295 = pneg %p294
      // Predicated region
      $region9: #{_lambda_.5} parent=5 // pred_check
        _
      $region10: #{_lambda_.5} parent=5 // pred_check_branch
        %297 = sbr.rel (%p294) target = $region12
      $region11: #{_lambda_.5} parent=5 // pred_region
        %s298 = ssub.s32 %s18, 1
        // Predicated region
        $region13: #{_lambda_.5} parent=11 // pred_check
          %p299 = pneg %p151
        $region14: #{_lambda_.5} parent=11 // pred_check_branch
          %301 = sbr.rel (%p299) target = $region16
        $region15: #{_lambda_.5} parent=11 // pred_region
          _
        $region16: #{_lambda_.5} parent=11 // pred_fallthru
          _
        // Predicated region
        $region17: #{_lambda_.5} parent=11 // pred_check
          %p302 = pneg %p172
        $region18: #{_lambda_.5} parent=11 // pred_check_branch
          %304 = sbr.rel (%p302) target = $region20
        $region19: #{_lambda_.5} parent=11 // pred_region
          _
        $region20: #{_lambda_.5} parent=11 // pred_fallthru
          _
        // Predicated region
        $region21: #{_lambda_.5} parent=11 // pred_check
          %p305 = pneg %p193
        $region22: #{_lambda_.5} parent=11 // pred_check_branch
          %307 = sbr.rel (%p305) target = $region24
        $region23: #{_lambda_.5} parent=11 // pred_region
          _
        $region24: #{_lambda_.5} parent=11 // pred_fallthru
          _
        // Predicated region
        $region25: #{_lambda_.5} parent=11 // pred_check
          %p308 = pneg %p214
        $region26: #{_lambda_.5} parent=11 // pred_check_branch
          %310 = sbr.rel (%p308) target = $region28
        $region27: #{_lambda_.5} parent=11 // pred_region
          _
        $region28: #{_lambda_.5} parent=11 // pred_fallthru
          _
        // Predicated region
        $region29: #{_lambda_.5} parent=11 // pred_check
          %p311 = pneg %p235
        $region30: #{_lambda_.5} parent=11 // pred_check_branch
          %313 = sbr.rel (%p311) target = $region32
        $region31: #{_lambda_.5} parent=11 // pred_region
          _
        $region32: #{_lambda_.5} parent=11 // pred_fallthru
          _
        // Predicated region
        $region33: #{_lambda_.5} parent=11 // pred_check
          %p314 = pneg %p256
        $region34: #{_lambda_.5} parent=11 // pred_check_branch
          %316 = sbr.rel (%p314) target = $region36
        $region35: #{_lambda_.5} parent=11 // pred_region
          _
        $region36: #{_lambda_.5} parent=11 // pred_fallthru
          _
      $region12: #{_lambda_.5} parent=5 // pred_fallthru
        _
      %p317 = scmp.lt.s32.totalorder %s18, 2
      // Predicated region
      $region37: #{_lambda_.5} parent=5 // pred_check
        %p318 = pneg %p317
      $region38: #{_lambda_.5} parent=5 // pred_check_branch
        %320 = sbr.rel (%p318) target = $region40
      $region39: #{_lambda_.5} parent=5 // pred_region
        // Predicated region
        $region41: #{_lambda_.5} parent=39 // pred_check
          %p321 = pneg %p52
        $region42: #{_lambda_.5} parent=39 // pred_check_branch
          %323 = sbr.rel (%p321) target = $region44
        $region43: #{_lambda_.5} parent=39 // pred_region
          %s324 = smul.u32 16, %s26
          %p325 = scmp.lt.s32.totalorder %s25, 1
          %s326 = scalar_select %p325, %s25, 1
          %p327 = scmp.lt.s32.totalorder %s324, 15
          %s328 = scalar_select %p327, %s324, 15
          %s329 = smul.addr %s328, 2
          %s330 = smul.addr %s326, 32
          %s331 = sadd.s32 %s329, %s330
          %s332 = smul.addr %s331, 4
          %s333 = scalar_lea.vmem %s0, %s332
          %s334 = smul.u32 16, %s26
        $region44: #{_lambda_.5} parent=39 // pred_fallthru
          _
        // Predicated region
        $region45: #{_lambda_.5} parent=39 // pred_check
          %p335 = pneg %p88
        $region46: #{_lambda_.5} parent=39 // pred_check_branch
          %337 = sbr.rel (%p335) target = $region48
        $region47: #{_lambda_.5} parent=39 // pred_region
          %s338 = smul.u32 %s26, 16
          %s339 = ssub.s32 %s338, 1
          %p340 = scmp.gt.s32.totalorder %s339, 0
          %s341 = scalar_select %p340, %s339, 0
          %p342 = scmp.lt.s32.totalorder %s25, 1
          %s343 = scalar_select %p342, %s25, 1
          %p344 = scmp.lt.s32.totalorder %s341, 15
          %s345 = scalar_select %p344, %s341, 15
          %s346 = smul.addr %s345, 2
          %s347 = smul.addr %s343, 32
          %s348 = sadd.s32 %s346, %s347
          %s349 = smul.addr %s348, 4
          %s350 = scalar_lea.vmem %s1, %s349
          %s351 = smul.u32 %s26, 16
          %s352 = ssub.s32 %s351, 1
          %p353 = scmp.gt.s32.totalorder %s352, 0
          %s354 = scalar_select %p353, %s352, 0
        $region48: #{_lambda_.5} parent=39 // pred_fallthru
          _
        // Predicated region
        $region49: #{_lambda_.5} parent=39 // pred_check
          %p355 = pneg %p124
        $region50: #{_lambda_.5} parent=39 // pred_check_branch
          %357 = sbr.rel (%p355) target = $region52
        $region51: #{_lambda_.5} parent=39 // pred_region
          %s358 = smul.u32 %s26, 16
          %s359 = sadd.s32 %s358, 16
          %p360 = scmp.lt.s32.totalorder %s359, 15
          %s361 = scalar_select %p360, %s359, 15
          %p362 = scmp.lt.s32.totalorder %s25, 1
          %s363 = scalar_select %p362, %s25, 1
          %p364 = scmp.lt.s32.totalorder %s361, 15
          %s365 = scalar_select %p364, %s361, 15
          %s366 = smul.addr %s365, 2
          %s367 = smul.addr %s363, 32
          %s368 = sadd.s32 %s366, %s367
          %s369 = smul.addr %s368, 4
          %s370 = scalar_lea.vmem %s2, %s369
          %s371 = smul.u32 %s26, 16
          %s372 = sadd.s32 %s371, 16
          %p373 = scmp.lt.s32.totalorder %s372, 15
          %s374 = scalar_select %p373, %s372, 15
        $region52: #{_lambda_.5} parent=39 // pred_fallthru
          _
      $region40: #{_lambda_.5} parent=5 // pred_fallthru
        _
      %p375 = scmp.le.s32.totalorder 1, %s18
      %p376 = scmp.lt.s32.totalorder %s18, 3
      %p377 = pnand %p375, %p376
      %p378 = pneg %p377
      // Predicated region
      $region53: #{_lambda_.5} parent=5 // pred_check
        _
      $region54: #{_lambda_.5} parent=5 // pred_check_branch
        %380 = sbr.rel (%p377) target = $region56
      $region55: #{_lambda_.5} parent=5 // pred_region
        %s381 = ssub.s32 %s18, 1
        %s382 = smul.u32 16, %s28
        %p383 = scmp.lt.s32.totalorder %s27, 1
        %s384 = scalar_select %p383, %s27, 1
        %p385 = scmp.lt.s32.totalorder %s382, 15
        %s386 = scalar_select %p385, %s382, 15
        %s387 = smul.addr %s386, 2
        %s388 = smul.addr %s384, 32
        %s389 = sadd.s32 %s387, %s388
        %s390 = smul.addr %s389, 4
        %s391 = scalar_lea.vmem %s0, %s390
        %p392 = pneg %p58
        %p393 = pneg %p55
        %s394 = smul.u32 %s28, 16
        %s395 = ssub.s32 %s394, 1
        %p396 = scmp.gt.s32.totalorder %s395, 0
        %s397 = scalar_select %p396, %s395, 0
        %p398 = scmp.lt.s32.totalorder %s27, 1
        %s399 = scalar_select %p398, %s27, 1
        %p400 = scmp.lt.s32.totalorder %s397, 15
        %s401 = scalar_select %p400, %s397, 15
        %s402 = smul.addr %s401, 2
        %s403 = smul.addr %s399, 32
        %s404 = sadd.s32 %s402, %s403
        %s405 = smul.addr %s404, 4
        %s406 = scalar_lea.vmem %s1, %s405
        %p407 = pneg %p94
        %p408 = pneg %p91
        %s409 = smul.u32 %s28, 16
        %s410 = sadd.s32 %s409, 16
        %p411 = scmp.lt.s32.totalorder %s410, 15
        %s412 = scalar_select %p411, %s410, 15
        %p413 = scmp.lt.s32.totalorder %s27, 1
        %s414 = scalar_select %p413, %s27, 1
        %p415 = scmp.lt.s32.totalorder %s412, 15
        %s416 = scalar_select %p415, %s412, 15
        %s417 = smul.addr %s416, 2
        %s418 = smul.addr %s414, 32
        %s419 = sadd.s32 %s417, %s418
        %s420 = smul.addr %s419, 4
        %s421 = scalar_lea.vmem %s2, %s420
        %p422 = pneg %p130
        %p423 = pneg %p127
        %p424 = pneg %p151
        %p425 = pneg %p148
        %p426 = pneg %p172
        %p427 = pneg %p169
        %p428 = pneg %p193
        %p429 = pneg %p190
        %p430 = pneg %p214
        %p431 = pneg %p211
        %p432 = pneg %p235
        %p433 = pneg %p232
        %p434 = pneg %p256
        %p435 = pneg %p253
        %p436 = pneg %p284
        %p437 = pneg %p281
        %s438 = sand.u32 %s271, 1
        %s439 = scalar_lea.sflag [#allocation4], %s438
        %s440 = sand.u32 %s271, 1
        %s441 = smul.addr %s440, 128
        %s442 = scalar_lea.vmem [#allocation3], %s441
        %s443 = smul.u32 16, %s28
        %p444 = scmp.lt.s32.totalorder %s27, 1
        %s445 = scalar_select %p444, %s27, 1
        %p446 = scmp.lt.s32.totalorder %s443, 15
        %s447 = scalar_select %p446, %s443, 15
        %s448 = smul.addr %s447, 2
        %s449 = smul.addr %s445, 32
        %s450 = sadd.s32 %s448, %s449
        %s451 = smul.addr %s450, 4
        %s452 = scalar_lea.vmem %s0, %s451
        %s453 = smul.u32 16, %s28
        %s454 = smul.u32 %s28, 16
        %s455 = ssub.s32 %s454, 1
        %p456 = scmp.gt.s32.totalorder %s455, 0
        %s457 = scalar_select %p456, %s455, 0
        %p458 = scmp.lt.s32.totalorder %s27, 1
        %s459 = scalar_select %p458, %s27, 1
        %p460 = scmp.lt.s32.totalorder %s457, 15
        %s461 = scalar_select %p460, %s457, 15
        %s462 = smul.addr %s461, 2
        %s463 = smul.addr %s459, 32
        %s464 = sadd.s32 %s462, %s463
        %s465 = smul.addr %s464, 4
        %s466 = scalar_lea.vmem %s1, %s465
        %s467 = smul.u32 %s28, 16
        %s468 = ssub.s32 %s467, 1
        %p469 = scmp.gt.s32.totalorder %s468, 0
        %s470 = scalar_select %p469, %s468, 0
        %s471 = smul.u32 %s28, 16
        %s472 = sadd.s32 %s471, 16
        %p473 = scmp.lt.s32.totalorder %s472, 15
        %s474 = scalar_select %p473, %s472, 15
        %p475 = scmp.lt.s32.totalorder %s27, 1
        %s476 = scalar_select %p475, %s27, 1
        %p477 = scmp.lt.s32.totalorder %s474, 15
        %s478 = scalar_select %p477, %s474, 15
        %s479 = smul.addr %s478, 2
        %s480 = smul.addr %s476, 32
        %s481 = sadd.s32 %s479, %s480
        %s482 = smul.addr %s481, 4
        %s483 = scalar_lea.vmem %s2, %s482
        %s484 = smul.u32 %s28, 16
        %s485 = sadd.s32 %s484, 16
        %p486 = scmp.lt.s32.totalorder %s485, 15
        %s487 = scalar_select %p486, %s485, 15
        %s488 = smul.u32 16, %s28
        %v490 = vld [vmem:[%s466] sm:$0xf]
        %v491 = vld [vmem:[%s466 + $0x4] sm:$0xf]
        %v492 = vld [vmem:[%s452] sm:$0xf]
        %v493 = vld [vmem:[%s452 + $0x4] sm:$0xf]
        %v494 = vld [vmem:[%s452 + $0x8] sm:$0xf]
        %v495 = vld [vmem:[%s452 + $0xc] sm:$0xf]
        %v496 = vld [vmem:[%s452 + $0x10] sm:$0xf]
        %v497 = vld [vmem:[%s452 + $0x14] sm:$0xf]
        %v498 = vld [vmem:[%s452 + $0x18] sm:$0xf]
        %v499 = vld [vmem:[%s452 + $0x1c] sm:$0xf]
        %v500 = vld [vmem:[%s452 + $0x20] sm:$0xf]
        %v501 = vld [vmem:[%s452 + $0x24] sm:$0xf]
        %v502 = vld [vmem:[%s452 + $0x28] sm:$0xf]
        %v503 = vld [vmem:[%s452 + $0x2c] sm:$0xf]
        %v504 = vld [vmem:[%s452 + $0x30] sm:$0xf]
        %v505 = vld [vmem:[%s452 + $0x34] sm:$0xf]
        %v506 = vld [vmem:[%s452 + $0x38] sm:$0xf]
        %v507 = vld [vmem:[%s452 + $0x3c] sm:$0xf]
        %v508 = vld [vmem:[%s452 + $0x40] sm:$0xf]
        %v509 = vld [vmem:[%s452 + $0x44] sm:$0xf]
        %v510 = vld [vmem:[%s452 + $0x48] sm:$0xf]
        %v511 = vld [vmem:[%s452 + $0x4c] sm:$0xf]
        %v512 = vld [vmem:[%s452 + $0x50] sm:$0xf]
        %v513 = vld [vmem:[%s452 + $0x54] sm:$0xf]
        %v514 = vld [vmem:[%s452 + $0x58] sm:$0xf]
        %v515 = vld [vmem:[%s452 + $0x5c] sm:$0xf]
        %v516 = vld [vmem:[%s452 + $0x60] sm:$0xf]
        %v517 = vld [vmem:[%s452 + $0x64] sm:$0xf]
        %v518 = vld [vmem:[%s452 + $0x68] sm:$0xf]
        %v519 = vld [vmem:[%s452 + $0x6c] sm:$0xf]
        %v520 = vld [vmem:[%s452 + $0x70] sm:$0xf]
        %v521 = vld [vmem:[%s452 + $0x74] sm:$0xf]
        %v522 = vld [vmem:[%s452 + $0x78] sm:$0xf]
        %v523 = vld [vmem:[%s452 + $0x7c] sm:$0xf]
        %v524 = vld [vmem:[%s483] sm:$0xf]
        %v525 = vld [vmem:[%s483 + $0x4] sm:$0xf]
        %v526 = vld [vmem:[%s3] sm:$0xf]
        %v527 = vld [vmem:[%s3 + $0x4] sm:$0xf]
        %v528 = vld [vmem:[%s3 + $0x8] sm:$0xf]
        %v529 = vld [vmem:[%s3 + $0xc] sm:$0xf]
        %v530 = vld [vmem:[%s3 + $0x10] sm:$0xf]
        %v531 = vld [vmem:[%s3 + $0x14] sm:$0xf]
        %v532 = vld [vmem:[%s3 + $0x18] sm:$0xf]
        %v533 = vld [vmem:[%s3 + $0x1c] sm:$0xf]
        %v534 = vld [vmem:[%s3 + $0x20] sm:$0xf]
        %v535 = vld [vmem:[%s3 + $0x24] sm:$0xf]
        %v536 = vld [vmem:[%s3 + $0x28] sm:$0xf]
        %v537 = vld [vmem:[%s3 + $0x2c] sm:$0xf]
        %v538 = vld [vmem:[%s3 + $0x30] sm:$0xf]
        %v539 = vld [vmem:[%s3 + $0x34] sm:$0xf]
        %v540 = vld [vmem:[%s3 + $0x38] sm:$0xf]
        %v541 = vld [vmem:[%s3 + $0x3c] sm:$0xf]
        %v542 = vld [vmem:[%s4] sm:$0x1]
        %v544 = vlaneseq
        %v545 = vshrl.u32 %v544, 7
        %v546 = vsub.s32 0, %v545
        %v547 = vrot.slane %v542, %v546
        %v585 = vunpack.c.l.b16 %v490
        %v586 = vunpack.c.l.b16 %v491
        %v587 = vunpack.c.l.b16 %v492
        %v588 = vunpack.c.l.b16 %v493
        %v589 = vunpack.c.l.b16 %v494
        %v590 = vunpack.c.l.b16 %v495
        %v591 = vunpack.c.l.b16 %v496
        %v592 = vunpack.c.l.b16 %v497
        %v593 = vunpack.c.l.b16 %v498
        %v594 = vunpack.c.l.b16 %v499
        %v595 = vunpack.c.l.b16 %v500
        %v596 = vunpack.c.l.b16 %v501
        %v597 = vunpack.c.l.b16 %v502
        %v598 = vunpack.c.l.b16 %v503
        %v599 = vunpack.c.l.b16 %v504
        %v600 = vunpack.c.l.b16 %v505
        %v601 = vunpack.c.l.b16 %v506
        %v602 = vunpack.c.l.b16 %v507
        %v603 = vunpack.c.l.b16 %v508
        %v604 = vunpack.c.l.b16 %v509
        %v605 = vunpack.c.l.b16 %v510
        %v606 = vunpack.c.l.b16 %v511
        %v607 = vunpack.c.l.b16 %v512
        %v608 = vunpack.c.l.b16 %v513
        %v609 = vunpack.c.l.b16 %v514
        %v610 = vunpack.c.l.b16 %v515
        %v611 = vunpack.c.l.b16 %v516
        %v612 = vunpack.c.l.b16 %v517
        %v613 = vunpack.c.l.b16 %v518
        %v614 = vunpack.c.l.b16 %v519
        %v615 = vunpack.c.l.b16 %v520
        %v616 = vunpack.c.l.b16 %v521
        %v617 = vunpack.c.l.b16 %v522
        %v618 = vunpack.c.l.b16 %v523
        %v619 = vunpack.c.l.b16 %v524
        %v620 = vunpack.c.l.b16 %v525
        %v621 = vpack.c.b16 %v586, %v585
        %v622 = vpack.c.b16 %v588, %v587
        %v623 = vpack.c.b16 %v590, %v589
        %v624 = vpack.c.b16 %v592, %v591
        %v625 = vpack.c.b16 %v594, %v593
        %v626 = vpack.c.b16 %v596, %v595
        %v627 = vpack.c.b16 %v598, %v597
        %v628 = vpack.c.b16 %v600, %v599
        %v629 = vpack.c.b16 %v602, %v601
        %v630 = vpack.c.b16 %v604, %v603
        %v631 = vpack.c.b16 %v606, %v605
        %v632 = vpack.c.b16 %v608, %v607
        %v633 = vpack.c.b16 %v610, %v609
        %v634 = vpack.c.b16 %v612, %v611
        %v635 = vpack.c.b16 %v614, %v613
        %v636 = vpack.c.b16 %v616, %v615
        %v637 = vpack.c.b16 %v618, %v617
        %v638 = vpack.c.b16 %v620, %v619
        %v673 = vunpack.c.l.b16 %v526
        %v674 = vunpack.c.l.b16 %v527
        %v675 = vunpack.c.l.b16 %v528
        %v676 = vunpack.c.l.b16 %v529
        %v677 = vunpack.c.l.b16 %v530
        %v678 = vunpack.c.l.b16 %v531
        %v679 = vunpack.c.l.b16 %v532
        %v680 = vunpack.c.l.b16 %v533
        %v681 = vunpack.c.l.b16 %v534
        %v682 = vunpack.c.l.b16 %v535
        %v683 = vunpack.c.l.b16 %v536
        %v684 = vunpack.c.l.b16 %v537
        %v685 = vunpack.c.l.b16 %v538
        %v686 = vunpack.c.l.b16 %v539
        %v687 = vunpack.c.l.b16 %v540
        %v688 = vunpack.c.l.b16 %v541
        %v689 = vpack.c.b16 %v674, %v673
        %v690 = vpack.c.b16 %v676, %v675
        %v691 = vpack.c.b16 %v678, %v677
        %v692 = vpack.c.b16 %v680, %v679
        %v693 = vpack.c.b16 %v682, %v681
        %v694 = vpack.c.b16 %v684, %v683
        %v695 = vpack.c.b16 %v686, %v685
        %v696 = vpack.c.b16 %v688, %v687
        %705 = vmatprep.subr.bf16.mxu0 0
        %706 = vmatpush1.bf16.msra.mxu0 %v696
        %707 = vmatprep.subr.bf16.mxu0 0
        %708 = vmatpush1.bf16.msra.mxu0 %v695
        %709 = vmatprep.subr.bf16.mxu0 0
        %710 = vmatpush1.bf16.msra.mxu0 %v694
        %711 = vmatprep.subr.bf16.mxu0 0
        %712 = vmatpush1.bf16.msra.mxu0 %v693
        %713 = vmatprep.subr.bf16.mxu0 0
        %714 = vmatpush1.bf16.msra.mxu0 %v692
        %715 = vmatprep.subr.bf16.mxu0 0
        %716 = vmatpush1.bf16.msra.mxu0 %v691
        %717 = vmatprep.subr.bf16.mxu0 0
        %718 = vmatpush1.bf16.msra.mxu0 %v690
        %719 = vmatprep.subr.bf16.mxu0 0
        %720 = vmatpush1.bf16.msra.mxu0 %v689
        %721 = vmatprep.subr.bf16.mxu0 0
        %722 = vmatpush2.bf16.msra.mxu0 0
        %723 = vmatprep.subr.bf16.mxu0 0
        %724 = vmatpush2.bf16.msra.mxu0 0
        %725 = vmatprep.subr.bf16.mxu0 0
        %726 = vmatpush2.bf16.msra.mxu0 0
        %727 = vmatprep.subr.bf16.mxu0 0
        %728 = vmatpush2.bf16.msra.mxu0 0
        %729 = vmatprep.subr.bf16.mxu0 0
        %730 = vmatpush2.bf16.msra.mxu0 0
        %731 = vmatprep.subr.bf16.mxu0 0
        %732 = vmatpush2.bf16.msra.mxu0 0
        %733 = vmatprep.subr.bf16.mxu0 0
        %734 = vmatpush2.bf16.msra.mxu0 0
        %735 = vmatprep.subr.bf16.mxu0 0
        %736 = vmatpush2.bf16.msra.mxu0 0
        %737 = vmatprep.mubr.bf16.mxu0 0
        %738 = vmatmul.mubr.bf16.gmra.mxu0 %v621
        %v739 = vpop.f32.mrf.mxu0
        %v740 = vadd.f32 %v547, %v739
        %v741 = vpop.f32.mrf.mxu0
        %v742 = vpop.f32.mrf.mxu0
        %v743 = vadd.f32 %v547, %v742
        %v744 = vpop.f32.mrf.mxu0
        %745 = vmatprep.mubr.bf16.mxu0 0
        %746 = vmatmul.mubr.bf16.gmra.mxu0 %v622
        %v747 = vpop.f32.mrf.mxu0
        %v748 = vadd.f32 %v547, %v747
        %v749 = vpop.f32.mrf.mxu0
        %v750 = vpop.f32.mrf.mxu0
        %v751 = vadd.f32 %v547, %v750
        %v752 = vpop.f32.mrf.mxu0
        %753 = vmatprep.mubr.bf16.mxu0 0
        %754 = vmatmul.mubr.bf16.gmra.mxu0 %v623
        %v755 = vpop.f32.mrf.mxu0
        %v756 = vadd.f32 %v547, %v755
        %v757 = vpop.f32.mrf.mxu0
        %v758 = vpop.f32.mrf.mxu0
        %v759 = vadd.f32 %v547, %v758
        %v760 = vpop.f32.mrf.mxu0
        %761 = vmatprep.mubr.bf16.mxu0 0
        %762 = vmatmul.mubr.bf16.gmra.mxu0 %v624
        %v763 = vpop.f32.mrf.mxu0
        %v764 = vadd.f32 %v547, %v763
        %v765 = vpop.f32.mrf.mxu0
        %v766 = vpop.f32.mrf.mxu0
        %v767 = vadd.f32 %v547, %v766
        %v768 = vpop.f32.mrf.mxu0
        %769 = vmatprep.mubr.bf16.mxu0 0
        %770 = vmatmul.mubr.bf16.gmra.mxu0 %v625
        %v771 = vpop.f32.mrf.mxu0
        %v772 = vadd.f32 %v547, %v771
        %v773 = vpop.f32.mrf.mxu0
        %v774 = vpop.f32.mrf.mxu0
        %v775 = vadd.f32 %v547, %v774
        %v776 = vpop.f32.mrf.mxu0
        %777 = vmatprep.mubr.bf16.mxu0 0
        %778 = vmatmul.mubr.bf16.gmra.mxu0 %v626
        %v779 = vpop.f32.mrf.mxu0
        %v780 = vadd.f32 %v547, %v779
        %v781 = vpop.f32.mrf.mxu0
        %v782 = vpop.f32.mrf.mxu0
        %v783 = vadd.f32 %v547, %v782
        %v784 = vpop.f32.mrf.mxu0
        %785 = vmatprep.mubr.bf16.mxu0 0
        %786 = vmatmul.mubr.bf16.gmra.mxu0 %v627
        %v787 = vpop.f32.mrf.mxu0
        %v788 = vadd.f32 %v547, %v787
        %v789 = vpop.f32.mrf.mxu0
        %v790 = vpop.f32.mrf.mxu0
        %v791 = vadd.f32 %v547, %v790
        %v792 = vpop.f32.mrf.mxu0
        %793 = vmatprep.mubr.bf16.mxu0 0
        %794 = vmatmul.mubr.bf16.gmra.mxu0 %v628
        %v795 = vpop.f32.mrf.mxu0
        %v796 = vadd.f32 %v547, %v795
        %v797 = vpop.f32.mrf.mxu0
        %v798 = vpop.f32.mrf.mxu0
        %v799 = vadd.f32 %v547, %v798
        %v800 = vpop.f32.mrf.mxu0
        %801 = vmatprep.mubr.bf16.mxu0 0
        %802 = vmatmul.mubr.bf16.gmra.mxu0 %v629
        %v803 = vpop.f32.mrf.mxu0
        %v804 = vadd.f32 %v547, %v803
        %v805 = vpop.f32.mrf.mxu0
        %v806 = vpop.f32.mrf.mxu0
        %v807 = vadd.f32 %v547, %v806
        %v808 = vpop.f32.mrf.mxu0
        %809 = vmatprep.mubr.bf16.mxu0 0
        %810 = vmatmul.mubr.bf16.gmra.mxu0 %v630
        %v811 = vpop.f32.mrf.mxu0
        %v812 = vadd.f32 %v547, %v811
        %v813 = vpop.f32.mrf.mxu0
        %v814 = vpop.f32.mrf.mxu0
        %v815 = vadd.f32 %v547, %v814
        %v816 = vpop.f32.mrf.mxu0
        %817 = vmatprep.mubr.bf16.mxu0 0
        %818 = vmatmul.mubr.bf16.gmra.mxu0 %v631
        %v819 = vpop.f32.mrf.mxu0
        %v820 = vadd.f32 %v547, %v819
        %v821 = vpop.f32.mrf.mxu0
        %v822 = vpop.f32.mrf.mxu0
        %v823 = vadd.f32 %v547, %v822
        %v824 = vpop.f32.mrf.mxu0
        %825 = vmatprep.mubr.bf16.mxu0 0
        %826 = vmatmul.mubr.bf16.gmra.mxu0 %v632
        %v827 = vpop.f32.mrf.mxu0
        %v828 = vadd.f32 %v547, %v827
        %v829 = vpop.f32.mrf.mxu0
        %v830 = vpop.f32.mrf.mxu0
        %v831 = vadd.f32 %v547, %v830
        %v832 = vpop.f32.mrf.mxu0
        %833 = vmatprep.mubr.bf16.mxu0 0
        %834 = vmatmul.mubr.bf16.gmra.mxu0 %v633
        %v835 = vpop.f32.mrf.mxu0
        %v836 = vadd.f32 %v547, %v835
        %v837 = vpop.f32.mrf.mxu0
        %v838 = vpop.f32.mrf.mxu0
        %v839 = vadd.f32 %v547, %v838
        %v840 = vpop.f32.mrf.mxu0
        %841 = vmatprep.mubr.bf16.mxu0 0
        %842 = vmatmul.mubr.bf16.gmra.mxu0 %v634
        %v843 = vpop.f32.mrf.mxu0
        %v844 = vadd.f32 %v547, %v843
        %v845 = vpop.f32.mrf.mxu0
        %v846 = vpop.f32.mrf.mxu0
        %v847 = vadd.f32 %v547, %v846
        %v848 = vpop.f32.mrf.mxu0
        %849 = vmatprep.mubr.bf16.mxu0 0
        %850 = vmatmul.mubr.bf16.gmra.mxu0 %v635
        %v851 = vpop.f32.mrf.mxu0
        %v852 = vadd.f32 %v547, %v851
        %v853 = vpop.f32.mrf.mxu0
        %v854 = vpop.f32.mrf.mxu0
        %v855 = vadd.f32 %v547, %v854
        %v856 = vpop.f32.mrf.mxu0
        %857 = vmatprep.mubr.bf16.mxu0 0
        %858 = vmatmul.mubr.bf16.gmra.mxu0 %v636
        %v859 = vpop.f32.mrf.mxu0
        %v860 = vadd.f32 %v547, %v859
        %v861 = vpop.f32.mrf.mxu0
        %v862 = vpop.f32.mrf.mxu0
        %v863 = vadd.f32 %v547, %v862
        %v864 = vpop.f32.mrf.mxu0
        %865 = vmatprep.mubr.bf16.mxu0 0
        %866 = vmatmul.mubr.bf16.gmra.mxu0 %v637
        %v867 = vpop.f32.mrf.mxu0
        %v868 = vadd.f32 %v547, %v867
        %v869 = vpop.f32.mrf.mxu0
        %v870 = vpop.f32.mrf.mxu0
        %v871 = vadd.f32 %v547, %v870
        %v872 = vpop.f32.mrf.mxu0
        %873 = vmatprep.mubr.bf16.mxu0 0
        %874 = vmatmul.mubr.bf16.gmra.mxu0 %v638
        %v875 = vpop.f32.mrf.mxu0
        %v876 = vadd.f32 %v547, %v875
        %v877 = vpop.f32.mrf.mxu0
        %v878 = vpop.f32.mrf.mxu0
        %v879 = vadd.f32 %v547, %v878
        %v880 = vpop.f32.mrf.mxu0
        %881 = vdwg.mxu0
        %v882 = vmax.f32 %v740, 0.0
        %v883 = vmax.f32 %v743, 0.0
        %v884 = vmax.f32 %v748, 0.0
        %v885 = vmax.f32 %v751, 0.0
        %v886 = vmax.f32 %v756, 0.0
        %v887 = vmax.f32 %v759, 0.0
        %v888 = vmax.f32 %v764, 0.0
        %v889 = vmax.f32 %v767, 0.0
        %v890 = vmax.f32 %v772, 0.0
        %v891 = vmax.f32 %v775, 0.0
        %v892 = vmax.f32 %v780, 0.0
        %v893 = vmax.f32 %v783, 0.0
        %v894 = vmax.f32 %v788, 0.0
        %v895 = vmax.f32 %v791, 0.0
        %v896 = vmax.f32 %v796, 0.0
        %v897 = vmax.f32 %v799, 0.0
        %v898 = vmax.f32 %v804, 0.0
        %v899 = vmax.f32 %v807, 0.0
        %v900 = vmax.f32 %v812, 0.0
        %v901 = vmax.f32 %v815, 0.0
        %v902 = vmax.f32 %v820, 0.0
        %v903 = vmax.f32 %v823, 0.0
        %v904 = vmax.f32 %v828, 0.0
        %v905 = vmax.f32 %v831, 0.0
        %v906 = vmax.f32 %v836, 0.0
        %v907 = vmax.f32 %v839, 0.0
        %v908 = vmax.f32 %v844, 0.0
        %v909 = vmax.f32 %v847, 0.0
        %v910 = vmax.f32 %v852, 0.0
        %v911 = vmax.f32 %v855, 0.0
        %v912 = vmax.f32 %v860, 0.0
        %v913 = vmax.f32 %v863, 0.0
        %v914 = vmax.f32 %v868, 0.0
        %v915 = vmax.f32 %v871, 0.0
        %v916 = vmax.f32 %v876, 0.0
        %v917 = vmax.f32 %v879, 0.0
        %v918 = vpack.c.bf16 %v883, %v882
        %v919 = vpack.c.bf16 %v885, %v884
        %v920 = vpack.c.bf16 %v887, %v886
        %v921 = vpack.c.bf16 %v889, %v888
        %v922 = vpack.c.bf16 %v891, %v890
        %v923 = vpack.c.bf16 %v893, %v892
        %v924 = vpack.c.bf16 %v895, %v894
        %v925 = vpack.c.bf16 %v897, %v896
        %v926 = vpack.c.bf16 %v899, %v898
        %v927 = vpack.c.bf16 %v901, %v900
        %v928 = vpack.c.bf16 %v903, %v902
        %v929 = vpack.c.bf16 %v905, %v904
        %v930 = vpack.c.bf16 %v907, %v906
        %v931 = vpack.c.bf16 %v909, %v908
        %v932 = vpack.c.bf16 %v911, %v910
        %v933 = vpack.c.bf16 %v913, %v912
        %v934 = vpack.c.bf16 %v915, %v914
        %v935 = vpack.c.bf16 %v917, %v916
        %v954 = vunpack.c.l.b16 %v918
        %v955 = vunpack.c.h.b16 %v918
        %v956 = vunpack.c.l.b16 %v919
        %v957 = vunpack.c.h.b16 %v919
        %v958 = vunpack.c.l.b16 %v920
        %v959 = vunpack.c.h.b16 %v920
        %v960 = vunpack.c.l.b16 %v921
        %v961 = vunpack.c.h.b16 %v921
        %v962 = vunpack.c.l.b16 %v922
        %v963 = vunpack.c.h.b16 %v922
        %v964 = vunpack.c.l.b16 %v923
        %v965 = vunpack.c.h.b16 %v923
        %v966 = vunpack.c.l.b16 %v924
        %v967 = vunpack.c.h.b16 %v924
        %v968 = vunpack.c.l.b16 %v925
        %v969 = vunpack.c.h.b16 %v925
        %v970 = vunpack.c.l.b16 %v926
        %v971 = vunpack.c.h.b16 %v926
        %v972 = vunpack.c.l.b16 %v927
        %v973 = vunpack.c.h.b16 %v927
        %v974 = vunpack.c.l.b16 %v928
        %v975 = vunpack.c.h.b16 %v928
        %v976 = vunpack.c.l.b16 %v929
        %v977 = vunpack.c.h.b16 %v929
        %v978 = vunpack.c.l.b16 %v930
        %v979 = vunpack.c.h.b16 %v930
        %v980 = vunpack.c.l.b16 %v931
        %v981 = vunpack.c.h.b16 %v931
        %v982 = vunpack.c.l.b16 %v932
        %v983 = vunpack.c.h.b16 %v932
        %v984 = vunpack.c.l.b16 %v933
        %v985 = vunpack.c.h.b16 %v933
        %v986 = vunpack.c.l.b16 %v934
        %v987 = vunpack.c.h.b16 %v934
        %v988 = vunpack.c.l.b16 %v935
        %v989 = vunpack.c.h.b16 %v935
        %v990 = vpack.c.b16 %v954, %v954
        %v991 = vpack.c.b16 %v955, %v955
        %v992 = vpack.c.b16 %v956, %v956
        %v993 = vpack.c.b16 %v957, %v957
        %v994 = vpack.c.b16 %v958, %v958
        %v995 = vpack.c.b16 %v959, %v959
        %v996 = vpack.c.b16 %v960, %v960
        %v997 = vpack.c.b16 %v961, %v961
        %v998 = vpack.c.b16 %v962, %v962
        %v999 = vpack.c.b16 %v963, %v963
        %v1000 = vpack.c.b16 %v964, %v964
        %v1001 = vpack.c.b16 %v965, %v965
        %v1002 = vpack.c.b16 %v966, %v966
        %v1003 = vpack.c.b16 %v967, %v967
        %v1004 = vpack.c.b16 %v968, %v968
        %v1005 = vpack.c.b16 %v969, %v969
        %v1006 = vpack.c.b16 %v970, %v970
        %v1007 = vpack.c.b16 %v971, %v971
        %v1008 = vpack.c.b16 %v972, %v972
        %v1009 = vpack.c.b16 %v973, %v973
        %v1010 = vpack.c.b16 %v974, %v974
        %v1011 = vpack.c.b16 %v975, %v975
        %v1012 = vpack.c.b16 %v976, %v976
        %v1013 = vpack.c.b16 %v977, %v977
        %v1014 = vpack.c.b16 %v978, %v978
        %v1015 = vpack.c.b16 %v979, %v979
        %v1016 = vpack.c.b16 %v980, %v980
        %v1017 = vpack.c.b16 %v981, %v981
        %v1018 = vpack.c.b16 %v982, %v982
        %v1019 = vpack.c.b16 %v983, %v983
        %v1020 = vpack.c.b16 %v984, %v984
        %v1021 = vpack.c.b16 %v985, %v985
        %v1022 = vpack.c.b16 %v986, %v986
        %v1023 = vpack.c.b16 %v987, %v987
        %v1024 = vpack.c.b16 %v988, %v988
        %v1025 = vpack.c.b16 %v989, %v989
        %vm1062 = vcmask 257024
        %1063 = vst.msk [vmem:[#allocation2] sm:$0xf] %vm1062, %v990
        %1064 = vst.msk [vmem:[#allocation2 + $0x4] sm:$0xf] %vm1062, %v991
        %1065 = vst.msk [vmem:[#allocation2 + $0x8] sm:$0xf] %vm1062, %v992
        %1066 = vst.msk [vmem:[#allocation2 + $0xc] sm:$0xf] %vm1062, %v993
        %1067 = vst.msk [vmem:[#allocation2 + $0x10] sm:$0xf] %vm1062, %v994
        %1068 = vst.msk [vmem:[#allocation2 + $0x14] sm:$0xf] %vm1062, %v995
        %1069 = vst.msk [vmem:[#allocation2 + $0x18] sm:$0xf] %vm1062, %v996
        %1070 = vst.msk [vmem:[#allocation2 + $0x1c] sm:$0xf] %vm1062, %v997
        %1071 = vst.msk [vmem:[#allocation2 + $0x20] sm:$0xf] %vm1062, %v998
        %1072 = vst.msk [vmem:[#allocation2 + $0x24] sm:$0xf] %vm1062, %v999
        %1073 = vst.msk [vmem:[#allocation2 + $0x28] sm:$0xf] %vm1062, %v1000
        %1074 = vst.msk [vmem:[#allocation2 + $0x2c] sm:$0xf] %vm1062, %v1001
        %1075 = vst.msk [vmem:[#allocation2 + $0x30] sm:$0xf] %vm1062, %v1002
        %1076 = vst.msk [vmem:[#allocation2 + $0x34] sm:$0xf] %vm1062, %v1003
        %1077 = vst.msk [vmem:[#allocation2 + $0x38] sm:$0xf] %vm1062, %v1004
        %1078 = vst.msk [vmem:[#allocation2 + $0x3c] sm:$0xf] %vm1062, %v1005
        %1079 = vst.msk [vmem:[#allocation2 + $0x40] sm:$0xf] %vm1062, %v1006
        %1080 = vst.msk [vmem:[#allocation2 + $0x44] sm:$0xf] %vm1062, %v1007
        %1081 = vst.msk [vmem:[#allocation2 + $0x48] sm:$0xf] %vm1062, %v1008
        %1082 = vst.msk [vmem:[#allocation2 + $0x4c] sm:$0xf] %vm1062, %v1009
        %1083 = vst.msk [vmem:[#allocation2 + $0x50] sm:$0xf] %vm1062, %v1010
        %1084 = vst.msk [vmem:[#allocation2 + $0x54] sm:$0xf] %vm1062, %v1011
        %1085 = vst.msk [vmem:[#allocation2 + $0x58] sm:$0xf] %vm1062, %v1012
        %1086 = vst.msk [vmem:[#allocation2 + $0x5c] sm:$0xf] %vm1062, %v1013
        %1087 = vst.msk [vmem:[#allocation2 + $0x60] sm:$0xf] %vm1062, %v1014
        %1088 = vst.msk [vmem:[#allocation2 + $0x64] sm:$0xf] %vm1062, %v1015
        %1089 = vst.msk [vmem:[#allocation2 + $0x68] sm:$0xf] %vm1062, %v1016
        %1090 = vst.msk [vmem:[#allocation2 + $0x6c] sm:$0xf] %vm1062, %v1017
        %1091 = vst.msk [vmem:[#allocation2 + $0x70] sm:$0xf] %vm1062, %v1018
        %1092 = vst.msk [vmem:[#allocation2 + $0x74] sm:$0xf] %vm1062, %v1019
        %1093 = vst.msk [vmem:[#allocation2 + $0x78] sm:$0xf] %vm1062, %v1020
        %1094 = vst.msk [vmem:[#allocation2 + $0x7c] sm:$0xf] %vm1062, %v1021
        %1095 = vst.msk [vmem:[#allocation2 + $0x80] sm:$0xf] %vm1062, %v1022
        %1096 = vst.msk [vmem:[#allocation2 + $0x84] sm:$0xf] %vm1062, %v1023
        %1097 = vst.msk [vmem:[#allocation2 + $0x88] sm:$0xf] %vm1062, %v1024
        %1098 = vst.msk [vmem:[#allocation2 + $0x8c] sm:$0xf] %vm1062, %v1025
        %p1099 = scmp.eq.s32.totalorder %s28, 0
        // Predicated region
        $region57: #{_lambda_.5} parent=55 // pred_check
          %p1100 = pneg %p1099
        $region58: #{_lambda_.5} parent=55 // pred_check_branch
          %1102 = sbr.rel (%p1100) target = $region60
        $region59: #{_lambda_.5} parent=55 // pred_region
          %1103 = vst.msk [vmem:[#allocation2] sm:$0xf] %vm1062, 0
          %1104 = vst.msk [vmem:[#allocation2 + $0x4] sm:$0xf] %vm1062, 0
          %s1105 = scalar_lea.vmem [#allocation2], 136
          %1106 = vst.msk [vmem:[%s1105] sm:$0xf] %vm1062, 0
          %1107 = vst.msk [vmem:[%s1105 + $0x4] sm:$0xf] %vm1062, 0
        $region60: #{_lambda_.5} parent=55 // pred_fallthru
          _
        %v1108 = vld [vmem:[#allocation2] sm:$0xf]
        %v1109 = vld [vmem:[#allocation2 + $0x4] sm:$0xf]
        %v1110 = vld [vmem:[#allocation2 + $0x8] sm:$0xf]
        %v1111 = vld [vmem:[#allocation2 + $0xc] sm:$0xf]
        %v1112 = vld [vmem:[#allocation2 + $0x10] sm:$0xf]
        %v1113 = vld [vmem:[#allocation2 + $0x14] sm:$0xf]
        %v1114 = vld [vmem:[#allocation2 + $0x18] sm:$0xf]
        %v1115 = vld [vmem:[#allocation2 + $0x1c] sm:$0xf]
        %v1116 = vld [vmem:[#allocation2 + $0x20] sm:$0xf]
        %v1117 = vld [vmem:[#allocation2 + $0x24] sm:$0xf]
        %v1118 = vld [vmem:[#allocation2 + $0x28] sm:$0xf]
        %v1119 = vld [vmem:[#allocation2 + $0x2c] sm:$0xf]
        %v1120 = vld [vmem:[#allocation2 + $0x30] sm:$0xf]
        %v1121 = vld [vmem:[#allocation2 + $0x34] sm:$0xf]
        %v1122 = vld [vmem:[#allocation2 + $0x38] sm:$0xf]
        %v1123 = vld [vmem:[#allocation2 + $0x3c] sm:$0xf]
        %v1124 = vld [vmem:[#allocation2 + $0x40] sm:$0xf]
        %v1125 = vld [vmem:[#allocation2 + $0x44] sm:$0xf]
        %v1126 = vld [vmem:[#allocation2 + $0x48] sm:$0xf]
        %v1127 = vld [vmem:[#allocation2 + $0x4c] sm:$0xf]
        %v1128 = vld [vmem:[#allocation2 + $0x50] sm:$0xf]
        %v1129 = vld [vmem:[#allocation2 + $0x54] sm:$0xf]
        %v1130 = vld [vmem:[#allocation2 + $0x58] sm:$0xf]
        %v1131 = vld [vmem:[#allocation2 + $0x5c] sm:$0xf]
        %v1132 = vld [vmem:[#allocation2 + $0x60] sm:$0xf]
        %v1133 = vld [vmem:[#allocation2 + $0x64] sm:$0xf]
        %v1134 = vld [vmem:[#allocation2 + $0x68] sm:$0xf]
        %v1135 = vld [vmem:[#allocation2 + $0x6c] sm:$0xf]
        %v1136 = vld [vmem:[#allocation2 + $0x70] sm:$0xf]
        %v1137 = vld [vmem:[#allocation2 + $0x74] sm:$0xf]
        %v1138 = vld [vmem:[#allocation2 + $0x78] sm:$0xf]
        %v1139 = vld [vmem:[#allocation2 + $0x7c] sm:$0xf]
        %v1140 = vld [vmem:[#allocation2 + $0x80] sm:$0xf]
        %v1141 = vld [vmem:[#allocation2 + $0x84] sm:$0xf]
        %v1142 = vld [vmem:[#allocation2 + $0x88] sm:$0xf]
        %v1143 = vld [vmem:[#allocation2 + $0x8c] sm:$0xf]
        %v1180 = vunpack.c.l.b16 %v1108
        %v1181 = vunpack.c.l.b16 %v1109
        %v1182 = vunpack.c.l.b16 %v1110
        %v1183 = vunpack.c.l.b16 %v1111
        %v1184 = vunpack.c.l.b16 %v1112
        %v1185 = vunpack.c.l.b16 %v1113
        %v1186 = vunpack.c.l.b16 %v1114
        %v1187 = vunpack.c.l.b16 %v1115
        %v1188 = vunpack.c.l.b16 %v1116
        %v1189 = vunpack.c.l.b16 %v1117
        %v1190 = vunpack.c.l.b16 %v1118
        %v1191 = vunpack.c.l.b16 %v1119
        %v1192 = vunpack.c.l.b16 %v1120
        %v1193 = vunpack.c.l.b16 %v1121
        %v1194 = vunpack.c.l.b16 %v1122
        %v1195 = vunpack.c.l.b16 %v1123
        %v1196 = vunpack.c.l.b16 %v1124
        %v1197 = vunpack.c.l.b16 %v1125
        %v1198 = vunpack.c.l.b16 %v1126
        %v1199 = vunpack.c.l.b16 %v1127
        %v1200 = vunpack.c.l.b16 %v1128
        %v1201 = vunpack.c.l.b16 %v1129
        %v1202 = vunpack.c.l.b16 %v1130
        %v1203 = vunpack.c.l.b16 %v1131
        %v1204 = vunpack.c.l.b16 %v1132
        %v1205 = vunpack.c.l.b16 %v1133
        %v1206 = vunpack.c.l.b16 %v1134
        %v1207 = vunpack.c.l.b16 %v1135
        %v1208 = vunpack.c.l.b16 %v1136
        %v1209 = vunpack.c.l.b16 %v1137
        %v1210 = vunpack.c.l.b16 %v1138
        %v1211 = vunpack.c.l.b16 %v1139
        %v1212 = vunpack.c.l.b16 %v1140
        %v1213 = vunpack.c.l.b16 %v1141
        %v1214 = vunpack.c.l.b16 %v1142
        %v1215 = vunpack.c.l.b16 %v1143
        %v1216 = vpack.c.b16 %v1181, %v1180
        %v1217 = vpack.c.b16 %v1183, %v1182
        %v1218 = vpack.c.b16 %v1185, %v1184
        %v1219 = vpack.c.b16 %v1187, %v1186
        %v1220 = vpack.c.b16 %v1189, %v1188
        %v1221 = vpack.c.b16 %v1191, %v1190
        %v1222 = vpack.c.b16 %v1193, %v1192
        %v1223 = vpack.c.b16 %v1195, %v1194
        %v1224 = vpack.c.b16 %v1197, %v1196
        %v1225 = vpack.c.b16 %v1199, %v1198
        %v1226 = vpack.c.b16 %v1201, %v1200
        %v1227 = vpack.c.b16 %v1203, %v1202
        %v1228 = vpack.c.b16 %v1205, %v1204
        %v1229 = vpack.c.b16 %v1207, %v1206
        %v1230 = vpack.c.b16 %v1209, %v1208
        %v1231 = vpack.c.b16 %v1211, %v1210
        %v1232 = vpack.c.b16 %v1213, %v1212
        %v1233 = vpack.c.b16 %v1215, %v1214
        %v1235 = vshrl.u32 %v1216, 16
        %v1237 = vrot.slane %v1235, 7
        %v1238 = vshll.u32 %v1216, 16
        %v1240 = vor.u32 %v1237, %v1238
        %v1242 = vshrl.u32 %v1217, 16
        %v1244 = vrot.slane %v1242, 7
        %v1245 = vshll.u32 %v1217, 16
        %v1247 = vor.u32 %v1244, %v1245
        %v1249 = vshrl.u32 %v1218, 16
        %v1251 = vrot.slane %v1249, 7
        %v1252 = vshll.u32 %v1218, 16
        %v1254 = vor.u32 %v1251, %v1252
        %v1256 = vshrl.u32 %v1219, 16
        %v1258 = vrot.slane %v1256, 7
        %v1259 = vshll.u32 %v1219, 16
        %v1261 = vor.u32 %v1258, %v1259
        %v1263 = vshrl.u32 %v1220, 16
        %v1265 = vrot.slane %v1263, 7
        %v1266 = vshll.u32 %v1220, 16
        %v1268 = vor.u32 %v1265, %v1266
        %v1270 = vshrl.u32 %v1221, 16
        %v1272 = vrot.slane %v1270, 7
        %v1273 = vshll.u32 %v1221, 16
        %v1275 = vor.u32 %v1272, %v1273
        %v1277 = vshrl.u32 %v1222, 16
        %v1279 = vrot.slane %v1277, 7
        %v1280 = vshll.u32 %v1222, 16
        %v1282 = vor.u32 %v1279, %v1280
        %v1284 = vshrl.u32 %v1223, 16
        %v1286 = vrot.slane %v1284, 7
        %v1287 = vshll.u32 %v1223, 16
        %v1289 = vor.u32 %v1286, %v1287
        %v1291 = vshrl.u32 %v1224, 16
        %v1293 = vrot.slane %v1291, 7
        %v1294 = vshll.u32 %v1224, 16
        %v1296 = vor.u32 %v1293, %v1294
        %v1298 = vshrl.u32 %v1225, 16
        %v1300 = vrot.slane %v1298, 7
        %v1301 = vshll.u32 %v1225, 16
        %v1303 = vor.u32 %v1300, %v1301
        %v1305 = vshrl.u32 %v1226, 16
        %v1307 = vrot.slane %v1305, 7
        %v1308 = vshll.u32 %v1226, 16
        %v1310 = vor.u32 %v1307, %v1308
        %v1312 = vshrl.u32 %v1227, 16
        %v1314 = vrot.slane %v1312, 7
        %v1315 = vshll.u32 %v1227, 16
        %v1317 = vor.u32 %v1314, %v1315
        %v1319 = vshrl.u32 %v1228, 16
        %v1321 = vrot.slane %v1319, 7
        %v1322 = vshll.u32 %v1228, 16
        %v1324 = vor.u32 %v1321, %v1322
        %v1326 = vshrl.u32 %v1229, 16
        %v1328 = vrot.slane %v1326, 7
        %v1329 = vshll.u32 %v1229, 16
        %v1331 = vor.u32 %v1328, %v1329
        %v1333 = vshrl.u32 %v1230, 16
        %v1335 = vrot.slane %v1333, 7
        %v1336 = vshll.u32 %v1230, 16
        %v1338 = vor.u32 %v1335, %v1336
        %v1340 = vshrl.u32 %v1231, 16
        %v1342 = vrot.slane %v1340, 7
        %v1343 = vshll.u32 %v1231, 16
        %v1345 = vor.u32 %v1342, %v1343
        %v1347 = vshrl.u32 %v1232, 16
        %v1349 = vrot.slane %v1347, 7
        %v1350 = vshll.u32 %v1232, 16
        %v1352 = vor.u32 %v1349, %v1350
        %v1354 = vshrl.u32 %v1233, 16
        %v1356 = vrot.slane %v1354, 7
        %v1357 = vshll.u32 %v1233, 16
        %v1359 = vor.u32 %v1356, %v1357
        %vm1378 = vcmask 1040384
        %vm1379 = vsmask.f32 256
        %vm1380 = vmand %vm1378, %vm1379
        %v1381 = vsel %vm1380, 0, %v1240
        %v1382 = vsel %vm1380, 0, %v1247
        %v1383 = vsel %vm1380, 0, %v1254
        %v1384 = vsel %vm1380, 0, %v1261
        %v1385 = vsel %vm1380, 0, %v1268
        %v1386 = vsel %vm1380, 0, %v1275
        %v1387 = vsel %vm1380, 0, %v1282
        %v1388 = vsel %vm1380, 0, %v1289
        %v1389 = vsel %vm1380, 0, %v1296
        %v1390 = vsel %vm1380, 0, %v1303
        %v1391 = vsel %vm1380, 0, %v1310
        %v1392 = vsel %vm1380, 0, %v1317
        %v1393 = vsel %vm1380, 0, %v1324
        %v1394 = vsel %vm1380, 0, %v1331
        %v1395 = vsel %vm1380, 0, %v1338
        %v1396 = vsel %vm1380, 0, %v1345
        %v1397 = vsel %vm1380, 0, %v1352
        %v1398 = vsel %vm1380, 0, %v1359
        %v1399 = vrot.slane %v1238, 1
        %v1400 = vor.u32 %v1235, %v1399
        %v1401 = vrot.slane %v1245, 1
        %v1402 = vor.u32 %v1242, %v1401
        %v1403 = vrot.slane %v1252, 1
        %v1404 = vor.u32 %v1249, %v1403
        %v1405 = vrot.slane %v1259, 1
        %v1406 = vor.u32 %v1256, %v1405
        %v1407 = vrot.slane %v1266, 1
        %v1408 = vor.u32 %v1263, %v1407
        %v1409 = vrot.slane %v1273, 1
        %v1410 = vor.u32 %v1270, %v1409
        %v1411 = vrot.slane %v1280, 1
        %v1412 = vor.u32 %v1277, %v1411
        %v1413 = vrot.slane %v1287, 1
        %v1414 = vor.u32 %v1284, %v1413
        %v1415 = vrot.slane %v1294, 1
        %v1416 = vor.u32 %v1291, %v1415
        %v1417 = vrot.slane %v1301, 1
        %v1418 = vor.u32 %v1298, %v1417
        %v1419 = vrot.slane %v1308, 1
        %v1420 = vor.u32 %v1305, %v1419
        %v1421 = vrot.slane %v1315, 1
        %v1422 = vor.u32 %v1312, %v1421
        %v1423 = vrot.slane %v1322, 1
        %v1424 = vor.u32 %v1319, %v1423
        %v1425 = vrot.slane %v1329, 1
        %v1426 = vor.u32 %v1326, %v1425
        %v1427 = vrot.slane %v1336, 1
        %v1428 = vor.u32 %v1333, %v1427
        %v1429 = vrot.slane %v1343, 1
        %v1430 = vor.u32 %v1340, %v1429
        %v1431 = vrot.slane %v1350, 1
        %v1432 = vor.u32 %v1347, %v1431
        %v1433 = vrot.slane %v1357, 1
        %v1434 = vor.u32 %v1354, %v1433
        %vm1453 = vcmask 1047552
        %vm1454 = vsmask.f32 7424
        %vm1455 = vmand %vm1453, %vm1454
        %v1456 = vsel %vm1455, %v1400, 0
        %v1457 = vsel %vm1455, %v1402, 0
        %v1458 = vsel %vm1455, %v1404, 0
        %v1459 = vsel %vm1455, %v1406, 0
        %v1460 = vsel %vm1455, %v1408, 0
        %v1461 = vsel %vm1455, %v1410, 0
        %v1462 = vsel %vm1455, %v1412, 0
        %v1463 = vsel %vm1455, %v1414, 0
        %v1464 = vsel %vm1455, %v1416, 0
        %v1465 = vsel %vm1455, %v1418, 0
        %v1466 = vsel %vm1455, %v1420, 0
        %v1467 = vsel %vm1455, %v1422, 0
        %v1468 = vsel %vm1455, %v1424, 0
        %v1469 = vsel %vm1455, %v1426, 0
        %v1470 = vsel %vm1455, %v1428, 0
        %v1471 = vsel %vm1455, %v1430, 0
        %v1472 = vsel %vm1455, %v1432, 0
        %v1473 = vsel %vm1455, %v1434, 0
        %1474 = vrot.lane.b32.xlu0 %v1216, 32
        %v1475 = vpop.permute.xlu0 %1474
        %1476 = vrot.lane.b32.xlu0 %v1217, 32
        %v1477 = vpop.permute.xlu0 %1476
        %1478 = vrot.lane.b32.xlu0 %v1218, 32
        %v1479 = vpop.permute.xlu0 %1478
        %1480 = vrot.lane.b32.xlu0 %v1219, 32
        %v1481 = vpop.permute.xlu0 %1480
        %1482 = vrot.lane.b32.xlu0 %v1220, 32
        %v1483 = vpop.permute.xlu0 %1482
        %1484 = vrot.lane.b32.xlu0 %v1221, 32
        %v1485 = vpop.permute.xlu0 %1484
        %1486 = vrot.lane.b32.xlu0 %v1222, 32
        %v1487 = vpop.permute.xlu0 %1486
        %1488 = vrot.lane.b32.xlu0 %v1223, 32
        %v1489 = vpop.permute.xlu0 %1488
        %1490 = vrot.lane.b32.xlu0 %v1224, 32
        %v1491 = vpop.permute.xlu0 %1490
        %1492 = vrot.lane.b32.xlu0 %v1225, 32
        %v1493 = vpop.permute.xlu0 %1492
        %1494 = vrot.lane.b32.xlu0 %v1226, 32
        %v1495 = vpop.permute.xlu0 %1494
        %1496 = vrot.lane.b32.xlu0 %v1227, 32
        %v1497 = vpop.permute.xlu0 %1496
        %1498 = vrot.lane.b32.xlu0 %v1228, 32
        %v1499 = vpop.permute.xlu0 %1498
        %1500 = vrot.lane.b32.xlu0 %v1229, 32
        %v1501 = vpop.permute.xlu0 %1500
        %1502 = vrot.lane.b32.xlu0 %v1230, 32
        %v1503 = vpop.permute.xlu0 %1502
        %1504 = vrot.lane.b32.xlu0 %v1231, 32
        %v1505 = vpop.permute.xlu0 %1504
        %1506 = vrot.lane.b32.xlu0 %v1232, 32
        %v1507 = vpop.permute.xlu0 %1506
        %1508 = vrot.lane.b32.xlu0 %v1233, 32
        %v1509 = vpop.permute.xlu0 %1508
        %1528 = vrot.lane.b32.xlu0 %v1456, 64
        %v1529 = vpop.permute.xlu0 %1528
        %1530 = vrot.lane.b32.xlu0 %v1457, 64
        %v1531 = vpop.permute.xlu0 %1530
        %1532 = vrot.lane.b32.xlu0 %v1458, 64
        %v1533 = vpop.permute.xlu0 %1532
        %1534 = vrot.lane.b32.xlu0 %v1459, 64
        %v1535 = vpop.permute.xlu0 %1534
        %1536 = vrot.lane.b32.xlu0 %v1460, 64
        %v1537 = vpop.permute.xlu0 %1536
        %1538 = vrot.lane.b32.xlu0 %v1461, 64
        %v1539 = vpop.permute.xlu0 %1538
        %1540 = vrot.lane.b32.xlu0 %v1462, 64
        %v1541 = vpop.permute.xlu0 %1540
        %1542 = vrot.lane.b32.xlu0 %v1463, 64
        %v1543 = vpop.permute.xlu0 %1542
        %1544 = vrot.lane.b32.xlu0 %v1464, 64
        %v1545 = vpop.permute.xlu0 %1544
        %1546 = vrot.lane.b32.xlu0 %v1465, 64
        %v1547 = vpop.permute.xlu0 %1546
        %1548 = vrot.lane.b32.xlu0 %v1466, 64
        %v1549 = vpop.permute.xlu0 %1548
        %1550 = vrot.lane.b32.xlu0 %v1467, 64
        %v1551 = vpop.permute.xlu0 %1550
        %1552 = vrot.lane.b32.xlu0 %v1468, 64
        %v1553 = vpop.permute.xlu0 %1552
        %1554 = vrot.lane.b32.xlu0 %v1469, 64
        %v1555 = vpop.permute.xlu0 %1554
        %1556 = vrot.lane.b32.xlu0 %v1470, 64
        %v1557 = vpop.permute.xlu0 %1556
        %1558 = vrot.lane.b32.xlu0 %v1471, 64
        %v1559 = vpop.permute.xlu0 %1558
        %1560 = vrot.lane.b32.xlu0 %v1472, 64
        %v1561 = vpop.permute.xlu0 %1560
        %1562 = vrot.lane.b32.xlu0 %v1473, 64
        %v1563 = vpop.permute.xlu0 %1562
        %vm1564 = vcmask 261120
        %v1567 = vsel %vm1564, %v1381, %v1475
        %v1570 = vsel %vm1564, %v1382, %v1477
        %v1573 = vsel %vm1564, %v1383, %v1479
        %v1576 = vsel %vm1564, %v1384, %v1481
        %v1579 = vsel %vm1564, %v1385, %v1483
        %v1582 = vsel %vm1564, %v1386, %v1485
        %v1585 = vsel %vm1564, %v1387, %v1487
        %v1588 = vsel %vm1564, %v1388, %v1489
        %v1591 = vsel %vm1564, %v1389, %v1491
        %v1594 = vsel %vm1564, %v1390, %v1493
        %v1597 = vsel %vm1564, %v1391, %v1495
        %v1600 = vsel %vm1564, %v1392, %v1497
        %v1603 = vsel %vm1564, %v1393, %v1499
        %v1606 = vsel %vm1564, %v1394, %v1501
        %v1609 = vsel %vm1564, %v1395, %v1503
        %v1612 = vsel %vm1564, %v1396, %v1505
        %v1615 = vsel %vm1564, %v1397, %v1507
        %v1618 = vsel %vm1564, %v1398, %v1509
        %vm1619 = vcmask 523264
        %v1621 = vsel %vm1619, %v1567, %v1529
        %v1623 = vsel %vm1619, %v1570, %v1531
        %v1625 = vsel %vm1619, %v1573, %v1533
        %v1627 = vsel %vm1619, %v1576, %v1535
        %v1629 = vsel %vm1619, %v1579, %v1537
        %v1631 = vsel %vm1619, %v1582, %v1539
        %v1633 = vsel %vm1619, %v1585, %v1541
        %v1635 = vsel %vm1619, %v1588, %v1543
        %v1637 = vsel %vm1619, %v1591, %v1545
        %v1639 = vsel %vm1619, %v1594, %v1547
        %v1641 = vsel %vm1619, %v1597, %v1549
        %v1643 = vsel %vm1619, %v1600, %v1551
        %v1645 = vsel %vm1619, %v1603, %v1553
        %v1647 = vsel %vm1619, %v1606, %v1555
        %v1649 = vsel %vm1619, %v1609, %v1557
        %v1651 = vsel %vm1619, %v1612, %v1559
        %v1653 = vsel %vm1619, %v1615, %v1561
        %v1655 = vsel %vm1619, %v1618, %v1563
        %v1656 = vld [vmem:[%s5] sm:$0xf]
        %v1657 = vld [vmem:[%s5 + $0x4] sm:$0xf]
        %v1658 = vld [vmem:[%s5 + $0x8] sm:$0xf]
        %v1659 = vld [vmem:[%s5 + $0xc] sm:$0xf]
        %v1660 = vld [vmem:[%s5 + $0x10] sm:$0xf]
        %v1661 = vld [vmem:[%s5 + $0x14] sm:$0xf]
        %v1662 = vld [vmem:[%s5 + $0x18] sm:$0xf]
        %v1663 = vld [vmem:[%s5 + $0x1c] sm:$0xf]
        %v1664 = vld [vmem:[%s5 + $0x20] sm:$0xf]
        %v1665 = vld [vmem:[%s5 + $0x24] sm:$0xf]
        %v1666 = vld [vmem:[%s5 + $0x28] sm:$0xf]
        %v1667 = vld [vmem:[%s5 + $0x2c] sm:$0xf]
        %s1668 = scalar_lea.vmem %s5, 48
        %v1669 = vld [vmem:[%s1668] sm:$0xf]
        %v1670 = vld [vmem:[%s1668 + $0x4] sm:$0xf]
        %v1671 = vld [vmem:[%s1668 + $0x8] sm:$0xf]
        %v1672 = vld [vmem:[%s1668 + $0xc] sm:$0xf]
        %v1673 = vld [vmem:[%s1668 + $0x10] sm:$0xf]
        %v1674 = vld [vmem:[%s1668 + $0x14] sm:$0xf]
        %v1675 = vld [vmem:[%s1668 + $0x18] sm:$0xf]
        %v1676 = vld [vmem:[%s1668 + $0x1c] sm:$0xf]
        %v1677 = vld [vmem:[%s1668 + $0x20] sm:$0xf]
        %v1678 = vld [vmem:[%s1668 + $0x24] sm:$0xf]
        %v1679 = vld [vmem:[%s1668 + $0x28] sm:$0xf]
        %v1680 = vld [vmem:[%s1668 + $0x2c] sm:$0xf]
        %v1693 = vunpack.c.l.b16 %v1669
        %v1694 = vunpack.c.l.b16 %v1670
        %v1695 = vunpack.c.l.b16 %v1671
        %v1696 = vunpack.c.l.b16 %v1672
        %v1697 = vunpack.c.l.b16 %v1673
        %v1698 = vunpack.c.l.b16 %v1674
        %v1699 = vunpack.c.l.b16 %v1675
        %v1700 = vunpack.c.l.b16 %v1676
        %v1701 = vunpack.c.l.b16 %v1677
        %v1702 = vunpack.c.l.b16 %v1678
        %v1703 = vunpack.c.l.b16 %v1679
        %v1704 = vunpack.c.l.b16 %v1680
        %v1705 = vpack.c.b16 %v1694, %v1693
        %v1706 = vpack.c.b16 %v1696, %v1695
        %v1707 = vpack.c.b16 %v1698, %v1697
        %v1708 = vpack.c.b16 %v1700, %v1699
        %v1709 = vpack.c.b16 %v1702, %v1701
        %v1710 = vpack.c.b16 %v1704, %v1703
        %vm1717 = vcmask 785408
        %v1718 = vsel %vm1717, %v1623, 0
        %v1720 = vsel %vm1717, %v1625, 0
        %v1722 = vsel %vm1717, %v1627, 0
        %v1724 = vsel %vm1717, %v1629, 0
        %v1726 = vsel %vm1717, %v1631, 0
        %v1728 = vsel %vm1717, %v1633, 0
        %v1730 = vsel %vm1717, %v1635, 0
        %v1732 = vsel %vm1717, %v1637, 0
        %v1734 = vsel %vm1717, %v1639, 0
        %v1736 = vsel %vm1717, %v1641, 0
        %v1738 = vsel %vm1717, %v1643, 0
        %v1740 = vsel %vm1717, %v1645, 0
        %v1742 = vsel %vm1717, %v1647, 0
        %v1744 = vsel %vm1717, %v1649, 0
        %v1746 = vsel %vm1717, %v1651, 0
        %v1748 = vsel %vm1717, %v1653, 0
        %1750 = vmatprep.subr.bf16.mxu0 0
        %1751 = vmatpush1.bf16.msra.mxu0 0
        %1752 = vmatprep.subr.bf16.mxu0 0
        %1753 = vmatpush1.bf16.msra.mxu0 0
        %1754 = vmatprep.subr.bf16.mxu0 0
        %1755 = vmatpush1.bf16.msra.mxu0 %v1710
        %1756 = vmatprep.subr.bf16.mxu0 0
        %1757 = vmatpush1.bf16.msra.mxu0 %v1709
        %1758 = vmatprep.subr.bf16.mxu0 0
        %1759 = vmatpush1.bf16.msra.mxu0 %v1708
        %1760 = vmatprep.subr.bf16.mxu0 0
        %1761 = vmatpush1.bf16.msra.mxu0 %v1707
        %1762 = vmatprep.subr.bf16.mxu0 0
        %1763 = vmatpush1.bf16.msra.mxu0 %v1706
        %1764 = vmatprep.subr.bf16.mxu0 0
        %1765 = vmatpush1.bf16.msra.mxu0 %v1705
        %1766 = vmatprep.subr.bf16.mxu0 0
        %1767 = vmatpush2.bf16.msra.mxu0 0
        %1768 = vmatprep.subr.bf16.mxu0 0
        %1769 = vmatpush2.bf16.msra.mxu0 0
        %1770 = vmatprep.subr.bf16.mxu0 0
        %1771 = vmatpush2.bf16.msra.mxu0 0
        %1772 = vmatprep.subr.bf16.mxu0 0
        %1773 = vmatpush2.bf16.msra.mxu0 0
        %1774 = vmatprep.subr.bf16.mxu0 0
        %1775 = vmatpush2.bf16.msra.mxu0 0
        %1776 = vmatprep.subr.bf16.mxu0 0
        %1777 = vmatpush2.bf16.msra.mxu0 0
        %1778 = vmatprep.subr.bf16.mxu0 0
        %1779 = vmatpush2.bf16.msra.mxu0 0
        %1780 = vmatprep.subr.bf16.mxu0 0
        %1781 = vmatpush2.bf16.msra.mxu0 0
        %1782 = vmatprep.mubr.bf16.mxu0 0
        %1783 = vmatmul.mubr.bf16.gmra.mxu0 %v1718
        %v1784 = vpop.f32.mrf.mxu0
        %v1785 = vadd.f32 0.0, %v1784
        %v1786 = vpop.f32.mrf.mxu0
        %v1787 = vpop.f32.mrf.mxu0
        %v1788 = vadd.f32 0.0, %v1787
        %v1789 = vpop.f32.mrf.mxu0
        %1790 = vmatprep.mubr.bf16.mxu0 0
        %1791 = vmatmul.mubr.bf16.gmra.mxu0 %v1720
        %v1792 = vpop.f32.mrf.mxu0
        %v1793 = vadd.f32 0.0, %v1792
        %v1794 = vpop.f32.mrf.mxu0
        %v1795 = vpop.f32.mrf.mxu0
        %v1796 = vadd.f32 0.0, %v1795
        %v1797 = vpop.f32.mrf.mxu0
        %1798 = vmatprep.mubr.bf16.mxu0 0
        %1799 = vmatmul.mubr.bf16.gmra.mxu0 %v1722
        %v1800 = vpop.f32.mrf.mxu0
        %v1801 = vadd.f32 0.0, %v1800
        %v1802 = vpop.f32.mrf.mxu0
        %v1803 = vpop.f32.mrf.mxu0
        %v1804 = vadd.f32 0.0, %v1803
        %v1805 = vpop.f32.mrf.mxu0
        %1806 = vmatprep.mubr.bf16.mxu0 0
        %1807 = vmatmul.mubr.bf16.gmra.mxu0 %v1724
        %v1808 = vpop.f32.mrf.mxu0
        %v1809 = vadd.f32 0.0, %v1808
        %v1810 = vpop.f32.mrf.mxu0
        %v1811 = vpop.f32.mrf.mxu0
        %v1812 = vadd.f32 0.0, %v1811
        %v1813 = vpop.f32.mrf.mxu0
        %1814 = vmatprep.mubr.bf16.mxu0 0
        %1815 = vmatmul.mubr.bf16.gmra.mxu0 %v1726
        %v1816 = vpop.f32.mrf.mxu0
        %v1817 = vadd.f32 0.0, %v1816
        %v1818 = vpop.f32.mrf.mxu0
        %v1819 = vpop.f32.mrf.mxu0
        %v1820 = vadd.f32 0.0, %v1819
        %v1821 = vpop.f32.mrf.mxu0
        %1822 = vmatprep.mubr.bf16.mxu0 0
        %1823 = vmatmul.mubr.bf16.gmra.mxu0 %v1728
        %v1824 = vpop.f32.mrf.mxu0
        %v1825 = vadd.f32 0.0, %v1824
        %v1826 = vpop.f32.mrf.mxu0
        %v1827 = vpop.f32.mrf.mxu0
        %v1828 = vadd.f32 0.0, %v1827
        %v1829 = vpop.f32.mrf.mxu0
        %1830 = vmatprep.mubr.bf16.mxu0 0
        %1831 = vmatmul.mubr.bf16.gmra.mxu0 %v1730
        %v1832 = vpop.f32.mrf.mxu0
        %v1833 = vadd.f32 0.0, %v1832
        %v1834 = vpop.f32.mrf.mxu0
        %v1835 = vpop.f32.mrf.mxu0
        %v1836 = vadd.f32 0.0, %v1835
        %v1837 = vpop.f32.mrf.mxu0
        %1838 = vmatprep.mubr.bf16.mxu0 0
        %1839 = vmatmul.mubr.bf16.gmra.mxu0 %v1732
        %v1840 = vpop.f32.mrf.mxu0
        %v1841 = vadd.f32 0.0, %v1840
        %v1842 = vpop.f32.mrf.mxu0
        %v1843 = vpop.f32.mrf.mxu0
        %v1844 = vadd.f32 0.0, %v1843
        %v1845 = vpop.f32.mrf.mxu0
        %1846 = vmatprep.mubr.bf16.mxu0 0
        %1847 = vmatmul.mubr.bf16.gmra.mxu0 %v1734
        %v1848 = vpop.f32.mrf.mxu0
        %v1849 = vadd.f32 0.0, %v1848
        %v1850 = vpop.f32.mrf.mxu0
        %v1851 = vpop.f32.mrf.mxu0
        %v1852 = vadd.f32 0.0, %v1851
        %v1853 = vpop.f32.mrf.mxu0
        %1854 = vmatprep.mubr.bf16.mxu0 0
        %1855 = vmatmul.mubr.bf16.gmra.mxu0 %v1736
        %v1856 = vpop.f32.mrf.mxu0
        %v1857 = vadd.f32 0.0, %v1856
        %v1858 = vpop.f32.mrf.mxu0
        %v1859 = vpop.f32.mrf.mxu0
        %v1860 = vadd.f32 0.0, %v1859
        %v1861 = vpop.f32.mrf.mxu0
        %1862 = vmatprep.mubr.bf16.mxu0 0
        %1863 = vmatmul.mubr.bf16.gmra.mxu0 %v1738
        %v1864 = vpop.f32.mrf.mxu0
        %v1865 = vadd.f32 0.0, %v1864
        %v1866 = vpop.f32.mrf.mxu0
        %v1867 = vpop.f32.mrf.mxu0
        %v1868 = vadd.f32 0.0, %v1867
        %v1869 = vpop.f32.mrf.mxu0
        %1870 = vmatprep.mubr.bf16.mxu0 0
        %1871 = vmatmul.mubr.bf16.gmra.mxu0 %v1740
        %v1872 = vpop.f32.mrf.mxu0
        %v1873 = vadd.f32 0.0, %v1872
        %v1874 = vpop.f32.mrf.mxu0
        %v1875 = vpop.f32.mrf.mxu0
        %v1876 = vadd.f32 0.0, %v1875
        %v1877 = vpop.f32.mrf.mxu0
        %1878 = vmatprep.mubr.bf16.mxu0 0
        %1879 = vmatmul.mubr.bf16.gmra.mxu0 %v1742
        %v1880 = vpop.f32.mrf.mxu0
        %v1881 = vadd.f32 0.0, %v1880
        %v1882 = vpop.f32.mrf.mxu0
        %v1883 = vpop.f32.mrf.mxu0
        %v1884 = vadd.f32 0.0, %v1883
        %v1885 = vpop.f32.mrf.mxu0
        %1886 = vmatprep.mubr.bf16.mxu0 0
        %1887 = vmatmul.mubr.bf16.gmra.mxu0 %v1744
        %v1888 = vpop.f32.mrf.mxu0
        %v1889 = vadd.f32 0.0, %v1888
        %v1890 = vpop.f32.mrf.mxu0
        %v1891 = vpop.f32.mrf.mxu0
        %v1892 = vadd.f32 0.0, %v1891
        %v1893 = vpop.f32.mrf.mxu0
        %1894 = vmatprep.mubr.bf16.mxu0 0
        %1895 = vmatmul.mubr.bf16.gmra.mxu0 %v1746
        %v1896 = vpop.f32.mrf.mxu0
        %v1897 = vadd.f32 0.0, %v1896
        %v1898 = vpop.f32.mrf.mxu0
        %v1899 = vpop.f32.mrf.mxu0
        %v1900 = vadd.f32 0.0, %v1899
        %v1901 = vpop.f32.mrf.mxu0
        %1902 = vmatprep.mubr.bf16.mxu0 0
        %1903 = vmatmul.mubr.bf16.gmra.mxu0 %v1748
        %v1904 = vpop.f32.mrf.mxu0
        %v1905 = vadd.f32 0.0, %v1904
        %v1906 = vpop.f32.mrf.mxu0
        %v1907 = vpop.f32.mrf.mxu0
        %v1908 = vadd.f32 0.0, %v1907
        %v1909 = vpop.f32.mrf.mxu0
        %1910 = vdwg.mxu0
        %v1923 = vunpack.c.l.b16 %v1656
        %v1924 = vunpack.c.l.b16 %v1657
        %v1925 = vunpack.c.l.b16 %v1658
        %v1926 = vunpack.c.l.b16 %v1659
        %v1927 = vunpack.c.l.b16 %v1660
        %v1928 = vunpack.c.l.b16 %v1661
        %v1929 = vunpack.c.l.b16 %v1662
        %v1930 = vunpack.c.l.b16 %v1663
        %v1931 = vunpack.c.l.b16 %v1664
        %v1932 = vunpack.c.l.b16 %v1665
        %v1933 = vunpack.c.l.b16 %v1666
        %v1934 = vunpack.c.l.b16 %v1667
        %v1935 = vpack.c.b16 %v1924, %v1923
        %v1936 = vpack.c.b16 %v1926, %v1925
        %v1937 = vpack.c.b16 %v1928, %v1927
        %v1938 = vpack.c.b16 %v1930, %v1929
        %v1939 = vpack.c.b16 %v1932, %v1931
        %v1940 = vpack.c.b16 %v1934, %v1933
        %v1947 = vsel %vm1717, %v1621, 0
        %1949 = vmatprep.subr.bf16.mxu0 0
        %1950 = vmatpush1.bf16.msra.mxu0 0
        %1951 = vmatprep.subr.bf16.mxu0 0
        %1952 = vmatpush1.bf16.msra.mxu0 0
        %1953 = vmatprep.subr.bf16.mxu0 0
        %1954 = vmatpush1.bf16.msra.mxu0 %v1940
        %1955 = vmatprep.subr.bf16.mxu0 0
        %1956 = vmatpush1.bf16.msra.mxu0 %v1939
        %1957 = vmatprep.subr.bf16.mxu0 0
        %1958 = vmatpush1.bf16.msra.mxu0 %v1938
        %1959 = vmatprep.subr.bf16.mxu0 0
        %1960 = vmatpush1.bf16.msra.mxu0 %v1937
        %1961 = vmatprep.subr.bf16.mxu0 0
        %1962 = vmatpush1.bf16.msra.mxu0 %v1936
        %1963 = vmatprep.subr.bf16.mxu0 0
        %1964 = vmatpush1.bf16.msra.mxu0 %v1935
        %1965 = vmatprep.subr.bf16.mxu0 0
        %1966 = vmatpush2.bf16.msra.mxu0 0
        %1967 = vmatprep.subr.bf16.mxu0 0
        %1968 = vmatpush2.bf16.msra.mxu0 0
        %1969 = vmatprep.subr.bf16.mxu0 0
        %1970 = vmatpush2.bf16.msra.mxu0 0
        %1971 = vmatprep.subr.bf16.mxu0 0
        %1972 = vmatpush2.bf16.msra.mxu0 0
        %1973 = vmatprep.subr.bf16.mxu0 0
        %1974 = vmatpush2.bf16.msra.mxu0 0
        %1975 = vmatprep.subr.bf16.mxu0 0
        %1976 = vmatpush2.bf16.msra.mxu0 0
        %1977 = vmatprep.subr.bf16.mxu0 0
        %1978 = vmatpush2.bf16.msra.mxu0 0
        %1979 = vmatprep.subr.bf16.mxu0 0
        %1980 = vmatpush2.bf16.msra.mxu0 0
        %1981 = vmatprep.mubr.bf16.mxu0 0
        %1982 = vmatmul.mubr.bf16.gmra.mxu0 %v1947
        %v1983 = vpop.f32.mrf.mxu0
        %v1984 = vadd.f32 %v1785, %v1983
        %v1985 = vpop.f32.mrf.mxu0
        %v1986 = vpop.f32.mrf.mxu0
        %v1987 = vadd.f32 %v1788, %v1986
        %v1988 = vpop.f32.mrf.mxu0
        %1989 = vmatprep.mubr.bf16.mxu0 0
        %1990 = vmatmul.mubr.bf16.gmra.mxu0 %v1718
        %v1991 = vpop.f32.mrf.mxu0
        %v1992 = vadd.f32 %v1793, %v1991
        %v1993 = vpop.f32.mrf.mxu0
        %v1994 = vpop.f32.mrf.mxu0
        %v1995 = vadd.f32 %v1796, %v1994
        %v1996 = vpop.f32.mrf.mxu0
        %1997 = vmatprep.mubr.bf16.mxu0 0
        %1998 = vmatmul.mubr.bf16.gmra.mxu0 %v1720
        %v1999 = vpop.f32.mrf.mxu0
        %v2000 = vadd.f32 %v1801, %v1999
        %v2001 = vpop.f32.mrf.mxu0
        %v2002 = vpop.f32.mrf.mxu0
        %v2003 = vadd.f32 %v1804, %v2002
        %v2004 = vpop.f32.mrf.mxu0
        %2005 = vmatprep.mubr.bf16.mxu0 0
        %2006 = vmatmul.mubr.bf16.gmra.mxu0 %v1722
        %v2007 = vpop.f32.mrf.mxu0
        %v2008 = vadd.f32 %v1809, %v2007
        %v2009 = vpop.f32.mrf.mxu0
        %v2010 = vpop.f32.mrf.mxu0
        %v2011 = vadd.f32 %v1812, %v2010
        %v2012 = vpop.f32.mrf.mxu0
        %2013 = vmatprep.mubr.bf16.mxu0 0
        %2014 = vmatmul.mubr.bf16.gmra.mxu0 %v1724
        %v2015 = vpop.f32.mrf.mxu0
        %v2016 = vadd.f32 %v1817, %v2015
        %v2017 = vpop.f32.mrf.mxu0
        %v2018 = vpop.f32.mrf.mxu0
        %v2019 = vadd.f32 %v1820, %v2018
        %v2020 = vpop.f32.mrf.mxu0
        %2021 = vmatprep.mubr.bf16.mxu0 0
        %2022 = vmatmul.mubr.bf16.gmra.mxu0 %v1726
        %v2023 = vpop.f32.mrf.mxu0
        %v2024 = vadd.f32 %v1825, %v2023
        %v2025 = vpop.f32.mrf.mxu0
        %v2026 = vpop.f32.mrf.mxu0
        %v2027 = vadd.f32 %v1828, %v2026
        %v2028 = vpop.f32.mrf.mxu0
        %2029 = vmatprep.mubr.bf16.mxu0 0
        %2030 = vmatmul.mubr.bf16.gmra.mxu0 %v1728
        %v2031 = vpop.f32.mrf.mxu0
        %v2032 = vadd.f32 %v1833, %v2031
        %v2033 = vpop.f32.mrf.mxu0
        %v2034 = vpop.f32.mrf.mxu0
        %v2035 = vadd.f32 %v1836, %v2034
        %v2036 = vpop.f32.mrf.mxu0
        %2037 = vmatprep.mubr.bf16.mxu0 0
        %2038 = vmatmul.mubr.bf16.gmra.mxu0 %v1730
        %v2039 = vpop.f32.mrf.mxu0
        %v2040 = vadd.f32 %v1841, %v2039
        %v2041 = vpop.f32.mrf.mxu0
        %v2042 = vpop.f32.mrf.mxu0
        %v2043 = vadd.f32 %v1844, %v2042
        %v2044 = vpop.f32.mrf.mxu0
        %2045 = vmatprep.mubr.bf16.mxu0 0
        %2046 = vmatmul.mubr.bf16.gmra.mxu0 %v1732
        %v2047 = vpop.f32.mrf.mxu0
        %v2048 = vadd.f32 %v1849, %v2047
        %v2049 = vpop.f32.mrf.mxu0
        %v2050 = vpop.f32.mrf.mxu0
        %v2051 = vadd.f32 %v1852, %v2050
        %v2052 = vpop.f32.mrf.mxu0
        %2053 = vmatprep.mubr.bf16.mxu0 0
        %2054 = vmatmul.mubr.bf16.gmra.mxu0 %v1734
        %v2055 = vpop.f32.mrf.mxu0
        %v2056 = vadd.f32 %v1857, %v2055
        %v2057 = vpop.f32.mrf.mxu0
        %v2058 = vpop.f32.mrf.mxu0
        %v2059 = vadd.f32 %v1860, %v2058
        %v2060 = vpop.f32.mrf.mxu0
        %2061 = vmatprep.mubr.bf16.mxu0 0
        %2062 = vmatmul.mubr.bf16.gmra.mxu0 %v1736
        %v2063 = vpop.f32.mrf.mxu0
        %v2064 = vadd.f32 %v1865, %v2063
        %v2065 = vpop.f32.mrf.mxu0
        %v2066 = vpop.f32.mrf.mxu0
        %v2067 = vadd.f32 %v1868, %v2066
        %v2068 = vpop.f32.mrf.mxu0
        %2069 = vmatprep.mubr.bf16.mxu0 0
        %2070 = vmatmul.mubr.bf16.gmra.mxu0 %v1738
        %v2071 = vpop.f32.mrf.mxu0
        %v2072 = vadd.f32 %v1873, %v2071
        %v2073 = vpop.f32.mrf.mxu0
        %v2074 = vpop.f32.mrf.mxu0
        %v2075 = vadd.f32 %v1876, %v2074
        %v2076 = vpop.f32.mrf.mxu0
        %2077 = vmatprep.mubr.bf16.mxu0 0
        %2078 = vmatmul.mubr.bf16.gmra.mxu0 %v1740
        %v2079 = vpop.f32.mrf.mxu0
        %v2080 = vadd.f32 %v1881, %v2079
        %v2081 = vpop.f32.mrf.mxu0
        %v2082 = vpop.f32.mrf.mxu0
        %v2083 = vadd.f32 %v1884, %v2082
        %v2084 = vpop.f32.mrf.mxu0
        %2085 = vmatprep.mubr.bf16.mxu0 0
        %2086 = vmatmul.mubr.bf16.gmra.mxu0 %v1742
        %v2087 = vpop.f32.mrf.mxu0
        %v2088 = vadd.f32 %v1889, %v2087
        %v2089 = vpop.f32.mrf.mxu0
        %v2090 = vpop.f32.mrf.mxu0
        %v2091 = vadd.f32 %v1892, %v2090
        %v2092 = vpop.f32.mrf.mxu0
        %2093 = vmatprep.mubr.bf16.mxu0 0
        %2094 = vmatmul.mubr.bf16.gmra.mxu0 %v1744
        %v2095 = vpop.f32.mrf.mxu0
        %v2096 = vadd.f32 %v1897, %v2095
        %v2097 = vpop.f32.mrf.mxu0
        %v2098 = vpop.f32.mrf.mxu0
        %v2099 = vadd.f32 %v1900, %v2098
        %v2100 = vpop.f32.mrf.mxu0
        %2101 = vmatprep.mubr.bf16.mxu0 0
        %2102 = vmatmul.mubr.bf16.gmra.mxu0 %v1746
        %v2103 = vpop.f32.mrf.mxu0
        %v2104 = vadd.f32 %v1905, %v2103
        %v2105 = vpop.f32.mrf.mxu0
        %v2106 = vpop.f32.mrf.mxu0
        %v2107 = vadd.f32 %v1908, %v2106
        %v2108 = vpop.f32.mrf.mxu0
        %2109 = vdwg.mxu0
        %s2110 = scalar_lea.vmem %s5, 96
        %v2111 = vld [vmem:[%s2110] sm:$0xf]
        %v2112 = vld [vmem:[%s2110 + $0x4] sm:$0xf]
        %v2113 = vld [vmem:[%s2110 + $0x8] sm:$0xf]
        %v2114 = vld [vmem:[%s2110 + $0xc] sm:$0xf]
        %v2115 = vld [vmem:[%s2110 + $0x10] sm:$0xf]
        %v2116 = vld [vmem:[%s2110 + $0x14] sm:$0xf]
        %v2117 = vld [vmem:[%s2110 + $0x18] sm:$0xf]
        %v2118 = vld [vmem:[%s2110 + $0x1c] sm:$0xf]
        %v2119 = vld [vmem:[%s2110 + $0x20] sm:$0xf]
        %v2120 = vld [vmem:[%s2110 + $0x24] sm:$0xf]
        %v2121 = vld [vmem:[%s2110 + $0x28] sm:$0xf]
        %v2122 = vld [vmem:[%s2110 + $0x2c] sm:$0xf]
        %v2135 = vunpack.c.l.b16 %v2111
        %v2136 = vunpack.c.l.b16 %v2112
        %v2137 = vunpack.c.l.b16 %v2113
        %v2138 = vunpack.c.l.b16 %v2114
        %v2139 = vunpack.c.l.b16 %v2115
        %v2140 = vunpack.c.l.b16 %v2116
        %v2141 = vunpack.c.l.b16 %v2117
        %v2142 = vunpack.c.l.b16 %v2118
        %v2143 = vunpack.c.l.b16 %v2119
        %v2144 = vunpack.c.l.b16 %v2120
        %v2145 = vunpack.c.l.b16 %v2121
        %v2146 = vunpack.c.l.b16 %v2122
        %v2147 = vpack.c.b16 %v2136, %v2135
        %v2148 = vpack.c.b16 %v2138, %v2137
        %v2149 = vpack.c.b16 %v2140, %v2139
        %v2150 = vpack.c.b16 %v2142, %v2141
        %v2151 = vpack.c.b16 %v2144, %v2143
        %v2152 = vpack.c.b16 %v2146, %v2145
        %v2159 = vsel %vm1717, %v1655, 0
        %2161 = vmatprep.subr.bf16.mxu0 0
        %2162 = vmatpush1.bf16.msra.mxu0 0
        %2163 = vmatprep.subr.bf16.mxu0 0
        %2164 = vmatpush1.bf16.msra.mxu0 0
        %2165 = vmatprep.subr.bf16.mxu0 0
        %2166 = vmatpush1.bf16.msra.mxu0 %v2152
        %2167 = vmatprep.subr.bf16.mxu0 0
        %2168 = vmatpush1.bf16.msra.mxu0 %v2151
        %2169 = vmatprep.subr.bf16.mxu0 0
        %2170 = vmatpush1.bf16.msra.mxu0 %v2150
        %2171 = vmatprep.subr.bf16.mxu0 0
        %2172 = vmatpush1.bf16.msra.mxu0 %v2149
        %2173 = vmatprep.subr.bf16.mxu0 0
        %2174 = vmatpush1.bf16.msra.mxu0 %v2148
        %2175 = vmatprep.subr.bf16.mxu0 0
        %2176 = vmatpush1.bf16.msra.mxu0 %v2147
        %2177 = vmatprep.subr.bf16.mxu0 0
        %2178 = vmatpush2.bf16.msra.mxu0 0
        %2179 = vmatprep.subr.bf16.mxu0 0
        %2180 = vmatpush2.bf16.msra.mxu0 0
        %2181 = vmatprep.subr.bf16.mxu0 0
        %2182 = vmatpush2.bf16.msra.mxu0 0
        %2183 = vmatprep.subr.bf16.mxu0 0
        %2184 = vmatpush2.bf16.msra.mxu0 0
        %2185 = vmatprep.subr.bf16.mxu0 0
        %2186 = vmatpush2.bf16.msra.mxu0 0
        %2187 = vmatprep.subr.bf16.mxu0 0
        %2188 = vmatpush2.bf16.msra.mxu0 0
        %2189 = vmatprep.subr.bf16.mxu0 0
        %2190 = vmatpush2.bf16.msra.mxu0 0
        %2191 = vmatprep.subr.bf16.mxu0 0
        %2192 = vmatpush2.bf16.msra.mxu0 0
        %2193 = vmatprep.mubr.bf16.mxu0 0
        %2194 = vmatmul.mubr.bf16.gmra.mxu0 %v1720
        %v2195 = vpop.f32.mrf.mxu0
        %v2196 = vadd.f32 0.0, %v2195
        %v2197 = vpop.f32.mrf.mxu0
        %v2198 = vpop.f32.mrf.mxu0
        %v2199 = vadd.f32 0.0, %v2198
        %v2200 = vpop.f32.mrf.mxu0
        %2201 = vmatprep.mubr.bf16.mxu0 0
        %2202 = vmatmul.mubr.bf16.gmra.mxu0 %v1722
        %v2203 = vpop.f32.mrf.mxu0
        %v2204 = vadd.f32 0.0, %v2203
        %v2205 = vpop.f32.mrf.mxu0
        %v2206 = vpop.f32.mrf.mxu0
        %v2207 = vadd.f32 0.0, %v2206
        %v2208 = vpop.f32.mrf.mxu0
        %2209 = vmatprep.mubr.bf16.mxu0 0
        %2210 = vmatmul.mubr.bf16.gmra.mxu0 %v1724
        %v2211 = vpop.f32.mrf.mxu0
        %v2212 = vadd.f32 0.0, %v2211
        %v2213 = vpop.f32.mrf.mxu0
        %v2214 = vpop.f32.mrf.mxu0
        %v2215 = vadd.f32 0.0, %v2214
        %v2216 = vpop.f32.mrf.mxu0
        %2217 = vmatprep.mubr.bf16.mxu0 0
        %2218 = vmatmul.mubr.bf16.gmra.mxu0 %v1726
        %v2219 = vpop.f32.mrf.mxu0
        %v2220 = vadd.f32 0.0, %v2219
        %v2221 = vpop.f32.mrf.mxu0
        %v2222 = vpop.f32.mrf.mxu0
        %v2223 = vadd.f32 0.0, %v2222
        %v2224 = vpop.f32.mrf.mxu0
        %2225 = vmatprep.mubr.bf16.mxu0 0
        %2226 = vmatmul.mubr.bf16.gmra.mxu0 %v1728
        %v2227 = vpop.f32.mrf.mxu0
        %v2228 = vadd.f32 0.0, %v2227
        %v2229 = vpop.f32.mrf.mxu0
        %v2230 = vpop.f32.mrf.mxu0
        %v2231 = vadd.f32 0.0, %v2230
        %v2232 = vpop.f32.mrf.mxu0
        %2233 = vmatprep.mubr.bf16.mxu0 0
        %2234 = vmatmul.mubr.bf16.gmra.mxu0 %v1730
        %v2235 = vpop.f32.mrf.mxu0
        %v2236 = vadd.f32 0.0, %v2235
        %v2237 = vpop.f32.mrf.mxu0
        %v2238 = vpop.f32.mrf.mxu0
        %v2239 = vadd.f32 0.0, %v2238
        %v2240 = vpop.f32.mrf.mxu0
        %2241 = vmatprep.mubr.bf16.mxu0 0
        %2242 = vmatmul.mubr.bf16.gmra.mxu0 %v1732
        %v2243 = vpop.f32.mrf.mxu0
        %v2244 = vadd.f32 0.0, %v2243
        %v2245 = vpop.f32.mrf.mxu0
        %v2246 = vpop.f32.mrf.mxu0
        %v2247 = vadd.f32 0.0, %v2246
        %v2248 = vpop.f32.mrf.mxu0
        %2249 = vmatprep.mubr.bf16.mxu0 0
        %2250 = vmatmul.mubr.bf16.gmra.mxu0 %v1734
        %v2251 = vpop.f32.mrf.mxu0
        %v2252 = vadd.f32 0.0, %v2251
        %v2253 = vpop.f32.mrf.mxu0
        %v2254 = vpop.f32.mrf.mxu0
        %v2255 = vadd.f32 0.0, %v2254
        %v2256 = vpop.f32.mrf.mxu0
        %2257 = vmatprep.mubr.bf16.mxu0 0
        %2258 = vmatmul.mubr.bf16.gmra.mxu0 %v1736
        %v2259 = vpop.f32.mrf.mxu0
        %v2260 = vadd.f32 0.0, %v2259
        %v2261 = vpop.f32.mrf.mxu0
        %v2262 = vpop.f32.mrf.mxu0
        %v2263 = vadd.f32 0.0, %v2262
        %v2264 = vpop.f32.mrf.mxu0
        %2265 = vmatprep.mubr.bf16.mxu0 0
        %2266 = vmatmul.mubr.bf16.gmra.mxu0 %v1738
        %v2267 = vpop.f32.mrf.mxu0
        %v2268 = vadd.f32 0.0, %v2267
        %v2269 = vpop.f32.mrf.mxu0
        %v2270 = vpop.f32.mrf.mxu0
        %v2271 = vadd.f32 0.0, %v2270
        %v2272 = vpop.f32.mrf.mxu0
        %2273 = vmatprep.mubr.bf16.mxu0 0
        %2274 = vmatmul.mubr.bf16.gmra.mxu0 %v1740
        %v2275 = vpop.f32.mrf.mxu0
        %v2276 = vadd.f32 0.0, %v2275
        %v2277 = vpop.f32.mrf.mxu0
        %v2278 = vpop.f32.mrf.mxu0
        %v2279 = vadd.f32 0.0, %v2278
        %v2280 = vpop.f32.mrf.mxu0
        %2281 = vmatprep.mubr.bf16.mxu0 0
        %2282 = vmatmul.mubr.bf16.gmra.mxu0 %v1742
        %v2283 = vpop.f32.mrf.mxu0
        %v2284 = vadd.f32 0.0, %v2283
        %v2285 = vpop.f32.mrf.mxu0
        %v2286 = vpop.f32.mrf.mxu0
        %v2287 = vadd.f32 0.0, %v2286
        %v2288 = vpop.f32.mrf.mxu0
        %2289 = vmatprep.mubr.bf16.mxu0 0
        %2290 = vmatmul.mubr.bf16.gmra.mxu0 %v1744
        %v2291 = vpop.f32.mrf.mxu0
        %v2292 = vadd.f32 0.0, %v2291
        %v2293 = vpop.f32.mrf.mxu0
        %v2294 = vpop.f32.mrf.mxu0
        %v2295 = vadd.f32 0.0, %v2294
        %v2296 = vpop.f32.mrf.mxu0
        %2297 = vmatprep.mubr.bf16.mxu0 0
        %2298 = vmatmul.mubr.bf16.gmra.mxu0 %v1746
        %v2299 = vpop.f32.mrf.mxu0
        %v2300 = vadd.f32 0.0, %v2299
        %v2301 = vpop.f32.mrf.mxu0
        %v2302 = vpop.f32.mrf.mxu0
        %v2303 = vadd.f32 0.0, %v2302
        %v2304 = vpop.f32.mrf.mxu0
        %2305 = vmatprep.mubr.bf16.mxu0 0
        %2306 = vmatmul.mubr.bf16.gmra.mxu0 %v1748
        %v2307 = vpop.f32.mrf.mxu0
        %v2308 = vadd.f32 0.0, %v2307
        %v2309 = vpop.f32.mrf.mxu0
        %v2310 = vpop.f32.mrf.mxu0
        %v2311 = vadd.f32 0.0, %v2310
        %v2312 = vpop.f32.mrf.mxu0
        %2313 = vmatprep.mubr.bf16.mxu0 0
        %2314 = vmatmul.mubr.bf16.gmra.mxu0 %v2159
        %v2315 = vpop.f32.mrf.mxu0
        %v2316 = vadd.f32 0.0, %v2315
        %v2317 = vpop.f32.mrf.mxu0
        %v2318 = vpop.f32.mrf.mxu0
        %v2319 = vadd.f32 0.0, %v2318
        %v2320 = vpop.f32.mrf.mxu0
        %2321 = vdwg.mxu0
        %v2322 = vadd.f32 %v1984, %v2196
        %v2323 = vadd.f32 %v1987, %v2199
        %v2324 = vadd.f32 %v1992, %v2204
        %v2325 = vadd.f32 %v1995, %v2207
        %v2326 = vadd.f32 %v2000, %v2212
        %v2327 = vadd.f32 %v2003, %v2215
        %v2328 = vadd.f32 %v2008, %v2220
        %v2329 = vadd.f32 %v2011, %v2223
        %v2330 = vadd.f32 %v2016, %v2228
        %v2331 = vadd.f32 %v2019, %v2231
        %v2332 = vadd.f32 %v2024, %v2236
        %v2333 = vadd.f32 %v2027, %v2239
        %v2334 = vadd.f32 %v2032, %v2244
        %v2335 = vadd.f32 %v2035, %v2247
        %v2336 = vadd.f32 %v2040, %v2252
        %v2337 = vadd.f32 %v2043, %v2255
        %v2338 = vadd.f32 %v2048, %v2260
        %v2339 = vadd.f32 %v2051, %v2263
        %v2340 = vadd.f32 %v2056, %v2268
        %v2341 = vadd.f32 %v2059, %v2271
        %v2342 = vadd.f32 %v2064, %v2276
        %v2343 = vadd.f32 %v2067, %v2279
        %v2344 = vadd.f32 %v2072, %v2284
        %v2345 = vadd.f32 %v2075, %v2287
        %v2346 = vadd.f32 %v2080, %v2292
        %v2347 = vadd.f32 %v2083, %v2295
        %v2348 = vadd.f32 %v2088, %v2300
        %v2349 = vadd.f32 %v2091, %v2303
        %v2350 = vadd.f32 %v2096, %v2308
        %v2351 = vadd.f32 %v2099, %v2311
        %v2352 = vadd.f32 %v2104, %v2316
        %v2353 = vadd.f32 %v2107, %v2319
        %v2354 = vld [vmem:[%s6] sm:$0x1]
        %v2356 = vlaneseq
        %v2357 = vshrl.u32 %v2356, 7
        %v2358 = vsub.s32 0, %v2357
        %v2359 = vrot.slane %v2354, %v2358
        %v2361 = vadd.f32 %v2322, %v2359
        %v2362 = vadd.f32 %v2323, %v2359
        %v2363 = vadd.f32 %v2324, %v2359
        %v2364 = vadd.f32 %v2325, %v2359
        %v2365 = vadd.f32 %v2326, %v2359
        %v2366 = vadd.f32 %v2327, %v2359
        %v2367 = vadd.f32 %v2328, %v2359
        %v2368 = vadd.f32 %v2329, %v2359
        %v2369 = vadd.f32 %v2330, %v2359
        %v2370 = vadd.f32 %v2331, %v2359
        %v2371 = vadd.f32 %v2332, %v2359
        %v2372 = vadd.f32 %v2333, %v2359
        %v2373 = vadd.f32 %v2334, %v2359
        %v2374 = vadd.f32 %v2335, %v2359
        %v2375 = vadd.f32 %v2336, %v2359
        %v2376 = vadd.f32 %v2337, %v2359
        %v2377 = vadd.f32 %v2338, %v2359
        %v2378 = vadd.f32 %v2339, %v2359
        %v2379 = vadd.f32 %v2340, %v2359
        %v2380 = vadd.f32 %v2341, %v2359
        %v2381 = vadd.f32 %v2342, %v2359
        %v2382 = vadd.f32 %v2343, %v2359
        %v2383 = vadd.f32 %v2344, %v2359
        %v2384 = vadd.f32 %v2345, %v2359
        %v2385 = vadd.f32 %v2346, %v2359
        %v2386 = vadd.f32 %v2347, %v2359
        %v2387 = vadd.f32 %v2348, %v2359
        %v2388 = vadd.f32 %v2349, %v2359
        %v2389 = vadd.f32 %v2350, %v2359
        %v2390 = vadd.f32 %v2351, %v2359
        %v2391 = vadd.f32 %v2352, %v2359
        %v2392 = vadd.f32 %v2353, %v2359
        %v2393 = vmax.f32 %v2361, 0.0
        %v2394 = vmax.f32 %v2362, 0.0
        %v2395 = vmax.f32 %v2363, 0.0
        %v2396 = vmax.f32 %v2364, 0.0
        %v2397 = vmax.f32 %v2365, 0.0
        %v2398 = vmax.f32 %v2366, 0.0
        %v2399 = vmax.f32 %v2367, 0.0
        %v2400 = vmax.f32 %v2368, 0.0
        %v2401 = vmax.f32 %v2369, 0.0
        %v2402 = vmax.f32 %v2370, 0.0
        %v2403 = vmax.f32 %v2371, 0.0
        %v2404 = vmax.f32 %v2372, 0.0
        %v2405 = vmax.f32 %v2373, 0.0
        %v2406 = vmax.f32 %v2374, 0.0
        %v2407 = vmax.f32 %v2375, 0.0
        %v2408 = vmax.f32 %v2376, 0.0
        %v2409 = vmax.f32 %v2377, 0.0
        %v2410 = vmax.f32 %v2378, 0.0
        %v2411 = vmax.f32 %v2379, 0.0
        %v2412 = vmax.f32 %v2380, 0.0
        %v2413 = vmax.f32 %v2381, 0.0
        %v2414 = vmax.f32 %v2382, 0.0
        %v2415 = vmax.f32 %v2383, 0.0
        %v2416 = vmax.f32 %v2384, 0.0
        %v2417 = vmax.f32 %v2385, 0.0
        %v2418 = vmax.f32 %v2386, 0.0
        %v2419 = vmax.f32 %v2387, 0.0
        %v2420 = vmax.f32 %v2388, 0.0
        %v2421 = vmax.f32 %v2389, 0.0
        %v2422 = vmax.f32 %v2390, 0.0
        %v2423 = vmax.f32 %v2391, 0.0
        %v2424 = vmax.f32 %v2392, 0.0
        %v2425 = vpack.c.bf16 %v2394, %v2393
        %v2426 = vpack.c.bf16 %v2396, %v2395
        %v2427 = vpack.c.bf16 %v2398, %v2397
        %v2428 = vpack.c.bf16 %v2400, %v2399
        %v2429 = vpack.c.bf16 %v2402, %v2401
        %v2430 = vpack.c.bf16 %v2404, %v2403
        %v2431 = vpack.c.bf16 %v2406, %v2405
        %v2432 = vpack.c.bf16 %v2408, %v2407
        %v2433 = vpack.c.bf16 %v2410, %v2409
        %v2434 = vpack.c.bf16 %v2412, %v2411
        %v2435 = vpack.c.bf16 %v2414, %v2413
        %v2436 = vpack.c.bf16 %v2416, %v2415
        %v2437 = vpack.c.bf16 %v2418, %v2417
        %v2438 = vpack.c.bf16 %v2420, %v2419
        %v2439 = vpack.c.bf16 %v2422, %v2421
        %v2440 = vpack.c.bf16 %v2424, %v2423
        %v2441 = vld [vmem:[%s7] sm:$0xf]
        %v2442 = vld [vmem:[%s7 + $0x4] sm:$0xf]
        %v2443 = vld [vmem:[%s7 + $0x8] sm:$0xf]
        %v2444 = vld [vmem:[%s7 + $0xc] sm:$0xf]
        %v2445 = vld [vmem:[%s8] sm:$0x1]
        %v2447 = vlaneseq
        %v2448 = vshrl.u32 %v2447, 7
        %v2449 = vsub.s32 0, %v2448
        %v2450 = vrot.slane %v2445, %v2449
        %v2456 = vunpack.c.l.b16 %v2441
        %v2457 = vunpack.c.l.b16 %v2442
        %v2458 = vunpack.c.l.b16 %v2443
        %v2459 = vunpack.c.l.b16 %v2444
        %v2460 = vpack.c.b16 %v2457, %v2456
        %v2461 = vpack.c.b16 %v2459, %v2458
        %v2465 = vsel %vm1564, %v2425, 0
        %v2468 = vsel %vm1564, %v2426, 0
        %v2471 = vsel %vm1564, %v2427, 0
        %v2474 = vsel %vm1564, %v2428, 0
        %v2477 = vsel %vm1564, %v2429, 0
        %v2480 = vsel %vm1564, %v2430, 0
        %v2483 = vsel %vm1564, %v2431, 0
        %v2486 = vsel %vm1564, %v2432, 0
        %v2489 = vsel %vm1564, %v2433, 0
        %v2492 = vsel %vm1564, %v2434, 0
        %v2495 = vsel %vm1564, %v2435, 0
        %v2498 = vsel %vm1564, %v2436, 0
        %v2501 = vsel %vm1564, %v2437, 0
        %v2504 = vsel %vm1564, %v2438, 0
        %v2507 = vsel %vm1564, %v2439, 0
        %v2510 = vsel %vm1564, %v2440, 0
        %2512 = vmatprep.subr.bf16.mxu0 0
        %2513 = vmatpush1.bf16.msra.mxu0 0
        %2514 = vmatprep.subr.bf16.mxu0 0
        %2515 = vmatpush1.bf16.msra.mxu0 0
        %2516 = vmatprep.subr.bf16.mxu0 0
        %2517 = vmatpush1.bf16.msra.mxu0 0
        %2518 = vmatprep.subr.bf16.mxu0 0
        %2519 = vmatpush1.bf16.msra.mxu0 0
        %2520 = vmatprep.subr.bf16.mxu0 0
        %2521 = vmatpush1.bf16.msra.mxu0 0
        %2522 = vmatprep.subr.bf16.mxu0 0
        %2523 = vmatpush1.bf16.msra.mxu0 0
        %2524 = vmatprep.subr.bf16.mxu0 0
        %2525 = vmatpush1.bf16.msra.mxu0 %v2461
        %2526 = vmatprep.subr.bf16.mxu0 0
        %2527 = vmatpush1.bf16.msra.mxu0 %v2460
        %2528 = vmatprep.subr.bf16.mxu0 0
        %2529 = vmatpush2.bf16.msra.mxu0 0
        %2530 = vmatprep.subr.bf16.mxu0 0
        %2531 = vmatpush2.bf16.msra.mxu0 0
        %2532 = vmatprep.subr.bf16.mxu0 0
        %2533 = vmatpush2.bf16.msra.mxu0 0
        %2534 = vmatprep.subr.bf16.mxu0 0
        %2535 = vmatpush2.bf16.msra.mxu0 0
        %2536 = vmatprep.subr.bf16.mxu0 0
        %2537 = vmatpush2.bf16.msra.mxu0 0
        %2538 = vmatprep.subr.bf16.mxu0 0
        %2539 = vmatpush2.bf16.msra.mxu0 0
        %2540 = vmatprep.subr.bf16.mxu0 0
        %2541 = vmatpush2.bf16.msra.mxu0 0
        %2542 = vmatprep.subr.bf16.mxu0 0
        %2543 = vmatpush2.bf16.msra.mxu0 0
        %2544 = vmatprep.mubr.bf16.mxu0 0
        %2545 = vmatmul.mubr.bf16.gmra.mxu0 %v2465
        %v2546 = vpop.f32.mrf.mxu0
        %v2547 = vadd.f32 %v2450, %v2546
        %v2548 = vpop.f32.mrf.mxu0
        %v2549 = vpop.f32.mrf.mxu0
        %v2550 = vadd.f32 %v2450, %v2549
        %v2551 = vpop.f32.mrf.mxu0
        %2552 = vmatprep.mubr.bf16.mxu0 0
        %2553 = vmatmul.mubr.bf16.gmra.mxu0 %v2468
        %v2554 = vpop.f32.mrf.mxu0
        %v2555 = vadd.f32 %v2450, %v2554
        %v2556 = vpop.f32.mrf.mxu0
        %v2557 = vpop.f32.mrf.mxu0
        %v2558 = vadd.f32 %v2450, %v2557
        %v2559 = vpop.f32.mrf.mxu0
        %2560 = vmatprep.mubr.bf16.mxu0 0
        %2561 = vmatmul.mubr.bf16.gmra.mxu0 %v2471
        %v2562 = vpop.f32.mrf.mxu0
        %v2563 = vadd.f32 %v2450, %v2562
        %v2564 = vpop.f32.mrf.mxu0
        %v2565 = vpop.f32.mrf.mxu0
        %v2566 = vadd.f32 %v2450, %v2565
        %v2567 = vpop.f32.mrf.mxu0
        %2568 = vmatprep.mubr.bf16.mxu0 0
        %2569 = vmatmul.mubr.bf16.gmra.mxu0 %v2474
        %v2570 = vpop.f32.mrf.mxu0
        %v2571 = vadd.f32 %v2450, %v2570
        %v2572 = vpop.f32.mrf.mxu0
        %v2573 = vpop.f32.mrf.mxu0
        %v2574 = vadd.f32 %v2450, %v2573
        %v2575 = vpop.f32.mrf.mxu0
        %2576 = vmatprep.mubr.bf16.mxu0 0
        %2577 = vmatmul.mubr.bf16.gmra.mxu0 %v2477
        %v2578 = vpop.f32.mrf.mxu0
        %v2579 = vadd.f32 %v2450, %v2578
        %v2580 = vpop.f32.mrf.mxu0
        %v2581 = vpop.f32.mrf.mxu0
        %v2582 = vadd.f32 %v2450, %v2581
        %v2583 = vpop.f32.mrf.mxu0
        %2584 = vmatprep.mubr.bf16.mxu0 0
        %2585 = vmatmul.mubr.bf16.gmra.mxu0 %v2480
        %v2586 = vpop.f32.mrf.mxu0
        %v2587 = vadd.f32 %v2450, %v2586
        %v2588 = vpop.f32.mrf.mxu0
        %v2589 = vpop.f32.mrf.mxu0
        %v2590 = vadd.f32 %v2450, %v2589
        %v2591 = vpop.f32.mrf.mxu0
        %2592 = vmatprep.mubr.bf16.mxu0 0
        %2593 = vmatmul.mubr.bf16.gmra.mxu0 %v2483
        %v2594 = vpop.f32.mrf.mxu0
        %v2595 = vadd.f32 %v2450, %v2594
        %v2596 = vpop.f32.mrf.mxu0
        %v2597 = vpop.f32.mrf.mxu0
        %v2598 = vadd.f32 %v2450, %v2597
        %v2599 = vpop.f32.mrf.mxu0
        %2600 = vmatprep.mubr.bf16.mxu0 0
        %2601 = vmatmul.mubr.bf16.gmra.mxu0 %v2486
        %v2602 = vpop.f32.mrf.mxu0
        %v2603 = vadd.f32 %v2450, %v2602
        %v2604 = vpop.f32.mrf.mxu0
        %v2605 = vpop.f32.mrf.mxu0
        %v2606 = vadd.f32 %v2450, %v2605
        %v2607 = vpop.f32.mrf.mxu0
        %2608 = vmatprep.mubr.bf16.mxu0 0
        %2609 = vmatmul.mubr.bf16.gmra.mxu0 %v2489
        %v2610 = vpop.f32.mrf.mxu0
        %v2611 = vadd.f32 %v2450, %v2610
        %v2612 = vpop.f32.mrf.mxu0
        %v2613 = vpop.f32.mrf.mxu0
        %v2614 = vadd.f32 %v2450, %v2613
        %v2615 = vpop.f32.mrf.mxu0
        %2616 = vmatprep.mubr.bf16.mxu0 0
        %2617 = vmatmul.mubr.bf16.gmra.mxu0 %v2492
        %v2618 = vpop.f32.mrf.mxu0
        %v2619 = vadd.f32 %v2450, %v2618
        %v2620 = vpop.f32.mrf.mxu0
        %v2621 = vpop.f32.mrf.mxu0
        %v2622 = vadd.f32 %v2450, %v2621
        %v2623 = vpop.f32.mrf.mxu0
        %2624 = vmatprep.mubr.bf16.mxu0 0
        %2625 = vmatmul.mubr.bf16.gmra.mxu0 %v2495
        %v2626 = vpop.f32.mrf.mxu0
        %v2627 = vadd.f32 %v2450, %v2626
        %v2628 = vpop.f32.mrf.mxu0
        %v2629 = vpop.f32.mrf.mxu0
        %v2630 = vadd.f32 %v2450, %v2629
        %v2631 = vpop.f32.mrf.mxu0
        %2632 = vmatprep.mubr.bf16.mxu0 0
        %2633 = vmatmul.mubr.bf16.gmra.mxu0 %v2498
        %v2634 = vpop.f32.mrf.mxu0
        %v2635 = vadd.f32 %v2450, %v2634
        %v2636 = vpop.f32.mrf.mxu0
        %v2637 = vpop.f32.mrf.mxu0
        %v2638 = vadd.f32 %v2450, %v2637
        %v2639 = vpop.f32.mrf.mxu0
        %2640 = vmatprep.mubr.bf16.mxu0 0
        %2641 = vmatmul.mubr.bf16.gmra.mxu0 %v2501
        %v2642 = vpop.f32.mrf.mxu0
        %v2643 = vadd.f32 %v2450, %v2642
        %v2644 = vpop.f32.mrf.mxu0
        %v2645 = vpop.f32.mrf.mxu0
        %v2646 = vadd.f32 %v2450, %v2645
        %v2647 = vpop.f32.mrf.mxu0
        %2648 = vmatprep.mubr.bf16.mxu0 0
        %2649 = vmatmul.mubr.bf16.gmra.mxu0 %v2504
        %v2650 = vpop.f32.mrf.mxu0
        %v2651 = vadd.f32 %v2450, %v2650
        %v2652 = vpop.f32.mrf.mxu0
        %v2653 = vpop.f32.mrf.mxu0
        %v2654 = vadd.f32 %v2450, %v2653
        %v2655 = vpop.f32.mrf.mxu0
        %2656 = vmatprep.mubr.bf16.mxu0 0
        %2657 = vmatmul.mubr.bf16.gmra.mxu0 %v2507
        %v2658 = vpop.f32.mrf.mxu0
        %v2659 = vadd.f32 %v2450, %v2658
        %v2660 = vpop.f32.mrf.mxu0
        %v2661 = vpop.f32.mrf.mxu0
        %v2662 = vadd.f32 %v2450, %v2661
        %v2663 = vpop.f32.mrf.mxu0
        %2664 = vmatprep.mubr.bf16.mxu0 0
        %2665 = vmatmul.mubr.bf16.gmra.mxu0 %v2510
        %v2666 = vpop.f32.mrf.mxu0
        %v2667 = vadd.f32 %v2450, %v2666
        %v2668 = vpop.f32.mrf.mxu0
        %v2669 = vpop.f32.mrf.mxu0
        %v2670 = vadd.f32 %v2450, %v2669
        %v2671 = vpop.f32.mrf.mxu0
        %2672 = vdwg.mxu0
        %v2673 = vmax.f32 %v2547, 0.0
        %v2674 = vmax.f32 %v2550, 0.0
        %v2675 = vmax.f32 %v2555, 0.0
        %v2676 = vmax.f32 %v2558, 0.0
        %v2677 = vmax.f32 %v2563, 0.0
        %v2678 = vmax.f32 %v2566, 0.0
        %v2679 = vmax.f32 %v2571, 0.0
        %v2680 = vmax.f32 %v2574, 0.0
        %v2681 = vmax.f32 %v2579, 0.0
        %v2682 = vmax.f32 %v2582, 0.0
        %v2683 = vmax.f32 %v2587, 0.0
        %v2684 = vmax.f32 %v2590, 0.0
        %v2685 = vmax.f32 %v2595, 0.0
        %v2686 = vmax.f32 %v2598, 0.0
        %v2687 = vmax.f32 %v2603, 0.0
        %v2688 = vmax.f32 %v2606, 0.0
        %v2689 = vmax.f32 %v2611, 0.0
        %v2690 = vmax.f32 %v2614, 0.0
        %v2691 = vmax.f32 %v2619, 0.0
        %v2692 = vmax.f32 %v2622, 0.0
        %v2693 = vmax.f32 %v2627, 0.0
        %v2694 = vmax.f32 %v2630, 0.0
        %v2695 = vmax.f32 %v2635, 0.0
        %v2696 = vmax.f32 %v2638, 0.0
        %v2697 = vmax.f32 %v2643, 0.0
        %v2698 = vmax.f32 %v2646, 0.0
        %v2699 = vmax.f32 %v2651, 0.0
        %v2700 = vmax.f32 %v2654, 0.0
        %v2701 = vmax.f32 %v2659, 0.0
        %v2702 = vmax.f32 %v2662, 0.0
        %v2703 = vmax.f32 %v2667, 0.0
        %v2704 = vmax.f32 %v2670, 0.0
        %v2705 = vpack.c.bf16 %v2674, %v2673
        %v2706 = vpack.c.bf16 %v2676, %v2675
        %v2707 = vpack.c.bf16 %v2678, %v2677
        %v2708 = vpack.c.bf16 %v2680, %v2679
        %v2709 = vpack.c.bf16 %v2682, %v2681
        %v2710 = vpack.c.bf16 %v2684, %v2683
        %v2711 = vpack.c.bf16 %v2686, %v2685
        %v2712 = vpack.c.bf16 %v2688, %v2687
        %v2713 = vpack.c.bf16 %v2690, %v2689
        %v2714 = vpack.c.bf16 %v2692, %v2691
        %v2715 = vpack.c.bf16 %v2694, %v2693
        %v2716 = vpack.c.bf16 %v2696, %v2695
        %v2717 = vpack.c.bf16 %v2698, %v2697
        %v2718 = vpack.c.bf16 %v2700, %v2699
        %v2719 = vpack.c.bf16 %v2702, %v2701
        %v2720 = vpack.c.bf16 %v2704, %v2703
        %v2737 = vunpack.c.l.b16 %v2705
        %v2738 = vunpack.c.h.b16 %v2705
        %v2739 = vunpack.c.l.b16 %v2706
        %v2740 = vunpack.c.h.b16 %v2706
        %v2741 = vunpack.c.l.b16 %v2707
        %v2742 = vunpack.c.h.b16 %v2707
        %v2743 = vunpack.c.l.b16 %v2708
        %v2744 = vunpack.c.h.b16 %v2708
        %v2745 = vunpack.c.l.b16 %v2709
        %v2746 = vunpack.c.h.b16 %v2709
        %v2747 = vunpack.c.l.b16 %v2710
        %v2748 = vunpack.c.h.b16 %v2710
        %v2749 = vunpack.c.l.b16 %v2711
        %v2750 = vunpack.c.h.b16 %v2711
        %v2751 = vunpack.c.l.b16 %v2712
        %v2752 = vunpack.c.h.b16 %v2712
        %v2753 = vunpack.c.l.b16 %v2713
        %v2754 = vunpack.c.h.b16 %v2713
        %v2755 = vunpack.c.l.b16 %v2714
        %v2756 = vunpack.c.h.b16 %v2714
        %v2757 = vunpack.c.l.b16 %v2715
        %v2758 = vunpack.c.h.b16 %v2715
        %v2759 = vunpack.c.l.b16 %v2716
        %v2760 = vunpack.c.h.b16 %v2716
        %v2761 = vunpack.c.l.b16 %v2717
        %v2762 = vunpack.c.h.b16 %v2717
        %v2763 = vunpack.c.l.b16 %v2718
        %v2764 = vunpack.c.h.b16 %v2718
        %v2765 = vunpack.c.l.b16 %v2719
        %v2766 = vunpack.c.h.b16 %v2719
        %v2767 = vunpack.c.l.b16 %v2720
        %v2768 = vunpack.c.h.b16 %v2720
        %v2769 = vpack.c.b16 %v2737, %v2737
        %v2770 = vpack.c.b16 %v2738, %v2738
        %v2771 = vpack.c.b16 %v2739, %v2739
        %v2772 = vpack.c.b16 %v2740, %v2740
        %v2773 = vpack.c.b16 %v2741, %v2741
        %v2774 = vpack.c.b16 %v2742, %v2742
        %v2775 = vpack.c.b16 %v2743, %v2743
        %v2776 = vpack.c.b16 %v2744, %v2744
        %v2777 = vpack.c.b16 %v2745, %v2745
        %v2778 = vpack.c.b16 %v2746, %v2746
        %v2779 = vpack.c.b16 %v2747, %v2747
        %v2780 = vpack.c.b16 %v2748, %v2748
        %v2781 = vpack.c.b16 %v2749, %v2749
        %v2782 = vpack.c.b16 %v2750, %v2750
        %v2783 = vpack.c.b16 %v2751, %v2751
        %v2784 = vpack.c.b16 %v2752, %v2752
        %v2785 = vpack.c.b16 %v2753, %v2753
        %v2786 = vpack.c.b16 %v2754, %v2754
        %v2787 = vpack.c.b16 %v2755, %v2755
        %v2788 = vpack.c.b16 %v2756, %v2756
        %v2789 = vpack.c.b16 %v2757, %v2757
        %v2790 = vpack.c.b16 %v2758, %v2758
        %v2791 = vpack.c.b16 %v2759, %v2759
        %v2792 = vpack.c.b16 %v2760, %v2760
        %v2793 = vpack.c.b16 %v2761, %v2761
        %v2794 = vpack.c.b16 %v2762, %v2762
        %v2795 = vpack.c.b16 %v2763, %v2763
        %v2796 = vpack.c.b16 %v2764, %v2764
        %v2797 = vpack.c.b16 %v2765, %v2765
        %v2798 = vpack.c.b16 %v2766, %v2766
        %v2799 = vpack.c.b16 %v2767, %v2767
        %v2800 = vpack.c.b16 %v2768, %v2768
        %2833 = vst.msk [vmem:[%s442] sm:$0xf] %vm1062, %v2769
        %2834 = vst.msk [vmem:[%s442 + $0x4] sm:$0xf] %vm1062, %v2770
        %2835 = vst.msk [vmem:[%s442 + $0x8] sm:$0xf] %vm1062, %v2771
        %2836 = vst.msk [vmem:[%s442 + $0xc] sm:$0xf] %vm1062, %v2772
        %2837 = vst.msk [vmem:[%s442 + $0x10] sm:$0xf] %vm1062, %v2773
        %2838 = vst.msk [vmem:[%s442 + $0x14] sm:$0xf] %vm1062, %v2774
        %2839 = vst.msk [vmem:[%s442 + $0x18] sm:$0xf] %vm1062, %v2775
        %2840 = vst.msk [vmem:[%s442 + $0x1c] sm:$0xf] %vm1062, %v2776
        %2841 = vst.msk [vmem:[%s442 + $0x20] sm:$0xf] %vm1062, %v2777
        %2842 = vst.msk [vmem:[%s442 + $0x24] sm:$0xf] %vm1062, %v2778
        %2843 = vst.msk [vmem:[%s442 + $0x28] sm:$0xf] %vm1062, %v2779
        %2844 = vst.msk [vmem:[%s442 + $0x2c] sm:$0xf] %vm1062, %v2780
        %2845 = vst.msk [vmem:[%s442 + $0x30] sm:$0xf] %vm1062, %v2781
        %2846 = vst.msk [vmem:[%s442 + $0x34] sm:$0xf] %vm1062, %v2782
        %2847 = vst.msk [vmem:[%s442 + $0x38] sm:$0xf] %vm1062, %v2783
        %2848 = vst.msk [vmem:[%s442 + $0x3c] sm:$0xf] %vm1062, %v2784
        %2849 = vst.msk [vmem:[%s442 + $0x40] sm:$0xf] %vm1062, %v2785
        %2850 = vst.msk [vmem:[%s442 + $0x44] sm:$0xf] %vm1062, %v2786
        %2851 = vst.msk [vmem:[%s442 + $0x48] sm:$0xf] %vm1062, %v2787
        %2852 = vst.msk [vmem:[%s442 + $0x4c] sm:$0xf] %vm1062, %v2788
        %2853 = vst.msk [vmem:[%s442 + $0x50] sm:$0xf] %vm1062, %v2789
        %2854 = vst.msk [vmem:[%s442 + $0x54] sm:$0xf] %vm1062, %v2790
        %2855 = vst.msk [vmem:[%s442 + $0x58] sm:$0xf] %vm1062, %v2791
        %2856 = vst.msk [vmem:[%s442 + $0x5c] sm:$0xf] %vm1062, %v2792
        %2857 = vst.msk [vmem:[%s442 + $0x60] sm:$0xf] %vm1062, %v2793
        %2858 = vst.msk [vmem:[%s442 + $0x64] sm:$0xf] %vm1062, %v2794
        %2859 = vst.msk [vmem:[%s442 + $0x68] sm:$0xf] %vm1062, %v2795
        %2860 = vst.msk [vmem:[%s442 + $0x6c] sm:$0xf] %vm1062, %v2796
        %2861 = vst.msk [vmem:[%s442 + $0x70] sm:$0xf] %vm1062, %v2797
        %2862 = vst.msk [vmem:[%s442 + $0x74] sm:$0xf] %vm1062, %v2798
        %2863 = vst.msk [vmem:[%s442 + $0x78] sm:$0xf] %vm1062, %v2799
        %2864 = vst.msk [vmem:[%s442 + $0x7c] sm:$0xf] %vm1062, %v2800
        %s2865 = sand.u32 %s271, 1
        %s2866 = scalar_lea.sflag [#allocation4], %s2865
        %s2867 = sand.u32 %s271, 1
        %s2868 = smul.addr %s2867, 128
        %s2869 = scalar_lea.vmem [#allocation3], %s2868
        // Predicated region
        $region61: #{_lambda_.5} parent=55 // pred_check
          %p2870 = pneg %p281
        $region62: #{_lambda_.5} parent=55 // pred_check_branch
          %2872 = sbr.rel (%p2870) target = $region64
        $region63: #{_lambda_.5} parent=55 // pred_region
          %s2873 = smul.u32 16, %s28
          %s2875 = ssub.s32 2048, 2048
          %2876 = vsyncadd %s2866, %s2875
          %s2877 = smul.addr %s2873, 2
          %s2878 = smul.addr %s27, 32
          %s2879 = sadd.s32 %s2877, %s2878
          %s2880 = smul.addr %s2879, 64
          %s2881 = scalar_lea.hbm %s9, %s2880
          %s2882 = sshll.u32 %s2869, 4
          %s2883 = int_to_ptr.vmem [resolvable:$true] %s2882
          %2888 = dma.vmem_to_hbm [thread:$0]  %s2883, 2048, %s2881, %s2866, 64, 64, 4
        $region64: #{_lambda_.5} parent=55 // pred_fallthru
          _
      $region56: #{_lambda_.5} parent=5 // pred_fallthru
        _
      %p2889 = scmp.le.s32.totalorder 2, %s18
      // Predicated region
      $region65: #{_lambda_.5} parent=5 // pred_check
        %p2890 = pneg %p2889
      $region66: #{_lambda_.5} parent=5 // pred_check_branch
        %2892 = sbr.rel (%p2890) target = $region68
      $region67: #{_lambda_.5} parent=5 // pred_region
        %s2893 = ssub.s32 %s18, 2
        // Predicated region
        $region69: #{_lambda_.5} parent=67 // pred_check
          %p2894 = pneg %p287
        $region70: #{_lambda_.5} parent=67 // pred_check_branch
          %2896 = sbr.rel (%p2894) target = $region72
        $region71: #{_lambda_.5} parent=67 // pred_region
          %s2897 = sand.u32 %s272, 1
          %s2898 = scalar_lea.sflag [#allocation4], %s2897
          %s2899 = sand.u32 %s272, 1
          %s2900 = smul.addr %s2899, 128
          %s2901 = scalar_lea.vmem [#allocation3], %s2900
          %2902 = dma.done %s2898, 2048
        $region72: #{_lambda_.5} parent=67 // pred_fallthru
          _
      $region68: #{_lambda_.5} parent=5 // pred_fallthru
        _
    $region6: #{_lambda_.5} parent=1 // loop_footer
      %s22 = sadd.s32 1, %s18
    $region7: #{_lambda_.5} parent=1 // loop_footer_branch
      %17 = sbr.rel target = $region3
    $region8: #{_lambda_.5} parent=1 // loop_exit
      _
    %2903 = vsyncpa [#allocation4], 1
    %s2904 = scalar_lea.sflag [#allocation4], 1
    %2905 = vsyncpa %s2904, 1

</llo_original>
